<compile_context>
chip_gen: v7x
topology: tpu7x:2x2x1
jax: 0.10.0
libtpu: 0.0.40
codegen_flags: <defaults>
</compile_context>

<pallas_src>
import math
import functools

import jax
import jax.numpy as jnp
from jax.experimental import pallas as pl
from jax.experimental.pallas import tpu as pltpu

# ---- module hyper-parameters (fixed by the PyTorch module) ------------------
PATCH = 4
D_MODEL = 64
MLP_DIM = 128
NUM_CLASSES = 10
NUM_HEADS = 4
NUM_LAYERS = 4
IMG_SIZE = 32
CHANNELS = 3
NUM_PATCHES = (IMG_SIZE // PATCH) ** 2          # 64
PATCH_DIM = PATCH * PATCH * CHANNELS            # 48
HEAD_DIM = D_MODEL // NUM_HEADS                 # 16
LOGITS_PAD = 128                                # lane-dense padded logits width


# ---- glue: PyTorch create_patches, reproduced with reshape/transpose --------
def create_patches_jax(images, p):
    B, C, H, W = images.shape
    x = images.reshape(B, C, H // p, p, W // p, p)
    x = x.transpose(0, 1, 2, 4, 3, 5)                       # (B,C,H/p,W/p,p,p)
    x = x.reshape(B, C, (H // p) * (W // p), p * p)         # (B,C,Np,p*p)
    x = x.transpose(0, 2, 3, 1)                             # (B,Np,p*p,C)
    return x.reshape(B, (H // p) * (W // p), p * p * C)     # (B,Np,p*p*C)


# ---- in-kernel helpers -------------------------------------------------------
def _layer_norm(x, w, b, eps=1e-5):
    mu = jnp.mean(x, axis=-1, keepdims=True)
    var = jnp.mean((x - mu) ** 2, axis=-1, keepdims=True)
    return (x - mu) * jax.lax.rsqrt(var + eps) * w + b


# ---- the fused ViT kernel ----------------------------------------------------
def vit_kernel(B,
               patches_ref,    # (B*N, 64)    bf16   patch-dim zero-padded 48->64
               posb_ref,       # (B*N, 64)    f32    tiled pos-emb + patch-emb bias
               avg_ref,        # (B, B*N)     bf16   mean-over-patches matrix
               w64_ref,        # (L+2,64,64)  bf16   [pe_w_pad, head_bcast, Wo x L]
               qkvw_ref,       # (L, 64,192)  bf16   fused [Wq*scale | Wk | Wv]
               w1_ref,         # (L+1,64,128) bf16   [linear1 x L, head linear1]
               w2_ref,         # (L+1,128,128)bf16   [linear2 x L (col-pad), head linear2 (col-pad)]
               vec64_ref,      # (L+1, 9, 64) f32    per-layer / head 64-wide vectors
               vec128_ref,     # (L+1, 2,128) f32    per-layer / head 128-wide vectors
               out_ref):       # (B, 128)     f32    padded logits
    N, D, L = NUM_PATCHES, D_MODEL, NUM_LAYERS
    f32, bf16 = jnp.float32, jnp.bfloat16

    pe_w = w64_ref[0]            # (D, D) rows >= PATCH_DIM are zero
    head_bcast = w64_ref[1]      # (D, D) block-diagonal: 1 iff same head

    # ---- patch embedding + position embedding (bias folded in wrapper) ----
    x = jnp.dot(patches_ref[...], pe_w, preferred_element_type=f32) + posb_ref[...]

    for l in range(L):
        lv = vec64_ref[l]                                   # (9, D) f32
        qb, kb, vb, ob = lv[0:1], lv[1:2], lv[2:3], lv[3:4]
        n1w, n1b, n2w, n2b = lv[4:5], lv[5:6], lv[6:7], lv[7:8]
        l2b = lv[8:9]
        l1b = vec128_ref[l][0:1]                            # (1, MLP_DIM) f32

        # --- fused QKV projection: one (B*N, D) @ (D, 3D) bf16 matmul ---
        xb = x.astype(bf16)
        qkv = jnp.dot(xb, qkvw_ref[l], preferred_element_type=f32)   # (B*N, 3D)
        q = qkv[:, 0:D] + qb            # scale already folded into Wq / bq
        k = qkv[:, D:2 * D] + kb
        v = qkv[:, 2 * D:3 * D] + vb

        # --- self-attention over the image-batch axis (batch_first=False) ---
        # One MXU dot for all (i, j) pairs.  Row ((i*B + j)*N + n, d) of `s`
        # holds sum_{d' in head(d)} q[i,n,d'] * k[j,n,d'] broadcast across the
        # 16 lanes of that head.
        q_rep = jnp.concatenate(
            [q[i * N:(i + 1) * N] for i in range(B) for _ in range(B)], axis=0)
        k_rep = jnp.concatenate([k] * B, axis=0)
        s = jnp.dot((q_rep * k_rep).astype(bf16), head_bcast,
                    preferred_element_type=f32)              # (B*B*N, D)

        out_blocks = []
        for i in range(B):                       # query "sequence" index (len B)
            sij = [s[(i * B + j) * N:(i * B + j + 1) * N] for j in range(B)]
            m = sij[0]
            for j in range(1, B):
                m = jnp.maximum(m, sij[j])
            e = [jnp.exp(t - m) for t in sij]
            denom = e[0]
            for j in range(1, B):
                denom = denom + e[j]
            inv = pl.reciprocal(denom, approx=True)          # EUP, off the VALU
            o = (e[0] * inv) * v[0:N]
            for j in range(1, B):
                o = o + (e[j] * inv) * v[j * N:(j + 1) * N]
            out_blocks.append(o)                              # (N, D)
        attn = jnp.concatenate(out_blocks, axis=0)            # (B*N, D)

        attn = jnp.dot(attn.astype(bf16), w64_ref[2 + l],
                       preferred_element_type=f32) + ob
        x = _layer_norm(x + attn, n1w, n1b)

        # --- feed-forward block ---
        ff = jnp.dot(x.astype(bf16), w1_ref[l], preferred_element_type=f32) + l1b
        ff = jnp.maximum(ff, 0.0)
        ff = jnp.dot(ff.astype(bf16), w2_ref[l][:, 0:D],
                     preferred_element_type=f32) + l2b
        x = _layer_norm(x + ff, n2w, n2b)

    # --- mean over patches (dim=1 of (B, N, D)) as one MXU dot ---
    pooled = jnp.dot(avg_ref[...], x.astype(bf16), preferred_element_type=f32)

    # --- MLP head: LayerNorm -> Linear -> ReLU -> Linear (lane-padded) ---
    hv = vec64_ref[L]
    hlnw, hlnb = hv[0:1], hv[1:2]
    hb = vec128_ref[L]
    h1b, h2b = hb[0:1], hb[1:2]

    h = _layer_norm(pooled, hlnw, hlnb)
    h = jnp.dot(h.astype(bf16), w1_ref[L], preferred_element_type=f32) + h1b
    h = jnp.maximum(h, 0.0)
    logits = jnp.dot(h.astype(bf16), w2_ref[L], preferred_element_type=f32) + h2b
    out_ref[...] = logits                                     # (B, 128)


# ---- parameter initialization (deterministic, synthetic) ---------------------
def init_params(key):
    ks = jax.random.split(key, 20)

    def w(k, shape):
        return (0.02 * jax.random.normal(k, shape)).astype(jnp.float32)

    L, D, F = NUM_LAYERS, D_MODEL, MLP_DIM
    scale = 1.0 / math.sqrt(HEAD_DIM)      # 0.25: exact in bf16/f32
    p = {}

    # Position embedding & patch-embed bias stay f32; folded in the wrapper.
    p['pos'] = w(ks[0], (NUM_PATCHES, D))
    p['pe_b'] = w(ks[1], (1, D))

    # w64: [pe_w (rows padded 48->64), head_bcast, out_proj x L]
    pe_w = jnp.pad(w(ks[2], (PATCH_DIM, D)), ((0, D - PATCH_DIM), (0, 0)))
    r = jax.lax.broadcasted_iota(jnp.int32, (D, D), 0) // HEAD_DIM
    c = jax.lax.broadcasted_iota(jnp.int32, (D, D), 1) // HEAD_DIM
    head_bcast = (r == c).astype(jnp.float32)
    ow = w(ks[3], (L, D, D))
    p['w64'] = jnp.concatenate(
        [pe_w[None], head_bcast[None], ow], axis=0).astype(jnp.bfloat16)

    # Fused QKV weight, stored (in, out) = (D, 3D). 1/sqrt(head_dim) folded
    # into the Q block (and qb below) — exact since scale is a power of two.
    # NOTE: real checkpoints must apply the same folding when loaded.
    qw = w(ks[4], (L, D, D)) * scale
    kw = w(ks[5], (L, D, D))
    vw = w(ks[6], (L, D, D))
    p['qkvw'] = jnp.concatenate([qw, kw, vw], axis=-1).astype(jnp.bfloat16)

    # w1: [linear1 x L, head linear1]   each (D, F)
    l1w = w(ks[7], (L, D, F))
    h1w = w(ks[8], (1, D, F))
    p['w1'] = jnp.concatenate([l1w, h1w], axis=0).astype(jnp.bfloat16)

    # w2: [linear2 x L (cols padded D->128), head linear2 (cols padded 10->128)]
    l2w = jnp.pad(w(ks[9], (L, F, D)), ((0, 0), (0, 0), (0, LOGITS_PAD - D)))
    h2w = jnp.pad(w(ks[10], (1, F, NUM_CLASSES)),
                  ((0, 0), (0, 0), (0, LOGITS_PAD - NUM_CLASSES)))
    p['w2'] = jnp.concatenate([l2w, h2w], axis=0).astype(jnp.bfloat16)

    # vec64: per layer [qb*scale, kb, vb, ob, ln1w, ln1b, ln2w, ln2b, l2b];
    # block L holds [head-LN weight, head-LN bias, zeros...].
    qb = w(ks[11], (L, 1, D)) * scale
    kb = w(ks[12], (L, 1, D))
    vb = w(ks[13], (L, 1, D))
    ob = w(ks[14], (L, 1, D))
    l2b = w(ks[15], (L, 1, D))
    ones = jnp.ones((L, 1, D), jnp.float32)
    zeros = jnp.zeros((L, 1, D), jnp.float32)
    layer_vec = jnp.concatenate(
        [qb, kb, vb, ob, ones, zeros, ones, zeros, l2b], axis=1)     # (L, 9, D)
    head_vec = jnp.concatenate(
        [jnp.ones((1, 1, D), jnp.float32), jnp.zeros((1, 8, D), jnp.float32)],
        axis=1)                                                      # (1, 9, D)
    head_vec = head_vec.at[0, 1].set(jnp.zeros((D,), jnp.float32))   # LN bias = 0
    p['vec64'] = jnp.concatenate([layer_vec, head_vec], axis=0)      # (L+1, 9, D)

    # vec128: per layer [l1b, zeros]; block L = [head linear1 bias, head linear2 bias (padded)]
    l1b = w(ks[16], (L, 1, F))
    layer_128 = jnp.concatenate([l1b, jnp.zeros((L, 1, F), jnp.float32)], axis=1)
    h1b = w(ks[17], (1, 1, F))
    h2b = jnp.pad(w(ks[18], (1, 1, NUM_CLASSES)),
                  ((0, 0), (0, 0), (0, LOGITS_PAD - NUM_CLASSES)))
    head_128 = jnp.concatenate([h1b, h2b], axis=1)
    p['vec128'] = jnp.concatenate([layer_128, head_128], axis=0)     # (L+1, 2, F)
    return p


# ---- wrapper -----------------------------------------------------------------
def vit_forward(x_nchw, params):
    B = x_nchw.shape[0]
    patches = create_patches_jax(x_nchw.astype(jnp.float32), PATCH)  # (B,N,48)
    patches_flat = patches.reshape(B * NUM_PATCHES, PATCH_DIM)
    patches_pad = jnp.pad(
        patches_flat, ((0, 0), (0, D_MODEL - PATCH_DIM))).astype(jnp.bfloat16)

    # Pre-tiled position embedding with the patch-embedding bias folded in.
    pos_bias = (jnp.tile(params['pos'], (B, 1)) + params['pe_b']).astype(jnp.float32)

    # Averaging matrix for mean-over-patches pooling (1/64 exact in bf16).
    row = jax.lax.broadcasted_iota(jnp.int32, (B, B * NUM_PATCHES), 0)
    col = jax.lax.broadcasted_iota(jnp.int32, (B, B * NUM_PATCHES), 1) // NUM_PATCHES
    avg_mat = ((row == col).astype(jnp.float32) *
               (1.0 / NUM_PATCHES)).astype(jnp.bfloat16)

    inputs = [patches_pad, pos_bias, avg_mat,
              params['w64'], params['qkvw'], params['w1'], params['w2'],
              params['vec64'], params['vec128']]

    kernel = functools.partial(vit_kernel, B)
    vmem_spec = pl.BlockSpec(memory_space=pltpu.MemorySpace.VMEM)
    padded = pl.pallas_call(
        kernel,
        out_shape=jax.ShapeDtypeStruct((B, LOGITS_PAD), jnp.float32),
        in_specs=[vmem_spec] * len(inputs),
        out_specs=vmem_spec,
        compiler_params=pltpu.CompilerParams(
            vmem_limit_bytes=32 * 1024 * 1024),
    )(*inputs)
    return padded[:, :NUM_CLASSES]


if __name__ == "__main__":
    key = jax.random.PRNGKey(0)
    k_in, k_param = jax.random.split(key)
    # input shape fixed by the module: (B, 3, 32, 32); keep batch small.
    x = jax.random.normal(k_in, (2, CHANNELS, IMG_SIZE, IMG_SIZE), jnp.float32)
    params = init_params(k_param)

    logits = vit_forward(x, params)
    logits = jax.block_until_ready(logits)
    assert logits.shape == (2, NUM_CLASSES)
    assert bool(jnp.all(jnp.isfinite(logits)))
    print("KERNEL_OK")
</pallas_src>

<mosaic_0001>
module attributes {stable_mosaic.version = 11 : i64} {
  func.func @vit_kernel(%arg0: memref<128x64xbf16, #tpu.memory_space<vmem>>, %arg1: memref<128x64xf32, #tpu.memory_space<vmem>>, %arg2: memref<2x128xbf16, #tpu.memory_space<vmem>>, %arg3: memref<6x64x64xbf16, #tpu.memory_space<vmem>>, %arg4: memref<4x64x192xbf16, #tpu.memory_space<vmem>>, %arg5: memref<5x64x128xbf16, #tpu.memory_space<vmem>>, %arg6: memref<5x128x128xbf16, #tpu.memory_space<vmem>>, %arg7: memref<5x9x64xf32, #tpu.memory_space<vmem>>, %arg8: memref<5x2x128xf32, #tpu.memory_space<vmem>>, %arg9: memref<2x128xf32, #tpu.memory_space<vmem>>) attributes {dimension_semantics = [], scalar_prefetch = 0 : i64, scratch_operands = 0 : i64, tpu.core_type = #tpu.core_type<tc>} {
    %c0 = arith.constant 0 : index
    %c0_0 = arith.constant 0 : index
    %c0_1 = arith.constant 0 : index
    %0 = vector.load %arg3[%c0, %c0_0, %c0_1] : memref<6x64x64xbf16, #tpu.memory_space<vmem>>, vector<1x64x64xbf16>
    %1 = vector.shape_cast %0 : vector<1x64x64xbf16> to vector<64x64xbf16>
    %c1 = arith.constant 1 : index
    %c0_2 = arith.constant 0 : index
    %c0_3 = arith.constant 0 : index
    %2 = vector.load %arg3[%c1, %c0_2, %c0_3] : memref<6x64x64xbf16, #tpu.memory_space<vmem>>, vector<1x64x64xbf16>
    %3 = vector.shape_cast %2 : vector<1x64x64xbf16> to vector<64x64xbf16>
    %c0_4 = arith.constant 0 : index
    %c0_5 = arith.constant 0 : index
    %4 = vector.load %arg0[%c0_4, %c0_5] : memref<128x64xbf16, #tpu.memory_space<vmem>>, vector<128x64xbf16>
    %cst = arith.constant dense<0.000000e+00> : vector<128x64xf32>
    %5 = tpu.matmul %4, %1, %cst {dimension_numbers = #tpu.dot_dimension_numbers<[1], [0], [0], [1], [0, 0, 1, 1], [], []>} : vector<128x64xbf16>, vector<64x64xbf16>, vector<128x64xf32> -> vector<128x64xf32>
    %c0_6 = arith.constant 0 : index
    %c0_7 = arith.constant 0 : index
    %6 = vector.load %arg1[%c0_6, %c0_7] : memref<128x64xf32, #tpu.memory_space<vmem>>, vector<128x64xf32>
    %7 = arith.addf %5, %6 : vector<128x64xf32>
    %c0_8 = arith.constant 0 : index
    %c0_9 = arith.constant 0 : index
    %c0_10 = arith.constant 0 : index
    %8 = vector.load %arg7[%c0_8, %c0_9, %c0_10] : memref<5x9x64xf32, #tpu.memory_space<vmem>>, vector<1x9x64xf32>
    %9 = vector.shape_cast %8 : vector<1x9x64xf32> to vector<9x64xf32>
    %10 = vector.extract_strided_slice %9 {offsets = [0, 0], sizes = [1, 64], strides = [1, 1]} : vector<9x64xf32> to vector<1x64xf32>
    %11 = vector.extract_strided_slice %9 {offsets = [1, 0], sizes = [1, 64], strides = [1, 1]} : vector<9x64xf32> to vector<1x64xf32>
    %12 = vector.extract_strided_slice %9 {offsets = [2, 0], sizes = [1, 64], strides = [1, 1]} : vector<9x64xf32> to vector<1x64xf32>
    %13 = vector.extract_strided_slice %9 {offsets = [3, 0], sizes = [1, 64], strides = [1, 1]} : vector<9x64xf32> to vector<1x64xf32>
    %14 = vector.extract_strided_slice %9 {offsets = [4, 0], sizes = [1, 64], strides = [1, 1]} : vector<9x64xf32> to vector<1x64xf32>
    %15 = vector.extract_strided_slice %9 {offsets = [5, 0], sizes = [1, 64], strides = [1, 1]} : vector<9x64xf32> to vector<1x64xf32>
    %16 = vector.extract_strided_slice %9 {offsets = [6, 0], sizes = [1, 64], strides = [1, 1]} : vector<9x64xf32> to vector<1x64xf32>
    %17 = vector.extract_strided_slice %9 {offsets = [7, 0], sizes = [1, 64], strides = [1, 1]} : vector<9x64xf32> to vector<1x64xf32>
    %18 = vector.extract_strided_slice %9 {offsets = [8, 0], sizes = [1, 64], strides = [1, 1]} : vector<9x64xf32> to vector<1x64xf32>
    %c0_11 = arith.constant 0 : index
    %c0_12 = arith.constant 0 : index
    %c0_13 = arith.constant 0 : index
    %19 = vector.load %arg8[%c0_11, %c0_12, %c0_13] : memref<5x2x128xf32, #tpu.memory_space<vmem>>, vector<1x2x128xf32>
    %20 = vector.shape_cast %19 : vector<1x2x128xf32> to vector<2x128xf32>
    %21 = vector.extract_strided_slice %20 {offsets = [0, 0], sizes = [1, 128], strides = [1, 1]} : vector<2x128xf32> to vector<1x128xf32>
    %22 = arith.truncf %7 : vector<128x64xf32> to vector<128x64xbf16>
    %c0_14 = arith.constant 0 : index
    %c0_15 = arith.constant 0 : index
    %c0_16 = arith.constant 0 : index
    %23 = vector.load %arg4[%c0_14, %c0_15, %c0_16] : memref<4x64x192xbf16, #tpu.memory_space<vmem>>, vector<1x64x192xbf16>
    %24 = vector.shape_cast %23 : vector<1x64x192xbf16> to vector<64x192xbf16>
    %cst_17 = arith.constant dense<0.000000e+00> : vector<128x192xf32>
    %25 = tpu.matmul %22, %24, %cst_17 {dimension_numbers = #tpu.dot_dimension_numbers<[1], [0], [0], [1], [0, 0, 1, 1], [], []>} : vector<128x64xbf16>, vector<64x192xbf16>, vector<128x192xf32> -> vector<128x192xf32>
    %26 = vector.extract_strided_slice %25 {offsets = [0, 0], sizes = [128, 64], strides = [1, 1]} : vector<128x192xf32> to vector<128x64xf32>
    %27 = vector.broadcast %10 : vector<1x64xf32> to vector<128x64xf32>
    %28 = arith.addf %26, %27 : vector<128x64xf32>
    %29 = vector.extract_strided_slice %25 {offsets = [0, 64], sizes = [128, 64], strides = [1, 1]} : vector<128x192xf32> to vector<128x64xf32>
    %30 = vector.broadcast %11 : vector<1x64xf32> to vector<128x64xf32>
    %31 = arith.addf %29, %30 : vector<128x64xf32>
    %32 = vector.extract_strided_slice %25 {offsets = [0, 128], sizes = [128, 64], strides = [1, 1]} : vector<128x192xf32> to vector<128x64xf32>
    %33 = vector.broadcast %12 : vector<1x64xf32> to vector<128x64xf32>
    %34 = arith.addf %32, %33 : vector<128x64xf32>
    %35 = vector.extract_strided_slice %28 {offsets = [0, 0], sizes = [64, 64], strides = [1, 1]} : vector<128x64xf32> to vector<64x64xf32>
    %36 = vector.extract_strided_slice %28 {offsets = [0, 0], sizes = [64, 64], strides = [1, 1]} : vector<128x64xf32> to vector<64x64xf32>
    %37 = vector.extract_strided_slice %28 {offsets = [64, 0], sizes = [64, 64], strides = [1, 1]} : vector<128x64xf32> to vector<64x64xf32>
    %38 = vector.extract_strided_slice %28 {offsets = [64, 0], sizes = [64, 64], strides = [1, 1]} : vector<128x64xf32> to vector<64x64xf32>
    %39 = tpu.concatenate %35, %36, %37, %38 in 0 : vector<64x64xf32>, vector<64x64xf32>, vector<64x64xf32>, vector<64x64xf32> -> vector<256x64xf32>
    %40 = tpu.concatenate %31, %31 in 0 : vector<128x64xf32>, vector<128x64xf32> -> vector<256x64xf32>
    %41 = arith.mulf %39, %40 : vector<256x64xf32>
    %42 = arith.truncf %41 : vector<256x64xf32> to vector<256x64xbf16>
    %cst_18 = arith.constant dense<0.000000e+00> : vector<256x64xf32>
    %43 = tpu.matmul %42, %3, %cst_18 {dimension_numbers = #tpu.dot_dimension_numbers<[1], [0], [0], [1], [0, 0, 1, 1], [], []>} : vector<256x64xbf16>, vector<64x64xbf16>, vector<256x64xf32> -> vector<256x64xf32>
    %44 = vector.extract_strided_slice %43 {offsets = [0, 0], sizes = [64, 64], strides = [1, 1]} : vector<256x64xf32> to vector<64x64xf32>
    %45 = vector.extract_strided_slice %43 {offsets = [64, 0], sizes = [64, 64], strides = [1, 1]} : vector<256x64xf32> to vector<64x64xf32>
    %46 = arith.maximumf %44, %45 : vector<64x64xf32>
    %47 = arith.subf %44, %46 : vector<64x64xf32>
    %48 = math.exp %47 : vector<64x64xf32>
    %49 = arith.subf %45, %46 : vector<64x64xf32>
    %50 = math.exp %49 : vector<64x64xf32>
    %51 = arith.addf %48, %50 : vector<64x64xf32>
    %52 = tpu.reciprocal %51 {approx = true} : vector<64x64xf32> -> vector<64x64xf32>
    %53 = arith.mulf %48, %52 : vector<64x64xf32>
    %54 = vector.extract_strided_slice %34 {offsets = [0, 0], sizes = [64, 64], strides = [1, 1]} : vector<128x64xf32> to vector<64x64xf32>
    %55 = arith.mulf %53, %54 : vector<64x64xf32>
    %56 = arith.mulf %50, %52 : vector<64x64xf32>
    %57 = vector.extract_strided_slice %34 {offsets = [64, 0], sizes = [64, 64], strides = [1, 1]} : vector<128x64xf32> to vector<64x64xf32>
    %58 = arith.mulf %56, %57 : vector<64x64xf32>
    %59 = arith.addf %55, %58 : vector<64x64xf32>
    %60 = vector.extract_strided_slice %43 {offsets = [128, 0], sizes = [64, 64], strides = [1, 1]} : vector<256x64xf32> to vector<64x64xf32>
    %61 = vector.extract_strided_slice %43 {offsets = [192, 0], sizes = [64, 64], strides = [1, 1]} : vector<256x64xf32> to vector<64x64xf32>
    %62 = arith.maximumf %60, %61 : vector<64x64xf32>
    %63 = arith.subf %60, %62 : vector<64x64xf32>
    %64 = math.exp %63 : vector<64x64xf32>
    %65 = arith.subf %61, %62 : vector<64x64xf32>
    %66 = math.exp %65 : vector<64x64xf32>
    %67 = arith.addf %64, %66 : vector<64x64xf32>
    %68 = tpu.reciprocal %67 {approx = true} : vector<64x64xf32> -> vector<64x64xf32>
    %69 = arith.mulf %64, %68 : vector<64x64xf32>
    %70 = vector.extract_strided_slice %34 {offsets = [0, 0], sizes = [64, 64], strides = [1, 1]} : vector<128x64xf32> to vector<64x64xf32>
    %71 = arith.mulf %69, %70 : vector<64x64xf32>
    %72 = arith.mulf %66, %68 : vector<64x64xf32>
    %73 = vector.extract_strided_slice %34 {offsets = [64, 0], sizes = [64, 64], strides = [1, 1]} : vector<128x64xf32> to vector<64x64xf32>
    %74 = arith.mulf %72, %73 : vector<64x64xf32>
    %75 = arith.addf %71, %74 : vector<64x64xf32>
    %76 = tpu.concatenate %59, %75 in 0 : vector<64x64xf32>, vector<64x64xf32> -> vector<128x64xf32>
    %77 = arith.truncf %76 : vector<128x64xf32> to vector<128x64xbf16>
    %c2 = arith.constant 2 : index
    %c0_19 = arith.constant 0 : index
    %c0_20 = arith.constant 0 : index
    %78 = vector.load %arg3[%c2, %c0_19, %c0_20] : memref<6x64x64xbf16, #tpu.memory_space<vmem>>, vector<1x64x64xbf16>
    %79 = vector.shape_cast %78 : vector<1x64x64xbf16> to vector<64x64xbf16>
    %cst_21 = arith.constant dense<0.000000e+00> : vector<128x64xf32>
    %80 = tpu.matmul %77, %79, %cst_21 {dimension_numbers = #tpu.dot_dimension_numbers<[1], [0], [0], [1], [0, 0, 1, 1], [], []>} : vector<128x64xbf16>, vector<64x64xbf16>, vector<128x64xf32> -> vector<128x64xf32>
    %81 = vector.broadcast %13 : vector<1x64xf32> to vector<128x64xf32>
    %82 = arith.addf %80, %81 : vector<128x64xf32>
    %83 = arith.addf %7, %82 : vector<128x64xf32>
    %cst_22 = arith.constant dense<0.000000e+00> : vector<128xf32>
    %84 = vector.multi_reduction <add>, %83, %cst_22 [1] : vector<128x64xf32> to vector<128xf32>
    %85 = vector.shape_cast %84 : vector<128xf32> to vector<128x1xf32>
    %cst_23 = arith.constant 6.400000e+01 : f32
    %86 = vector.broadcast %cst_23 : f32 to vector<128x1xf32>
    %87 = arith.divf %85, %86 : vector<128x1xf32>
    %88 = vector.broadcast %87 : vector<128x1xf32> to vector<128x64xf32>
    %89 = arith.subf %83, %88 : vector<128x64xf32>
    %90 = arith.mulf %89, %89 : vector<128x64xf32>
    %cst_24 = arith.constant dense<0.000000e+00> : vector<128xf32>
    %91 = vector.multi_reduction <add>, %90, %cst_24 [1] : vector<128x64xf32> to vector<128xf32>
    %92 = vector.shape_cast %91 : vector<128xf32> to vector<128x1xf32>
    %cst_25 = arith.constant 6.400000e+01 : f32
    %93 = vector.broadcast %cst_25 : f32 to vector<128x1xf32>
    %94 = arith.divf %92, %93 : vector<128x1xf32>
    %95 = vector.broadcast %87 : vector<128x1xf32> to vector<128x64xf32>
    %96 = arith.subf %83, %95 : vector<128x64xf32>
    %cst_26 = arith.constant 9.99999974E-6 : f32
    %97 = vector.broadcast %cst_26 : f32 to vector<128x1xf32>
    %98 = arith.addf %94, %97 : vector<128x1xf32>
    %99 = math.rsqrt %98 : vector<128x1xf32>
    %100 = vector.broadcast %99 : vector<128x1xf32> to vector<128x64xf32>
    %101 = arith.mulf %96, %100 : vector<128x64xf32>
    %102 = vector.broadcast %14 : vector<1x64xf32> to vector<128x64xf32>
    %103 = arith.mulf %101, %102 : vector<128x64xf32>
    %104 = vector.broadcast %15 : vector<1x64xf32> to vector<128x64xf32>
    %105 = arith.addf %103, %104 : vector<128x64xf32>
    %106 = arith.truncf %105 : vector<128x64xf32> to vector<128x64xbf16>
    %c0_27 = arith.constant 0 : index
    %c0_28 = arith.constant 0 : index
    %c0_29 = arith.constant 0 : index
    %107 = vector.load %arg5[%c0_27, %c0_28, %c0_29] : memref<5x64x128xbf16, #tpu.memory_space<vmem>>, vector<1x64x128xbf16>
    %108 = vector.shape_cast %107 : vector<1x64x128xbf16> to vector<64x128xbf16>
    %cst_30 = arith.constant dense<0.000000e+00> : vector<128x128xf32>
    %109 = tpu.matmul %106, %108, %cst_30 {dimension_numbers = #tpu.dot_dimension_numbers<[1], [0], [0], [1], [0, 0, 1, 1], [], []>} : vector<128x64xbf16>, vector<64x128xbf16>, vector<128x128xf32> -> vector<128x128xf32>
    %110 = vector.broadcast %21 : vector<1x128xf32> to vector<128x128xf32>
    %111 = arith.addf %109, %110 : vector<128x128xf32>
    %cst_31 = arith.constant 0.000000e+00 : f32
    %112 = vector.broadcast %cst_31 : f32 to vector<128x128xf32>
    %113 = arith.maximumf %111, %112 : vector<128x128xf32>
    %114 = arith.truncf %113 : vector<128x128xf32> to vector<128x128xbf16>
    %c0_32 = arith.constant 0 : index
    %c0_33 = arith.constant 0 : index
    %c0_34 = arith.constant 0 : index
    %115 = vector.load %arg6[%c0_32, %c0_33, %c0_34] : memref<5x128x128xbf16, #tpu.memory_space<vmem>>, vector<1x128x128xbf16>
    %116 = vector.shape_cast %115 : vector<1x128x128xbf16> to vector<128x128xbf16>
    %117 = vector.extract_strided_slice %116 {offsets = [0, 0], sizes = [128, 64], strides = [1, 1]} : vector<128x128xbf16> to vector<128x64xbf16>
    %cst_35 = arith.constant dense<0.000000e+00> : vector<128x64xf32>
    %118 = tpu.matmul %114, %117, %cst_35 {dimension_numbers = #tpu.dot_dimension_numbers<[1], [0], [0], [1], [0, 0, 1, 1], [], []>} : vector<128x128xbf16>, vector<128x64xbf16>, vector<128x64xf32> -> vector<128x64xf32>
    %119 = vector.broadcast %18 : vector<1x64xf32> to vector<128x64xf32>
    %120 = arith.addf %118, %119 : vector<128x64xf32>
    %121 = arith.addf %105, %120 : vector<128x64xf32>
    %cst_36 = arith.constant dense<0.000000e+00> : vector<128xf32>
    %122 = vector.multi_reduction <add>, %121, %cst_36 [1] : vector<128x64xf32> to vector<128xf32>
    %123 = vector.shape_cast %122 : vector<128xf32> to vector<128x1xf32>
    %cst_37 = arith.constant 6.400000e+01 : f32
    %124 = vector.broadcast %cst_37 : f32 to vector<128x1xf32>
    %125 = arith.divf %123, %124 : vector<128x1xf32>
    %126 = vector.broadcast %125 : vector<128x1xf32> to vector<128x64xf32>
    %127 = arith.subf %121, %126 : vector<128x64xf32>
    %128 = arith.mulf %127, %127 : vector<128x64xf32>
    %cst_38 = arith.constant dense<0.000000e+00> : vector<128xf32>
    %129 = vector.multi_reduction <add>, %128, %cst_38 [1] : vector<128x64xf32> to vector<128xf32>
    %130 = vector.shape_cast %129 : vector<128xf32> to vector<128x1xf32>
    %cst_39 = arith.constant 6.400000e+01 : f32
    %131 = vector.broadcast %cst_39 : f32 to vector<128x1xf32>
    %132 = arith.divf %130, %131 : vector<128x1xf32>
    %133 = vector.broadcast %125 : vector<128x1xf32> to vector<128x64xf32>
    %134 = arith.subf %121, %133 : vector<128x64xf32>
    %cst_40 = arith.constant 9.99999974E-6 : f32
    %135 = vector.broadcast %cst_40 : f32 to vector<128x1xf32>
    %136 = arith.addf %132, %135 : vector<128x1xf32>
    %137 = math.rsqrt %136 : vector<128x1xf32>
    %138 = vector.broadcast %137 : vector<128x1xf32> to vector<128x64xf32>
    %139 = arith.mulf %134, %138 : vector<128x64xf32>
    %140 = vector.broadcast %16 : vector<1x64xf32> to vector<128x64xf32>
    %141 = arith.mulf %139, %140 : vector<128x64xf32>
    %142 = vector.broadcast %17 : vector<1x64xf32> to vector<128x64xf32>
    %143 = arith.addf %141, %142 : vector<128x64xf32>
    %c1_41 = arith.constant 1 : index
    %c0_42 = arith.constant 0 : index
    %c0_43 = arith.constant 0 : index
    %144 = vector.load %arg7[%c1_41, %c0_42, %c0_43] : memref<5x9x64xf32, #tpu.memory_space<vmem>>, vector<1x9x64xf32>
    %145 = vector.shape_cast %144 : vector<1x9x64xf32> to vector<9x64xf32>
    %146 = vector.extract_strided_slice %145 {offsets = [0, 0], sizes = [1, 64], strides = [1, 1]} : vector<9x64xf32> to vector<1x64xf32>
    %147 = vector.extract_strided_slice %145 {offsets = [1, 0], sizes = [1, 64], strides = [1, 1]} : vector<9x64xf32> to vector<1x64xf32>
    %148 = vector.extract_strided_slice %145 {offsets = [2, 0], sizes = [1, 64], strides = [1, 1]} : vector<9x64xf32> to vector<1x64xf32>
    %149 = vector.extract_strided_slice %145 {offsets = [3, 0], sizes = [1, 64], strides = [1, 1]} : vector<9x64xf32> to vector<1x64xf32>
    %150 = vector.extract_strided_slice %145 {offsets = [4, 0], sizes = [1, 64], strides = [1, 1]} : vector<9x64xf32> to vector<1x64xf32>
    %151 = vector.extract_strided_slice %145 {offsets = [5, 0], sizes = [1, 64], strides = [1, 1]} : vector<9x64xf32> to vector<1x64xf32>
    %152 = vector.extract_strided_slice %145 {offsets = [6, 0], sizes = [1, 64], strides = [1, 1]} : vector<9x64xf32> to vector<1x64xf32>
    %153 = vector.extract_strided_slice %145 {offsets = [7, 0], sizes = [1, 64], strides = [1, 1]} : vector<9x64xf32> to vector<1x64xf32>
    %154 = vector.extract_strided_slice %145 {offsets = [8, 0], sizes = [1, 64], strides = [1, 1]} : vector<9x64xf32> to vector<1x64xf32>
    %c1_44 = arith.constant 1 : index
    %c0_45 = arith.constant 0 : index
    %c0_46 = arith.constant 0 : index
    %155 = vector.load %arg8[%c1_44, %c0_45, %c0_46] : memref<5x2x128xf32, #tpu.memory_space<vmem>>, vector<1x2x128xf32>
    %156 = vector.shape_cast %155 : vector<1x2x128xf32> to vector<2x128xf32>
    %157 = vector.extract_strided_slice %156 {offsets = [0, 0], sizes = [1, 128], strides = [1, 1]} : vector<2x128xf32> to vector<1x128xf32>
    %158 = arith.truncf %143 : vector<128x64xf32> to vector<128x64xbf16>
    %c1_47 = arith.constant 1 : index
    %c0_48 = arith.constant 0 : index
    %c0_49 = arith.constant 0 : index
    %159 = vector.load %arg4[%c1_47, %c0_48, %c0_49] : memref<4x64x192xbf16, #tpu.memory_space<vmem>>, vector<1x64x192xbf16>
    %160 = vector.shape_cast %159 : vector<1x64x192xbf16> to vector<64x192xbf16>
    %cst_50 = arith.constant dense<0.000000e+00> : vector<128x192xf32>
    %161 = tpu.matmul %158, %160, %cst_50 {dimension_numbers = #tpu.dot_dimension_numbers<[1], [0], [0], [1], [0, 0, 1, 1], [], []>} : vector<128x64xbf16>, vector<64x192xbf16>, vector<128x192xf32> -> vector<128x192xf32>
    %162 = vector.extract_strided_slice %161 {offsets = [0, 0], sizes = [128, 64], strides = [1, 1]} : vector<128x192xf32> to vector<128x64xf32>
    %163 = vector.broadcast %146 : vector<1x64xf32> to vector<128x64xf32>
    %164 = arith.addf %162, %163 : vector<128x64xf32>
    %165 = vector.extract_strided_slice %161 {offsets = [0, 64], sizes = [128, 64], strides = [1, 1]} : vector<128x192xf32> to vector<128x64xf32>
    %166 = vector.broadcast %147 : vector<1x64xf32> to vector<128x64xf32>
    %167 = arith.addf %165, %166 : vector<128x64xf32>
    %168 = vector.extract_strided_slice %161 {offsets = [0, 128], sizes = [128, 64], strides = [1, 1]} : vector<128x192xf32> to vector<128x64xf32>
    %169 = vector.broadcast %148 : vector<1x64xf32> to vector<128x64xf32>
    %170 = arith.addf %168, %169 : vector<128x64xf32>
    %171 = vector.extract_strided_slice %164 {offsets = [0, 0], sizes = [64, 64], strides = [1, 1]} : vector<128x64xf32> to vector<64x64xf32>
    %172 = vector.extract_strided_slice %164 {offsets = [0, 0], sizes = [64, 64], strides = [1, 1]} : vector<128x64xf32> to vector<64x64xf32>
    %173 = vector.extract_strided_slice %164 {offsets = [64, 0], sizes = [64, 64], strides = [1, 1]} : vector<128x64xf32> to vector<64x64xf32>
    %174 = vector.extract_strided_slice %164 {offsets = [64, 0], sizes = [64, 64], strides = [1, 1]} : vector<128x64xf32> to vector<64x64xf32>
    %175 = tpu.concatenate %171, %172, %173, %174 in 0 : vector<64x64xf32>, vector<64x64xf32>, vector<64x64xf32>, vector<64x64xf32> -> vector<256x64xf32>
    %176 = tpu.concatenate %167, %167 in 0 : vector<128x64xf32>, vector<128x64xf32> -> vector<256x64xf32>
    %177 = arith.mulf %175, %176 : vector<256x64xf32>
    %178 = arith.truncf %177 : vector<256x64xf32> to vector<256x64xbf16>
    %cst_51 = arith.constant dense<0.000000e+00> : vector<256x64xf32>
    %179 = tpu.matmul %178, %3, %cst_51 {dimension_numbers = #tpu.dot_dimension_numbers<[1], [0], [0], [1], [0, 0, 1, 1], [], []>} : vector<256x64xbf16>, vector<64x64xbf16>, vector<256x64xf32> -> vector<256x64xf32>
    %180 = vector.extract_strided_slice %179 {offsets = [0, 0], sizes = [64, 64], strides = [1, 1]} : vector<256x64xf32> to vector<64x64xf32>
    %181 = vector.extract_strided_slice %179 {offsets = [64, 0], sizes = [64, 64], strides = [1, 1]} : vector<256x64xf32> to vector<64x64xf32>
    %182 = arith.maximumf %180, %181 : vector<64x64xf32>
    %183 = arith.subf %180, %182 : vector<64x64xf32>
    %184 = math.exp %183 : vector<64x64xf32>
    %185 = arith.subf %181, %182 : vector<64x64xf32>
    %186 = math.exp %185 : vector<64x64xf32>
    %187 = arith.addf %184, %186 : vector<64x64xf32>
    %188 = tpu.reciprocal %187 {approx = true} : vector<64x64xf32> -> vector<64x64xf32>
    %189 = arith.mulf %184, %188 : vector<64x64xf32>
    %190 = vector.extract_strided_slice %170 {offsets = [0, 0], sizes = [64, 64], strides = [1, 1]} : vector<128x64xf32> to vector<64x64xf32>
    %191 = arith.mulf %189, %190 : vector<64x64xf32>
    %192 = arith.mulf %186, %188 : vector<64x64xf32>
    %193 = vector.extract_strided_slice %170 {offsets = [64, 0], sizes = [64, 64], strides = [1, 1]} : vector<128x64xf32> to vector<64x64xf32>
    %194 = arith.mulf %192, %193 : vector<64x64xf32>
    %195 = arith.addf %191, %194 : vector<64x64xf32>
    %196 = vector.extract_strided_slice %179 {offsets = [128, 0], sizes = [64, 64], strides = [1, 1]} : vector<256x64xf32> to vector<64x64xf32>
    %197 = vector.extract_strided_slice %179 {offsets = [192, 0], sizes = [64, 64], strides = [1, 1]} : vector<256x64xf32> to vector<64x64xf32>
    %198 = arith.maximumf %196, %197 : vector<64x64xf32>
    %199 = arith.subf %196, %198 : vector<64x64xf32>
    %200 = math.exp %199 : vector<64x64xf32>
    %201 = arith.subf %197, %198 : vector<64x64xf32>
    %202 = math.exp %201 : vector<64x64xf32>
    %203 = arith.addf %200, %202 : vector<64x64xf32>
    %204 = tpu.reciprocal %203 {approx = true} : vector<64x64xf32> -> vector<64x64xf32>
    %205 = arith.mulf %200, %204 : vector<64x64xf32>
    %206 = vector.extract_strided_slice %170 {offsets = [0, 0], sizes = [64, 64], strides = [1, 1]} : vector<128x64xf32> to vector<64x64xf32>
    %207 = arith.mulf %205, %206 : vector<64x64xf32>
    %208 = arith.mulf %202, %204 : vector<64x64xf32>
    %209 = vector.extract_strided_slice %170 {offsets = [64, 0], sizes = [64, 64], strides = [1, 1]} : vector<128x64xf32> to vector<64x64xf32>
    %210 = arith.mulf %208, %209 : vector<64x64xf32>
    %211 = arith.addf %207, %210 : vector<64x64xf32>
    %212 = tpu.concatenate %195, %211 in 0 : vector<64x64xf32>, vector<64x64xf32> -> vector<128x64xf32>
    %213 = arith.truncf %212 : vector<128x64xf32> to vector<128x64xbf16>
    %c3 = arith.constant 3 : index
    %c0_52 = arith.constant 0 : index
    %c0_53 = arith.constant 0 : index
    %214 = vector.load %arg3[%c3, %c0_52, %c0_53] : memref<6x64x64xbf16, #tpu.memory_space<vmem>>, vector<1x64x64xbf16>
    %215 = vector.shape_cast %214 : vector<1x64x64xbf16> to vector<64x64xbf16>
    %cst_54 = arith.constant dense<0.000000e+00> : vector<128x64xf32>
    %216 = tpu.matmul %213, %215, %cst_54 {dimension_numbers = #tpu.dot_dimension_numbers<[1], [0], [0], [1], [0, 0, 1, 1], [], []>} : vector<128x64xbf16>, vector<64x64xbf16>, vector<128x64xf32> -> vector<128x64xf32>
    %217 = vector.broadcast %149 : vector<1x64xf32> to vector<128x64xf32>
    %218 = arith.addf %216, %217 : vector<128x64xf32>
    %219 = arith.addf %143, %218 : vector<128x64xf32>
    %cst_55 = arith.constant dense<0.000000e+00> : vector<128xf32>
    %220 = vector.multi_reduction <add>, %219, %cst_55 [1] : vector<128x64xf32> to vector<128xf32>
    %221 = vector.shape_cast %220 : vector<128xf32> to vector<128x1xf32>
    %cst_56 = arith.constant 6.400000e+01 : f32
    %222 = vector.broadcast %cst_56 : f32 to vector<128x1xf32>
    %223 = arith.divf %221, %222 : vector<128x1xf32>
    %224 = vector.broadcast %223 : vector<128x1xf32> to vector<128x64xf32>
    %225 = arith.subf %219, %224 : vector<128x64xf32>
    %226 = arith.mulf %225, %225 : vector<128x64xf32>
    %cst_57 = arith.constant dense<0.000000e+00> : vector<128xf32>
    %227 = vector.multi_reduction <add>, %226, %cst_57 [1] : vector<128x64xf32> to vector<128xf32>
    %228 = vector.shape_cast %227 : vector<128xf32> to vector<128x1xf32>
    %cst_58 = arith.constant 6.400000e+01 : f32
    %229 = vector.broadcast %cst_58 : f32 to vector<128x1xf32>
    %230 = arith.divf %228, %229 : vector<128x1xf32>
    %231 = vector.broadcast %223 : vector<128x1xf32> to vector<128x64xf32>
    %232 = arith.subf %219, %231 : vector<128x64xf32>
    %cst_59 = arith.constant 9.99999974E-6 : f32
    %233 = vector.broadcast %cst_59 : f32 to vector<128x1xf32>
    %234 = arith.addf %230, %233 : vector<128x1xf32>
    %235 = math.rsqrt %234 : vector<128x1xf32>
    %236 = vector.broadcast %235 : vector<128x1xf32> to vector<128x64xf32>
    %237 = arith.mulf %232, %236 : vector<128x64xf32>
    %238 = vector.broadcast %150 : vector<1x64xf32> to vector<128x64xf32>
    %239 = arith.mulf %237, %238 : vector<128x64xf32>
    %240 = vector.broadcast %151 : vector<1x64xf32> to vector<128x64xf32>
    %241 = arith.addf %239, %240 : vector<128x64xf32>
    %242 = arith.truncf %241 : vector<128x64xf32> to vector<128x64xbf16>
    %c1_60 = arith.constant 1 : index
    %c0_61 = arith.constant 0 : index
    %c0_62 = arith.constant 0 : index
    %243 = vector.load %arg5[%c1_60, %c0_61, %c0_62] : memref<5x64x128xbf16, #tpu.memory_space<vmem>>, vector<1x64x128xbf16>
    %244 = vector.shape_cast %243 : vector<1x64x128xbf16> to vector<64x128xbf16>
    %cst_63 = arith.constant dense<0.000000e+00> : vector<128x128xf32>
    %245 = tpu.matmul %242, %244, %cst_63 {dimension_numbers = #tpu.dot_dimension_numbers<[1], [0], [0], [1], [0, 0, 1, 1], [], []>} : vector<128x64xbf16>, vector<64x128xbf16>, vector<128x128xf32> -> vector<128x128xf32>
    %246 = vector.broadcast %157 : vector<1x128xf32> to vector<128x128xf32>
    %247 = arith.addf %245, %246 : vector<128x128xf32>
    %cst_64 = arith.constant 0.000000e+00 : f32
    %248 = vector.broadcast %cst_64 : f32 to vector<128x128xf32>
    %249 = arith.maximumf %247, %248 : vector<128x128xf32>
    %250 = arith.truncf %249 : vector<128x128xf32> to vector<128x128xbf16>
    %c1_65 = arith.constant 1 : index
    %c0_66 = arith.constant 0 : index
    %c0_67 = arith.constant 0 : index
    %251 = vector.load %arg6[%c1_65, %c0_66, %c0_67] : memref<5x128x128xbf16, #tpu.memory_space<vmem>>, vector<1x128x128xbf16>
    %252 = vector.shape_cast %251 : vector<1x128x128xbf16> to vector<128x128xbf16>
    %253 = vector.extract_strided_slice %252 {offsets = [0, 0], sizes = [128, 64], strides = [1, 1]} : vector<128x128xbf16> to vector<128x64xbf16>
    %cst_68 = arith.constant dense<0.000000e+00> : vector<128x64xf32>
    %254 = tpu.matmul %250, %253, %cst_68 {dimension_numbers = #tpu.dot_dimension_numbers<[1], [0], [0], [1], [0, 0, 1, 1], [], []>} : vector<128x128xbf16>, vector<128x64xbf16>, vector<128x64xf32> -> vector<128x64xf32>
    %255 = vector.broadcast %154 : vector<1x64xf32> to vector<128x64xf32>
    %256 = arith.addf %254, %255 : vector<128x64xf32>
    %257 = arith.addf %241, %256 : vector<128x64xf32>
    %cst_69 = arith.constant dense<0.000000e+00> : vector<128xf32>
    %258 = vector.multi_reduction <add>, %257, %cst_69 [1] : vector<128x64xf32> to vector<128xf32>
    %259 = vector.shape_cast %258 : vector<128xf32> to vector<128x1xf32>
    %cst_70 = arith.constant 6.400000e+01 : f32
    %260 = vector.broadcast %cst_70 : f32 to vector<128x1xf32>
    %261 = arith.divf %259, %260 : vector<128x1xf32>
    %262 = vector.broadcast %261 : vector<128x1xf32> to vector<128x64xf32>
    %263 = arith.subf %257, %262 : vector<128x64xf32>
    %264 = arith.mulf %263, %263 : vector<128x64xf32>
    %cst_71 = arith.constant dense<0.000000e+00> : vector<128xf32>
    %265 = vector.multi_reduction <add>, %264, %cst_71 [1] : vector<128x64xf32> to vector<128xf32>
    %266 = vector.shape_cast %265 : vector<128xf32> to vector<128x1xf32>
    %cst_72 = arith.constant 6.400000e+01 : f32
    %267 = vector.broadcast %cst_72 : f32 to vector<128x1xf32>
    %268 = arith.divf %266, %267 : vector<128x1xf32>
    %269 = vector.broadcast %261 : vector<128x1xf32> to vector<128x64xf32>
    %270 = arith.subf %257, %269 : vector<128x64xf32>
    %cst_73 = arith.constant 9.99999974E-6 : f32
    %271 = vector.broadcast %cst_73 : f32 to vector<128x1xf32>
    %272 = arith.addf %268, %271 : vector<128x1xf32>
    %273 = math.rsqrt %272 : vector<128x1xf32>
    %274 = vector.broadcast %273 : vector<128x1xf32> to vector<128x64xf32>
    %275 = arith.mulf %270, %274 : vector<128x64xf32>
    %276 = vector.broadcast %152 : vector<1x64xf32> to vector<128x64xf32>
    %277 = arith.mulf %275, %276 : vector<128x64xf32>
    %278 = vector.broadcast %153 : vector<1x64xf32> to vector<128x64xf32>
    %279 = arith.addf %277, %278 : vector<128x64xf32>
    %c2_74 = arith.constant 2 : index
    %c0_75 = arith.constant 0 : index
    %c0_76 = arith.constant 0 : index
    %280 = vector.load %arg7[%c2_74, %c0_75, %c0_76] : memref<5x9x64xf32, #tpu.memory_space<vmem>>, vector<1x9x64xf32>
    %281 = vector.shape_cast %280 : vector<1x9x64xf32> to vector<9x64xf32>
    %282 = vector.extract_strided_slice %281 {offsets = [0, 0], sizes = [1, 64], strides = [1, 1]} : vector<9x64xf32> to vector<1x64xf32>
    %283 = vector.extract_strided_slice %281 {offsets = [1, 0], sizes = [1, 64], strides = [1, 1]} : vector<9x64xf32> to vector<1x64xf32>
    %284 = vector.extract_strided_slice %281 {offsets = [2, 0], sizes = [1, 64], strides = [1, 1]} : vector<9x64xf32> to vector<1x64xf32>
    %285 = vector.extract_strided_slice %281 {offsets = [3, 0], sizes = [1, 64], strides = [1, 1]} : vector<9x64xf32> to vector<1x64xf32>
    %286 = vector.extract_strided_slice %281 {offsets = [4, 0], sizes = [1, 64], strides = [1, 1]} : vector<9x64xf32> to vector<1x64xf32>
    %287 = vector.extract_strided_slice %281 {offsets = [5, 0], sizes = [1, 64], strides = [1, 1]} : vector<9x64xf32> to vector<1x64xf32>
    %288 = vector.extract_strided_slice %281 {offsets = [6, 0], sizes = [1, 64], strides = [1, 1]} : vector<9x64xf32> to vector<1x64xf32>
    %289 = vector.extract_strided_slice %281 {offsets = [7, 0], sizes = [1, 64], strides = [1, 1]} : vector<9x64xf32> to vector<1x64xf32>
    %290 = vector.extract_strided_slice %281 {offsets = [8, 0], sizes = [1, 64], strides = [1, 1]} : vector<9x64xf32> to vector<1x64xf32>
    %c2_77 = arith.constant 2 : index
    %c0_78 = arith.constant 0 : index
    %c0_79 = arith.constant 0 : index
    %291 = vector.load %arg8[%c2_77, %c0_78, %c0_79] : memref<5x2x128xf32, #tpu.memory_space<vmem>>, vector<1x2x128xf32>
    %292 = vector.shape_cast %291 : vector<1x2x128xf32> to vector<2x128xf32>
    %293 = vector.extract_strided_slice %292 {offsets = [0, 0], sizes = [1, 128], strides = [1, 1]} : vector<2x128xf32> to vector<1x128xf32>
    %294 = arith.truncf %279 : vector<128x64xf32> to vector<128x64xbf16>
    %c2_80 = arith.constant 2 : index
    %c0_81 = arith.constant 0 : index
    %c0_82 = arith.constant 0 : index
    %295 = vector.load %arg4[%c2_80, %c0_81, %c0_82] : memref<4x64x192xbf16, #tpu.memory_space<vmem>>, vector<1x64x192xbf16>
    %296 = vector.shape_cast %295 : vector<1x64x192xbf16> to vector<64x192xbf16>
    %cst_83 = arith.constant dense<0.000000e+00> : vector<128x192xf32>
    %297 = tpu.matmul %294, %296, %cst_83 {dimension_numbers = #tpu.dot_dimension_numbers<[1], [0], [0], [1], [0, 0, 1, 1], [], []>} : vector<128x64xbf16>, vector<64x192xbf16>, vector<128x192xf32> -> vector<128x192xf32>
    %298 = vector.extract_strided_slice %297 {offsets = [0, 0], sizes = [128, 64], strides = [1, 1]} : vector<128x192xf32> to vector<128x64xf32>
    %299 = vector.broadcast %282 : vector<1x64xf32> to vector<128x64xf32>
    %300 = arith.addf %298, %299 : vector<128x64xf32>
    %301 = vector.extract_strided_slice %297 {offsets = [0, 64], sizes = [128, 64], strides = [1, 1]} : vector<128x192xf32> to vector<128x64xf32>
    %302 = vector.broadcast %283 : vector<1x64xf32> to vector<128x64xf32>
    %303 = arith.addf %301, %302 : vector<128x64xf32>
    %304 = vector.extract_strided_slice %297 {offsets = [0, 128], sizes = [128, 64], strides = [1, 1]} : vector<128x192xf32> to vector<128x64xf32>
    %305 = vector.broadcast %284 : vector<1x64xf32> to vector<128x64xf32>
    %306 = arith.addf %304, %305 : vector<128x64xf32>
    %307 = vector.extract_strided_slice %300 {offsets = [0, 0], sizes = [64, 64], strides = [1, 1]} : vector<128x64xf32> to vector<64x64xf32>
    %308 = vector.extract_strided_slice %300 {offsets = [0, 0], sizes = [64, 64], strides = [1, 1]} : vector<128x64xf32> to vector<64x64xf32>
    %309 = vector.extract_strided_slice %300 {offsets = [64, 0], sizes = [64, 64], strides = [1, 1]} : vector<128x64xf32> to vector<64x64xf32>
    %310 = vector.extract_strided_slice %300 {offsets = [64, 0], sizes = [64, 64], strides = [1, 1]} : vector<128x64xf32> to vector<64x64xf32>
    %311 = tpu.concatenate %307, %308, %309, %310 in 0 : vector<64x64xf32>, vector<64x64xf32>, vector<64x64xf32>, vector<64x64xf32> -> vector<256x64xf32>
    %312 = tpu.concatenate %303, %303 in 0 : vector<128x64xf32>, vector<128x64xf32> -> vector<256x64xf32>
    %313 = arith.mulf %311, %312 : vector<256x64xf32>
    %314 = arith.truncf %313 : vector<256x64xf32> to vector<256x64xbf16>
    %cst_84 = arith.constant dense<0.000000e+00> : vector<256x64xf32>
    %315 = tpu.matmul %314, %3, %cst_84 {dimension_numbers = #tpu.dot_dimension_numbers<[1], [0], [0], [1], [0, 0, 1, 1], [], []>} : vector<256x64xbf16>, vector<64x64xbf16>, vector<256x64xf32> -> vector<256x64xf32>
    %316 = vector.extract_strided_slice %315 {offsets = [0, 0], sizes = [64, 64], strides = [1, 1]} : vector<256x64xf32> to vector<64x64xf32>
    %317 = vector.extract_strided_slice %315 {offsets = [64, 0], sizes = [64, 64], strides = [1, 1]} : vector<256x64xf32> to vector<64x64xf32>
    %318 = arith.maximumf %316, %317 : vector<64x64xf32>
    %319 = arith.subf %316, %318 : vector<64x64xf32>
    %320 = math.exp %319 : vector<64x64xf32>
    %321 = arith.subf %317, %318 : vector<64x64xf32>
    %322 = math.exp %321 : vector<64x64xf32>
    %323 = arith.addf %320, %322 : vector<64x64xf32>
    %324 = tpu.reciprocal %323 {approx = true} : vector<64x64xf32> -> vector<64x64xf32>
    %325 = arith.mulf %320, %324 : vector<64x64xf32>
    %326 = vector.extract_strided_slice %306 {offsets = [0, 0], sizes = [64, 64], strides = [1, 1]} : vector<128x64xf32> to vector<64x64xf32>
    %327 = arith.mulf %325, %326 : vector<64x64xf32>
    %328 = arith.mulf %322, %324 : vector<64x64xf32>
    %329 = vector.extract_strided_slice %306 {offsets = [64, 0], sizes = [64, 64], strides = [1, 1]} : vector<128x64xf32> to vector<64x64xf32>
    %330 = arith.mulf %328, %329 : vector<64x64xf32>
    %331 = arith.addf %327, %330 : vector<64x64xf32>
    %332 = vector.extract_strided_slice %315 {offsets = [128, 0], sizes = [64, 64], strides = [1, 1]} : vector<256x64xf32> to vector<64x64xf32>
    %333 = vector.extract_strided_slice %315 {offsets = [192, 0], sizes = [64, 64], strides = [1, 1]} : vector<256x64xf32> to vector<64x64xf32>
    %334 = arith.maximumf %332, %333 : vector<64x64xf32>
    %335 = arith.subf %332, %334 : vector<64x64xf32>
    %336 = math.exp %335 : vector<64x64xf32>
    %337 = arith.subf %333, %334 : vector<64x64xf32>
    %338 = math.exp %337 : vector<64x64xf32>
    %339 = arith.addf %336, %338 : vector<64x64xf32>
    %340 = tpu.reciprocal %339 {approx = true} : vector<64x64xf32> -> vector<64x64xf32>
    %341 = arith.mulf %336, %340 : vector<64x64xf32>
    %342 = vector.extract_strided_slice %306 {offsets = [0, 0], sizes = [64, 64], strides = [1, 1]} : vector<128x64xf32> to vector<64x64xf32>
    %343 = arith.mulf %341, %342 : vector<64x64xf32>
    %344 = arith.mulf %338, %340 : vector<64x64xf32>
    %345 = vector.extract_strided_slice %306 {offsets = [64, 0], sizes = [64, 64], strides = [1, 1]} : vector<128x64xf32> to vector<64x64xf32>
    %346 = arith.mulf %344, %345 : vector<64x64xf32>
    %347 = arith.addf %343, %346 : vector<64x64xf32>
    %348 = tpu.concatenate %331, %347 in 0 : vector<64x64xf32>, vector<64x64xf32> -> vector<128x64xf32>
    %349 = arith.truncf %348 : vector<128x64xf32> to vector<128x64xbf16>
    %c4 = arith.constant 4 : index
    %c0_85 = arith.constant 0 : index
    %c0_86 = arith.constant 0 : index
    %350 = vector.load %arg3[%c4, %c0_85, %c0_86] : memref<6x64x64xbf16, #tpu.memory_space<vmem>>, vector<1x64x64xbf16>
    %351 = vector.shape_cast %350 : vector<1x64x64xbf16> to vector<64x64xbf16>
    %cst_87 = arith.constant dense<0.000000e+00> : vector<128x64xf32>
    %352 = tpu.matmul %349, %351, %cst_87 {dimension_numbers = #tpu.dot_dimension_numbers<[1], [0], [0], [1], [0, 0, 1, 1], [], []>} : vector<128x64xbf16>, vector<64x64xbf16>, vector<128x64xf32> -> vector<128x64xf32>
    %353 = vector.broadcast %285 : vector<1x64xf32> to vector<128x64xf32>
    %354 = arith.addf %352, %353 : vector<128x64xf32>
    %355 = arith.addf %279, %354 : vector<128x64xf32>
    %cst_88 = arith.constant dense<0.000000e+00> : vector<128xf32>
    %356 = vector.multi_reduction <add>, %355, %cst_88 [1] : vector<128x64xf32> to vector<128xf32>
    %357 = vector.shape_cast %356 : vector<128xf32> to vector<128x1xf32>
    %cst_89 = arith.constant 6.400000e+01 : f32
    %358 = vector.broadcast %cst_89 : f32 to vector<128x1xf32>
    %359 = arith.divf %357, %358 : vector<128x1xf32>
    %360 = vector.broadcast %359 : vector<128x1xf32> to vector<128x64xf32>
    %361 = arith.subf %355, %360 : vector<128x64xf32>
    %362 = arith.mulf %361, %361 : vector<128x64xf32>
    %cst_90 = arith.constant dense<0.000000e+00> : vector<128xf32>
    %363 = vector.multi_reduction <add>, %362, %cst_90 [1] : vector<128x64xf32> to vector<128xf32>
    %364 = vector.shape_cast %363 : vector<128xf32> to vector<128x1xf32>
    %cst_91 = arith.constant 6.400000e+01 : f32
    %365 = vector.broadcast %cst_91 : f32 to vector<128x1xf32>
    %366 = arith.divf %364, %365 : vector<128x1xf32>
    %367 = vector.broadcast %359 : vector<128x1xf32> to vector<128x64xf32>
    %368 = arith.subf %355, %367 : vector<128x64xf32>
    %cst_92 = arith.constant 9.99999974E-6 : f32
    %369 = vector.broadcast %cst_92 : f32 to vector<128x1xf32>
    %370 = arith.addf %366, %369 : vector<128x1xf32>
    %371 = math.rsqrt %370 : vector<128x1xf32>
    %372 = vector.broadcast %371 : vector<128x1xf32> to vector<128x64xf32>
    %373 = arith.mulf %368, %372 : vector<128x64xf32>
    %374 = vector.broadcast %286 : vector<1x64xf32> to vector<128x64xf32>
    %375 = arith.mulf %373, %374 : vector<128x64xf32>
    %376 = vector.broadcast %287 : vector<1x64xf32> to vector<128x64xf32>
    %377 = arith.addf %375, %376 : vector<128x64xf32>
    %378 = arith.truncf %377 : vector<128x64xf32> to vector<128x64xbf16>
    %c2_93 = arith.constant 2 : index
    %c0_94 = arith.constant 0 : index
    %c0_95 = arith.constant 0 : index
    %379 = vector.load %arg5[%c2_93, %c0_94, %c0_95] : memref<5x64x128xbf16, #tpu.memory_space<vmem>>, vector<1x64x128xbf16>
    %380 = vector.shape_cast %379 : vector<1x64x128xbf16> to vector<64x128xbf16>
    %cst_96 = arith.constant dense<0.000000e+00> : vector<128x128xf32>
    %381 = tpu.matmul %378, %380, %cst_96 {dimension_numbers = #tpu.dot_dimension_numbers<[1], [0], [0], [1], [0, 0, 1, 1], [], []>} : vector<128x64xbf16>, vector<64x128xbf16>, vector<128x128xf32> -> vector<128x128xf32>
    %382 = vector.broadcast %293 : vector<1x128xf32> to vector<128x128xf32>
    %383 = arith.addf %381, %382 : vector<128x128xf32>
    %cst_97 = arith.constant 0.000000e+00 : f32
    %384 = vector.broadcast %cst_97 : f32 to vector<128x128xf32>
    %385 = arith.maximumf %383, %384 : vector<128x128xf32>
    %386 = arith.truncf %385 : vector<128x128xf32> to vector<128x128xbf16>
    %c2_98 = arith.constant 2 : index
    %c0_99 = arith.constant 0 : index
    %c0_100 = arith.constant 0 : index
    %387 = vector.load %arg6[%c2_98, %c0_99, %c0_100] : memref<5x128x128xbf16, #tpu.memory_space<vmem>>, vector<1x128x128xbf16>
    %388 = vector.shape_cast %387 : vector<1x128x128xbf16> to vector<128x128xbf16>
    %389 = vector.extract_strided_slice %388 {offsets = [0, 0], sizes = [128, 64], strides = [1, 1]} : vector<128x128xbf16> to vector<128x64xbf16>
    %cst_101 = arith.constant dense<0.000000e+00> : vector<128x64xf32>
    %390 = tpu.matmul %386, %389, %cst_101 {dimension_numbers = #tpu.dot_dimension_numbers<[1], [0], [0], [1], [0, 0, 1, 1], [], []>} : vector<128x128xbf16>, vector<128x64xbf16>, vector<128x64xf32> -> vector<128x64xf32>
    %391 = vector.broadcast %290 : vector<1x64xf32> to vector<128x64xf32>
    %392 = arith.addf %390, %391 : vector<128x64xf32>
    %393 = arith.addf %377, %392 : vector<128x64xf32>
    %cst_102 = arith.constant dense<0.000000e+00> : vector<128xf32>
    %394 = vector.multi_reduction <add>, %393, %cst_102 [1] : vector<128x64xf32> to vector<128xf32>
    %395 = vector.shape_cast %394 : vector<128xf32> to vector<128x1xf32>
    %cst_103 = arith.constant 6.400000e+01 : f32
    %396 = vector.broadcast %cst_103 : f32 to vector<128x1xf32>
    %397 = arith.divf %395, %396 : vector<128x1xf32>
    %398 = vector.broadcast %397 : vector<128x1xf32> to vector<128x64xf32>
    %399 = arith.subf %393, %398 : vector<128x64xf32>
    %400 = arith.mulf %399, %399 : vector<128x64xf32>
    %cst_104 = arith.constant dense<0.000000e+00> : vector<128xf32>
    %401 = vector.multi_reduction <add>, %400, %cst_104 [1] : vector<128x64xf32> to vector<128xf32>
    %402 = vector.shape_cast %401 : vector<128xf32> to vector<128x1xf32>
    %cst_105 = arith.constant 6.400000e+01 : f32
    %403 = vector.broadcast %cst_105 : f32 to vector<128x1xf32>
    %404 = arith.divf %402, %403 : vector<128x1xf32>
    %405 = vector.broadcast %397 : vector<128x1xf32> to vector<128x64xf32>
    %406 = arith.subf %393, %405 : vector<128x64xf32>
    %cst_106 = arith.constant 9.99999974E-6 : f32
    %407 = vector.broadcast %cst_106 : f32 to vector<128x1xf32>
    %408 = arith.addf %404, %407 : vector<128x1xf32>
    %409 = math.rsqrt %408 : vector<128x1xf32>
    %410 = vector.broadcast %409 : vector<128x1xf32> to vector<128x64xf32>
    %411 = arith.mulf %406, %410 : vector<128x64xf32>
    %412 = vector.broadcast %288 : vector<1x64xf32> to vector<128x64xf32>
    %413 = arith.mulf %411, %412 : vector<128x64xf32>
    %414 = vector.broadcast %289 : vector<1x64xf32> to vector<128x64xf32>
    %415 = arith.addf %413, %414 : vector<128x64xf32>
    %c3_107 = arith.constant 3 : index
    %c0_108 = arith.constant 0 : index
    %c0_109 = arith.constant 0 : index
    %416 = vector.load %arg7[%c3_107, %c0_108, %c0_109] : memref<5x9x64xf32, #tpu.memory_space<vmem>>, vector<1x9x64xf32>
    %417 = vector.shape_cast %416 : vector<1x9x64xf32> to vector<9x64xf32>
    %418 = vector.extract_strided_slice %417 {offsets = [0, 0], sizes = [1, 64], strides = [1, 1]} : vector<9x64xf32> to vector<1x64xf32>
    %419 = vector.extract_strided_slice %417 {offsets = [1, 0], sizes = [1, 64], strides = [1, 1]} : vector<9x64xf32> to vector<1x64xf32>
    %420 = vector.extract_strided_slice %417 {offsets = [2, 0], sizes = [1, 64], strides = [1, 1]} : vector<9x64xf32> to vector<1x64xf32>
    %421 = vector.extract_strided_slice %417 {offsets = [3, 0], sizes = [1, 64], strides = [1, 1]} : vector<9x64xf32> to vector<1x64xf32>
    %422 = vector.extract_strided_slice %417 {offsets = [4, 0], sizes = [1, 64], strides = [1, 1]} : vector<9x64xf32> to vector<1x64xf32>
    %423 = vector.extract_strided_slice %417 {offsets = [5, 0], sizes = [1, 64], strides = [1, 1]} : vector<9x64xf32> to vector<1x64xf32>
    %424 = vector.extract_strided_slice %417 {offsets = [6, 0], sizes = [1, 64], strides = [1, 1]} : vector<9x64xf32> to vector<1x64xf32>
    %425 = vector.extract_strided_slice %417 {offsets = [7, 0], sizes = [1, 64], strides = [1, 1]} : vector<9x64xf32> to vector<1x64xf32>
    %426 = vector.extract_strided_slice %417 {offsets = [8, 0], sizes = [1, 64], strides = [1, 1]} : vector<9x64xf32> to vector<1x64xf32>
    %c3_110 = arith.constant 3 : index
    %c0_111 = arith.constant 0 : index
    %c0_112 = arith.constant 0 : index
    %427 = vector.load %arg8[%c3_110, %c0_111, %c0_112] : memref<5x2x128xf32, #tpu.memory_space<vmem>>, vector<1x2x128xf32>
    %428 = vector.shape_cast %427 : vector<1x2x128xf32> to vector<2x128xf32>
    %429 = vector.extract_strided_slice %428 {offsets = [0, 0], sizes = [1, 128], strides = [1, 1]} : vector<2x128xf32> to vector<1x128xf32>
    %430 = arith.truncf %415 : vector<128x64xf32> to vector<128x64xbf16>
    %c3_113 = arith.constant 3 : index
    %c0_114 = arith.constant 0 : index
    %c0_115 = arith.constant 0 : index
    %431 = vector.load %arg4[%c3_113, %c0_114, %c0_115] : memref<4x64x192xbf16, #tpu.memory_space<vmem>>, vector<1x64x192xbf16>
    %432 = vector.shape_cast %431 : vector<1x64x192xbf16> to vector<64x192xbf16>
    %cst_116 = arith.constant dense<0.000000e+00> : vector<128x192xf32>
    %433 = tpu.matmul %430, %432, %cst_116 {dimension_numbers = #tpu.dot_dimension_numbers<[1], [0], [0], [1], [0, 0, 1, 1], [], []>} : vector<128x64xbf16>, vector<64x192xbf16>, vector<128x192xf32> -> vector<128x192xf32>
    %434 = vector.extract_strided_slice %433 {offsets = [0, 0], sizes = [128, 64], strides = [1, 1]} : vector<128x192xf32> to vector<128x64xf32>
    %435 = vector.broadcast %418 : vector<1x64xf32> to vector<128x64xf32>
    %436 = arith.addf %434, %435 : vector<128x64xf32>
    %437 = vector.extract_strided_slice %433 {offsets = [0, 64], sizes = [128, 64], strides = [1, 1]} : vector<128x192xf32> to vector<128x64xf32>
    %438 = vector.broadcast %419 : vector<1x64xf32> to vector<128x64xf32>
    %439 = arith.addf %437, %438 : vector<128x64xf32>
    %440 = vector.extract_strided_slice %433 {offsets = [0, 128], sizes = [128, 64], strides = [1, 1]} : vector<128x192xf32> to vector<128x64xf32>
    %441 = vector.broadcast %420 : vector<1x64xf32> to vector<128x64xf32>
    %442 = arith.addf %440, %441 : vector<128x64xf32>
    %443 = vector.extract_strided_slice %436 {offsets = [0, 0], sizes = [64, 64], strides = [1, 1]} : vector<128x64xf32> to vector<64x64xf32>
    %444 = vector.extract_strided_slice %436 {offsets = [0, 0], sizes = [64, 64], strides = [1, 1]} : vector<128x64xf32> to vector<64x64xf32>
    %445 = vector.extract_strided_slice %436 {offsets = [64, 0], sizes = [64, 64], strides = [1, 1]} : vector<128x64xf32> to vector<64x64xf32>
    %446 = vector.extract_strided_slice %436 {offsets = [64, 0], sizes = [64, 64], strides = [1, 1]} : vector<128x64xf32> to vector<64x64xf32>
    %447 = tpu.concatenate %443, %444, %445, %446 in 0 : vector<64x64xf32>, vector<64x64xf32>, vector<64x64xf32>, vector<64x64xf32> -> vector<256x64xf32>
    %448 = tpu.concatenate %439, %439 in 0 : vector<128x64xf32>, vector<128x64xf32> -> vector<256x64xf32>
    %449 = arith.mulf %447, %448 : vector<256x64xf32>
    %450 = arith.truncf %449 : vector<256x64xf32> to vector<256x64xbf16>
    %cst_117 = arith.constant dense<0.000000e+00> : vector<256x64xf32>
    %451 = tpu.matmul %450, %3, %cst_117 {dimension_numbers = #tpu.dot_dimension_numbers<[1], [0], [0], [1], [0, 0, 1, 1], [], []>} : vector<256x64xbf16>, vector<64x64xbf16>, vector<256x64xf32> -> vector<256x64xf32>
    %452 = vector.extract_strided_slice %451 {offsets = [0, 0], sizes = [64, 64], strides = [1, 1]} : vector<256x64xf32> to vector<64x64xf32>
    %453 = vector.extract_strided_slice %451 {offsets = [64, 0], sizes = [64, 64], strides = [1, 1]} : vector<256x64xf32> to vector<64x64xf32>
    %454 = arith.maximumf %452, %453 : vector<64x64xf32>
    %455 = arith.subf %452, %454 : vector<64x64xf32>
    %456 = math.exp %455 : vector<64x64xf32>
    %457 = arith.subf %453, %454 : vector<64x64xf32>
    %458 = math.exp %457 : vector<64x64xf32>
    %459 = arith.addf %456, %458 : vector<64x64xf32>
    %460 = tpu.reciprocal %459 {approx = true} : vector<64x64xf32> -> vector<64x64xf32>
    %461 = arith.mulf %456, %460 : vector<64x64xf32>
    %462 = vector.extract_strided_slice %442 {offsets = [0, 0], sizes = [64, 64], strides = [1, 1]} : vector<128x64xf32> to vector<64x64xf32>
    %463 = arith.mulf %461, %462 : vector<64x64xf32>
    %464 = arith.mulf %458, %460 : vector<64x64xf32>
    %465 = vector.extract_strided_slice %442 {offsets = [64, 0], sizes = [64, 64], strides = [1, 1]} : vector<128x64xf32> to vector<64x64xf32>
    %466 = arith.mulf %464, %465 : vector<64x64xf32>
    %467 = arith.addf %463, %466 : vector<64x64xf32>
    %468 = vector.extract_strided_slice %451 {offsets = [128, 0], sizes = [64, 64], strides = [1, 1]} : vector<256x64xf32> to vector<64x64xf32>
    %469 = vector.extract_strided_slice %451 {offsets = [192, 0], sizes = [64, 64], strides = [1, 1]} : vector<256x64xf32> to vector<64x64xf32>
    %470 = arith.maximumf %468, %469 : vector<64x64xf32>
    %471 = arith.subf %468, %470 : vector<64x64xf32>
    %472 = math.exp %471 : vector<64x64xf32>
    %473 = arith.subf %469, %470 : vector<64x64xf32>
    %474 = math.exp %473 : vector<64x64xf32>
    %475 = arith.addf %472, %474 : vector<64x64xf32>
    %476 = tpu.reciprocal %475 {approx = true} : vector<64x64xf32> -> vector<64x64xf32>
    %477 = arith.mulf %472, %476 : vector<64x64xf32>
    %478 = vector.extract_strided_slice %442 {offsets = [0, 0], sizes = [64, 64], strides = [1, 1]} : vector<128x64xf32> to vector<64x64xf32>
    %479 = arith.mulf %477, %478 : vector<64x64xf32>
    %480 = arith.mulf %474, %476 : vector<64x64xf32>
    %481 = vector.extract_strided_slice %442 {offsets = [64, 0], sizes = [64, 64], strides = [1, 1]} : vector<128x64xf32> to vector<64x64xf32>
    %482 = arith.mulf %480, %481 : vector<64x64xf32>
    %483 = arith.addf %479, %482 : vector<64x64xf32>
    %484 = tpu.concatenate %467, %483 in 0 : vector<64x64xf32>, vector<64x64xf32> -> vector<128x64xf32>
    %485 = arith.truncf %484 : vector<128x64xf32> to vector<128x64xbf16>
    %c5 = arith.constant 5 : index
    %c0_118 = arith.constant 0 : index
    %c0_119 = arith.constant 0 : index
    %486 = vector.load %arg3[%c5, %c0_118, %c0_119] : memref<6x64x64xbf16, #tpu.memory_space<vmem>>, vector<1x64x64xbf16>
    %487 = vector.shape_cast %486 : vector<1x64x64xbf16> to vector<64x64xbf16>
    %cst_120 = arith.constant dense<0.000000e+00> : vector<128x64xf32>
    %488 = tpu.matmul %485, %487, %cst_120 {dimension_numbers = #tpu.dot_dimension_numbers<[1], [0], [0], [1], [0, 0, 1, 1], [], []>} : vector<128x64xbf16>, vector<64x64xbf16>, vector<128x64xf32> -> vector<128x64xf32>
    %489 = vector.broadcast %421 : vector<1x64xf32> to vector<128x64xf32>
    %490 = arith.addf %488, %489 : vector<128x64xf32>
    %491 = arith.addf %415, %490 : vector<128x64xf32>
    %cst_121 = arith.constant dense<0.000000e+00> : vector<128xf32>
    %492 = vector.multi_reduction <add>, %491, %cst_121 [1] : vector<128x64xf32> to vector<128xf32>
    %493 = vector.shape_cast %492 : vector<128xf32> to vector<128x1xf32>
    %cst_122 = arith.constant 6.400000e+01 : f32
    %494 = vector.broadcast %cst_122 : f32 to vector<128x1xf32>
    %495 = arith.divf %493, %494 : vector<128x1xf32>
    %496 = vector.broadcast %495 : vector<128x1xf32> to vector<128x64xf32>
    %497 = arith.subf %491, %496 : vector<128x64xf32>
    %498 = arith.mulf %497, %497 : vector<128x64xf32>
    %cst_123 = arith.constant dense<0.000000e+00> : vector<128xf32>
    %499 = vector.multi_reduction <add>, %498, %cst_123 [1] : vector<128x64xf32> to vector<128xf32>
    %500 = vector.shape_cast %499 : vector<128xf32> to vector<128x1xf32>
    %cst_124 = arith.constant 6.400000e+01 : f32
    %501 = vector.broadcast %cst_124 : f32 to vector<128x1xf32>
    %502 = arith.divf %500, %501 : vector<128x1xf32>
    %503 = vector.broadcast %495 : vector<128x1xf32> to vector<128x64xf32>
    %504 = arith.subf %491, %503 : vector<128x64xf32>
    %cst_125 = arith.constant 9.99999974E-6 : f32
    %505 = vector.broadcast %cst_125 : f32 to vector<128x1xf32>
    %506 = arith.addf %502, %505 : vector<128x1xf32>
    %507 = math.rsqrt %506 : vector<128x1xf32>
    %508 = vector.broadcast %507 : vector<128x1xf32> to vector<128x64xf32>
    %509 = arith.mulf %504, %508 : vector<128x64xf32>
    %510 = vector.broadcast %422 : vector<1x64xf32> to vector<128x64xf32>
    %511 = arith.mulf %509, %510 : vector<128x64xf32>
    %512 = vector.broadcast %423 : vector<1x64xf32> to vector<128x64xf32>
    %513 = arith.addf %511, %512 : vector<128x64xf32>
    %514 = arith.truncf %513 : vector<128x64xf32> to vector<128x64xbf16>
    %c3_126 = arith.constant 3 : index
    %c0_127 = arith.constant 0 : index
    %c0_128 = arith.constant 0 : index
    %515 = vector.load %arg5[%c3_126, %c0_127, %c0_128] : memref<5x64x128xbf16, #tpu.memory_space<vmem>>, vector<1x64x128xbf16>
    %516 = vector.shape_cast %515 : vector<1x64x128xbf16> to vector<64x128xbf16>
    %cst_129 = arith.constant dense<0.000000e+00> : vector<128x128xf32>
    %517 = tpu.matmul %514, %516, %cst_129 {dimension_numbers = #tpu.dot_dimension_numbers<[1], [0], [0], [1], [0, 0, 1, 1], [], []>} : vector<128x64xbf16>, vector<64x128xbf16>, vector<128x128xf32> -> vector<128x128xf32>
    %518 = vector.broadcast %429 : vector<1x128xf32> to vector<128x128xf32>
    %519 = arith.addf %517, %518 : vector<128x128xf32>
    %cst_130 = arith.constant 0.000000e+00 : f32
    %520 = vector.broadcast %cst_130 : f32 to vector<128x128xf32>
    %521 = arith.maximumf %519, %520 : vector<128x128xf32>
    %522 = arith.truncf %521 : vector<128x128xf32> to vector<128x128xbf16>
    %c3_131 = arith.constant 3 : index
    %c0_132 = arith.constant 0 : index
    %c0_133 = arith.constant 0 : index
    %523 = vector.load %arg6[%c3_131, %c0_132, %c0_133] : memref<5x128x128xbf16, #tpu.memory_space<vmem>>, vector<1x128x128xbf16>
    %524 = vector.shape_cast %523 : vector<1x128x128xbf16> to vector<128x128xbf16>
    %525 = vector.extract_strided_slice %524 {offsets = [0, 0], sizes = [128, 64], strides = [1, 1]} : vector<128x128xbf16> to vector<128x64xbf16>
    %cst_134 = arith.constant dense<0.000000e+00> : vector<128x64xf32>
    %526 = tpu.matmul %522, %525, %cst_134 {dimension_numbers = #tpu.dot_dimension_numbers<[1], [0], [0], [1], [0, 0, 1, 1], [], []>} : vector<128x128xbf16>, vector<128x64xbf16>, vector<128x64xf32> -> vector<128x64xf32>
    %527 = vector.broadcast %426 : vector<1x64xf32> to vector<128x64xf32>
    %528 = arith.addf %526, %527 : vector<128x64xf32>
    %529 = arith.addf %513, %528 : vector<128x64xf32>
    %cst_135 = arith.constant dense<0.000000e+00> : vector<128xf32>
    %530 = vector.multi_reduction <add>, %529, %cst_135 [1] : vector<128x64xf32> to vector<128xf32>
    %531 = vector.shape_cast %530 : vector<128xf32> to vector<128x1xf32>
    %cst_136 = arith.constant 6.400000e+01 : f32
    %532 = vector.broadcast %cst_136 : f32 to vector<128x1xf32>
    %533 = arith.divf %531, %532 : vector<128x1xf32>
    %534 = vector.broadcast %533 : vector<128x1xf32> to vector<128x64xf32>
    %535 = arith.subf %529, %534 : vector<128x64xf32>
    %536 = arith.mulf %535, %535 : vector<128x64xf32>
    %cst_137 = arith.constant dense<0.000000e+00> : vector<128xf32>
    %537 = vector.multi_reduction <add>, %536, %cst_137 [1] : vector<128x64xf32> to vector<128xf32>
    %538 = vector.shape_cast %537 : vector<128xf32> to vector<128x1xf32>
    %cst_138 = arith.constant 6.400000e+01 : f32
    %539 = vector.broadcast %cst_138 : f32 to vector<128x1xf32>
    %540 = arith.divf %538, %539 : vector<128x1xf32>
    %541 = vector.broadcast %533 : vector<128x1xf32> to vector<128x64xf32>
    %542 = arith.subf %529, %541 : vector<128x64xf32>
    %cst_139 = arith.constant 9.99999974E-6 : f32
    %543 = vector.broadcast %cst_139 : f32 to vector<128x1xf32>
    %544 = arith.addf %540, %543 : vector<128x1xf32>
    %545 = math.rsqrt %544 : vector<128x1xf32>
    %546 = vector.broadcast %545 : vector<128x1xf32> to vector<128x64xf32>
    %547 = arith.mulf %542, %546 : vector<128x64xf32>
    %548 = vector.broadcast %424 : vector<1x64xf32> to vector<128x64xf32>
    %549 = arith.mulf %547, %548 : vector<128x64xf32>
    %550 = vector.broadcast %425 : vector<1x64xf32> to vector<128x64xf32>
    %551 = arith.addf %549, %550 : vector<128x64xf32>
    %c0_140 = arith.constant 0 : index
    %c0_141 = arith.constant 0 : index
    %552 = vector.load %arg2[%c0_140, %c0_141] : memref<2x128xbf16, #tpu.memory_space<vmem>>, vector<2x128xbf16>
    %553 = arith.truncf %551 : vector<128x64xf32> to vector<128x64xbf16>
    %cst_142 = arith.constant dense<0.000000e+00> : vector<2x64xf32>
    %554 = tpu.matmul %552, %553, %cst_142 {dimension_numbers = #tpu.dot_dimension_numbers<[1], [0], [0], [1], [0, 0, 1, 1], [], []>} : vector<2x128xbf16>, vector<128x64xbf16>, vector<2x64xf32> -> vector<2x64xf32>
    %c4_143 = arith.constant 4 : index
    %c0_144 = arith.constant 0 : index
    %c0_145 = arith.constant 0 : index
    %555 = vector.load %arg7[%c4_143, %c0_144, %c0_145] : memref<5x9x64xf32, #tpu.memory_space<vmem>>, vector<1x9x64xf32>
    %556 = vector.shape_cast %555 : vector<1x9x64xf32> to vector<9x64xf32>
    %557 = vector.extract_strided_slice %556 {offsets = [0, 0], sizes = [1, 64], strides = [1, 1]} : vector<9x64xf32> to vector<1x64xf32>
    %558 = vector.extract_strided_slice %556 {offsets = [1, 0], sizes = [1, 64], strides = [1, 1]} : vector<9x64xf32> to vector<1x64xf32>
    %c4_146 = arith.constant 4 : index
    %c0_147 = arith.constant 0 : index
    %c0_148 = arith.constant 0 : index
    %559 = vector.load %arg8[%c4_146, %c0_147, %c0_148] : memref<5x2x128xf32, #tpu.memory_space<vmem>>, vector<1x2x128xf32>
    %560 = vector.shape_cast %559 : vector<1x2x128xf32> to vector<2x128xf32>
    %561 = vector.extract_strided_slice %560 {offsets = [0, 0], sizes = [1, 128], strides = [1, 1]} : vector<2x128xf32> to vector<1x128xf32>
    %562 = vector.extract_strided_slice %560 {offsets = [1, 0], sizes = [1, 128], strides = [1, 1]} : vector<2x128xf32> to vector<1x128xf32>
    %cst_149 = arith.constant dense<0.000000e+00> : vector<2xf32>
    %563 = vector.multi_reduction <add>, %554, %cst_149 [1] : vector<2x64xf32> to vector<2xf32>
    %564 = vector.shape_cast %563 : vector<2xf32> to vector<2x1xf32>
    %cst_150 = arith.constant 6.400000e+01 : f32
    %565 = vector.broadcast %cst_150 : f32 to vector<2x1xf32>
    %566 = arith.divf %564, %565 : vector<2x1xf32>
    %567 = vector.broadcast %566 : vector<2x1xf32> to vector<2x64xf32>
    %568 = arith.subf %554, %567 : vector<2x64xf32>
    %569 = arith.mulf %568, %568 : vector<2x64xf32>
    %cst_151 = arith.constant dense<0.000000e+00> : vector<2xf32>
    %570 = vector.multi_reduction <add>, %569, %cst_151 [1] : vector<2x64xf32> to vector<2xf32>
    %571 = vector.shape_cast %570 : vector<2xf32> to vector<2x1xf32>
    %cst_152 = arith.constant 6.400000e+01 : f32
    %572 = vector.broadcast %cst_152 : f32 to vector<2x1xf32>
    %573 = arith.divf %571, %572 : vector<2x1xf32>
    %574 = vector.broadcast %566 : vector<2x1xf32> to vector<2x64xf32>
    %575 = arith.subf %554, %574 : vector<2x64xf32>
    %cst_153 = arith.constant 9.99999974E-6 : f32
    %576 = vector.broadcast %cst_153 : f32 to vector<2x1xf32>
    %577 = arith.addf %573, %576 : vector<2x1xf32>
    %578 = math.rsqrt %577 : vector<2x1xf32>
    %579 = vector.broadcast %578 : vector<2x1xf32> to vector<2x64xf32>
    %580 = arith.mulf %575, %579 : vector<2x64xf32>
    %581 = vector.broadcast %557 : vector<1x64xf32> to vector<2x64xf32>
    %582 = arith.mulf %580, %581 : vector<2x64xf32>
    %583 = vector.broadcast %558 : vector<1x64xf32> to vector<2x64xf32>
    %584 = arith.addf %582, %583 : vector<2x64xf32>
    %585 = arith.truncf %584 : vector<2x64xf32> to vector<2x64xbf16>
    %c4_154 = arith.constant 4 : index
    %c0_155 = arith.constant 0 : index
    %c0_156 = arith.constant 0 : index
    %586 = vector.load %arg5[%c4_154, %c0_155, %c0_156] : memref<5x64x128xbf16, #tpu.memory_space<vmem>>, vector<1x64x128xbf16>
    %587 = vector.shape_cast %586 : vector<1x64x128xbf16> to vector<64x128xbf16>
    %cst_157 = arith.constant dense<0.000000e+00> : vector<2x128xf32>
    %588 = tpu.matmul %585, %587, %cst_157 {dimension_numbers = #tpu.dot_dimension_numbers<[1], [0], [0], [1], [0, 0, 1, 1], [], []>} : vector<2x64xbf16>, vector<64x128xbf16>, vector<2x128xf32> -> vector<2x128xf32>
    %589 = vector.broadcast %561 : vector<1x128xf32> to vector<2x128xf32>
    %590 = arith.addf %588, %589 : vector<2x128xf32>
    %cst_158 = arith.constant 0.000000e+00 : f32
    %591 = vector.broadcast %cst_158 : f32 to vector<2x128xf32>
    %592 = arith.maximumf %590, %591 : vector<2x128xf32>
    %593 = arith.truncf %592 : vector<2x128xf32> to vector<2x128xbf16>
    %c4_159 = arith.constant 4 : index
    %c0_160 = arith.constant 0 : index
    %c0_161 = arith.constant 0 : index
    %594 = vector.load %arg6[%c4_159, %c0_160, %c0_161] : memref<5x128x128xbf16, #tpu.memory_space<vmem>>, vector<1x128x128xbf16>
    %595 = vector.shape_cast %594 : vector<1x128x128xbf16> to vector<128x128xbf16>
    %cst_162 = arith.constant dense<0.000000e+00> : vector<2x128xf32>
    %596 = tpu.matmul %593, %595, %cst_162 {dimension_numbers = #tpu.dot_dimension_numbers<[1], [0], [0], [1], [0, 0, 1, 1], [], []>} : vector<2x128xbf16>, vector<128x128xbf16>, vector<2x128xf32> -> vector<2x128xf32>
    %597 = vector.broadcast %562 : vector<1x128xf32> to vector<2x128xf32>
    %598 = arith.addf %596, %597 : vector<2x128xf32>
    %c0_163 = arith.constant 0 : index
    %c0_164 = arith.constant 0 : index
    %599 = vector.load %arg9[%c0_163, %c0_164] : memref<2x128xf32, #tpu.memory_space<vmem>>, vector<2x128xf32>
    tpu.vector_store %arg9[%c0_163, %c0_164], %598 {strides = array<i32>} : memref<2x128xf32, #tpu.memory_space<vmem>>, vector<2x128xf32>,
    return
  }
}

</mosaic_0001>

<llo_original>
// kernel: tpu_custom_call.1
$region0: #{tpu_custom_call.1}
  #allocation0 [shape = 'u32[]', space=smem, size = 0x4, offset = 0x4, fixed_abs, tag = 'smem constant byte address 0x4 - core index']
  #allocation1 [shape = 'u32[144,128]{1,0:T(1,128)}', space=vmem, size = 0x12000, scoped, tag = 'internal scratch']
  %s0 = inlined_call_operand.vmem [shape: bf16[128,64], index: 0, kind: input, shape index: {}]
  %s1 = inlined_call_operand.vmem [shape: f32[128,64], index: 1, kind: input, shape index: {}]
  %s2 = inlined_call_operand.vmem [shape: bf16[2,128], index: 2, kind: input, shape index: {}]
  %s3 = inlined_call_operand.hbm [shape: bf16[6,64,64], index: 3, kind: input, shape index: {}]
  %s4 = inlined_call_operand.hbm [shape: bf16[4,64,192], index: 4, kind: input, shape index: {}]
  %s5 = inlined_call_operand.hbm [shape: bf16[5,64,128], index: 5, kind: input, shape index: {}]
  %s6 = inlined_call_operand.vmem [shape: bf16[5,128,128], index: 6, kind: input, shape index: {}]
  %s7 = inlined_call_operand.vmem [shape: f32[5,9,64], index: 7, kind: input, shape index: {}]
  %s8 = inlined_call_operand.vmem [shape: f32[5,2,128], index: 8, kind: input, shape index: {}]
  %s9 = inlined_call_operand.hbm [shape: f32[2,128], index: 9, kind: output, shape index: {}]
  %s10 = sld [smem:[#allocation0]]
  $region58: #{tpu_custom_call.1} parent=0
    _
  %s12 = ssub.s32 1, %s10
  %s13 = scalar_select 0, %s12, %s10
  $region1: #{tpu_custom_call.1} parent=0
    #allocation2 [shape = 'u8[98304]{0}', space=vmem, size = 0x18000, scoped, tag = 'input window, operand 3, single buffered']
    #allocation3 [shape = 's32[1]{0}', space=sflag, size = 0x4, scoped, tag = 'scoped memory for tpu_custom_call.1']
    #allocation4 [shape = 's32[1]{0}', space=sflag, size = 0x4, scoped, tag = 'scoped memory for tpu_custom_call.1']
    #allocation5 [shape = 'u8[131072]{0}', space=vmem, size = 0x20000, scoped, tag = 'input window, operand 4, single buffered']
    #allocation6 [shape = 's32[1]{0}', space=sflag, size = 0x4, scoped, tag = 'scoped memory for tpu_custom_call.1']
    #allocation7 [shape = 'u8[81920]{0}', space=vmem, size = 0x14000, scoped, tag = 'input window, operand 5, single buffered']
    #allocation8 [shape = 'u8[1024]{0}', space=vmem, size = 0x400, scoped, tag = 'output window, operand 0, single buffered']
    %14 = vsyncpa [#allocation3], 0
    %15 = vsyncpa [#allocation6], 0
    %16 = vsyncpa [#allocation4], 0
    // Predicated region
    $region2: #{tpu_custom_call.1} parent=1 // pred_check
      _
    $region3: #{tpu_custom_call.1} parent=1 // pred_check_branch
      %18 = sbr.rel (0) target = $region5
    $region4: #{tpu_custom_call.1} parent=1 // pred_region
      _
    $region5: #{tpu_custom_call.1} parent=1 // pred_fallthru
      _
    // Predicated region
    $region6: #{tpu_custom_call.1} parent=1 // pred_check
      _
    $region7: #{tpu_custom_call.1} parent=1 // pred_check_branch
      %20 = sbr.rel (0) target = $region9
    $region8: #{tpu_custom_call.1} parent=1 // pred_region
      _
    $region9: #{tpu_custom_call.1} parent=1 // pred_fallthru
      _
    // Predicated region
    $region10: #{tpu_custom_call.1} parent=1 // pred_check
      _
    $region11: #{tpu_custom_call.1} parent=1 // pred_check_branch
      %22 = sbr.rel (0) target = $region13
    $region12: #{tpu_custom_call.1} parent=1 // pred_region
      _
    $region13: #{tpu_custom_call.1} parent=1 // pred_fallthru
      _
    // Predicated region
    $region14: #{tpu_custom_call.1} parent=1 // pred_check
      _
    $region15: #{tpu_custom_call.1} parent=1 // pred_check_branch
      %24 = sbr.rel (0) target = $region17
    $region16: #{tpu_custom_call.1} parent=1 // pred_region
      %s26 = ssub.s32 3072, 3072
      %27 = vsyncadd [#allocation3], %s26
      %s28 = sshll.u32 [#allocation2], 4
      %s29 = int_to_ptr.vmem [resolvable:$true] %s28
      %34 = dma.hbm_to_vmem [thread:$0]  %s3, 3072, %s29, [#allocation3], 64, 64, 4
    $region17: #{tpu_custom_call.1} parent=1 // pred_fallthru
      _
    // Predicated region
    $region18: #{tpu_custom_call.1} parent=1 // pred_check
      _
    $region19: #{tpu_custom_call.1} parent=1 // pred_check_branch
      %36 = sbr.rel (0) target = $region21
    $region20: #{tpu_custom_call.1} parent=1 // pred_region
      %s38 = ssub.s32 4096, 4096
      %39 = vsyncadd [#allocation6], %s38
      %s40 = sshll.u32 [#allocation5], 4
      %s41 = int_to_ptr.vmem [resolvable:$true] %s40
      %46 = dma.hbm_to_vmem [thread:$0]  %s4, 4096, %s41, [#allocation6], 128, 128, 8
    $region21: #{tpu_custom_call.1} parent=1 // pred_fallthru
      _
    // Predicated region
    $region22: #{tpu_custom_call.1} parent=1 // pred_check
      _
    $region23: #{tpu_custom_call.1} parent=1 // pred_check_branch
      %48 = sbr.rel (0) target = $region25
    $region24: #{tpu_custom_call.1} parent=1 // pred_region
      %s50 = ssub.s32 2560, 2560
      %51 = vsyncadd [#allocation6], %s50
      %s52 = sshll.u32 [#allocation7], 4
      %s53 = int_to_ptr.vmem [resolvable:$true] %s52
      %58 = dma.hbm_to_vmem [thread:$0]  %s5, 2560, %s53, [#allocation6], 64, 64, 4
    $region25: #{tpu_custom_call.1} parent=1 // pred_fallthru
      _
    // Predicated region
    $region26: #{tpu_custom_call.1} parent=1 // pred_check
      _
    $region27: #{tpu_custom_call.1} parent=1 // pred_check_branch
      %60 = sbr.rel (0) target = $region29
    $region28: #{tpu_custom_call.1} parent=1 // pred_region
      _
    $region29: #{tpu_custom_call.1} parent=1 // pred_fallthru
      _
    // Predicated region
    $region30: #{tpu_custom_call.1} parent=1 // pred_check
      _
    $region31: #{tpu_custom_call.1} parent=1 // pred_check_branch
      %62 = sbr.rel (0) target = $region33
    $region32: #{tpu_custom_call.1} parent=1 // pred_region
      _
    $region33: #{tpu_custom_call.1} parent=1 // pred_fallthru
      _
    // Predicated region
    $region34: #{tpu_custom_call.1} parent=1 // pred_check
      _
    $region35: #{tpu_custom_call.1} parent=1 // pred_check_branch
      %64 = sbr.rel (0) target = $region37
    $region36: #{tpu_custom_call.1} parent=1 // pred_region
      _
    $region37: #{tpu_custom_call.1} parent=1 // pred_fallthru
      _
    // Predicated region
    $region38: #{tpu_custom_call.1} parent=1 // pred_check
      _
    $region39: #{tpu_custom_call.1} parent=1 // pred_check_branch
      %66 = sbr.rel (0) target = $region41
    $region40: #{tpu_custom_call.1} parent=1 // pred_region
      %67 = dma.done [#allocation3], 3072
    $region41: #{tpu_custom_call.1} parent=1 // pred_fallthru
      _
    // Predicated region
    $region42: #{tpu_custom_call.1} parent=1 // pred_check
      _
    $region43: #{tpu_custom_call.1} parent=1 // pred_check_branch
      %69 = sbr.rel (0) target = $region45
    $region44: #{tpu_custom_call.1} parent=1 // pred_region
      %70 = dma.done [#allocation6], 4096
    $region45: #{tpu_custom_call.1} parent=1 // pred_fallthru
      _
    // Predicated region
    $region46: #{tpu_custom_call.1} parent=1 // pred_check
      _
    $region47: #{tpu_custom_call.1} parent=1 // pred_check_branch
      %72 = sbr.rel (0) target = $region49
    $region48: #{tpu_custom_call.1} parent=1 // pred_region
      %73 = dma.done [#allocation6], 2560
    $region49: #{tpu_custom_call.1} parent=1 // pred_fallthru
      _
    %v75 = vld [vmem:[#allocation2] sm:$0xf]
    %v76 = vld [vmem:[#allocation2 + $0x4] sm:$0xf]
    %v77 = vld [vmem:[#allocation2 + $0x8] sm:$0xf]
    %v78 = vld [vmem:[#allocation2 + $0xc] sm:$0xf]
    %v79 = vld [vmem:[#allocation2 + $0x10] sm:$0xf]
    %v80 = vld [vmem:[#allocation2 + $0x14] sm:$0xf]
    %v81 = vld [vmem:[#allocation2 + $0x18] sm:$0xf]
    %v82 = vld [vmem:[#allocation2 + $0x1c] sm:$0xf]
    %s83 = scalar_lea.vmem [#allocation2], 32
    %v84 = vld [vmem:[%s83] sm:$0xf]
    %v85 = vld [vmem:[%s83 + $0x4] sm:$0xf]
    %v86 = vld [vmem:[%s83 + $0x8] sm:$0xf]
    %v87 = vld [vmem:[%s83 + $0xc] sm:$0xf]
    %v88 = vld [vmem:[%s83 + $0x10] sm:$0xf]
    %v89 = vld [vmem:[%s83 + $0x14] sm:$0xf]
    %v90 = vld [vmem:[%s83 + $0x18] sm:$0xf]
    %v91 = vld [vmem:[%s83 + $0x1c] sm:$0xf]
    %v92 = vld [vmem:[%s0] sm:$0xf]
    %v93 = vld [vmem:[%s0 + $0x4] sm:$0xf]
    %v94 = vld [vmem:[%s0 + $0x8] sm:$0xf]
    %v95 = vld [vmem:[%s0 + $0xc] sm:$0xf]
    %v96 = vld [vmem:[%s0 + $0x10] sm:$0xf]
    %v97 = vld [vmem:[%s0 + $0x14] sm:$0xf]
    %v98 = vld [vmem:[%s0 + $0x18] sm:$0xf]
    %v99 = vld [vmem:[%s0 + $0x1c] sm:$0xf]
    %v100 = vld [vmem:[%s0 + $0x20] sm:$0xf]
    %v101 = vld [vmem:[%s0 + $0x24] sm:$0xf]
    %v102 = vld [vmem:[%s0 + $0x28] sm:$0xf]
    %v103 = vld [vmem:[%s0 + $0x2c] sm:$0xf]
    %v104 = vld [vmem:[%s0 + $0x30] sm:$0xf]
    %v105 = vld [vmem:[%s0 + $0x34] sm:$0xf]
    %v106 = vld [vmem:[%s0 + $0x38] sm:$0xf]
    %v107 = vld [vmem:[%s0 + $0x3c] sm:$0xf]
    %v108 = vld [vmem:[%s1] sm:$0xff]
    %v109 = vld [vmem:[%s1 + $0x8] sm:$0xff]
    %v110 = vld [vmem:[%s1 + $0x10] sm:$0xff]
    %v111 = vld [vmem:[%s1 + $0x18] sm:$0xff]
    %v112 = vld [vmem:[%s1 + $0x20] sm:$0xff]
    %v113 = vld [vmem:[%s1 + $0x28] sm:$0xff]
    %v114 = vld [vmem:[%s1 + $0x30] sm:$0xff]
    %v115 = vld [vmem:[%s1 + $0x38] sm:$0xff]
    %v116 = vld [vmem:[%s1 + $0x40] sm:$0xff]
    %v117 = vld [vmem:[%s1 + $0x48] sm:$0xff]
    %v118 = vld [vmem:[%s1 + $0x50] sm:$0xff]
    %v119 = vld [vmem:[%s1 + $0x58] sm:$0xff]
    %v120 = vld [vmem:[%s1 + $0x60] sm:$0xff]
    %v121 = vld [vmem:[%s1 + $0x68] sm:$0xff]
    %v122 = vld [vmem:[%s1 + $0x70] sm:$0xff]
    %v123 = vld [vmem:[%s1 + $0x78] sm:$0xff]
    %v140 = vunpack.c.l.b16 %v92
    %v141 = vunpack.c.l.b16 %v93
    %v142 = vunpack.c.l.b16 %v94
    %v143 = vunpack.c.l.b16 %v95
    %v144 = vunpack.c.l.b16 %v96
    %v145 = vunpack.c.l.b16 %v97
    %v146 = vunpack.c.l.b16 %v98
    %v147 = vunpack.c.l.b16 %v99
    %v148 = vunpack.c.l.b16 %v100
    %v149 = vunpack.c.l.b16 %v101
    %v150 = vunpack.c.l.b16 %v102
    %v151 = vunpack.c.l.b16 %v103
    %v152 = vunpack.c.l.b16 %v104
    %v153 = vunpack.c.l.b16 %v105
    %v154 = vunpack.c.l.b16 %v106
    %v155 = vunpack.c.l.b16 %v107
    %v156 = vpack.c.b16 %v141, %v140
    %v157 = vpack.c.b16 %v143, %v142
    %v158 = vpack.c.b16 %v145, %v144
    %v159 = vpack.c.b16 %v147, %v146
    %v160 = vpack.c.b16 %v149, %v148
    %v161 = vpack.c.b16 %v151, %v150
    %v162 = vpack.c.b16 %v153, %v152
    %v163 = vpack.c.b16 %v155, %v154
    %v172 = vunpack.c.l.b16 %v75
    %v173 = vunpack.c.l.b16 %v76
    %v174 = vunpack.c.l.b16 %v77
    %v175 = vunpack.c.l.b16 %v78
    %v176 = vunpack.c.l.b16 %v79
    %v177 = vunpack.c.l.b16 %v80
    %v178 = vunpack.c.l.b16 %v81
    %v179 = vunpack.c.l.b16 %v82
    %v180 = vpack.c.b16 %v173, %v172
    %v181 = vpack.c.b16 %v175, %v174
    %v182 = vpack.c.b16 %v177, %v176
    %v183 = vpack.c.b16 %v179, %v178
    %vm188 = vcmask 523264
    %v190 = vsel %vm188, %v156, 0
    %v193 = vsel %vm188, %v157, 0
    %v196 = vsel %vm188, %v158, 0
    %v199 = vsel %vm188, %v159, 0
    %v202 = vsel %vm188, %v160, 0
    %v205 = vsel %vm188, %v161, 0
    %v208 = vsel %vm188, %v162, 0
    %v211 = vsel %vm188, %v163, 0
    %213 = vmatprep.subr.bf16.mxu0 0
    %214 = vmatpush1.bf16.msra.mxu0 %v180
    %215 = vmatprep.subr.bf16.mxu0 0
    %216 = vmatpush1.bf16.msra.mxu0 %v181
    %217 = vmatprep.subr.bf16.mxu0 0
    %218 = vmatpush1.bf16.msra.mxu0 %v182
    %219 = vmatprep.subr.bf16.mxu0 0
    %220 = vmatpush1.bf16.msra.mxu0 %v183
    %221 = vmatprep.subr.bf16.mxu0 0
    %222 = vmatpush1.bf16.msra.mxu0 0
    %223 = vmatprep.subr.bf16.mxu0 0
    %224 = vmatpush1.bf16.msra.mxu0 0
    %225 = vmatprep.subr.bf16.mxu0 0
    %226 = vmatpush1.bf16.msra.mxu0 0
    %227 = vmatprep.subr.bf16.mxu0 0
    %228 = vmatpush1.bf16.msra.mxu0 0
    %229 = vmatprep.subr.bf16.mxu0 0
    %230 = vmatpush1.bf16.msra.mxu0 0
    %231 = vmatprep.subr.bf16.mxu0 0
    %232 = vmatpush1.bf16.msra.mxu0 0
    %233 = vmatprep.subr.bf16.mxu0 0
    %234 = vmatpush1.bf16.msra.mxu0 0
    %235 = vmatprep.subr.bf16.mxu0 0
    %236 = vmatpush1.bf16.msra.mxu0 0
    %237 = vmatprep.subr.bf16.mxu0 0
    %238 = vmatpush1.bf16.msra.mxu0 0
    %239 = vmatprep.subr.bf16.mxu0 0
    %240 = vmatpush1.bf16.msra.mxu0 0
    %241 = vmatprep.subr.bf16.mxu0 0
    %242 = vmatpush1.bf16.msra.mxu0 0
    %243 = vmatprep.subr.bf16.mxu0 0
    %244 = vmatpush1.bf16.msra.mxu0 0
    %245 = vmatprep.mubr.bf16.mxu0 0
    %246 = vmatmul.mubr.bf16.gmra.mrb[0].mxu0 %v190
    %v247 = vpop.f32.mrb[0].mxu0
    %v248 = vadd.f32 %v108, %v247
    %v249 = vpop.f32.mrb[0].mxu0
    %v250 = vpop.f32.mrb[0].mxu0
    %v251 = vadd.f32 %v109, %v250
    %v252 = vpop.f32.mrb[0].mxu0
    %253 = vmatprep.mubr.bf16.mxu0 0
    %254 = vmatmul.mubr.bf16.gmra.mrb[0].mxu0 %v193
    %v255 = vpop.f32.mrb[0].mxu0
    %v256 = vadd.f32 %v110, %v255
    %v257 = vpop.f32.mrb[0].mxu0
    %v258 = vpop.f32.mrb[0].mxu0
    %v259 = vadd.f32 %v111, %v258
    %v260 = vpop.f32.mrb[0].mxu0
    %261 = vmatprep.mubr.bf16.mxu0 0
    %262 = vmatmul.mubr.bf16.gmra.mrb[0].mxu0 %v196
    %v263 = vpop.f32.mrb[0].mxu0
    %v264 = vadd.f32 %v112, %v263
    %v265 = vpop.f32.mrb[0].mxu0
    %v266 = vpop.f32.mrb[0].mxu0
    %v267 = vadd.f32 %v113, %v266
    %v268 = vpop.f32.mrb[0].mxu0
    %269 = vmatprep.mubr.bf16.mxu0 0
    %270 = vmatmul.mubr.bf16.gmra.mrb[0].mxu0 %v199
    %v271 = vpop.f32.mrb[0].mxu0
    %v272 = vadd.f32 %v114, %v271
    %v273 = vpop.f32.mrb[0].mxu0
    %v274 = vpop.f32.mrb[0].mxu0
    %v275 = vadd.f32 %v115, %v274
    %v276 = vpop.f32.mrb[0].mxu0
    %277 = vmatprep.mubr.bf16.mxu0 0
    %278 = vmatmul.mubr.bf16.gmra.mrb[0].mxu0 %v202
    %v279 = vpop.f32.mrb[0].mxu0
    %v280 = vadd.f32 %v116, %v279
    %v281 = vpop.f32.mrb[0].mxu0
    %v282 = vpop.f32.mrb[0].mxu0
    %v283 = vadd.f32 %v117, %v282
    %v284 = vpop.f32.mrb[0].mxu0
    %285 = vmatprep.mubr.bf16.mxu0 0
    %286 = vmatmul.mubr.bf16.gmra.mrb[0].mxu0 %v205
    %v287 = vpop.f32.mrb[0].mxu0
    %v288 = vadd.f32 %v118, %v287
    %v289 = vpop.f32.mrb[0].mxu0
    %v290 = vpop.f32.mrb[0].mxu0
    %v291 = vadd.f32 %v119, %v290
    %v292 = vpop.f32.mrb[0].mxu0
    %293 = vmatprep.mubr.bf16.mxu0 0
    %294 = vmatmul.mubr.bf16.gmra.mrb[0].mxu0 %v208
    %v295 = vpop.f32.mrb[0].mxu0
    %v296 = vadd.f32 %v120, %v295
    %v297 = vpop.f32.mrb[0].mxu0
    %v298 = vpop.f32.mrb[0].mxu0
    %v299 = vadd.f32 %v121, %v298
    %v300 = vpop.f32.mrb[0].mxu0
    %301 = vmatprep.mubr.bf16.mxu0 0
    %302 = vmatmul.mubr.bf16.gmra.mrb[0].mxu0 %v211
    %v303 = vpop.f32.mrb[0].mxu0
    %v304 = vadd.f32 %v122, %v303
    %v305 = vpop.f32.mrb[0].mxu0
    %v306 = vpop.f32.mrb[0].mxu0
    %v307 = vadd.f32 %v123, %v306
    %v308 = vpop.f32.mrb[0].mxu0
    %309 = vdwg.mxu0
    %v310 = vld [vmem:[%s7] sm:$0xff]
    %v311 = vld [vmem:[%s7 + $0x8] sm:$0x1]
    %v312 = vld [vmem:[%s8] sm:$0x3]
    %v313 = vpack.c.bf16 %v251, %v248
    %v314 = vpack.c.bf16 %v259, %v256
    %v315 = vpack.c.bf16 %v267, %v264
    %v316 = vpack.c.bf16 %v275, %v272
    %v317 = vpack.c.bf16 %v283, %v280
    %v318 = vpack.c.bf16 %v291, %v288
    %v319 = vpack.c.bf16 %v299, %v296
    %v320 = vpack.c.bf16 %v307, %v304
    %v321 = vld [vmem:[#allocation5] sm:$0xff]
    %v322 = vld [vmem:[#allocation5 + $0x8] sm:$0xff]
    %v323 = vld [vmem:[#allocation5 + $0x10] sm:$0xff]
    %v324 = vld [vmem:[#allocation5 + $0x18] sm:$0xff]
    %v325 = vld [vmem:[#allocation5 + $0x20] sm:$0xff]
    %v326 = vld [vmem:[#allocation5 + $0x28] sm:$0xff]
    %v327 = vld [vmem:[#allocation5 + $0x30] sm:$0xff]
    %v328 = vld [vmem:[#allocation5 + $0x38] sm:$0xff]
    %v337 = vunpack.c.l.b16 %v321
    %v338 = vunpack.c.h.b16 %v321
    %v339 = vunpack.c.l.b16 %v322
    %v340 = vunpack.c.h.b16 %v322
    %v341 = vunpack.c.l.b16 %v323
    %v342 = vunpack.c.h.b16 %v323
    %v343 = vunpack.c.l.b16 %v324
    %v344 = vunpack.c.h.b16 %v324
    %v345 = vunpack.c.l.b16 %v325
    %v346 = vunpack.c.h.b16 %v325
    %v347 = vunpack.c.l.b16 %v326
    %v348 = vunpack.c.h.b16 %v326
    %v349 = vunpack.c.l.b16 %v327
    %v350 = vunpack.c.h.b16 %v327
    %v351 = vunpack.c.l.b16 %v328
    %v352 = vunpack.c.h.b16 %v328
    %v353 = vpack.c.b16 %v339, %v337
    %v354 = vpack.c.b16 %v340, %v338
    %v355 = vpack.c.b16 %v343, %v341
    %v356 = vpack.c.b16 %v344, %v342
    %v357 = vpack.c.b16 %v347, %v345
    %v358 = vpack.c.b16 %v348, %v346
    %v359 = vpack.c.b16 %v351, %v349
    %v360 = vpack.c.b16 %v352, %v350
    %v370 = vsel %vm188, %v313, 0
    %v373 = vsel %vm188, %v314, 0
    %v376 = vsel %vm188, %v315, 0
    %v379 = vsel %vm188, %v316, 0
    %v382 = vsel %vm188, %v317, 0
    %v385 = vsel %vm188, %v318, 0
    %v388 = vsel %vm188, %v319, 0
    %v391 = vsel %vm188, %v320, 0
    %393 = vmatprep.subr.bf16.mxu0 %v354
    %394 = vmatpush1.bf16.msra.mxu0 %v353
    %395 = vmatprep.subr.bf16.mxu0 %v356
    %396 = vmatpush1.bf16.msra.mxu0 %v355
    %397 = vmatprep.subr.bf16.mxu0 %v358
    %398 = vmatpush1.bf16.msra.mxu0 %v357
    %399 = vmatprep.subr.bf16.mxu0 %v360
    %400 = vmatpush1.bf16.msra.mxu0 %v359
    %401 = vmatprep.subr.bf16.mxu0 0
    %402 = vmatpush1.bf16.msra.mxu0 0
    %403 = vmatprep.subr.bf16.mxu0 0
    %404 = vmatpush1.bf16.msra.mxu0 0
    %405 = vmatprep.subr.bf16.mxu0 0
    %406 = vmatpush1.bf16.msra.mxu0 0
    %407 = vmatprep.subr.bf16.mxu0 0
    %408 = vmatpush1.bf16.msra.mxu0 0
    %409 = vmatprep.subr.bf16.mxu0 0
    %410 = vmatpush1.bf16.msra.mxu0 0
    %411 = vmatprep.subr.bf16.mxu0 0
    %412 = vmatpush1.bf16.msra.mxu0 0
    %413 = vmatprep.subr.bf16.mxu0 0
    %414 = vmatpush1.bf16.msra.mxu0 0
    %415 = vmatprep.subr.bf16.mxu0 0
    %416 = vmatpush1.bf16.msra.mxu0 0
    %417 = vmatprep.subr.bf16.mxu0 0
    %418 = vmatpush1.bf16.msra.mxu0 0
    %419 = vmatprep.subr.bf16.mxu0 0
    %420 = vmatpush1.bf16.msra.mxu0 0
    %421 = vmatprep.subr.bf16.mxu0 0
    %422 = vmatpush1.bf16.msra.mxu0 0
    %423 = vmatprep.subr.bf16.mxu0 0
    %424 = vmatpush1.bf16.msra.mxu0 0
    %425 = vmatprep.mubr.bf16.mxu0 0
    %426 = vmatmul.mubr.bf16.gmra.mrb[0].mxu0 %v370
    %v427 = vpop.f32.mrb[0].mxu0
    %v428 = vadd.f32 0.0, %v427
    %v429 = vpop.f32.mrb[0].mxu0
    %v430 = vadd.f32 0.0, %v429
    %v431 = vpop.f32.mrb[0].mxu0
    %v432 = vadd.f32 0.0, %v431
    %v433 = vpop.f32.mrb[0].mxu0
    %v434 = vadd.f32 0.0, %v433
    %435 = vmatprep.mubr.bf16.mxu0 0
    %436 = vmatmul.mubr.bf16.gmra.mrb[0].mxu0 %v373
    %v437 = vpop.f32.mrb[0].mxu0
    %v438 = vadd.f32 0.0, %v437
    %v439 = vpop.f32.mrb[0].mxu0
    %v440 = vadd.f32 0.0, %v439
    %v441 = vpop.f32.mrb[0].mxu0
    %v442 = vadd.f32 0.0, %v441
    %v443 = vpop.f32.mrb[0].mxu0
    %v444 = vadd.f32 0.0, %v443
    %445 = vmatprep.mubr.bf16.mxu0 0
    %446 = vmatmul.mubr.bf16.gmra.mrb[0].mxu0 %v376
    %v447 = vpop.f32.mrb[0].mxu0
    %v448 = vadd.f32 0.0, %v447
    %v449 = vpop.f32.mrb[0].mxu0
    %v450 = vadd.f32 0.0, %v449
    %v451 = vpop.f32.mrb[0].mxu0
    %v452 = vadd.f32 0.0, %v451
    %v453 = vpop.f32.mrb[0].mxu0
    %v454 = vadd.f32 0.0, %v453
    %455 = vmatprep.mubr.bf16.mxu0 0
    %456 = vmatmul.mubr.bf16.gmra.mrb[0].mxu0 %v379
    %v457 = vpop.f32.mrb[0].mxu0
    %v458 = vadd.f32 0.0, %v457
    %v459 = vpop.f32.mrb[0].mxu0
    %v460 = vadd.f32 0.0, %v459
    %v461 = vpop.f32.mrb[0].mxu0
    %v462 = vadd.f32 0.0, %v461
    %v463 = vpop.f32.mrb[0].mxu0
    %v464 = vadd.f32 0.0, %v463
    %465 = vmatprep.mubr.bf16.mxu0 0
    %466 = vmatmul.mubr.bf16.gmra.mrb[0].mxu0 %v382
    %v467 = vpop.f32.mrb[0].mxu0
    %v468 = vadd.f32 0.0, %v467
    %v469 = vpop.f32.mrb[0].mxu0
    %v470 = vadd.f32 0.0, %v469
    %v471 = vpop.f32.mrb[0].mxu0
    %v472 = vadd.f32 0.0, %v471
    %v473 = vpop.f32.mrb[0].mxu0
    %v474 = vadd.f32 0.0, %v473
    %475 = vmatprep.mubr.bf16.mxu0 0
    %476 = vmatmul.mubr.bf16.gmra.mrb[0].mxu0 %v385
    %v477 = vpop.f32.mrb[0].mxu0
    %v478 = vadd.f32 0.0, %v477
    %v479 = vpop.f32.mrb[0].mxu0
    %v480 = vadd.f32 0.0, %v479
    %v481 = vpop.f32.mrb[0].mxu0
    %v482 = vadd.f32 0.0, %v481
    %v483 = vpop.f32.mrb[0].mxu0
    %v484 = vadd.f32 0.0, %v483
    %485 = vmatprep.mubr.bf16.mxu0 0
    %486 = vmatmul.mubr.bf16.gmra.mrb[0].mxu0 %v388
    %v487 = vpop.f32.mrb[0].mxu0
    %v488 = vadd.f32 0.0, %v487
    %v489 = vpop.f32.mrb[0].mxu0
    %v490 = vadd.f32 0.0, %v489
    %v491 = vpop.f32.mrb[0].mxu0
    %v492 = vadd.f32 0.0, %v491
    %v493 = vpop.f32.mrb[0].mxu0
    %v494 = vadd.f32 0.0, %v493
    %495 = vmatprep.mubr.bf16.mxu0 0
    %496 = vmatmul.mubr.bf16.gmra.mrb[0].mxu0 %v391
    %v497 = vpop.f32.mrb[0].mxu0
    %v498 = vadd.f32 0.0, %v497
    %v499 = vpop.f32.mrb[0].mxu0
    %v500 = vadd.f32 0.0, %v499
    %v501 = vpop.f32.mrb[0].mxu0
    %v502 = vadd.f32 0.0, %v501
    %v503 = vpop.f32.mrb[0].mxu0
    %v504 = vadd.f32 0.0, %v503
    %505 = vdwg.mxu0
    %v506 = vlaneseq
    %v507 = vshrl.u32 %v506, 7
    %v508 = vsub.s32 0, %v507
    %v509 = vrot.slane %v310, %v508
    %v510 = vadd.f32 %v428, %v509
    %v511 = vadd.f32 %v432, %v509
    %v512 = vadd.f32 %v438, %v509
    %v513 = vadd.f32 %v442, %v509
    %v514 = vadd.f32 %v448, %v509
    %v515 = vadd.f32 %v452, %v509
    %v516 = vadd.f32 %v458, %v509
    %v517 = vadd.f32 %v462, %v509
    %v518 = vadd.f32 %v468, %v509
    %v519 = vadd.f32 %v472, %v509
    %v520 = vadd.f32 %v478, %v509
    %v521 = vadd.f32 %v482, %v509
    %v522 = vadd.f32 %v488, %v509
    %v523 = vadd.f32 %v492, %v509
    %v524 = vadd.f32 %v498, %v509
    %v525 = vadd.f32 %v502, %v509
    %v526 = vlaneseq
    %v527 = vshrl.u32 %v526, 7
    %v528 = vsub.s32 1, %v527
    %v529 = vrot.slane %v310, %v528
    %531 = vrot.lane.b32.xlu0 %v529, 64
    %v532 = vpop.permute.xlu0 %531
    %v534 = vadd.f32 %v428, %v532
    %v535 = vadd.f32 %v432, %v532
    %v536 = vadd.f32 %v438, %v532
    %v537 = vadd.f32 %v442, %v532
    %v538 = vadd.f32 %v448, %v532
    %v539 = vadd.f32 %v452, %v532
    %v540 = vadd.f32 %v458, %v532
    %v541 = vadd.f32 %v462, %v532
    %v542 = vadd.f32 %v468, %v532
    %v543 = vadd.f32 %v472, %v532
    %v544 = vadd.f32 %v478, %v532
    %v545 = vadd.f32 %v482, %v532
    %v546 = vadd.f32 %v488, %v532
    %v547 = vadd.f32 %v492, %v532
    %v548 = vadd.f32 %v498, %v532
    %v549 = vadd.f32 %v502, %v532
    %v550 = vlaneseq
    %v551 = vshrl.u32 %v550, 7
    %v552 = vsub.s32 2, %v551
    %v553 = vrot.slane %v310, %v552
    %v554 = vadd.f32 %v430, %v553
    %v555 = vadd.f32 %v434, %v553
    %v556 = vadd.f32 %v440, %v553
    %v557 = vadd.f32 %v444, %v553
    %v558 = vadd.f32 %v450, %v553
    %v559 = vadd.f32 %v454, %v553
    %v560 = vadd.f32 %v460, %v553
    %v561 = vadd.f32 %v464, %v553
    %v562 = vadd.f32 %v470, %v553
    %v563 = vadd.f32 %v474, %v553
    %v564 = vadd.f32 %v480, %v553
    %v565 = vadd.f32 %v484, %v553
    %v566 = vadd.f32 %v490, %v553
    %v567 = vadd.f32 %v494, %v553
    %v568 = vadd.f32 %v500, %v553
    %v569 = vadd.f32 %v504, %v553
    %586 = vrot.lane.b32.xlu0 %v534, 64
    %v587 = vpop.permute.xlu0 %586
    %588 = vrot.lane.b32.xlu0 %v535, 64
    %v589 = vpop.permute.xlu0 %588
    %590 = vrot.lane.b32.xlu0 %v536, 64
    %v591 = vpop.permute.xlu0 %590
    %592 = vrot.lane.b32.xlu0 %v537, 64
    %v593 = vpop.permute.xlu0 %592
    %594 = vrot.lane.b32.xlu0 %v538, 64
    %v595 = vpop.permute.xlu0 %594
    %596 = vrot.lane.b32.xlu0 %v539, 64
    %v597 = vpop.permute.xlu0 %596
    %598 = vrot.lane.b32.xlu0 %v540, 64
    %v599 = vpop.permute.xlu0 %598
    %600 = vrot.lane.b32.xlu0 %v541, 64
    %v601 = vpop.permute.xlu0 %600
    %602 = vrot.lane.b32.xlu0 %v542, 64
    %v603 = vpop.permute.xlu0 %602
    %604 = vrot.lane.b32.xlu0 %v543, 64
    %v605 = vpop.permute.xlu0 %604
    %606 = vrot.lane.b32.xlu0 %v544, 64
    %v607 = vpop.permute.xlu0 %606
    %608 = vrot.lane.b32.xlu0 %v545, 64
    %v609 = vpop.permute.xlu0 %608
    %610 = vrot.lane.b32.xlu0 %v546, 64
    %v611 = vpop.permute.xlu0 %610
    %612 = vrot.lane.b32.xlu0 %v547, 64
    %v613 = vpop.permute.xlu0 %612
    %614 = vrot.lane.b32.xlu0 %v548, 64
    %v615 = vpop.permute.xlu0 %614
    %616 = vrot.lane.b32.xlu0 %v549, 64
    %v617 = vpop.permute.xlu0 %616
    %v634 = vmul.f32 %v510, %v587
    %v635 = vmul.f32 %v511, %v589
    %v636 = vmul.f32 %v512, %v591
    %v637 = vmul.f32 %v513, %v593
    %v638 = vmul.f32 %v514, %v595
    %v639 = vmul.f32 %v515, %v597
    %v640 = vmul.f32 %v516, %v599
    %v641 = vmul.f32 %v517, %v601
    %v642 = vmul.f32 %v510, %v603
    %v643 = vmul.f32 %v511, %v605
    %v644 = vmul.f32 %v512, %v607
    %v645 = vmul.f32 %v513, %v609
    %v646 = vmul.f32 %v514, %v611
    %v647 = vmul.f32 %v515, %v613
    %v648 = vmul.f32 %v516, %v615
    %v649 = vmul.f32 %v517, %v617
    %v650 = vmul.f32 %v518, %v587
    %v651 = vmul.f32 %v519, %v589
    %v652 = vmul.f32 %v520, %v591
    %v653 = vmul.f32 %v521, %v593
    %v654 = vmul.f32 %v522, %v595
    %v655 = vmul.f32 %v523, %v597
    %v656 = vmul.f32 %v524, %v599
    %v657 = vmul.f32 %v525, %v601
    %v658 = vmul.f32 %v518, %v603
    %v659 = vmul.f32 %v519, %v605
    %v660 = vmul.f32 %v520, %v607
    %v661 = vmul.f32 %v521, %v609
    %v662 = vmul.f32 %v522, %v611
    %v663 = vmul.f32 %v523, %v613
    %v664 = vmul.f32 %v524, %v615
    %v665 = vmul.f32 %v525, %v617
    %v666 = vpack.c.bf16 %v635, %v634
    %v667 = vpack.c.bf16 %v637, %v636
    %v668 = vpack.c.bf16 %v639, %v638
    %v669 = vpack.c.bf16 %v641, %v640
    %v670 = vpack.c.bf16 %v643, %v642
    %v671 = vpack.c.bf16 %v645, %v644
    %v672 = vpack.c.bf16 %v647, %v646
    %v673 = vpack.c.bf16 %v649, %v648
    %v674 = vpack.c.bf16 %v651, %v650
    %v675 = vpack.c.bf16 %v653, %v652
    %v676 = vpack.c.bf16 %v655, %v654
    %v677 = vpack.c.bf16 %v657, %v656
    %v678 = vpack.c.bf16 %v659, %v658
    %v679 = vpack.c.bf16 %v661, %v660
    %v680 = vpack.c.bf16 %v663, %v662
    %v681 = vpack.c.bf16 %v665, %v664
    %v690 = vunpack.c.l.b16 %v84
    %v691 = vunpack.c.l.b16 %v85
    %v692 = vunpack.c.l.b16 %v86
    %v693 = vunpack.c.l.b16 %v87
    %v694 = vunpack.c.l.b16 %v88
    %v695 = vunpack.c.l.b16 %v89
    %v696 = vunpack.c.l.b16 %v90
    %v697 = vunpack.c.l.b16 %v91
    %v698 = vpack.c.b16 %v691, %v690
    %v699 = vpack.c.b16 %v693, %v692
    %v700 = vpack.c.b16 %v695, %v694
    %v701 = vpack.c.b16 %v697, %v696
    %v707 = vsel %vm188, %v666, 0
    %v710 = vsel %vm188, %v667, 0
    %v713 = vsel %vm188, %v668, 0
    %v716 = vsel %vm188, %v669, 0
    %v719 = vsel %vm188, %v670, 0
    %v722 = vsel %vm188, %v671, 0
    %v725 = vsel %vm188, %v672, 0
    %v728 = vsel %vm188, %v673, 0
    %v731 = vsel %vm188, %v674, 0
    %v734 = vsel %vm188, %v675, 0
    %v737 = vsel %vm188, %v676, 0
    %v740 = vsel %vm188, %v677, 0
    %v743 = vsel %vm188, %v678, 0
    %v746 = vsel %vm188, %v679, 0
    %v749 = vsel %vm188, %v680, 0
    %v752 = vsel %vm188, %v681, 0
    %754 = vmatprep.subr.bf16.mxu0 0
    %755 = vmatpush1.bf16.msra.mxu0 %v698
    %756 = vmatprep.subr.bf16.mxu0 0
    %757 = vmatpush1.bf16.msra.mxu0 %v699
    %758 = vmatprep.subr.bf16.mxu0 0
    %759 = vmatpush1.bf16.msra.mxu0 %v700
    %760 = vmatprep.subr.bf16.mxu0 0
    %761 = vmatpush1.bf16.msra.mxu0 %v701
    %762 = vmatprep.subr.bf16.mxu0 0
    %763 = vmatpush1.bf16.msra.mxu0 0
    %764 = vmatprep.subr.bf16.mxu0 0
    %765 = vmatpush1.bf16.msra.mxu0 0
    %766 = vmatprep.subr.bf16.mxu0 0
    %767 = vmatpush1.bf16.msra.mxu0 0
    %768 = vmatprep.subr.bf16.mxu0 0
    %769 = vmatpush1.bf16.msra.mxu0 0
    %770 = vmatprep.subr.bf16.mxu0 0
    %771 = vmatpush1.bf16.msra.mxu0 0
    %772 = vmatprep.subr.bf16.mxu0 0
    %773 = vmatpush1.bf16.msra.mxu0 0
    %774 = vmatprep.subr.bf16.mxu0 0
    %775 = vmatpush1.bf16.msra.mxu0 0
    %776 = vmatprep.subr.bf16.mxu0 0
    %777 = vmatpush1.bf16.msra.mxu0 0
    %778 = vmatprep.subr.bf16.mxu0 0
    %779 = vmatpush1.bf16.msra.mxu0 0
    %780 = vmatprep.subr.bf16.mxu0 0
    %781 = vmatpush1.bf16.msra.mxu0 0
    %782 = vmatprep.subr.bf16.mxu0 0
    %783 = vmatpush1.bf16.msra.mxu0 0
    %784 = vmatprep.subr.bf16.mxu0 0
    %785 = vmatpush1.bf16.msra.mxu0 0
    %786 = vmatprep.mubr.bf16.mxu0 0
    %787 = vmatmul.mubr.bf16.gmra.mrb[0].mxu0 %v707
    %v788 = vpop.f32.mrb[0].mxu0
    %v789 = vadd.f32 0.0, %v788
    %v790 = vpop.f32.mrb[0].mxu0
    %v791 = vpop.f32.mrb[0].mxu0
    %v792 = vadd.f32 0.0, %v791
    %v793 = vpop.f32.mrb[0].mxu0
    %794 = vmatprep.mubr.bf16.mxu0 0
    %795 = vmatmul.mubr.bf16.gmra.mrb[0].mxu0 %v710
    %v796 = vpop.f32.mrb[0].mxu0
    %v797 = vadd.f32 0.0, %v796
    %v798 = vpop.f32.mrb[0].mxu0
    %v799 = vpop.f32.mrb[0].mxu0
    %v800 = vadd.f32 0.0, %v799
    %v801 = vpop.f32.mrb[0].mxu0
    %802 = vmatprep.mubr.bf16.mxu0 0
    %803 = vmatmul.mubr.bf16.gmra.mrb[0].mxu0 %v713
    %v804 = vpop.f32.mrb[0].mxu0
    %v805 = vadd.f32 0.0, %v804
    %v806 = vpop.f32.mrb[0].mxu0
    %v807 = vpop.f32.mrb[0].mxu0
    %v808 = vadd.f32 0.0, %v807
    %v809 = vpop.f32.mrb[0].mxu0
    %810 = vmatprep.mubr.bf16.mxu0 0
    %811 = vmatmul.mubr.bf16.gmra.mrb[0].mxu0 %v716
    %v812 = vpop.f32.mrb[0].mxu0
    %v813 = vadd.f32 0.0, %v812
    %v814 = vpop.f32.mrb[0].mxu0
    %v815 = vpop.f32.mrb[0].mxu0
    %v816 = vadd.f32 0.0, %v815
    %v817 = vpop.f32.mrb[0].mxu0
    %818 = vmatprep.mubr.bf16.mxu0 0
    %819 = vmatmul.mubr.bf16.gmra.mrb[0].mxu0 %v719
    %v820 = vpop.f32.mrb[0].mxu0
    %v821 = vadd.f32 0.0, %v820
    %v822 = vpop.f32.mrb[0].mxu0
    %v823 = vpop.f32.mrb[0].mxu0
    %v824 = vadd.f32 0.0, %v823
    %v825 = vpop.f32.mrb[0].mxu0
    %826 = vmatprep.mubr.bf16.mxu0 0
    %827 = vmatmul.mubr.bf16.gmra.mrb[0].mxu0 %v722
    %v828 = vpop.f32.mrb[0].mxu0
    %v829 = vadd.f32 0.0, %v828
    %v830 = vpop.f32.mrb[0].mxu0
    %v831 = vpop.f32.mrb[0].mxu0
    %v832 = vadd.f32 0.0, %v831
    %v833 = vpop.f32.mrb[0].mxu0
    %834 = vmatprep.mubr.bf16.mxu0 0
    %835 = vmatmul.mubr.bf16.gmra.mrb[0].mxu0 %v725
    %v836 = vpop.f32.mrb[0].mxu0
    %v837 = vadd.f32 0.0, %v836
    %v838 = vpop.f32.mrb[0].mxu0
    %v839 = vpop.f32.mrb[0].mxu0
    %v840 = vadd.f32 0.0, %v839
    %v841 = vpop.f32.mrb[0].mxu0
    %842 = vmatprep.mubr.bf16.mxu0 0
    %843 = vmatmul.mubr.bf16.gmra.mrb[0].mxu0 %v728
    %v844 = vpop.f32.mrb[0].mxu0
    %v845 = vadd.f32 0.0, %v844
    %v846 = vpop.f32.mrb[0].mxu0
    %v847 = vpop.f32.mrb[0].mxu0
    %v848 = vadd.f32 0.0, %v847
    %v849 = vpop.f32.mrb[0].mxu0
    %850 = vmatprep.mubr.bf16.mxu0 0
    %851 = vmatmul.mubr.bf16.gmra.mrb[0].mxu0 %v731
    %v852 = vpop.f32.mrb[0].mxu0
    %v853 = vadd.f32 0.0, %v852
    %v854 = vpop.f32.mrb[0].mxu0
    %v855 = vpop.f32.mrb[0].mxu0
    %v856 = vadd.f32 0.0, %v855
    %v857 = vpop.f32.mrb[0].mxu0
    %858 = vmatprep.mubr.bf16.mxu0 0
    %859 = vmatmul.mubr.bf16.gmra.mrb[0].mxu0 %v734
    %v860 = vpop.f32.mrb[0].mxu0
    %v861 = vadd.f32 0.0, %v860
    %v862 = vpop.f32.mrb[0].mxu0
    %v863 = vpop.f32.mrb[0].mxu0
    %v864 = vadd.f32 0.0, %v863
    %v865 = vpop.f32.mrb[0].mxu0
    %866 = vmatprep.mubr.bf16.mxu0 0
    %867 = vmatmul.mubr.bf16.gmra.mrb[0].mxu0 %v737
    %v868 = vpop.f32.mrb[0].mxu0
    %v869 = vadd.f32 0.0, %v868
    %v870 = vpop.f32.mrb[0].mxu0
    %v871 = vpop.f32.mrb[0].mxu0
    %v872 = vadd.f32 0.0, %v871
    %v873 = vpop.f32.mrb[0].mxu0
    %874 = vmatprep.mubr.bf16.mxu0 0
    %875 = vmatmul.mubr.bf16.gmra.mrb[0].mxu0 %v740
    %v876 = vpop.f32.mrb[0].mxu0
    %v877 = vadd.f32 0.0, %v876
    %v878 = vpop.f32.mrb[0].mxu0
    %v879 = vpop.f32.mrb[0].mxu0
    %v880 = vadd.f32 0.0, %v879
    %v881 = vpop.f32.mrb[0].mxu0
    %882 = vmatprep.mubr.bf16.mxu0 0
    %883 = vmatmul.mubr.bf16.gmra.mrb[0].mxu0 %v743
    %v884 = vpop.f32.mrb[0].mxu0
    %v885 = vadd.f32 0.0, %v884
    %v886 = vpop.f32.mrb[0].mxu0
    %v887 = vpop.f32.mrb[0].mxu0
    %v888 = vadd.f32 0.0, %v887
    %v889 = vpop.f32.mrb[0].mxu0
    %890 = vmatprep.mubr.bf16.mxu0 0
    %891 = vmatmul.mubr.bf16.gmra.mrb[0].mxu0 %v746
    %v892 = vpop.f32.mrb[0].mxu0
    %v893 = vadd.f32 0.0, %v892
    %v894 = vpop.f32.mrb[0].mxu0
    %v895 = vpop.f32.mrb[0].mxu0
    %v896 = vadd.f32 0.0, %v895
    %v897 = vpop.f32.mrb[0].mxu0
    %898 = vmatprep.mubr.bf16.mxu0 0
    %899 = vmatmul.mubr.bf16.gmra.mrb[0].mxu0 %v749
    %v900 = vpop.f32.mrb[0].mxu0
    %v901 = vadd.f32 0.0, %v900
    %v902 = vpop.f32.mrb[0].mxu0
    %v903 = vpop.f32.mrb[0].mxu0
    %v904 = vadd.f32 0.0, %v903
    %v905 = vpop.f32.mrb[0].mxu0
    %906 = vmatprep.mubr.bf16.mxu0 0
    %907 = vmatmul.mubr.bf16.gmra.mrb[0].mxu0 %v752
    %v908 = vpop.f32.mrb[0].mxu0
    %v909 = vadd.f32 0.0, %v908
    %v910 = vpop.f32.mrb[0].mxu0
    %v911 = vpop.f32.mrb[0].mxu0
    %v912 = vadd.f32 0.0, %v911
    %v913 = vpop.f32.mrb[0].mxu0
    %914 = vdwg.mxu0
    %v915 = vmax.f32 %v789, %v821
    %v916 = vmax.f32 %v792, %v824
    %v917 = vmax.f32 %v797, %v829
    %v918 = vmax.f32 %v800, %v832
    %v919 = vmax.f32 %v805, %v837
    %v920 = vmax.f32 %v808, %v840
    %v921 = vmax.f32 %v813, %v845
    %v922 = vmax.f32 %v816, %v848
    %v923 = vsub.f32 %v789, %v915
    %v924 = vsub.f32 %v792, %v916
    %v925 = vsub.f32 %v797, %v917
    %v926 = vsub.f32 %v800, %v918
    %v927 = vsub.f32 %v805, %v919
    %v928 = vsub.f32 %v808, %v920
    %v929 = vsub.f32 %v813, %v921
    %v930 = vsub.f32 %v816, %v922
    %v931 = vmul.f32 %v923, 1.442695
    %v932 = vpow.pop %v931
    %v933 = vmul.f32 %v924, 1.442695
    %v934 = vpow.pop %v933
    %v935 = vmul.f32 %v925, 1.442695
    %v936 = vpow.pop %v935
    %v937 = vmul.f32 %v926, 1.442695
    %v938 = vpow.pop %v937
    %v939 = vmul.f32 %v927, 1.442695
    %v940 = vpow.pop %v939
    %v941 = vmul.f32 %v928, 1.442695
    %v942 = vpow.pop %v941
    %v943 = vmul.f32 %v929, 1.442695
    %v944 = vpow.pop %v943
    %v945 = vmul.f32 %v930, 1.442695
    %v946 = vpow.pop %v945
    %v947 = vsub.f32 %v821, %v915
    %v948 = vsub.f32 %v824, %v916
    %v949 = vsub.f32 %v829, %v917
    %v950 = vsub.f32 %v832, %v918
    %v951 = vsub.f32 %v837, %v919
    %v952 = vsub.f32 %v840, %v920
    %v953 = vsub.f32 %v845, %v921
    %v954 = vsub.f32 %v848, %v922
    %v955 = vmul.f32 %v947, 1.442695
    %v956 = vpow.pop %v955
    %v957 = vmul.f32 %v948, 1.442695
    %v958 = vpow.pop %v957
    %v959 = vmul.f32 %v949, 1.442695
    %v960 = vpow.pop %v959
    %v961 = vmul.f32 %v950, 1.442695
    %v962 = vpow.pop %v961
    %v963 = vmul.f32 %v951, 1.442695
    %v964 = vpow.pop %v963
    %v965 = vmul.f32 %v952, 1.442695
    %v966 = vpow.pop %v965
    %v967 = vmul.f32 %v953, 1.442695
    %v968 = vpow.pop %v967
    %v969 = vmul.f32 %v954, 1.442695
    %v970 = vpow.pop %v969
    %v971 = vadd.f32 %v932, %v956
    %v972 = vadd.f32 %v934, %v958
    %v973 = vadd.f32 %v936, %v960
    %v974 = vadd.f32 %v938, %v962
    %v975 = vadd.f32 %v940, %v964
    %v976 = vadd.f32 %v942, %v966
    %v977 = vadd.f32 %v944, %v968
    %v978 = vadd.f32 %v946, %v970
    %v979 = vrcp.pop %v971
    %v980 = vrcp.pop %v972
    %v981 = vrcp.pop %v973
    %v982 = vrcp.pop %v974
    %v983 = vrcp.pop %v975
    %v984 = vrcp.pop %v976
    %v985 = vrcp.pop %v977
    %v986 = vrcp.pop %v978
    %v987 = vmul.f32 %v932, %v979
    %v988 = vmul.f32 %v934, %v980
    %v989 = vmul.f32 %v936, %v981
    %v990 = vmul.f32 %v938, %v982
    %v991 = vmul.f32 %v940, %v983
    %v992 = vmul.f32 %v942, %v984
    %v993 = vmul.f32 %v944, %v985
    %v994 = vmul.f32 %v946, %v986
    %v995 = vmul.f32 %v987, %v554
    %v996 = vmul.f32 %v988, %v555
    %v997 = vmul.f32 %v989, %v556
    %v998 = vmul.f32 %v990, %v557
    %v999 = vmul.f32 %v991, %v558
    %v1000 = vmul.f32 %v992, %v559
    %v1001 = vmul.f32 %v993, %v560
    %v1002 = vmul.f32 %v994, %v561
    %v1003 = vmul.f32 %v956, %v979
    %v1004 = vmul.f32 %v958, %v980
    %v1005 = vmul.f32 %v960, %v981
    %v1006 = vmul.f32 %v962, %v982
    %v1007 = vmul.f32 %v964, %v983
    %v1008 = vmul.f32 %v966, %v984
    %v1009 = vmul.f32 %v968, %v985
    %v1010 = vmul.f32 %v970, %v986
    %v1011 = vmul.f32 %v1003, %v562
    %v1012 = vmul.f32 %v1004, %v563
    %v1013 = vmul.f32 %v1005, %v564
    %v1014 = vmul.f32 %v1006, %v565
    %v1015 = vmul.f32 %v1007, %v566
    %v1016 = vmul.f32 %v1008, %v567
    %v1017 = vmul.f32 %v1009, %v568
    %v1018 = vmul.f32 %v1010, %v569
    %v1019 = vadd.f32 %v995, %v1011
    %v1020 = vadd.f32 %v996, %v1012
    %v1021 = vadd.f32 %v997, %v1013
    %v1022 = vadd.f32 %v998, %v1014
    %v1023 = vadd.f32 %v999, %v1015
    %v1024 = vadd.f32 %v1000, %v1016
    %v1025 = vadd.f32 %v1001, %v1017
    %v1026 = vadd.f32 %v1002, %v1018
    %v1027 = vmax.f32 %v853, %v885
    %v1028 = vmax.f32 %v856, %v888
    %v1029 = vmax.f32 %v861, %v893
    %v1030 = vmax.f32 %v864, %v896
    %v1031 = vmax.f32 %v869, %v901
    %v1032 = vmax.f32 %v872, %v904
    %v1033 = vmax.f32 %v877, %v909
    %v1034 = vmax.f32 %v880, %v912
    %v1035 = vsub.f32 %v853, %v1027
    %v1036 = vsub.f32 %v856, %v1028
    %v1037 = vsub.f32 %v861, %v1029
    %v1038 = vsub.f32 %v864, %v1030
    %v1039 = vsub.f32 %v869, %v1031
    %v1040 = vsub.f32 %v872, %v1032
    %v1041 = vsub.f32 %v877, %v1033
    %v1042 = vsub.f32 %v880, %v1034
    %v1043 = vmul.f32 %v1035, 1.442695
    %v1044 = vpow.pop %v1043
    %v1045 = vmul.f32 %v1036, 1.442695
    %v1046 = vpow.pop %v1045
    %v1047 = vmul.f32 %v1037, 1.442695
    %v1048 = vpow.pop %v1047
    %v1049 = vmul.f32 %v1038, 1.442695
    %v1050 = vpow.pop %v1049
    %v1051 = vmul.f32 %v1039, 1.442695
    %v1052 = vpow.pop %v1051
    %v1053 = vmul.f32 %v1040, 1.442695
    %v1054 = vpow.pop %v1053
    %v1055 = vmul.f32 %v1041, 1.442695
    %v1056 = vpow.pop %v1055
    %v1057 = vmul.f32 %v1042, 1.442695
    %v1058 = vpow.pop %v1057
    %v1059 = vsub.f32 %v885, %v1027
    %v1060 = vsub.f32 %v888, %v1028
    %v1061 = vsub.f32 %v893, %v1029
    %v1062 = vsub.f32 %v896, %v1030
    %v1063 = vsub.f32 %v901, %v1031
    %v1064 = vsub.f32 %v904, %v1032
    %v1065 = vsub.f32 %v909, %v1033
    %v1066 = vsub.f32 %v912, %v1034
    %v1067 = vmul.f32 %v1059, 1.442695
    %v1068 = vpow.pop %v1067
    %v1069 = vmul.f32 %v1060, 1.442695
    %v1070 = vpow.pop %v1069
    %v1071 = vmul.f32 %v1061, 1.442695
    %v1072 = vpow.pop %v1071
    %v1073 = vmul.f32 %v1062, 1.442695
    %v1074 = vpow.pop %v1073
    %v1075 = vmul.f32 %v1063, 1.442695
    %v1076 = vpow.pop %v1075
    %v1077 = vmul.f32 %v1064, 1.442695
    %v1078 = vpow.pop %v1077
    %v1079 = vmul.f32 %v1065, 1.442695
    %v1080 = vpow.pop %v1079
    %v1081 = vmul.f32 %v1066, 1.442695
    %v1082 = vpow.pop %v1081
    %v1083 = vadd.f32 %v1044, %v1068
    %v1084 = vadd.f32 %v1046, %v1070
    %v1085 = vadd.f32 %v1048, %v1072
    %v1086 = vadd.f32 %v1050, %v1074
    %v1087 = vadd.f32 %v1052, %v1076
    %v1088 = vadd.f32 %v1054, %v1078
    %v1089 = vadd.f32 %v1056, %v1080
    %v1090 = vadd.f32 %v1058, %v1082
    %v1091 = vrcp.pop %v1083
    %v1092 = vrcp.pop %v1084
    %v1093 = vrcp.pop %v1085
    %v1094 = vrcp.pop %v1086
    %v1095 = vrcp.pop %v1087
    %v1096 = vrcp.pop %v1088
    %v1097 = vrcp.pop %v1089
    %v1098 = vrcp.pop %v1090
    %v1099 = vmul.f32 %v1044, %v1091
    %v1100 = vmul.f32 %v1046, %v1092
    %v1101 = vmul.f32 %v1048, %v1093
    %v1102 = vmul.f32 %v1050, %v1094
    %v1103 = vmul.f32 %v1052, %v1095
    %v1104 = vmul.f32 %v1054, %v1096
    %v1105 = vmul.f32 %v1056, %v1097
    %v1106 = vmul.f32 %v1058, %v1098
    %v1107 = vmul.f32 %v1099, %v554
    %v1108 = vmul.f32 %v1100, %v555
    %v1109 = vmul.f32 %v1101, %v556
    %v1110 = vmul.f32 %v1102, %v557
    %v1111 = vmul.f32 %v1103, %v558
    %v1112 = vmul.f32 %v1104, %v559
    %v1113 = vmul.f32 %v1105, %v560
    %v1114 = vmul.f32 %v1106, %v561
    %v1115 = vmul.f32 %v1068, %v1091
    %v1116 = vmul.f32 %v1070, %v1092
    %v1117 = vmul.f32 %v1072, %v1093
    %v1118 = vmul.f32 %v1074, %v1094
    %v1119 = vmul.f32 %v1076, %v1095
    %v1120 = vmul.f32 %v1078, %v1096
    %v1121 = vmul.f32 %v1080, %v1097
    %v1122 = vmul.f32 %v1082, %v1098
    %v1123 = vmul.f32 %v1115, %v562
    %v1124 = vmul.f32 %v1116, %v563
    %v1125 = vmul.f32 %v1117, %v564
    %v1126 = vmul.f32 %v1118, %v565
    %v1127 = vmul.f32 %v1119, %v566
    %v1128 = vmul.f32 %v1120, %v567
    %v1129 = vmul.f32 %v1121, %v568
    %v1130 = vmul.f32 %v1122, %v569
    %v1131 = vadd.f32 %v1107, %v1123
    %v1132 = vadd.f32 %v1108, %v1124
    %v1133 = vadd.f32 %v1109, %v1125
    %v1134 = vadd.f32 %v1110, %v1126
    %v1135 = vadd.f32 %v1111, %v1127
    %v1136 = vadd.f32 %v1112, %v1128
    %v1137 = vadd.f32 %v1113, %v1129
    %v1138 = vadd.f32 %v1114, %v1130
    %v1139 = vpack.c.bf16 %v1020, %v1019
    %v1140 = vpack.c.bf16 %v1022, %v1021
    %v1141 = vpack.c.bf16 %v1024, %v1023
    %v1142 = vpack.c.bf16 %v1026, %v1025
    %v1143 = vpack.c.bf16 %v1132, %v1131
    %v1144 = vpack.c.bf16 %v1134, %v1133
    %v1145 = vpack.c.bf16 %v1136, %v1135
    %v1146 = vpack.c.bf16 %v1138, %v1137
    %s1147 = scalar_lea.vmem [#allocation2], 64
    %v1148 = vld [vmem:[%s1147] sm:$0xf]
    %v1149 = vld [vmem:[%s1147 + $0x4] sm:$0xf]
    %v1150 = vld [vmem:[%s1147 + $0x8] sm:$0xf]
    %v1151 = vld [vmem:[%s1147 + $0xc] sm:$0xf]
    %v1152 = vld [vmem:[%s1147 + $0x10] sm:$0xf]
    %v1153 = vld [vmem:[%s1147 + $0x14] sm:$0xf]
    %v1154 = vld [vmem:[%s1147 + $0x18] sm:$0xf]
    %v1155 = vld [vmem:[%s1147 + $0x1c] sm:$0xf]
    %v1156 = vlaneseq
    %v1157 = vshrl.u32 %v1156, 7
    %v1158 = vsub.s32 3, %v1157
    %v1159 = vrot.slane %v310, %v1158
    %v1168 = vunpack.c.l.b16 %v1148
    %v1169 = vunpack.c.l.b16 %v1149
    %v1170 = vunpack.c.l.b16 %v1150
    %v1171 = vunpack.c.l.b16 %v1151
    %v1172 = vunpack.c.l.b16 %v1152
    %v1173 = vunpack.c.l.b16 %v1153
    %v1174 = vunpack.c.l.b16 %v1154
    %v1175 = vunpack.c.l.b16 %v1155
    %v1176 = vpack.c.b16 %v1169, %v1168
    %v1177 = vpack.c.b16 %v1171, %v1170
    %v1178 = vpack.c.b16 %v1173, %v1172
    %v1179 = vpack.c.b16 %v1175, %v1174
    %v1185 = vsel %vm188, %v1139, 0
    %v1188 = vsel %vm188, %v1140, 0
    %v1191 = vsel %vm188, %v1141, 0
    %v1194 = vsel %vm188, %v1142, 0
    %v1197 = vsel %vm188, %v1143, 0
    %v1200 = vsel %vm188, %v1144, 0
    %v1203 = vsel %vm188, %v1145, 0
    %v1206 = vsel %vm188, %v1146, 0
    %1208 = vmatprep.subr.bf16.mxu0 0
    %1209 = vmatpush1.bf16.msra.mxu0 %v1176
    %1210 = vmatprep.subr.bf16.mxu0 0
    %1211 = vmatpush1.bf16.msra.mxu0 %v1177
    %1212 = vmatprep.subr.bf16.mxu0 0
    %1213 = vmatpush1.bf16.msra.mxu0 %v1178
    %1214 = vmatprep.subr.bf16.mxu0 0
    %1215 = vmatpush1.bf16.msra.mxu0 %v1179
    %1216 = vmatprep.subr.bf16.mxu0 0
    %1217 = vmatpush1.bf16.msra.mxu0 0
    %1218 = vmatprep.subr.bf16.mxu0 0
    %1219 = vmatpush1.bf16.msra.mxu0 0
    %1220 = vmatprep.subr.bf16.mxu0 0
    %1221 = vmatpush1.bf16.msra.mxu0 0
    %1222 = vmatprep.subr.bf16.mxu0 0
    %1223 = vmatpush1.bf16.msra.mxu0 0
    %1224 = vmatprep.subr.bf16.mxu0 0
    %1225 = vmatpush1.bf16.msra.mxu0 0
    %1226 = vmatprep.subr.bf16.mxu0 0
    %1227 = vmatpush1.bf16.msra.mxu0 0
    %1228 = vmatprep.subr.bf16.mxu0 0
    %1229 = vmatpush1.bf16.msra.mxu0 0
    %1230 = vmatprep.subr.bf16.mxu0 0
    %1231 = vmatpush1.bf16.msra.mxu0 0
    %1232 = vmatprep.subr.bf16.mxu0 0
    %1233 = vmatpush1.bf16.msra.mxu0 0
    %1234 = vmatprep.subr.bf16.mxu0 0
    %1235 = vmatpush1.bf16.msra.mxu0 0
    %1236 = vmatprep.subr.bf16.mxu0 0
    %1237 = vmatpush1.bf16.msra.mxu0 0
    %1238 = vmatprep.subr.bf16.mxu0 0
    %1239 = vmatpush1.bf16.msra.mxu0 0
    %1240 = vmatprep.mubr.bf16.mxu0 0
    %1241 = vmatmul.mubr.bf16.gmra.mrb[0].mxu0 %v1185
    %v1242 = vpop.f32.mrb[0].mxu0
    %v1243 = vadd.f32 %v1159, %v1242
    %v1244 = vpop.f32.mrb[0].mxu0
    %v1245 = vpop.f32.mrb[0].mxu0
    %v1246 = vadd.f32 %v1159, %v1245
    %v1247 = vpop.f32.mrb[0].mxu0
    %1248 = vmatprep.mubr.bf16.mxu0 0
    %1249 = vmatmul.mubr.bf16.gmra.mrb[0].mxu0 %v1188
    %v1250 = vpop.f32.mrb[0].mxu0
    %v1251 = vadd.f32 %v1159, %v1250
    %v1252 = vpop.f32.mrb[0].mxu0
    %v1253 = vpop.f32.mrb[0].mxu0
    %v1254 = vadd.f32 %v1159, %v1253
    %v1255 = vpop.f32.mrb[0].mxu0
    %1256 = vmatprep.mubr.bf16.mxu0 0
    %1257 = vmatmul.mubr.bf16.gmra.mrb[0].mxu0 %v1191
    %v1258 = vpop.f32.mrb[0].mxu0
    %v1259 = vadd.f32 %v1159, %v1258
    %v1260 = vpop.f32.mrb[0].mxu0
    %v1261 = vpop.f32.mrb[0].mxu0
    %v1262 = vadd.f32 %v1159, %v1261
    %v1263 = vpop.f32.mrb[0].mxu0
    %1264 = vmatprep.mubr.bf16.mxu0 0
    %1265 = vmatmul.mubr.bf16.gmra.mrb[0].mxu0 %v1194
    %v1266 = vpop.f32.mrb[0].mxu0
    %v1267 = vadd.f32 %v1159, %v1266
    %v1268 = vpop.f32.mrb[0].mxu0
    %v1269 = vpop.f32.mrb[0].mxu0
    %v1270 = vadd.f32 %v1159, %v1269
    %v1271 = vpop.f32.mrb[0].mxu0
    %1272 = vmatprep.mubr.bf16.mxu0 0
    %1273 = vmatmul.mubr.bf16.gmra.mrb[0].mxu0 %v1197
    %v1274 = vpop.f32.mrb[0].mxu0
    %v1275 = vadd.f32 %v1159, %v1274
    %v1276 = vpop.f32.mrb[0].mxu0
    %v1277 = vpop.f32.mrb[0].mxu0
    %v1278 = vadd.f32 %v1159, %v1277
    %v1279 = vpop.f32.mrb[0].mxu0
    %1280 = vmatprep.mubr.bf16.mxu0 0
    %1281 = vmatmul.mubr.bf16.gmra.mrb[0].mxu0 %v1200
    %v1282 = vpop.f32.mrb[0].mxu0
    %v1283 = vadd.f32 %v1159, %v1282
    %v1284 = vpop.f32.mrb[0].mxu0
    %v1285 = vpop.f32.mrb[0].mxu0
    %v1286 = vadd.f32 %v1159, %v1285
    %v1287 = vpop.f32.mrb[0].mxu0
    %1288 = vmatprep.mubr.bf16.mxu0 0
    %1289 = vmatmul.mubr.bf16.gmra.mrb[0].mxu0 %v1203
    %v1290 = vpop.f32.mrb[0].mxu0
    %v1291 = vadd.f32 %v1159, %v1290
    %v1292 = vpop.f32.mrb[0].mxu0
    %v1293 = vpop.f32.mrb[0].mxu0
    %v1294 = vadd.f32 %v1159, %v1293
    %v1295 = vpop.f32.mrb[0].mxu0
    %1296 = vmatprep.mubr.bf16.mxu0 0
    %1297 = vmatmul.mubr.bf16.gmra.mrb[0].mxu0 %v1206
    %v1298 = vpop.f32.mrb[0].mxu0
    %v1299 = vadd.f32 %v1159, %v1298
    %v1300 = vpop.f32.mrb[0].mxu0
    %v1301 = vpop.f32.mrb[0].mxu0
    %v1302 = vadd.f32 %v1159, %v1301
    %v1303 = vpop.f32.mrb[0].mxu0
    %1304 = vdwg.mxu0
    %v1305 = vadd.f32 %v248, %v1243
    %v1306 = vadd.f32 %v251, %v1246
    %v1307 = vadd.f32 %v256, %v1251
    %v1308 = vadd.f32 %v259, %v1254
    %v1309 = vadd.f32 %v264, %v1259
    %v1310 = vadd.f32 %v267, %v1262
    %v1311 = vadd.f32 %v272, %v1267
    %v1312 = vadd.f32 %v275, %v1270
    %v1313 = vadd.f32 %v280, %v1275
    %v1314 = vadd.f32 %v283, %v1278
    %v1315 = vadd.f32 %v288, %v1283
    %v1316 = vadd.f32 %v291, %v1286
    %v1317 = vadd.f32 %v296, %v1291
    %v1318 = vadd.f32 %v299, %v1294
    %v1319 = vadd.f32 %v304, %v1299
    %v1320 = vadd.f32 %v307, %v1302
    %v1321 = vsel %vm188, %v1305, 0.0
    %1322 = vadd.xlane.f32.xlu0 %v1321
    %v1323 = vpop.xlane.xlu0 %1322
    %v1324 = vsel %vm188, %v1306, 0.0
    %1325 = vadd.xlane.f32.xlu0 %v1324
    %v1326 = vpop.xlane.xlu0 %1325
    %v1327 = vsel %vm188, %v1307, 0.0
    %1328 = vadd.xlane.f32.xlu0 %v1327
    %v1329 = vpop.xlane.xlu0 %1328
    %v1330 = vsel %vm188, %v1308, 0.0
    %1331 = vadd.xlane.f32.xlu0 %v1330
    %v1332 = vpop.xlane.xlu0 %1331
    %v1333 = vsel %vm188, %v1309, 0.0
    %1334 = vadd.xlane.f32.xlu0 %v1333
    %v1335 = vpop.xlane.xlu0 %1334
    %v1336 = vsel %vm188, %v1310, 0.0
    %1337 = vadd.xlane.f32.xlu0 %v1336
    %v1338 = vpop.xlane.xlu0 %1337
    %v1339 = vsel %vm188, %v1311, 0.0
    %1340 = vadd.xlane.f32.xlu0 %v1339
    %v1341 = vpop.xlane.xlu0 %1340
    %v1342 = vsel %vm188, %v1312, 0.0
    %1343 = vadd.xlane.f32.xlu0 %v1342
    %v1344 = vpop.xlane.xlu0 %1343
    %v1345 = vsel %vm188, %v1313, 0.0
    %1346 = vadd.xlane.f32.xlu0 %v1345
    %v1347 = vpop.xlane.xlu0 %1346
    %v1348 = vsel %vm188, %v1314, 0.0
    %1349 = vadd.xlane.f32.xlu0 %v1348
    %v1350 = vpop.xlane.xlu0 %1349
    %v1351 = vsel %vm188, %v1315, 0.0
    %1352 = vadd.xlane.f32.xlu0 %v1351
    %v1353 = vpop.xlane.xlu0 %1352
    %v1354 = vsel %vm188, %v1316, 0.0
    %1355 = vadd.xlane.f32.xlu0 %v1354
    %v1356 = vpop.xlane.xlu0 %1355
    %v1357 = vsel %vm188, %v1317, 0.0
    %1358 = vadd.xlane.f32.xlu0 %v1357
    %v1359 = vpop.xlane.xlu0 %1358
    %v1360 = vsel %vm188, %v1318, 0.0
    %1361 = vadd.xlane.f32.xlu0 %v1360
    %v1362 = vpop.xlane.xlu0 %1361
    %v1363 = vsel %vm188, %v1319, 0.0
    %1364 = vadd.xlane.f32.xlu0 %v1363
    %v1365 = vpop.xlane.xlu0 %1364
    %v1366 = vsel %vm188, %v1320, 0.0
    %1367 = vadd.xlane.f32.xlu0 %v1366
    %v1368 = vpop.xlane.xlu0 %1367
    %v1369 = vrcp.pop 64.0
    %v1370 = vmul.f32 %v1323, %v1369
    %v1371 = vmul.f32 %v1326, %v1369
    %v1372 = vmul.f32 %v1329, %v1369
    %v1373 = vmul.f32 %v1332, %v1369
    %v1374 = vmul.f32 %v1335, %v1369
    %v1375 = vmul.f32 %v1338, %v1369
    %v1376 = vmul.f32 %v1341, %v1369
    %v1377 = vmul.f32 %v1344, %v1369
    %v1378 = vmul.f32 %v1347, %v1369
    %v1379 = vmul.f32 %v1350, %v1369
    %v1380 = vmul.f32 %v1353, %v1369
    %v1381 = vmul.f32 %v1356, %v1369
    %v1382 = vmul.f32 %v1359, %v1369
    %v1383 = vmul.f32 %v1362, %v1369
    %v1384 = vmul.f32 %v1365, %v1369
    %v1385 = vmul.f32 %v1368, %v1369
    %v1386 = vsub.f32 %v1305, %v1370
    %v1387 = vsub.f32 %v1306, %v1371
    %v1388 = vsub.f32 %v1307, %v1372
    %v1389 = vsub.f32 %v1308, %v1373
    %v1390 = vsub.f32 %v1309, %v1374
    %v1391 = vsub.f32 %v1310, %v1375
    %v1392 = vsub.f32 %v1311, %v1376
    %v1393 = vsub.f32 %v1312, %v1377
    %v1394 = vsub.f32 %v1313, %v1378
    %v1395 = vsub.f32 %v1314, %v1379
    %v1396 = vsub.f32 %v1315, %v1380
    %v1397 = vsub.f32 %v1316, %v1381
    %v1398 = vsub.f32 %v1317, %v1382
    %v1399 = vsub.f32 %v1318, %v1383
    %v1400 = vsub.f32 %v1319, %v1384
    %v1401 = vsub.f32 %v1320, %v1385
    %v1402 = vmul.f32 %v1386, %v1386
    %v1403 = vmul.f32 %v1387, %v1387
    %v1404 = vmul.f32 %v1388, %v1388
    %v1405 = vmul.f32 %v1389, %v1389
    %v1406 = vmul.f32 %v1390, %v1390
    %v1407 = vmul.f32 %v1391, %v1391
    %v1408 = vmul.f32 %v1392, %v1392
    %v1409 = vmul.f32 %v1393, %v1393
    %v1410 = vmul.f32 %v1394, %v1394
    %v1411 = vmul.f32 %v1395, %v1395
    %v1412 = vmul.f32 %v1396, %v1396
    %v1413 = vmul.f32 %v1397, %v1397
    %v1414 = vmul.f32 %v1398, %v1398
    %v1415 = vmul.f32 %v1399, %v1399
    %v1416 = vmul.f32 %v1400, %v1400
    %v1417 = vmul.f32 %v1401, %v1401
    %v1418 = vsel %vm188, %v1402, 0.0
    %1419 = vadd.xlane.f32.xlu0 %v1418
    %v1420 = vpop.xlane.xlu0 %1419
    %v1421 = vsel %vm188, %v1403, 0.0
    %1422 = vadd.xlane.f32.xlu0 %v1421
    %v1423 = vpop.xlane.xlu0 %1422
    %v1424 = vsel %vm188, %v1404, 0.0
    %1425 = vadd.xlane.f32.xlu0 %v1424
    %v1426 = vpop.xlane.xlu0 %1425
    %v1427 = vsel %vm188, %v1405, 0.0
    %1428 = vadd.xlane.f32.xlu0 %v1427
    %v1429 = vpop.xlane.xlu0 %1428
    %v1430 = vsel %vm188, %v1406, 0.0
    %1431 = vadd.xlane.f32.xlu0 %v1430
    %v1432 = vpop.xlane.xlu0 %1431
    %v1433 = vsel %vm188, %v1407, 0.0
    %1434 = vadd.xlane.f32.xlu0 %v1433
    %v1435 = vpop.xlane.xlu0 %1434
    %v1436 = vsel %vm188, %v1408, 0.0
    %1437 = vadd.xlane.f32.xlu0 %v1436
    %v1438 = vpop.xlane.xlu0 %1437
    %v1439 = vsel %vm188, %v1409, 0.0
    %1440 = vadd.xlane.f32.xlu0 %v1439
    %v1441 = vpop.xlane.xlu0 %1440
    %v1442 = vsel %vm188, %v1410, 0.0
    %1443 = vadd.xlane.f32.xlu0 %v1442
    %v1444 = vpop.xlane.xlu0 %1443
    %v1445 = vsel %vm188, %v1411, 0.0
    %1446 = vadd.xlane.f32.xlu0 %v1445
    %v1447 = vpop.xlane.xlu0 %1446
    %v1448 = vsel %vm188, %v1412, 0.0
    %1449 = vadd.xlane.f32.xlu0 %v1448
    %v1450 = vpop.xlane.xlu0 %1449
    %v1451 = vsel %vm188, %v1413, 0.0
    %1452 = vadd.xlane.f32.xlu0 %v1451
    %v1453 = vpop.xlane.xlu0 %1452
    %v1454 = vsel %vm188, %v1414, 0.0
    %1455 = vadd.xlane.f32.xlu0 %v1454
    %v1456 = vpop.xlane.xlu0 %1455
    %v1457 = vsel %vm188, %v1415, 0.0
    %1458 = vadd.xlane.f32.xlu0 %v1457
    %v1459 = vpop.xlane.xlu0 %1458
    %v1460 = vsel %vm188, %v1416, 0.0
    %1461 = vadd.xlane.f32.xlu0 %v1460
    %v1462 = vpop.xlane.xlu0 %1461
    %v1463 = vsel %vm188, %v1417, 0.0
    %1464 = vadd.xlane.f32.xlu0 %v1463
    %v1465 = vpop.xlane.xlu0 %1464
    %v1466 = vmul.f32 %v1420, %v1369
    %v1467 = vmul.f32 %v1423, %v1369
    %v1468 = vmul.f32 %v1426, %v1369
    %v1469 = vmul.f32 %v1429, %v1369
    %v1470 = vmul.f32 %v1432, %v1369
    %v1471 = vmul.f32 %v1435, %v1369
    %v1472 = vmul.f32 %v1438, %v1369
    %v1473 = vmul.f32 %v1441, %v1369
    %v1474 = vmul.f32 %v1444, %v1369
    %v1475 = vmul.f32 %v1447, %v1369
    %v1476 = vmul.f32 %v1450, %v1369
    %v1477 = vmul.f32 %v1453, %v1369
    %v1478 = vmul.f32 %v1456, %v1369
    %v1479 = vmul.f32 %v1459, %v1369
    %v1480 = vmul.f32 %v1462, %v1369
    %v1481 = vmul.f32 %v1465, %v1369
    %v1482 = vadd.f32 %v1466, 1e-05
    %v1483 = vadd.f32 %v1467, 1e-05
    %v1484 = vadd.f32 %v1468, 1e-05
    %v1485 = vadd.f32 %v1469, 1e-05
    %v1486 = vadd.f32 %v1470, 1e-05
    %v1487 = vadd.f32 %v1471, 1e-05
    %v1488 = vadd.f32 %v1472, 1e-05
    %v1489 = vadd.f32 %v1473, 1e-05
    %v1490 = vadd.f32 %v1474, 1e-05
    %v1491 = vadd.f32 %v1475, 1e-05
    %v1492 = vadd.f32 %v1476, 1e-05
    %v1493 = vadd.f32 %v1477, 1e-05
    %v1494 = vadd.f32 %v1478, 1e-05
    %v1495 = vadd.f32 %v1479, 1e-05
    %v1496 = vadd.f32 %v1480, 1e-05
    %v1497 = vadd.f32 %v1481, 1e-05
    %v1498 = vrsqrt.pop %v1482
    %v1499 = vrsqrt.pop %v1483
    %v1500 = vrsqrt.pop %v1484
    %v1501 = vrsqrt.pop %v1485
    %v1502 = vrsqrt.pop %v1486
    %v1503 = vrsqrt.pop %v1487
    %v1504 = vrsqrt.pop %v1488
    %v1505 = vrsqrt.pop %v1489
    %v1506 = vrsqrt.pop %v1490
    %v1507 = vrsqrt.pop %v1491
    %v1508 = vrsqrt.pop %v1492
    %v1509 = vrsqrt.pop %v1493
    %v1510 = vrsqrt.pop %v1494
    %v1511 = vrsqrt.pop %v1495
    %v1512 = vrsqrt.pop %v1496
    %v1513 = vrsqrt.pop %v1497
    %v1514 = vmul.f32 %v1386, %v1498
    %v1515 = vmul.f32 %v1387, %v1499
    %v1516 = vmul.f32 %v1388, %v1500
    %v1517 = vmul.f32 %v1389, %v1501
    %v1518 = vmul.f32 %v1390, %v1502
    %v1519 = vmul.f32 %v1391, %v1503
    %v1520 = vmul.f32 %v1392, %v1504
    %v1521 = vmul.f32 %v1393, %v1505
    %v1522 = vmul.f32 %v1394, %v1506
    %v1523 = vmul.f32 %v1395, %v1507
    %v1524 = vmul.f32 %v1396, %v1508
    %v1525 = vmul.f32 %v1397, %v1509
    %v1526 = vmul.f32 %v1398, %v1510
    %v1527 = vmul.f32 %v1399, %v1511
    %v1528 = vmul.f32 %v1400, %v1512
    %v1529 = vmul.f32 %v1401, %v1513
    %v1530 = vlaneseq
    %v1531 = vshrl.u32 %v1530, 7
    %v1532 = vsub.s32 4, %v1531
    %v1533 = vrot.slane %v310, %v1532
    %v1534 = vmul.f32 %v1514, %v1533
    %v1535 = vmul.f32 %v1515, %v1533
    %v1536 = vmul.f32 %v1516, %v1533
    %v1537 = vmul.f32 %v1517, %v1533
    %v1538 = vmul.f32 %v1518, %v1533
    %v1539 = vmul.f32 %v1519, %v1533
    %v1540 = vmul.f32 %v1520, %v1533
    %v1541 = vmul.f32 %v1521, %v1533
    %v1542 = vmul.f32 %v1522, %v1533
    %v1543 = vmul.f32 %v1523, %v1533
    %v1544 = vmul.f32 %v1524, %v1533
    %v1545 = vmul.f32 %v1525, %v1533
    %v1546 = vmul.f32 %v1526, %v1533
    %v1547 = vmul.f32 %v1527, %v1533
    %v1548 = vmul.f32 %v1528, %v1533
    %v1549 = vmul.f32 %v1529, %v1533
    %v1550 = vlaneseq
    %v1551 = vshrl.u32 %v1550, 7
    %v1552 = vsub.s32 5, %v1551
    %v1553 = vrot.slane %v310, %v1552
    %v1554 = vadd.f32 %v1534, %v1553
    %v1555 = vadd.f32 %v1535, %v1553
    %v1556 = vadd.f32 %v1536, %v1553
    %v1557 = vadd.f32 %v1537, %v1553
    %v1558 = vadd.f32 %v1538, %v1553
    %v1559 = vadd.f32 %v1539, %v1553
    %v1560 = vadd.f32 %v1540, %v1553
    %v1561 = vadd.f32 %v1541, %v1553
    %v1562 = vadd.f32 %v1542, %v1553
    %v1563 = vadd.f32 %v1543, %v1553
    %v1564 = vadd.f32 %v1544, %v1553
    %v1565 = vadd.f32 %v1545, %v1553
    %v1566 = vadd.f32 %v1546, %v1553
    %v1567 = vadd.f32 %v1547, %v1553
    %v1568 = vadd.f32 %v1548, %v1553
    %v1569 = vadd.f32 %v1549, %v1553
    %v1570 = vpack.c.bf16 %v1555, %v1554
    %v1571 = vpack.c.bf16 %v1557, %v1556
    %v1572 = vpack.c.bf16 %v1559, %v1558
    %v1573 = vpack.c.bf16 %v1561, %v1560
    %v1574 = vpack.c.bf16 %v1563, %v1562
    %v1575 = vpack.c.bf16 %v1565, %v1564
    %v1576 = vpack.c.bf16 %v1567, %v1566
    %v1577 = vpack.c.bf16 %v1569, %v1568
    %v1578 = vld [vmem:[#allocation7] sm:$0xf]
    %v1579 = vld [vmem:[#allocation7 + $0x4] sm:$0xf]
    %v1580 = vld [vmem:[#allocation7 + $0x8] sm:$0xf]
    %v1581 = vld [vmem:[#allocation7 + $0xc] sm:$0xf]
    %v1582 = vld [vmem:[#allocation7 + $0x10] sm:$0xf]
    %v1583 = vld [vmem:[#allocation7 + $0x14] sm:$0xf]
    %v1584 = vld [vmem:[#allocation7 + $0x18] sm:$0xf]
    %v1585 = vld [vmem:[#allocation7 + $0x1c] sm:$0xf]
    %v1586 = vlaneseq
    %v1587 = vshrl.u32 %v1586, 7
    %v1588 = vsub.s32 0, %v1587
    %v1589 = vrot.slane %v312, %v1588
    %v1598 = vunpack.c.l.b16 %v1578
    %v1599 = vunpack.c.l.b16 %v1579
    %v1600 = vunpack.c.l.b16 %v1580
    %v1601 = vunpack.c.l.b16 %v1581
    %v1602 = vunpack.c.l.b16 %v1582
    %v1603 = vunpack.c.l.b16 %v1583
    %v1604 = vunpack.c.l.b16 %v1584
    %v1605 = vunpack.c.l.b16 %v1585
    %v1606 = vpack.c.b16 %v1599, %v1598
    %v1607 = vpack.c.b16 %v1601, %v1600
    %v1608 = vpack.c.b16 %v1603, %v1602
    %v1609 = vpack.c.b16 %v1605, %v1604
    %v1615 = vsel %vm188, %v1570, 0
    %v1618 = vsel %vm188, %v1571, 0
    %v1621 = vsel %vm188, %v1572, 0
    %v1624 = vsel %vm188, %v1573, 0
    %v1627 = vsel %vm188, %v1574, 0
    %v1630 = vsel %vm188, %v1575, 0
    %v1633 = vsel %vm188, %v1576, 0
    %v1636 = vsel %vm188, %v1577, 0
    %1638 = vmatprep.subr.bf16.mxu0 0
    %1639 = vmatpush1.bf16.msra.mxu0 %v1606
    %1640 = vmatprep.subr.bf16.mxu0 0
    %1641 = vmatpush1.bf16.msra.mxu0 %v1607
    %1642 = vmatprep.subr.bf16.mxu0 0
    %1643 = vmatpush1.bf16.msra.mxu0 %v1608
    %1644 = vmatprep.subr.bf16.mxu0 0
    %1645 = vmatpush1.bf16.msra.mxu0 %v1609
    %1646 = vmatprep.subr.bf16.mxu0 0
    %1647 = vmatpush1.bf16.msra.mxu0 0
    %1648 = vmatprep.subr.bf16.mxu0 0
    %1649 = vmatpush1.bf16.msra.mxu0 0
    %1650 = vmatprep.subr.bf16.mxu0 0
    %1651 = vmatpush1.bf16.msra.mxu0 0
    %1652 = vmatprep.subr.bf16.mxu0 0
    %1653 = vmatpush1.bf16.msra.mxu0 0
    %1654 = vmatprep.subr.bf16.mxu0 0
    %1655 = vmatpush1.bf16.msra.mxu0 0
    %1656 = vmatprep.subr.bf16.mxu0 0
    %1657 = vmatpush1.bf16.msra.mxu0 0
    %1658 = vmatprep.subr.bf16.mxu0 0
    %1659 = vmatpush1.bf16.msra.mxu0 0
    %1660 = vmatprep.subr.bf16.mxu0 0
    %1661 = vmatpush1.bf16.msra.mxu0 0
    %1662 = vmatprep.subr.bf16.mxu0 0
    %1663 = vmatpush1.bf16.msra.mxu0 0
    %1664 = vmatprep.subr.bf16.mxu0 0
    %1665 = vmatpush1.bf16.msra.mxu0 0
    %1666 = vmatprep.subr.bf16.mxu0 0
    %1667 = vmatpush1.bf16.msra.mxu0 0
    %1668 = vmatprep.subr.bf16.mxu0 0
    %1669 = vmatpush1.bf16.msra.mxu0 0
    %1670 = vmatprep.mubr.bf16.mxu0 0
    %1671 = vmatmul.mubr.bf16.gmra.mrb[0].mxu0 %v1615
    %v1672 = vpop.f32.mrb[0].mxu0
    %v1673 = vadd.f32 %v1589, %v1672
    %v1674 = vpop.f32.mrb[0].mxu0
    %v1675 = vpop.f32.mrb[0].mxu0
    %v1676 = vadd.f32 %v1589, %v1675
    %v1677 = vpop.f32.mrb[0].mxu0
    %1678 = vmatprep.mubr.bf16.mxu0 0
    %1679 = vmatmul.mubr.bf16.gmra.mrb[0].mxu0 %v1618
    %v1680 = vpop.f32.mrb[0].mxu0
    %v1681 = vadd.f32 %v1589, %v1680
    %v1682 = vpop.f32.mrb[0].mxu0
    %v1683 = vpop.f32.mrb[0].mxu0
    %v1684 = vadd.f32 %v1589, %v1683
    %v1685 = vpop.f32.mrb[0].mxu0
    %1686 = vmatprep.mubr.bf16.mxu0 0
    %1687 = vmatmul.mubr.bf16.gmra.mrb[0].mxu0 %v1621
    %v1688 = vpop.f32.mrb[0].mxu0
    %v1689 = vadd.f32 %v1589, %v1688
    %v1690 = vpop.f32.mrb[0].mxu0
    %v1691 = vpop.f32.mrb[0].mxu0
    %v1692 = vadd.f32 %v1589, %v1691
    %v1693 = vpop.f32.mrb[0].mxu0
    %1694 = vmatprep.mubr.bf16.mxu0 0
    %1695 = vmatmul.mubr.bf16.gmra.mrb[0].mxu0 %v1624
    %v1696 = vpop.f32.mrb[0].mxu0
    %v1697 = vadd.f32 %v1589, %v1696
    %v1698 = vpop.f32.mrb[0].mxu0
    %v1699 = vpop.f32.mrb[0].mxu0
    %v1700 = vadd.f32 %v1589, %v1699
    %v1701 = vpop.f32.mrb[0].mxu0
    %1702 = vmatprep.mubr.bf16.mxu0 0
    %1703 = vmatmul.mubr.bf16.gmra.mrb[0].mxu0 %v1627
    %v1704 = vpop.f32.mrb[0].mxu0
    %v1705 = vadd.f32 %v1589, %v1704
    %v1706 = vpop.f32.mrb[0].mxu0
    %v1707 = vpop.f32.mrb[0].mxu0
    %v1708 = vadd.f32 %v1589, %v1707
    %v1709 = vpop.f32.mrb[0].mxu0
    %1710 = vmatprep.mubr.bf16.mxu0 0
    %1711 = vmatmul.mubr.bf16.gmra.mrb[0].mxu0 %v1630
    %v1712 = vpop.f32.mrb[0].mxu0
    %v1713 = vadd.f32 %v1589, %v1712
    %v1714 = vpop.f32.mrb[0].mxu0
    %v1715 = vpop.f32.mrb[0].mxu0
    %v1716 = vadd.f32 %v1589, %v1715
    %v1717 = vpop.f32.mrb[0].mxu0
    %1718 = vmatprep.mubr.bf16.mxu0 0
    %1719 = vmatmul.mubr.bf16.gmra.mrb[0].mxu0 %v1633
    %v1720 = vpop.f32.mrb[0].mxu0
    %v1721 = vadd.f32 %v1589, %v1720
    %v1722 = vpop.f32.mrb[0].mxu0
    %v1723 = vpop.f32.mrb[0].mxu0
    %v1724 = vadd.f32 %v1589, %v1723
    %v1725 = vpop.f32.mrb[0].mxu0
    %1726 = vmatprep.mubr.bf16.mxu0 0
    %1727 = vmatmul.mubr.bf16.gmra.mrb[0].mxu0 %v1636
    %v1728 = vpop.f32.mrb[0].mxu0
    %v1729 = vadd.f32 %v1589, %v1728
    %v1730 = vpop.f32.mrb[0].mxu0
    %v1731 = vpop.f32.mrb[0].mxu0
    %v1732 = vadd.f32 %v1589, %v1731
    %v1733 = vpop.f32.mrb[0].mxu0
    %1734 = vdwg.mxu0
    %v1735 = vmax.f32 %v1673, 0.0
    %v1736 = vmax.f32 %v1676, 0.0
    %v1737 = vmax.f32 %v1681, 0.0
    %v1738 = vmax.f32 %v1684, 0.0
    %v1739 = vmax.f32 %v1689, 0.0
    %v1740 = vmax.f32 %v1692, 0.0
    %v1741 = vmax.f32 %v1697, 0.0
    %v1742 = vmax.f32 %v1700, 0.0
    %v1743 = vmax.f32 %v1705, 0.0
    %v1744 = vmax.f32 %v1708, 0.0
    %v1745 = vmax.f32 %v1713, 0.0
    %v1746 = vmax.f32 %v1716, 0.0
    %v1747 = vmax.f32 %v1721, 0.0
    %v1748 = vmax.f32 %v1724, 0.0
    %v1749 = vmax.f32 %v1729, 0.0
    %v1750 = vmax.f32 %v1732, 0.0
    %v1751 = vpack.c.bf16 %v1736, %v1735
    %v1752 = vpack.c.bf16 %v1738, %v1737
    %v1753 = vpack.c.bf16 %v1740, %v1739
    %v1754 = vpack.c.bf16 %v1742, %v1741
    %v1755 = vpack.c.bf16 %v1744, %v1743
    %v1756 = vpack.c.bf16 %v1746, %v1745
    %v1757 = vpack.c.bf16 %v1748, %v1747
    %v1758 = vpack.c.bf16 %v1750, %v1749
    %v1759 = vld [vmem:[%s6] sm:$0xf]
    %v1760 = vld [vmem:[%s6 + $0x4] sm:$0xf]
    %v1761 = vld [vmem:[%s6 + $0x8] sm:$0xf]
    %v1762 = vld [vmem:[%s6 + $0xc] sm:$0xf]
    %v1763 = vld [vmem:[%s6 + $0x10] sm:$0xf]
    %v1764 = vld [vmem:[%s6 + $0x14] sm:$0xf]
    %v1765 = vld [vmem:[%s6 + $0x18] sm:$0xf]
    %v1766 = vld [vmem:[%s6 + $0x1c] sm:$0xf]
    %v1767 = vld [vmem:[%s6 + $0x20] sm:$0xf]
    %v1768 = vld [vmem:[%s6 + $0x24] sm:$0xf]
    %v1769 = vld [vmem:[%s6 + $0x28] sm:$0xf]
    %v1770 = vld [vmem:[%s6 + $0x2c] sm:$0xf]
    %v1771 = vld [vmem:[%s6 + $0x30] sm:$0xf]
    %v1772 = vld [vmem:[%s6 + $0x34] sm:$0xf]
    %v1773 = vld [vmem:[%s6 + $0x38] sm:$0xf]
    %v1774 = vld [vmem:[%s6 + $0x3c] sm:$0xf]
    %v1775 = vlaneseq
    %v1776 = vshrl.u32 %v1775, 7
    %v1777 = vsub.s32 0, %v1776
    %v1778 = vrot.slane %v311, %v1777
    %v1795 = vunpack.c.l.b16 %v1759
    %v1796 = vunpack.c.l.b16 %v1760
    %v1797 = vunpack.c.l.b16 %v1761
    %v1798 = vunpack.c.l.b16 %v1762
    %v1799 = vunpack.c.l.b16 %v1763
    %v1800 = vunpack.c.l.b16 %v1764
    %v1801 = vunpack.c.l.b16 %v1765
    %v1802 = vunpack.c.l.b16 %v1766
    %v1803 = vunpack.c.l.b16 %v1767
    %v1804 = vunpack.c.l.b16 %v1768
    %v1805 = vunpack.c.l.b16 %v1769
    %v1806 = vunpack.c.l.b16 %v1770
    %v1807 = vunpack.c.l.b16 %v1771
    %v1808 = vunpack.c.l.b16 %v1772
    %v1809 = vunpack.c.l.b16 %v1773
    %v1810 = vunpack.c.l.b16 %v1774
    %v1811 = vpack.c.b16 %v1796, %v1795
    %v1812 = vpack.c.b16 %v1798, %v1797
    %v1813 = vpack.c.b16 %v1800, %v1799
    %v1814 = vpack.c.b16 %v1802, %v1801
    %v1815 = vpack.c.b16 %v1804, %v1803
    %v1816 = vpack.c.b16 %v1806, %v1805
    %v1817 = vpack.c.b16 %v1808, %v1807
    %v1818 = vpack.c.b16 %v1810, %v1809
    %1827 = vmatprep.subr.bf16.mxu0 0
    %1828 = vmatpush1.bf16.msra.mxu0 %v1811
    %1829 = vmatprep.subr.bf16.mxu0 0
    %1830 = vmatpush1.bf16.msra.mxu0 %v1812
    %1831 = vmatprep.subr.bf16.mxu0 0
    %1832 = vmatpush1.bf16.msra.mxu0 %v1813
    %1833 = vmatprep.subr.bf16.mxu0 0
    %1834 = vmatpush1.bf16.msra.mxu0 %v1814
    %1835 = vmatprep.subr.bf16.mxu0 0
    %1836 = vmatpush1.bf16.msra.mxu0 %v1815
    %1837 = vmatprep.subr.bf16.mxu0 0
    %1838 = vmatpush1.bf16.msra.mxu0 %v1816
    %1839 = vmatprep.subr.bf16.mxu0 0
    %1840 = vmatpush1.bf16.msra.mxu0 %v1817
    %1841 = vmatprep.subr.bf16.mxu0 0
    %1842 = vmatpush1.bf16.msra.mxu0 %v1818
    %1843 = vmatprep.subr.bf16.mxu0 0
    %1844 = vmatpush1.bf16.msra.mxu0 0
    %1845 = vmatprep.subr.bf16.mxu0 0
    %1846 = vmatpush1.bf16.msra.mxu0 0
    %1847 = vmatprep.subr.bf16.mxu0 0
    %1848 = vmatpush1.bf16.msra.mxu0 0
    %1849 = vmatprep.subr.bf16.mxu0 0
    %1850 = vmatpush1.bf16.msra.mxu0 0
    %1851 = vmatprep.subr.bf16.mxu0 0
    %1852 = vmatpush1.bf16.msra.mxu0 0
    %1853 = vmatprep.subr.bf16.mxu0 0
    %1854 = vmatpush1.bf16.msra.mxu0 0
    %1855 = vmatprep.subr.bf16.mxu0 0
    %1856 = vmatpush1.bf16.msra.mxu0 0
    %1857 = vmatprep.subr.bf16.mxu0 0
    %1858 = vmatpush1.bf16.msra.mxu0 0
    %1859 = vmatprep.mubr.bf16.mxu0 0
    %1860 = vmatmul.mubr.bf16.gmra.mrb[0].mxu0 %v1751
    %v1861 = vpop.f32.mrb[0].mxu0
    %v1862 = vadd.f32 %v1778, %v1861
    %v1863 = vpop.f32.mrb[0].mxu0
    %v1864 = vpop.f32.mrb[0].mxu0
    %v1865 = vadd.f32 %v1778, %v1864
    %v1866 = vpop.f32.mrb[0].mxu0
    %1867 = vmatprep.mubr.bf16.mxu0 0
    %1868 = vmatmul.mubr.bf16.gmra.mrb[0].mxu0 %v1752
    %v1869 = vpop.f32.mrb[0].mxu0
    %v1870 = vadd.f32 %v1778, %v1869
    %v1871 = vpop.f32.mrb[0].mxu0
    %v1872 = vpop.f32.mrb[0].mxu0
    %v1873 = vadd.f32 %v1778, %v1872
    %v1874 = vpop.f32.mrb[0].mxu0
    %1875 = vmatprep.mubr.bf16.mxu0 0
    %1876 = vmatmul.mubr.bf16.gmra.mrb[0].mxu0 %v1753
    %v1877 = vpop.f32.mrb[0].mxu0
    %v1878 = vadd.f32 %v1778, %v1877
    %v1879 = vpop.f32.mrb[0].mxu0
    %v1880 = vpop.f32.mrb[0].mxu0
    %v1881 = vadd.f32 %v1778, %v1880
    %v1882 = vpop.f32.mrb[0].mxu0
    %1883 = vmatprep.mubr.bf16.mxu0 0
    %1884 = vmatmul.mubr.bf16.gmra.mrb[0].mxu0 %v1754
    %v1885 = vpop.f32.mrb[0].mxu0
    %v1886 = vadd.f32 %v1778, %v1885
    %v1887 = vpop.f32.mrb[0].mxu0
    %v1888 = vpop.f32.mrb[0].mxu0
    %v1889 = vadd.f32 %v1778, %v1888
    %v1890 = vpop.f32.mrb[0].mxu0
    %1891 = vmatprep.mubr.bf16.mxu0 0
    %1892 = vmatmul.mubr.bf16.gmra.mrb[0].mxu0 %v1755
    %v1893 = vpop.f32.mrb[0].mxu0
    %v1894 = vadd.f32 %v1778, %v1893
    %v1895 = vpop.f32.mrb[0].mxu0
    %v1896 = vpop.f32.mrb[0].mxu0
    %v1897 = vadd.f32 %v1778, %v1896
    %v1898 = vpop.f32.mrb[0].mxu0
    %1899 = vmatprep.mubr.bf16.mxu0 0
    %1900 = vmatmul.mubr.bf16.gmra.mrb[0].mxu0 %v1756
    %v1901 = vpop.f32.mrb[0].mxu0
    %v1902 = vadd.f32 %v1778, %v1901
    %v1903 = vpop.f32.mrb[0].mxu0
    %v1904 = vpop.f32.mrb[0].mxu0
    %v1905 = vadd.f32 %v1778, %v1904
    %v1906 = vpop.f32.mrb[0].mxu0
    %1907 = vmatprep.mubr.bf16.mxu0 0
    %1908 = vmatmul.mubr.bf16.gmra.mrb[0].mxu0 %v1757
    %v1909 = vpop.f32.mrb[0].mxu0
    %v1910 = vadd.f32 %v1778, %v1909
    %v1911 = vpop.f32.mrb[0].mxu0
    %v1912 = vpop.f32.mrb[0].mxu0
    %v1913 = vadd.f32 %v1778, %v1912
    %v1914 = vpop.f32.mrb[0].mxu0
    %1915 = vmatprep.mubr.bf16.mxu0 0
    %1916 = vmatmul.mubr.bf16.gmra.mrb[0].mxu0 %v1758
    %v1917 = vpop.f32.mrb[0].mxu0
    %v1918 = vadd.f32 %v1778, %v1917
    %v1919 = vpop.f32.mrb[0].mxu0
    %v1920 = vpop.f32.mrb[0].mxu0
    %v1921 = vadd.f32 %v1778, %v1920
    %v1922 = vpop.f32.mrb[0].mxu0
    %1923 = vdwg.mxu0
    %v1924 = vadd.f32 %v1554, %v1862
    %v1925 = vadd.f32 %v1555, %v1865
    %v1926 = vadd.f32 %v1556, %v1870
    %v1927 = vadd.f32 %v1557, %v1873
    %v1928 = vadd.f32 %v1558, %v1878
    %v1929 = vadd.f32 %v1559, %v1881
    %v1930 = vadd.f32 %v1560, %v1886
    %v1931 = vadd.f32 %v1561, %v1889
    %v1932 = vadd.f32 %v1562, %v1894
    %v1933 = vadd.f32 %v1563, %v1897
    %v1934 = vadd.f32 %v1564, %v1902
    %v1935 = vadd.f32 %v1565, %v1905
    %v1936 = vadd.f32 %v1566, %v1910
    %v1937 = vadd.f32 %v1567, %v1913
    %v1938 = vadd.f32 %v1568, %v1918
    %v1939 = vadd.f32 %v1569, %v1921
    %v1940 = vsel %vm188, %v1924, 0.0
    %1941 = vadd.xlane.f32.xlu0 %v1940
    %v1942 = vpop.xlane.xlu0 %1941
    %v1943 = vsel %vm188, %v1925, 0.0
    %1944 = vadd.xlane.f32.xlu0 %v1943
    %v1945 = vpop.xlane.xlu0 %1944
    %v1946 = vsel %vm188, %v1926, 0.0
    %1947 = vadd.xlane.f32.xlu0 %v1946
    %v1948 = vpop.xlane.xlu0 %1947
    %v1949 = vsel %vm188, %v1927, 0.0
    %1950 = vadd.xlane.f32.xlu0 %v1949
    %v1951 = vpop.xlane.xlu0 %1950
    %v1952 = vsel %vm188, %v1928, 0.0
    %1953 = vadd.xlane.f32.xlu0 %v1952
    %v1954 = vpop.xlane.xlu0 %1953
    %v1955 = vsel %vm188, %v1929, 0.0
    %1956 = vadd.xlane.f32.xlu0 %v1955
    %v1957 = vpop.xlane.xlu0 %1956
    %v1958 = vsel %vm188, %v1930, 0.0
    %1959 = vadd.xlane.f32.xlu0 %v1958
    %v1960 = vpop.xlane.xlu0 %1959
    %v1961 = vsel %vm188, %v1931, 0.0
    %1962 = vadd.xlane.f32.xlu0 %v1961
    %v1963 = vpop.xlane.xlu0 %1962
    %v1964 = vsel %vm188, %v1932, 0.0
    %1965 = vadd.xlane.f32.xlu0 %v1964
    %v1966 = vpop.xlane.xlu0 %1965
    %v1967 = vsel %vm188, %v1933, 0.0
    %1968 = vadd.xlane.f32.xlu0 %v1967
    %v1969 = vpop.xlane.xlu0 %1968
    %v1970 = vsel %vm188, %v1934, 0.0
    %1971 = vadd.xlane.f32.xlu0 %v1970
    %v1972 = vpop.xlane.xlu0 %1971
    %v1973 = vsel %vm188, %v1935, 0.0
    %1974 = vadd.xlane.f32.xlu0 %v1973
    %v1975 = vpop.xlane.xlu0 %1974
    %v1976 = vsel %vm188, %v1936, 0.0
    %1977 = vadd.xlane.f32.xlu0 %v1976
    %v1978 = vpop.xlane.xlu0 %1977
    %v1979 = vsel %vm188, %v1937, 0.0
    %1980 = vadd.xlane.f32.xlu0 %v1979
    %v1981 = vpop.xlane.xlu0 %1980
    %v1982 = vsel %vm188, %v1938, 0.0
    %1983 = vadd.xlane.f32.xlu0 %v1982
    %v1984 = vpop.xlane.xlu0 %1983
    %v1985 = vsel %vm188, %v1939, 0.0
    %1986 = vadd.xlane.f32.xlu0 %v1985
    %v1987 = vpop.xlane.xlu0 %1986
    %v1988 = vmul.f32 %v1942, %v1369
    %v1989 = vmul.f32 %v1945, %v1369
    %v1990 = vmul.f32 %v1948, %v1369
    %v1991 = vmul.f32 %v1951, %v1369
    %v1992 = vmul.f32 %v1954, %v1369
    %v1993 = vmul.f32 %v1957, %v1369
    %v1994 = vmul.f32 %v1960, %v1369
    %v1995 = vmul.f32 %v1963, %v1369
    %v1996 = vmul.f32 %v1966, %v1369
    %v1997 = vmul.f32 %v1969, %v1369
    %v1998 = vmul.f32 %v1972, %v1369
    %v1999 = vmul.f32 %v1975, %v1369
    %v2000 = vmul.f32 %v1978, %v1369
    %v2001 = vmul.f32 %v1981, %v1369
    %v2002 = vmul.f32 %v1984, %v1369
    %v2003 = vmul.f32 %v1987, %v1369
    %v2004 = vsub.f32 %v1924, %v1988
    %v2005 = vsub.f32 %v1925, %v1989
    %v2006 = vsub.f32 %v1926, %v1990
    %v2007 = vsub.f32 %v1927, %v1991
    %v2008 = vsub.f32 %v1928, %v1992
    %v2009 = vsub.f32 %v1929, %v1993
    %v2010 = vsub.f32 %v1930, %v1994
    %v2011 = vsub.f32 %v1931, %v1995
    %v2012 = vsub.f32 %v1932, %v1996
    %v2013 = vsub.f32 %v1933, %v1997
    %v2014 = vsub.f32 %v1934, %v1998
    %v2015 = vsub.f32 %v1935, %v1999
    %v2016 = vsub.f32 %v1936, %v2000
    %v2017 = vsub.f32 %v1937, %v2001
    %v2018 = vsub.f32 %v1938, %v2002
    %v2019 = vsub.f32 %v1939, %v2003
    %v2020 = vmul.f32 %v2004, %v2004
    %v2021 = vmul.f32 %v2005, %v2005
    %v2022 = vmul.f32 %v2006, %v2006
    %v2023 = vmul.f32 %v2007, %v2007
    %v2024 = vmul.f32 %v2008, %v2008
    %v2025 = vmul.f32 %v2009, %v2009
    %v2026 = vmul.f32 %v2010, %v2010
    %v2027 = vmul.f32 %v2011, %v2011
    %v2028 = vmul.f32 %v2012, %v2012
    %v2029 = vmul.f32 %v2013, %v2013
    %v2030 = vmul.f32 %v2014, %v2014
    %v2031 = vmul.f32 %v2015, %v2015
    %v2032 = vmul.f32 %v2016, %v2016
    %v2033 = vmul.f32 %v2017, %v2017
    %v2034 = vmul.f32 %v2018, %v2018
    %v2035 = vmul.f32 %v2019, %v2019
    %v2036 = vsel %vm188, %v2020, 0.0
    %2037 = vadd.xlane.f32.xlu0 %v2036
    %v2038 = vpop.xlane.xlu0 %2037
    %v2039 = vsel %vm188, %v2021, 0.0
    %2040 = vadd.xlane.f32.xlu0 %v2039
    %v2041 = vpop.xlane.xlu0 %2040
    %v2042 = vsel %vm188, %v2022, 0.0
    %2043 = vadd.xlane.f32.xlu0 %v2042
    %v2044 = vpop.xlane.xlu0 %2043
    %v2045 = vsel %vm188, %v2023, 0.0
    %2046 = vadd.xlane.f32.xlu0 %v2045
    %v2047 = vpop.xlane.xlu0 %2046
    %v2048 = vsel %vm188, %v2024, 0.0
    %2049 = vadd.xlane.f32.xlu0 %v2048
    %v2050 = vpop.xlane.xlu0 %2049
    %v2051 = vsel %vm188, %v2025, 0.0
    %2052 = vadd.xlane.f32.xlu0 %v2051
    %v2053 = vpop.xlane.xlu0 %2052
    %v2054 = vsel %vm188, %v2026, 0.0
    %2055 = vadd.xlane.f32.xlu0 %v2054
    %v2056 = vpop.xlane.xlu0 %2055
    %v2057 = vsel %vm188, %v2027, 0.0
    %2058 = vadd.xlane.f32.xlu0 %v2057
    %v2059 = vpop.xlane.xlu0 %2058
    %v2060 = vsel %vm188, %v2028, 0.0
    %2061 = vadd.xlane.f32.xlu0 %v2060
    %v2062 = vpop.xlane.xlu0 %2061
    %v2063 = vsel %vm188, %v2029, 0.0
    %2064 = vadd.xlane.f32.xlu0 %v2063
    %v2065 = vpop.xlane.xlu0 %2064
    %v2066 = vsel %vm188, %v2030, 0.0
    %2067 = vadd.xlane.f32.xlu0 %v2066
    %v2068 = vpop.xlane.xlu0 %2067
    %v2069 = vsel %vm188, %v2031, 0.0
    %2070 = vadd.xlane.f32.xlu0 %v2069
    %v2071 = vpop.xlane.xlu0 %2070
    %v2072 = vsel %vm188, %v2032, 0.0
    %2073 = vadd.xlane.f32.xlu0 %v2072
    %v2074 = vpop.xlane.xlu0 %2073
    %v2075 = vsel %vm188, %v2033, 0.0
    %2076 = vadd.xlane.f32.xlu0 %v2075
    %v2077 = vpop.xlane.xlu0 %2076
    %v2078 = vsel %vm188, %v2034, 0.0
    %2079 = vadd.xlane.f32.xlu0 %v2078
    %v2080 = vpop.xlane.xlu0 %2079
    %v2081 = vsel %vm188, %v2035, 0.0
    %2082 = vadd.xlane.f32.xlu0 %v2081
    %v2083 = vpop.xlane.xlu0 %2082
    %v2084 = vmul.f32 %v2038, %v1369
    %v2085 = vmul.f32 %v2041, %v1369
    %v2086 = vmul.f32 %v2044, %v1369
    %v2087 = vmul.f32 %v2047, %v1369
    %v2088 = vmul.f32 %v2050, %v1369
    %v2089 = vmul.f32 %v2053, %v1369
    %v2090 = vmul.f32 %v2056, %v1369
    %v2091 = vmul.f32 %v2059, %v1369
    %v2092 = vmul.f32 %v2062, %v1369
    %v2093 = vmul.f32 %v2065, %v1369
    %v2094 = vmul.f32 %v2068, %v1369
    %v2095 = vmul.f32 %v2071, %v1369
    %v2096 = vmul.f32 %v2074, %v1369
    %v2097 = vmul.f32 %v2077, %v1369
    %v2098 = vmul.f32 %v2080, %v1369
    %v2099 = vmul.f32 %v2083, %v1369
    %v2100 = vadd.f32 %v2084, 1e-05
    %v2101 = vadd.f32 %v2085, 1e-05
    %v2102 = vadd.f32 %v2086, 1e-05
    %v2103 = vadd.f32 %v2087, 1e-05
    %v2104 = vadd.f32 %v2088, 1e-05
    %v2105 = vadd.f32 %v2089, 1e-05
    %v2106 = vadd.f32 %v2090, 1e-05
    %v2107 = vadd.f32 %v2091, 1e-05
    %v2108 = vadd.f32 %v2092, 1e-05
    %v2109 = vadd.f32 %v2093, 1e-05
    %v2110 = vadd.f32 %v2094, 1e-05
    %v2111 = vadd.f32 %v2095, 1e-05
    %v2112 = vadd.f32 %v2096, 1e-05
    %v2113 = vadd.f32 %v2097, 1e-05
    %v2114 = vadd.f32 %v2098, 1e-05
    %v2115 = vadd.f32 %v2099, 1e-05
    %v2116 = vrsqrt.pop %v2100
    %v2117 = vrsqrt.pop %v2101
    %v2118 = vrsqrt.pop %v2102
    %v2119 = vrsqrt.pop %v2103
    %v2120 = vrsqrt.pop %v2104
    %v2121 = vrsqrt.pop %v2105
    %v2122 = vrsqrt.pop %v2106
    %v2123 = vrsqrt.pop %v2107
    %v2124 = vrsqrt.pop %v2108
    %v2125 = vrsqrt.pop %v2109
    %v2126 = vrsqrt.pop %v2110
    %v2127 = vrsqrt.pop %v2111
    %v2128 = vrsqrt.pop %v2112
    %v2129 = vrsqrt.pop %v2113
    %v2130 = vrsqrt.pop %v2114
    %v2131 = vrsqrt.pop %v2115
    %v2132 = vmul.f32 %v2004, %v2116
    %v2133 = vmul.f32 %v2005, %v2117
    %v2134 = vmul.f32 %v2006, %v2118
    %v2135 = vmul.f32 %v2007, %v2119
    %v2136 = vmul.f32 %v2008, %v2120
    %v2137 = vmul.f32 %v2009, %v2121
    %v2138 = vmul.f32 %v2010, %v2122
    %v2139 = vmul.f32 %v2011, %v2123
    %v2140 = vmul.f32 %v2012, %v2124
    %v2141 = vmul.f32 %v2013, %v2125
    %v2142 = vmul.f32 %v2014, %v2126
    %v2143 = vmul.f32 %v2015, %v2127
    %v2144 = vmul.f32 %v2016, %v2128
    %v2145 = vmul.f32 %v2017, %v2129
    %v2146 = vmul.f32 %v2018, %v2130
    %v2147 = vmul.f32 %v2019, %v2131
    %v2148 = vlaneseq
    %v2149 = vshrl.u32 %v2148, 7
    %v2150 = vsub.s32 6, %v2149
    %v2151 = vrot.slane %v310, %v2150
    %v2152 = vmul.f32 %v2132, %v2151
    %v2153 = vmul.f32 %v2133, %v2151
    %v2154 = vmul.f32 %v2134, %v2151
    %v2155 = vmul.f32 %v2135, %v2151
    %v2156 = vmul.f32 %v2136, %v2151
    %v2157 = vmul.f32 %v2137, %v2151
    %v2158 = vmul.f32 %v2138, %v2151
    %v2159 = vmul.f32 %v2139, %v2151
    %v2160 = vmul.f32 %v2140, %v2151
    %v2161 = vmul.f32 %v2141, %v2151
    %v2162 = vmul.f32 %v2142, %v2151
    %v2163 = vmul.f32 %v2143, %v2151
    %v2164 = vmul.f32 %v2144, %v2151
    %v2165 = vmul.f32 %v2145, %v2151
    %v2166 = vmul.f32 %v2146, %v2151
    %v2167 = vmul.f32 %v2147, %v2151
    %v2168 = vlaneseq
    %v2169 = vshrl.u32 %v2168, 7
    %v2170 = vsub.s32 7, %v2169
    %v2171 = vrot.slane %v310, %v2170
    %v2172 = vadd.f32 %v2152, %v2171
    %v2173 = vadd.f32 %v2153, %v2171
    %v2174 = vadd.f32 %v2154, %v2171
    %v2175 = vadd.f32 %v2155, %v2171
    %v2176 = vadd.f32 %v2156, %v2171
    %v2177 = vadd.f32 %v2157, %v2171
    %v2178 = vadd.f32 %v2158, %v2171
    %v2179 = vadd.f32 %v2159, %v2171
    %v2180 = vadd.f32 %v2160, %v2171
    %v2181 = vadd.f32 %v2161, %v2171
    %v2182 = vadd.f32 %v2162, %v2171
    %v2183 = vadd.f32 %v2163, %v2171
    %v2184 = vadd.f32 %v2164, %v2171
    %v2185 = vadd.f32 %v2165, %v2171
    %v2186 = vadd.f32 %v2166, %v2171
    %v2187 = vadd.f32 %v2167, %v2171
    %s2188 = scalar_lea.vmem %s7, 16
    %v2189 = vld [vmem:[%s2188] sm:$0xff]
    %v2190 = vld [vmem:[%s2188 + $0x8] sm:$0x1]
    %s2191 = scalar_lea.vmem %s8, 2
    %v2192 = vld [vmem:[%s2191] sm:$0x3]
    %v2193 = vpack.c.bf16 %v2173, %v2172
    %v2194 = vpack.c.bf16 %v2175, %v2174
    %v2195 = vpack.c.bf16 %v2177, %v2176
    %v2196 = vpack.c.bf16 %v2179, %v2178
    %v2197 = vpack.c.bf16 %v2181, %v2180
    %v2198 = vpack.c.bf16 %v2183, %v2182
    %v2199 = vpack.c.bf16 %v2185, %v2184
    %v2200 = vpack.c.bf16 %v2187, %v2186
    %s2201 = scalar_lea.vmem [#allocation5], 64
    %v2202 = vld [vmem:[%s2201] sm:$0xff]
    %v2203 = vld [vmem:[%s2201 + $0x8] sm:$0xff]
    %v2204 = vld [vmem:[%s2201 + $0x10] sm:$0xff]
    %v2205 = vld [vmem:[%s2201 + $0x18] sm:$0xff]
    %v2206 = vld [vmem:[%s2201 + $0x20] sm:$0xff]
    %v2207 = vld [vmem:[%s2201 + $0x28] sm:$0xff]
    %v2208 = vld [vmem:[%s2201 + $0x30] sm:$0xff]
    %v2209 = vld [vmem:[%s2201 + $0x38] sm:$0xff]
    %v2218 = vunpack.c.l.b16 %v2202
    %v2219 = vunpack.c.h.b16 %v2202
    %v2220 = vunpack.c.l.b16 %v2203
    %v2221 = vunpack.c.h.b16 %v2203
    %v2222 = vunpack.c.l.b16 %v2204
    %v2223 = vunpack.c.h.b16 %v2204
    %v2224 = vunpack.c.l.b16 %v2205
    %v2225 = vunpack.c.h.b16 %v2205
    %v2226 = vunpack.c.l.b16 %v2206
    %v2227 = vunpack.c.h.b16 %v2206
    %v2228 = vunpack.c.l.b16 %v2207
    %v2229 = vunpack.c.h.b16 %v2207
    %v2230 = vunpack.c.l.b16 %v2208
    %v2231 = vunpack.c.h.b16 %v2208
    %v2232 = vunpack.c.l.b16 %v2209
    %v2233 = vunpack.c.h.b16 %v2209
    %v2234 = vpack.c.b16 %v2220, %v2218
    %v2235 = vpack.c.b16 %v2221, %v2219
    %v2236 = vpack.c.b16 %v2224, %v2222
    %v2237 = vpack.c.b16 %v2225, %v2223
    %v2238 = vpack.c.b16 %v2228, %v2226
    %v2239 = vpack.c.b16 %v2229, %v2227
    %v2240 = vpack.c.b16 %v2232, %v2230
    %v2241 = vpack.c.b16 %v2233, %v2231
    %v2251 = vsel %vm188, %v2193, 0
    %v2254 = vsel %vm188, %v2194, 0
    %v2257 = vsel %vm188, %v2195, 0
    %v2260 = vsel %vm188, %v2196, 0
    %v2263 = vsel %vm188, %v2197, 0
    %v2266 = vsel %vm188, %v2198, 0
    %v2269 = vsel %vm188, %v2199, 0
    %v2272 = vsel %vm188, %v2200, 0
    %2274 = vmatprep.subr.bf16.mxu0 %v2235
    %2275 = vmatpush1.bf16.msra.mxu0 %v2234
    %2276 = vmatprep.subr.bf16.mxu0 %v2237
    %2277 = vmatpush1.bf16.msra.mxu0 %v2236
    %2278 = vmatprep.subr.bf16.mxu0 %v2239
    %2279 = vmatpush1.bf16.msra.mxu0 %v2238
    %2280 = vmatprep.subr.bf16.mxu0 %v2241
    %2281 = vmatpush1.bf16.msra.mxu0 %v2240
    %2282 = vmatprep.subr.bf16.mxu0 0
    %2283 = vmatpush1.bf16.msra.mxu0 0
    %2284 = vmatprep.subr.bf16.mxu0 0
    %2285 = vmatpush1.bf16.msra.mxu0 0
    %2286 = vmatprep.subr.bf16.mxu0 0
    %2287 = vmatpush1.bf16.msra.mxu0 0
    %2288 = vmatprep.subr.bf16.mxu0 0
    %2289 = vmatpush1.bf16.msra.mxu0 0
    %2290 = vmatprep.subr.bf16.mxu0 0
    %2291 = vmatpush1.bf16.msra.mxu0 0
    %2292 = vmatprep.subr.bf16.mxu0 0
    %2293 = vmatpush1.bf16.msra.mxu0 0
    %2294 = vmatprep.subr.bf16.mxu0 0
    %2295 = vmatpush1.bf16.msra.mxu0 0
    %2296 = vmatprep.subr.bf16.mxu0 0
    %2297 = vmatpush1.bf16.msra.mxu0 0
    %2298 = vmatprep.subr.bf16.mxu0 0
    %2299 = vmatpush1.bf16.msra.mxu0 0
    %2300 = vmatprep.subr.bf16.mxu0 0
    %2301 = vmatpush1.bf16.msra.mxu0 0
    %2302 = vmatprep.subr.bf16.mxu0 0
    %2303 = vmatpush1.bf16.msra.mxu0 0
    %2304 = vmatprep.subr.bf16.mxu0 0
    %2305 = vmatpush1.bf16.msra.mxu0 0
    %2306 = vmatprep.mubr.bf16.mxu0 0
    %2307 = vmatmul.mubr.bf16.gmra.mrb[0].mxu0 %v2251
    %v2308 = vpop.f32.mrb[0].mxu0
    %v2309 = vadd.f32 0.0, %v2308
    %v2310 = vpop.f32.mrb[0].mxu0
    %v2311 = vadd.f32 0.0, %v2310
    %v2312 = vpop.f32.mrb[0].mxu0
    %v2313 = vadd.f32 0.0, %v2312
    %v2314 = vpop.f32.mrb[0].mxu0
    %v2315 = vadd.f32 0.0, %v2314
    %2316 = vmatprep.mubr.bf16.mxu0 0
    %2317 = vmatmul.mubr.bf16.gmra.mrb[0].mxu0 %v2254
    %v2318 = vpop.f32.mrb[0].mxu0
    %v2319 = vadd.f32 0.0, %v2318
    %v2320 = vpop.f32.mrb[0].mxu0
    %v2321 = vadd.f32 0.0, %v2320
    %v2322 = vpop.f32.mrb[0].mxu0
    %v2323 = vadd.f32 0.0, %v2322
    %v2324 = vpop.f32.mrb[0].mxu0
    %v2325 = vadd.f32 0.0, %v2324
    %2326 = vmatprep.mubr.bf16.mxu0 0
    %2327 = vmatmul.mubr.bf16.gmra.mrb[0].mxu0 %v2257
    %v2328 = vpop.f32.mrb[0].mxu0
    %v2329 = vadd.f32 0.0, %v2328
    %v2330 = vpop.f32.mrb[0].mxu0
    %v2331 = vadd.f32 0.0, %v2330
    %v2332 = vpop.f32.mrb[0].mxu0
    %v2333 = vadd.f32 0.0, %v2332
    %v2334 = vpop.f32.mrb[0].mxu0
    %v2335 = vadd.f32 0.0, %v2334
    %2336 = vmatprep.mubr.bf16.mxu0 0
    %2337 = vmatmul.mubr.bf16.gmra.mrb[0].mxu0 %v2260
    %v2338 = vpop.f32.mrb[0].mxu0
    %v2339 = vadd.f32 0.0, %v2338
    %v2340 = vpop.f32.mrb[0].mxu0
    %v2341 = vadd.f32 0.0, %v2340
    %v2342 = vpop.f32.mrb[0].mxu0
    %v2343 = vadd.f32 0.0, %v2342
    %v2344 = vpop.f32.mrb[0].mxu0
    %v2345 = vadd.f32 0.0, %v2344
    %2346 = vmatprep.mubr.bf16.mxu0 0
    %2347 = vmatmul.mubr.bf16.gmra.mrb[0].mxu0 %v2263
    %v2348 = vpop.f32.mrb[0].mxu0
    %v2349 = vadd.f32 0.0, %v2348
    %v2350 = vpop.f32.mrb[0].mxu0
    %v2351 = vadd.f32 0.0, %v2350
    %v2352 = vpop.f32.mrb[0].mxu0
    %v2353 = vadd.f32 0.0, %v2352
    %v2354 = vpop.f32.mrb[0].mxu0
    %v2355 = vadd.f32 0.0, %v2354
    %2356 = vmatprep.mubr.bf16.mxu0 0
    %2357 = vmatmul.mubr.bf16.gmra.mrb[0].mxu0 %v2266
    %v2358 = vpop.f32.mrb[0].mxu0
    %v2359 = vadd.f32 0.0, %v2358
    %v2360 = vpop.f32.mrb[0].mxu0
    %v2361 = vadd.f32 0.0, %v2360
    %v2362 = vpop.f32.mrb[0].mxu0
    %v2363 = vadd.f32 0.0, %v2362
    %v2364 = vpop.f32.mrb[0].mxu0
    %v2365 = vadd.f32 0.0, %v2364
    %2366 = vmatprep.mubr.bf16.mxu0 0
    %2367 = vmatmul.mubr.bf16.gmra.mrb[0].mxu0 %v2269
    %v2368 = vpop.f32.mrb[0].mxu0
    %v2369 = vadd.f32 0.0, %v2368
    %v2370 = vpop.f32.mrb[0].mxu0
    %v2371 = vadd.f32 0.0, %v2370
    %v2372 = vpop.f32.mrb[0].mxu0
    %v2373 = vadd.f32 0.0, %v2372
    %v2374 = vpop.f32.mrb[0].mxu0
    %v2375 = vadd.f32 0.0, %v2374
    %2376 = vmatprep.mubr.bf16.mxu0 0
    %2377 = vmatmul.mubr.bf16.gmra.mrb[0].mxu0 %v2272
    %v2378 = vpop.f32.mrb[0].mxu0
    %v2379 = vadd.f32 0.0, %v2378
    %v2380 = vpop.f32.mrb[0].mxu0
    %v2381 = vadd.f32 0.0, %v2380
    %v2382 = vpop.f32.mrb[0].mxu0
    %v2383 = vadd.f32 0.0, %v2382
    %v2384 = vpop.f32.mrb[0].mxu0
    %v2385 = vadd.f32 0.0, %v2384
    %2386 = vdwg.mxu0
    %v2387 = vlaneseq
    %v2388 = vshrl.u32 %v2387, 7
    %v2389 = vsub.s32 0, %v2388
    %v2390 = vrot.slane %v2189, %v2389
    %v2391 = vadd.f32 %v2309, %v2390
    %v2392 = vadd.f32 %v2313, %v2390
    %v2393 = vadd.f32 %v2319, %v2390
    %v2394 = vadd.f32 %v2323, %v2390
    %v2395 = vadd.f32 %v2329, %v2390
    %v2396 = vadd.f32 %v2333, %v2390
    %v2397 = vadd.f32 %v2339, %v2390
    %v2398 = vadd.f32 %v2343, %v2390
    %v2399 = vadd.f32 %v2349, %v2390
    %v2400 = vadd.f32 %v2353, %v2390
    %v2401 = vadd.f32 %v2359, %v2390
    %v2402 = vadd.f32 %v2363, %v2390
    %v2403 = vadd.f32 %v2369, %v2390
    %v2404 = vadd.f32 %v2373, %v2390
    %v2405 = vadd.f32 %v2379, %v2390
    %v2406 = vadd.f32 %v2383, %v2390
    %v2407 = vlaneseq
    %v2408 = vshrl.u32 %v2407, 7
    %v2409 = vsub.s32 1, %v2408
    %v2410 = vrot.slane %v2189, %v2409
    %2412 = vrot.lane.b32.xlu0 %v2410, 64
    %v2413 = vpop.permute.xlu0 %2412
    %v2415 = vadd.f32 %v2309, %v2413
    %v2416 = vadd.f32 %v2313, %v2413
    %v2417 = vadd.f32 %v2319, %v2413
    %v2418 = vadd.f32 %v2323, %v2413
    %v2419 = vadd.f32 %v2329, %v2413
    %v2420 = vadd.f32 %v2333, %v2413
    %v2421 = vadd.f32 %v2339, %v2413
    %v2422 = vadd.f32 %v2343, %v2413
    %v2423 = vadd.f32 %v2349, %v2413
    %v2424 = vadd.f32 %v2353, %v2413
    %v2425 = vadd.f32 %v2359, %v2413
    %v2426 = vadd.f32 %v2363, %v2413
    %v2427 = vadd.f32 %v2369, %v2413
    %v2428 = vadd.f32 %v2373, %v2413
    %v2429 = vadd.f32 %v2379, %v2413
    %v2430 = vadd.f32 %v2383, %v2413
    %v2431 = vlaneseq
    %v2432 = vshrl.u32 %v2431, 7
    %v2433 = vsub.s32 2, %v2432
    %v2434 = vrot.slane %v2189, %v2433
    %v2435 = vadd.f32 %v2311, %v2434
    %v2436 = vadd.f32 %v2315, %v2434
    %v2437 = vadd.f32 %v2321, %v2434
    %v2438 = vadd.f32 %v2325, %v2434
    %v2439 = vadd.f32 %v2331, %v2434
    %v2440 = vadd.f32 %v2335, %v2434
    %v2441 = vadd.f32 %v2341, %v2434
    %v2442 = vadd.f32 %v2345, %v2434
    %v2443 = vadd.f32 %v2351, %v2434
    %v2444 = vadd.f32 %v2355, %v2434
    %v2445 = vadd.f32 %v2361, %v2434
    %v2446 = vadd.f32 %v2365, %v2434
    %v2447 = vadd.f32 %v2371, %v2434
    %v2448 = vadd.f32 %v2375, %v2434
    %v2449 = vadd.f32 %v2381, %v2434
    %v2450 = vadd.f32 %v2385, %v2434
    %2467 = vrot.lane.b32.xlu0 %v2415, 64
    %v2468 = vpop.permute.xlu0 %2467
    %2469 = vrot.lane.b32.xlu0 %v2416, 64
    %v2470 = vpop.permute.xlu0 %2469
    %2471 = vrot.lane.b32.xlu0 %v2417, 64
    %v2472 = vpop.permute.xlu0 %2471
    %2473 = vrot.lane.b32.xlu0 %v2418, 64
    %v2474 = vpop.permute.xlu0 %2473
    %2475 = vrot.lane.b32.xlu0 %v2419, 64
    %v2476 = vpop.permute.xlu0 %2475
    %2477 = vrot.lane.b32.xlu0 %v2420, 64
    %v2478 = vpop.permute.xlu0 %2477
    %2479 = vrot.lane.b32.xlu0 %v2421, 64
    %v2480 = vpop.permute.xlu0 %2479
    %2481 = vrot.lane.b32.xlu0 %v2422, 64
    %v2482 = vpop.permute.xlu0 %2481
    %2483 = vrot.lane.b32.xlu0 %v2423, 64
    %v2484 = vpop.permute.xlu0 %2483
    %2485 = vrot.lane.b32.xlu0 %v2424, 64
    %v2486 = vpop.permute.xlu0 %2485
    %2487 = vrot.lane.b32.xlu0 %v2425, 64
    %v2488 = vpop.permute.xlu0 %2487
    %2489 = vrot.lane.b32.xlu0 %v2426, 64
    %v2490 = vpop.permute.xlu0 %2489
    %2491 = vrot.lane.b32.xlu0 %v2427, 64
    %v2492 = vpop.permute.xlu0 %2491
    %2493 = vrot.lane.b32.xlu0 %v2428, 64
    %v2494 = vpop.permute.xlu0 %2493
    %2495 = vrot.lane.b32.xlu0 %v2429, 64
    %v2496 = vpop.permute.xlu0 %2495
    %2497 = vrot.lane.b32.xlu0 %v2430, 64
    %v2498 = vpop.permute.xlu0 %2497
    %v2515 = vmul.f32 %v2391, %v2468
    %v2516 = vmul.f32 %v2392, %v2470
    %v2517 = vmul.f32 %v2393, %v2472
    %v2518 = vmul.f32 %v2394, %v2474
    %v2519 = vmul.f32 %v2395, %v2476
    %v2520 = vmul.f32 %v2396, %v2478
    %v2521 = vmul.f32 %v2397, %v2480
    %v2522 = vmul.f32 %v2398, %v2482
    %v2523 = vmul.f32 %v2391, %v2484
    %v2524 = vmul.f32 %v2392, %v2486
    %v2525 = vmul.f32 %v2393, %v2488
    %v2526 = vmul.f32 %v2394, %v2490
    %v2527 = vmul.f32 %v2395, %v2492
    %v2528 = vmul.f32 %v2396, %v2494
    %v2529 = vmul.f32 %v2397, %v2496
    %v2530 = vmul.f32 %v2398, %v2498
    %v2531 = vmul.f32 %v2399, %v2468
    %v2532 = vmul.f32 %v2400, %v2470
    %v2533 = vmul.f32 %v2401, %v2472
    %v2534 = vmul.f32 %v2402, %v2474
    %v2535 = vmul.f32 %v2403, %v2476
    %v2536 = vmul.f32 %v2404, %v2478
    %v2537 = vmul.f32 %v2405, %v2480
    %v2538 = vmul.f32 %v2406, %v2482
    %v2539 = vmul.f32 %v2399, %v2484
    %v2540 = vmul.f32 %v2400, %v2486
    %v2541 = vmul.f32 %v2401, %v2488
    %v2542 = vmul.f32 %v2402, %v2490
    %v2543 = vmul.f32 %v2403, %v2492
    %v2544 = vmul.f32 %v2404, %v2494
    %v2545 = vmul.f32 %v2405, %v2496
    %v2546 = vmul.f32 %v2406, %v2498
    %v2547 = vpack.c.bf16 %v2516, %v2515
    %v2548 = vpack.c.bf16 %v2518, %v2517
    %v2549 = vpack.c.bf16 %v2520, %v2519
    %v2550 = vpack.c.bf16 %v2522, %v2521
    %v2551 = vpack.c.bf16 %v2524, %v2523
    %v2552 = vpack.c.bf16 %v2526, %v2525
    %v2553 = vpack.c.bf16 %v2528, %v2527
    %v2554 = vpack.c.bf16 %v2530, %v2529
    %v2555 = vpack.c.bf16 %v2532, %v2531
    %v2556 = vpack.c.bf16 %v2534, %v2533
    %v2557 = vpack.c.bf16 %v2536, %v2535
    %v2558 = vpack.c.bf16 %v2538, %v2537
    %v2559 = vpack.c.bf16 %v2540, %v2539
    %v2560 = vpack.c.bf16 %v2542, %v2541
    %v2561 = vpack.c.bf16 %v2544, %v2543
    %v2562 = vpack.c.bf16 %v2546, %v2545
    %v2564 = vsel %vm188, %v2547, 0
    %v2567 = vsel %vm188, %v2548, 0
    %v2570 = vsel %vm188, %v2549, 0
    %v2573 = vsel %vm188, %v2550, 0
    %v2576 = vsel %vm188, %v2551, 0
    %v2579 = vsel %vm188, %v2552, 0
    %v2582 = vsel %vm188, %v2553, 0
    %v2585 = vsel %vm188, %v2554, 0
    %v2588 = vsel %vm188, %v2555, 0
    %v2591 = vsel %vm188, %v2556, 0
    %v2594 = vsel %vm188, %v2557, 0
    %v2597 = vsel %vm188, %v2558, 0
    %v2600 = vsel %vm188, %v2559, 0
    %v2603 = vsel %vm188, %v2560, 0
    %v2606 = vsel %vm188, %v2561, 0
    %v2609 = vsel %vm188, %v2562, 0
    %2611 = vmatprep.subr.bf16.mxu0 0
    %2612 = vmatpush1.bf16.msra.mxu0 %v698
    %2613 = vmatprep.subr.bf16.mxu0 0
    %2614 = vmatpush1.bf16.msra.mxu0 %v699
    %2615 = vmatprep.subr.bf16.mxu0 0
    %2616 = vmatpush1.bf16.msra.mxu0 %v700
    %2617 = vmatprep.subr.bf16.mxu0 0
    %2618 = vmatpush1.bf16.msra.mxu0 %v701
    %2619 = vmatprep.subr.bf16.mxu0 0
    %2620 = vmatpush1.bf16.msra.mxu0 0
    %2621 = vmatprep.subr.bf16.mxu0 0
    %2622 = vmatpush1.bf16.msra.mxu0 0
    %2623 = vmatprep.subr.bf16.mxu0 0
    %2624 = vmatpush1.bf16.msra.mxu0 0
    %2625 = vmatprep.subr.bf16.mxu0 0
    %2626 = vmatpush1.bf16.msra.mxu0 0
    %2627 = vmatprep.subr.bf16.mxu0 0
    %2628 = vmatpush1.bf16.msra.mxu0 0
    %2629 = vmatprep.subr.bf16.mxu0 0
    %2630 = vmatpush1.bf16.msra.mxu0 0
    %2631 = vmatprep.subr.bf16.mxu0 0
    %2632 = vmatpush1.bf16.msra.mxu0 0
    %2633 = vmatprep.subr.bf16.mxu0 0
    %2634 = vmatpush1.bf16.msra.mxu0 0
    %2635 = vmatprep.subr.bf16.mxu0 0
    %2636 = vmatpush1.bf16.msra.mxu0 0
    %2637 = vmatprep.subr.bf16.mxu0 0
    %2638 = vmatpush1.bf16.msra.mxu0 0
    %2639 = vmatprep.subr.bf16.mxu0 0
    %2640 = vmatpush1.bf16.msra.mxu0 0
    %2641 = vmatprep.subr.bf16.mxu0 0
    %2642 = vmatpush1.bf16.msra.mxu0 0
    %2643 = vmatprep.mubr.bf16.mxu0 0
    %2644 = vmatmul.mubr.bf16.gmra.mrb[0].mxu0 %v2564
    %v2645 = vpop.f32.mrb[0].mxu0
    %v2646 = vadd.f32 0.0, %v2645
    %v2647 = vpop.f32.mrb[0].mxu0
    %v2648 = vpop.f32.mrb[0].mxu0
    %v2649 = vadd.f32 0.0, %v2648
    %v2650 = vpop.f32.mrb[0].mxu0
    %2651 = vmatprep.mubr.bf16.mxu0 0
    %2652 = vmatmul.mubr.bf16.gmra.mrb[0].mxu0 %v2567
    %v2653 = vpop.f32.mrb[0].mxu0
    %v2654 = vadd.f32 0.0, %v2653
    %v2655 = vpop.f32.mrb[0].mxu0
    %v2656 = vpop.f32.mrb[0].mxu0
    %v2657 = vadd.f32 0.0, %v2656
    %v2658 = vpop.f32.mrb[0].mxu0
    %2659 = vmatprep.mubr.bf16.mxu0 0
    %2660 = vmatmul.mubr.bf16.gmra.mrb[0].mxu0 %v2570
    %v2661 = vpop.f32.mrb[0].mxu0
    %v2662 = vadd.f32 0.0, %v2661
    %v2663 = vpop.f32.mrb[0].mxu0
    %v2664 = vpop.f32.mrb[0].mxu0
    %v2665 = vadd.f32 0.0, %v2664
    %v2666 = vpop.f32.mrb[0].mxu0
    %2667 = vmatprep.mubr.bf16.mxu0 0
    %2668 = vmatmul.mubr.bf16.gmra.mrb[0].mxu0 %v2573
    %v2669 = vpop.f32.mrb[0].mxu0
    %v2670 = vadd.f32 0.0, %v2669
    %v2671 = vpop.f32.mrb[0].mxu0
    %v2672 = vpop.f32.mrb[0].mxu0
    %v2673 = vadd.f32 0.0, %v2672
    %v2674 = vpop.f32.mrb[0].mxu0
    %2675 = vmatprep.mubr.bf16.mxu0 0
    %2676 = vmatmul.mubr.bf16.gmra.mrb[0].mxu0 %v2576
    %v2677 = vpop.f32.mrb[0].mxu0
    %v2678 = vadd.f32 0.0, %v2677
    %v2679 = vpop.f32.mrb[0].mxu0
    %v2680 = vpop.f32.mrb[0].mxu0
    %v2681 = vadd.f32 0.0, %v2680
    %v2682 = vpop.f32.mrb[0].mxu0
    %2683 = vmatprep.mubr.bf16.mxu0 0
    %2684 = vmatmul.mubr.bf16.gmra.mrb[0].mxu0 %v2579
    %v2685 = vpop.f32.mrb[0].mxu0
    %v2686 = vadd.f32 0.0, %v2685
    %v2687 = vpop.f32.mrb[0].mxu0
    %v2688 = vpop.f32.mrb[0].mxu0
    %v2689 = vadd.f32 0.0, %v2688
    %v2690 = vpop.f32.mrb[0].mxu0
    %2691 = vmatprep.mubr.bf16.mxu0 0
    %2692 = vmatmul.mubr.bf16.gmra.mrb[0].mxu0 %v2582
    %v2693 = vpop.f32.mrb[0].mxu0
    %v2694 = vadd.f32 0.0, %v2693
    %v2695 = vpop.f32.mrb[0].mxu0
    %v2696 = vpop.f32.mrb[0].mxu0
    %v2697 = vadd.f32 0.0, %v2696
    %v2698 = vpop.f32.mrb[0].mxu0
    %2699 = vmatprep.mubr.bf16.mxu0 0
    %2700 = vmatmul.mubr.bf16.gmra.mrb[0].mxu0 %v2585
    %v2701 = vpop.f32.mrb[0].mxu0
    %v2702 = vadd.f32 0.0, %v2701
    %v2703 = vpop.f32.mrb[0].mxu0
    %v2704 = vpop.f32.mrb[0].mxu0
    %v2705 = vadd.f32 0.0, %v2704
    %v2706 = vpop.f32.mrb[0].mxu0
    %2707 = vmatprep.mubr.bf16.mxu0 0
    %2708 = vmatmul.mubr.bf16.gmra.mrb[0].mxu0 %v2588
    %v2709 = vpop.f32.mrb[0].mxu0
    %v2710 = vadd.f32 0.0, %v2709
    %v2711 = vpop.f32.mrb[0].mxu0
    %v2712 = vpop.f32.mrb[0].mxu0
    %v2713 = vadd.f32 0.0, %v2712
    %v2714 = vpop.f32.mrb[0].mxu0
    %2715 = vmatprep.mubr.bf16.mxu0 0
    %2716 = vmatmul.mubr.bf16.gmra.mrb[0].mxu0 %v2591
    %v2717 = vpop.f32.mrb[0].mxu0
    %v2718 = vadd.f32 0.0, %v2717
    %v2719 = vpop.f32.mrb[0].mxu0
    %v2720 = vpop.f32.mrb[0].mxu0
    %v2721 = vadd.f32 0.0, %v2720
    %v2722 = vpop.f32.mrb[0].mxu0
    %2723 = vmatprep.mubr.bf16.mxu0 0
    %2724 = vmatmul.mubr.bf16.gmra.mrb[0].mxu0 %v2594
    %v2725 = vpop.f32.mrb[0].mxu0
    %v2726 = vadd.f32 0.0, %v2725
    %v2727 = vpop.f32.mrb[0].mxu0
    %v2728 = vpop.f32.mrb[0].mxu0
    %v2729 = vadd.f32 0.0, %v2728
    %v2730 = vpop.f32.mrb[0].mxu0
    %2731 = vmatprep.mubr.bf16.mxu0 0
    %2732 = vmatmul.mubr.bf16.gmra.mrb[0].mxu0 %v2597
    %v2733 = vpop.f32.mrb[0].mxu0
    %v2734 = vadd.f32 0.0, %v2733
    %v2735 = vpop.f32.mrb[0].mxu0
    %v2736 = vpop.f32.mrb[0].mxu0
    %v2737 = vadd.f32 0.0, %v2736
    %v2738 = vpop.f32.mrb[0].mxu0
    %2739 = vmatprep.mubr.bf16.mxu0 0
    %2740 = vmatmul.mubr.bf16.gmra.mrb[0].mxu0 %v2600
    %v2741 = vpop.f32.mrb[0].mxu0
    %v2742 = vadd.f32 0.0, %v2741
    %v2743 = vpop.f32.mrb[0].mxu0
    %v2744 = vpop.f32.mrb[0].mxu0
    %v2745 = vadd.f32 0.0, %v2744
    %v2746 = vpop.f32.mrb[0].mxu0
    %2747 = vmatprep.mubr.bf16.mxu0 0
    %2748 = vmatmul.mubr.bf16.gmra.mrb[0].mxu0 %v2603
    %v2749 = vpop.f32.mrb[0].mxu0
    %v2750 = vadd.f32 0.0, %v2749
    %v2751 = vpop.f32.mrb[0].mxu0
    %v2752 = vpop.f32.mrb[0].mxu0
    %v2753 = vadd.f32 0.0, %v2752
    %v2754 = vpop.f32.mrb[0].mxu0
    %2755 = vmatprep.mubr.bf16.mxu0 0
    %2756 = vmatmul.mubr.bf16.gmra.mrb[0].mxu0 %v2606
    %v2757 = vpop.f32.mrb[0].mxu0
    %v2758 = vadd.f32 0.0, %v2757
    %v2759 = vpop.f32.mrb[0].mxu0
    %v2760 = vpop.f32.mrb[0].mxu0
    %v2761 = vadd.f32 0.0, %v2760
    %v2762 = vpop.f32.mrb[0].mxu0
    %2763 = vmatprep.mubr.bf16.mxu0 0
    %2764 = vmatmul.mubr.bf16.gmra.mrb[0].mxu0 %v2609
    %v2765 = vpop.f32.mrb[0].mxu0
    %v2766 = vadd.f32 0.0, %v2765
    %v2767 = vpop.f32.mrb[0].mxu0
    %v2768 = vpop.f32.mrb[0].mxu0
    %v2769 = vadd.f32 0.0, %v2768
    %v2770 = vpop.f32.mrb[0].mxu0
    %2771 = vdwg.mxu0
    %v2772 = vmax.f32 %v2646, %v2678
    %v2773 = vmax.f32 %v2649, %v2681
    %v2774 = vmax.f32 %v2654, %v2686
    %v2775 = vmax.f32 %v2657, %v2689
    %v2776 = vmax.f32 %v2662, %v2694
    %v2777 = vmax.f32 %v2665, %v2697
    %v2778 = vmax.f32 %v2670, %v2702
    %v2779 = vmax.f32 %v2673, %v2705
    %v2780 = vsub.f32 %v2646, %v2772
    %v2781 = vsub.f32 %v2649, %v2773
    %v2782 = vsub.f32 %v2654, %v2774
    %v2783 = vsub.f32 %v2657, %v2775
    %v2784 = vsub.f32 %v2662, %v2776
    %v2785 = vsub.f32 %v2665, %v2777
    %v2786 = vsub.f32 %v2670, %v2778
    %v2787 = vsub.f32 %v2673, %v2779
    %v2788 = vmul.f32 %v2780, 1.442695
    %v2789 = vpow.pop %v2788
    %v2790 = vmul.f32 %v2781, 1.442695
    %v2791 = vpow.pop %v2790
    %v2792 = vmul.f32 %v2782, 1.442695
    %v2793 = vpow.pop %v2792
    %v2794 = vmul.f32 %v2783, 1.442695
    %v2795 = vpow.pop %v2794
    %v2796 = vmul.f32 %v2784, 1.442695
    %v2797 = vpow.pop %v2796
    %v2798 = vmul.f32 %v2785, 1.442695
    %v2799 = vpow.pop %v2798
    %v2800 = vmul.f32 %v2786, 1.442695
    %v2801 = vpow.pop %v2800
    %v2802 = vmul.f32 %v2787, 1.442695
    %v2803 = vpow.pop %v2802
    %v2804 = vsub.f32 %v2678, %v2772
    %v2805 = vsub.f32 %v2681, %v2773
    %v2806 = vsub.f32 %v2686, %v2774
    %v2807 = vsub.f32 %v2689, %v2775
    %v2808 = vsub.f32 %v2694, %v2776
    %v2809 = vsub.f32 %v2697, %v2777
    %v2810 = vsub.f32 %v2702, %v2778
    %v2811 = vsub.f32 %v2705, %v2779
    %v2812 = vmul.f32 %v2804, 1.442695
    %v2813 = vpow.pop %v2812
    %v2814 = vmul.f32 %v2805, 1.442695
    %v2815 = vpow.pop %v2814
    %v2816 = vmul.f32 %v2806, 1.442695
    %v2817 = vpow.pop %v2816
    %v2818 = vmul.f32 %v2807, 1.442695
    %v2819 = vpow.pop %v2818
    %v2820 = vmul.f32 %v2808, 1.442695
    %v2821 = vpow.pop %v2820
    %v2822 = vmul.f32 %v2809, 1.442695
    %v2823 = vpow.pop %v2822
    %v2824 = vmul.f32 %v2810, 1.442695
    %v2825 = vpow.pop %v2824
    %v2826 = vmul.f32 %v2811, 1.442695
    %v2827 = vpow.pop %v2826
    %v2828 = vadd.f32 %v2789, %v2813
    %v2829 = vadd.f32 %v2791, %v2815
    %v2830 = vadd.f32 %v2793, %v2817
    %v2831 = vadd.f32 %v2795, %v2819
    %v2832 = vadd.f32 %v2797, %v2821
    %v2833 = vadd.f32 %v2799, %v2823
    %v2834 = vadd.f32 %v2801, %v2825
    %v2835 = vadd.f32 %v2803, %v2827
    %v2836 = vrcp.pop %v2828
    %v2837 = vrcp.pop %v2829
    %v2838 = vrcp.pop %v2830
    %v2839 = vrcp.pop %v2831
    %v2840 = vrcp.pop %v2832
    %v2841 = vrcp.pop %v2833
    %v2842 = vrcp.pop %v2834
    %v2843 = vrcp.pop %v2835
    %v2844 = vmul.f32 %v2789, %v2836
    %v2845 = vmul.f32 %v2791, %v2837
    %v2846 = vmul.f32 %v2793, %v2838
    %v2847 = vmul.f32 %v2795, %v2839
    %v2848 = vmul.f32 %v2797, %v2840
    %v2849 = vmul.f32 %v2799, %v2841
    %v2850 = vmul.f32 %v2801, %v2842
    %v2851 = vmul.f32 %v2803, %v2843
    %v2852 = vmul.f32 %v2844, %v2435
    %v2853 = vmul.f32 %v2845, %v2436
    %v2854 = vmul.f32 %v2846, %v2437
    %v2855 = vmul.f32 %v2847, %v2438
    %v2856 = vmul.f32 %v2848, %v2439
    %v2857 = vmul.f32 %v2849, %v2440
    %v2858 = vmul.f32 %v2850, %v2441
    %v2859 = vmul.f32 %v2851, %v2442
    %v2860 = vmul.f32 %v2813, %v2836
    %v2861 = vmul.f32 %v2815, %v2837
    %v2862 = vmul.f32 %v2817, %v2838
    %v2863 = vmul.f32 %v2819, %v2839
    %v2864 = vmul.f32 %v2821, %v2840
    %v2865 = vmul.f32 %v2823, %v2841
    %v2866 = vmul.f32 %v2825, %v2842
    %v2867 = vmul.f32 %v2827, %v2843
    %v2868 = vmul.f32 %v2860, %v2443
    %v2869 = vmul.f32 %v2861, %v2444
    %v2870 = vmul.f32 %v2862, %v2445
    %v2871 = vmul.f32 %v2863, %v2446
    %v2872 = vmul.f32 %v2864, %v2447
    %v2873 = vmul.f32 %v2865, %v2448
    %v2874 = vmul.f32 %v2866, %v2449
    %v2875 = vmul.f32 %v2867, %v2450
    %v2876 = vadd.f32 %v2852, %v2868
    %v2877 = vadd.f32 %v2853, %v2869
    %v2878 = vadd.f32 %v2854, %v2870
    %v2879 = vadd.f32 %v2855, %v2871
    %v2880 = vadd.f32 %v2856, %v2872
    %v2881 = vadd.f32 %v2857, %v2873
    %v2882 = vadd.f32 %v2858, %v2874
    %v2883 = vadd.f32 %v2859, %v2875
    %v2884 = vmax.f32 %v2710, %v2742
    %v2885 = vmax.f32 %v2713, %v2745
    %v2886 = vmax.f32 %v2718, %v2750
    %v2887 = vmax.f32 %v2721, %v2753
    %v2888 = vmax.f32 %v2726, %v2758
    %v2889 = vmax.f32 %v2729, %v2761
    %v2890 = vmax.f32 %v2734, %v2766
    %v2891 = vmax.f32 %v2737, %v2769
    %v2892 = vsub.f32 %v2710, %v2884
    %v2893 = vsub.f32 %v2713, %v2885
    %v2894 = vsub.f32 %v2718, %v2886
    %v2895 = vsub.f32 %v2721, %v2887
    %v2896 = vsub.f32 %v2726, %v2888
    %v2897 = vsub.f32 %v2729, %v2889
    %v2898 = vsub.f32 %v2734, %v2890
    %v2899 = vsub.f32 %v2737, %v2891
    %v2900 = vmul.f32 %v2892, 1.442695
    %v2901 = vpow.pop %v2900
    %v2902 = vmul.f32 %v2893, 1.442695
    %v2903 = vpow.pop %v2902
    %v2904 = vmul.f32 %v2894, 1.442695
    %v2905 = vpow.pop %v2904
    %v2906 = vmul.f32 %v2895, 1.442695
    %v2907 = vpow.pop %v2906
    %v2908 = vmul.f32 %v2896, 1.442695
    %v2909 = vpow.pop %v2908
    %v2910 = vmul.f32 %v2897, 1.442695
    %v2911 = vpow.pop %v2910
    %v2912 = vmul.f32 %v2898, 1.442695
    %v2913 = vpow.pop %v2912
    %v2914 = vmul.f32 %v2899, 1.442695
    %v2915 = vpow.pop %v2914
    %v2916 = vsub.f32 %v2742, %v2884
    %v2917 = vsub.f32 %v2745, %v2885
    %v2918 = vsub.f32 %v2750, %v2886
    %v2919 = vsub.f32 %v2753, %v2887
    %v2920 = vsub.f32 %v2758, %v2888
    %v2921 = vsub.f32 %v2761, %v2889
    %v2922 = vsub.f32 %v2766, %v2890
    %v2923 = vsub.f32 %v2769, %v2891
    %v2924 = vmul.f32 %v2916, 1.442695
    %v2925 = vpow.pop %v2924
    %v2926 = vmul.f32 %v2917, 1.442695
    %v2927 = vpow.pop %v2926
    %v2928 = vmul.f32 %v2918, 1.442695
    %v2929 = vpow.pop %v2928
    %v2930 = vmul.f32 %v2919, 1.442695
    %v2931 = vpow.pop %v2930
    %v2932 = vmul.f32 %v2920, 1.442695
    %v2933 = vpow.pop %v2932
    %v2934 = vmul.f32 %v2921, 1.442695
    %v2935 = vpow.pop %v2934
    %v2936 = vmul.f32 %v2922, 1.442695
    %v2937 = vpow.pop %v2936
    %v2938 = vmul.f32 %v2923, 1.442695
    %v2939 = vpow.pop %v2938
    %v2940 = vadd.f32 %v2901, %v2925
    %v2941 = vadd.f32 %v2903, %v2927
    %v2942 = vadd.f32 %v2905, %v2929
    %v2943 = vadd.f32 %v2907, %v2931
    %v2944 = vadd.f32 %v2909, %v2933
    %v2945 = vadd.f32 %v2911, %v2935
    %v2946 = vadd.f32 %v2913, %v2937
    %v2947 = vadd.f32 %v2915, %v2939
    %v2948 = vrcp.pop %v2940
    %v2949 = vrcp.pop %v2941
    %v2950 = vrcp.pop %v2942
    %v2951 = vrcp.pop %v2943
    %v2952 = vrcp.pop %v2944
    %v2953 = vrcp.pop %v2945
    %v2954 = vrcp.pop %v2946
    %v2955 = vrcp.pop %v2947
    %v2956 = vmul.f32 %v2901, %v2948
    %v2957 = vmul.f32 %v2903, %v2949
    %v2958 = vmul.f32 %v2905, %v2950
    %v2959 = vmul.f32 %v2907, %v2951
    %v2960 = vmul.f32 %v2909, %v2952
    %v2961 = vmul.f32 %v2911, %v2953
    %v2962 = vmul.f32 %v2913, %v2954
    %v2963 = vmul.f32 %v2915, %v2955
    %v2964 = vmul.f32 %v2956, %v2435
    %v2965 = vmul.f32 %v2957, %v2436
    %v2966 = vmul.f32 %v2958, %v2437
    %v2967 = vmul.f32 %v2959, %v2438
    %v2968 = vmul.f32 %v2960, %v2439
    %v2969 = vmul.f32 %v2961, %v2440
    %v2970 = vmul.f32 %v2962, %v2441
    %v2971 = vmul.f32 %v2963, %v2442
    %v2972 = vmul.f32 %v2925, %v2948
    %v2973 = vmul.f32 %v2927, %v2949
    %v2974 = vmul.f32 %v2929, %v2950
    %v2975 = vmul.f32 %v2931, %v2951
    %v2976 = vmul.f32 %v2933, %v2952
    %v2977 = vmul.f32 %v2935, %v2953
    %v2978 = vmul.f32 %v2937, %v2954
    %v2979 = vmul.f32 %v2939, %v2955
    %v2980 = vmul.f32 %v2972, %v2443
    %v2981 = vmul.f32 %v2973, %v2444
    %v2982 = vmul.f32 %v2974, %v2445
    %v2983 = vmul.f32 %v2975, %v2446
    %v2984 = vmul.f32 %v2976, %v2447
    %v2985 = vmul.f32 %v2977, %v2448
    %v2986 = vmul.f32 %v2978, %v2449
    %v2987 = vmul.f32 %v2979, %v2450
    %v2988 = vadd.f32 %v2964, %v2980
    %v2989 = vadd.f32 %v2965, %v2981
    %v2990 = vadd.f32 %v2966, %v2982
    %v2991 = vadd.f32 %v2967, %v2983
    %v2992 = vadd.f32 %v2968, %v2984
    %v2993 = vadd.f32 %v2969, %v2985
    %v2994 = vadd.f32 %v2970, %v2986
    %v2995 = vadd.f32 %v2971, %v2987
    %v2996 = vpack.c.bf16 %v2877, %v2876
    %v2997 = vpack.c.bf16 %v2879, %v2878
    %v2998 = vpack.c.bf16 %v2881, %v2880
    %v2999 = vpack.c.bf16 %v2883, %v2882
    %v3000 = vpack.c.bf16 %v2989, %v2988
    %v3001 = vpack.c.bf16 %v2991, %v2990
    %v3002 = vpack.c.bf16 %v2993, %v2992
    %v3003 = vpack.c.bf16 %v2995, %v2994
    %s3004 = scalar_lea.vmem [#allocation2], 96
    %v3005 = vld [vmem:[%s3004] sm:$0xf]
    %v3006 = vld [vmem:[%s3004 + $0x4] sm:$0xf]
    %v3007 = vld [vmem:[%s3004 + $0x8] sm:$0xf]
    %v3008 = vld [vmem:[%s3004 + $0xc] sm:$0xf]
    %v3009 = vld [vmem:[%s3004 + $0x10] sm:$0xf]
    %v3010 = vld [vmem:[%s3004 + $0x14] sm:$0xf]
    %v3011 = vld [vmem:[%s3004 + $0x18] sm:$0xf]
    %v3012 = vld [vmem:[%s3004 + $0x1c] sm:$0xf]
    %v3013 = vlaneseq
    %v3014 = vshrl.u32 %v3013, 7
    %v3015 = vsub.s32 3, %v3014
    %v3016 = vrot.slane %v2189, %v3015
    %v3025 = vunpack.c.l.b16 %v3005
    %v3026 = vunpack.c.l.b16 %v3006
    %v3027 = vunpack.c.l.b16 %v3007
    %v3028 = vunpack.c.l.b16 %v3008
    %v3029 = vunpack.c.l.b16 %v3009
    %v3030 = vunpack.c.l.b16 %v3010
    %v3031 = vunpack.c.l.b16 %v3011
    %v3032 = vunpack.c.l.b16 %v3012
    %v3033 = vpack.c.b16 %v3026, %v3025
    %v3034 = vpack.c.b16 %v3028, %v3027
    %v3035 = vpack.c.b16 %v3030, %v3029
    %v3036 = vpack.c.b16 %v3032, %v3031
    %v3042 = vsel %vm188, %v2996, 0
    %v3045 = vsel %vm188, %v2997, 0
    %v3048 = vsel %vm188, %v2998, 0
    %v3051 = vsel %vm188, %v2999, 0
    %v3054 = vsel %vm188, %v3000, 0
    %v3057 = vsel %vm188, %v3001, 0
    %v3060 = vsel %vm188, %v3002, 0
    %v3063 = vsel %vm188, %v3003, 0
    %3065 = vmatprep.subr.bf16.mxu0 0
    %3066 = vmatpush1.bf16.msra.mxu0 %v3033
    %3067 = vmatprep.subr.bf16.mxu0 0
    %3068 = vmatpush1.bf16.msra.mxu0 %v3034
    %3069 = vmatprep.subr.bf16.mxu0 0
    %3070 = vmatpush1.bf16.msra.mxu0 %v3035
    %3071 = vmatprep.subr.bf16.mxu0 0
    %3072 = vmatpush1.bf16.msra.mxu0 %v3036
    %3073 = vmatprep.subr.bf16.mxu0 0
    %3074 = vmatpush1.bf16.msra.mxu0 0
    %3075 = vmatprep.subr.bf16.mxu0 0
    %3076 = vmatpush1.bf16.msra.mxu0 0
    %3077 = vmatprep.subr.bf16.mxu0 0
    %3078 = vmatpush1.bf16.msra.mxu0 0
    %3079 = vmatprep.subr.bf16.mxu0 0
    %3080 = vmatpush1.bf16.msra.mxu0 0
    %3081 = vmatprep.subr.bf16.mxu0 0
    %3082 = vmatpush1.bf16.msra.mxu0 0
    %3083 = vmatprep.subr.bf16.mxu0 0
    %3084 = vmatpush1.bf16.msra.mxu0 0
    %3085 = vmatprep.subr.bf16.mxu0 0
    %3086 = vmatpush1.bf16.msra.mxu0 0
    %3087 = vmatprep.subr.bf16.mxu0 0
    %3088 = vmatpush1.bf16.msra.mxu0 0
    %3089 = vmatprep.subr.bf16.mxu0 0
    %3090 = vmatpush1.bf16.msra.mxu0 0
    %3091 = vmatprep.subr.bf16.mxu0 0
    %3092 = vmatpush1.bf16.msra.mxu0 0
    %3093 = vmatprep.subr.bf16.mxu0 0
    %3094 = vmatpush1.bf16.msra.mxu0 0
    %3095 = vmatprep.subr.bf16.mxu0 0
    %3096 = vmatpush1.bf16.msra.mxu0 0
    %3097 = vmatprep.mubr.bf16.mxu0 0
    %3098 = vmatmul.mubr.bf16.gmra.mrb[0].mxu0 %v3042
    %v3099 = vpop.f32.mrb[0].mxu0
    %v3100 = vadd.f32 %v3016, %v3099
    %v3101 = vpop.f32.mrb[0].mxu0
    %v3102 = vpop.f32.mrb[0].mxu0
    %v3103 = vadd.f32 %v3016, %v3102
    %v3104 = vpop.f32.mrb[0].mxu0
    %3105 = vmatprep.mubr.bf16.mxu0 0
    %3106 = vmatmul.mubr.bf16.gmra.mrb[0].mxu0 %v3045
    %v3107 = vpop.f32.mrb[0].mxu0
    %v3108 = vadd.f32 %v3016, %v3107
    %v3109 = vpop.f32.mrb[0].mxu0
    %v3110 = vpop.f32.mrb[0].mxu0
    %v3111 = vadd.f32 %v3016, %v3110
    %v3112 = vpop.f32.mrb[0].mxu0
    %3113 = vmatprep.mubr.bf16.mxu0 0
    %3114 = vmatmul.mubr.bf16.gmra.mrb[0].mxu0 %v3048
    %v3115 = vpop.f32.mrb[0].mxu0
    %v3116 = vadd.f32 %v3016, %v3115
    %v3117 = vpop.f32.mrb[0].mxu0
    %v3118 = vpop.f32.mrb[0].mxu0
    %v3119 = vadd.f32 %v3016, %v3118
    %v3120 = vpop.f32.mrb[0].mxu0
    %3121 = vmatprep.mubr.bf16.mxu0 0
    %3122 = vmatmul.mubr.bf16.gmra.mrb[0].mxu0 %v3051
    %v3123 = vpop.f32.mrb[0].mxu0
    %v3124 = vadd.f32 %v3016, %v3123
    %v3125 = vpop.f32.mrb[0].mxu0
    %v3126 = vpop.f32.mrb[0].mxu0
    %v3127 = vadd.f32 %v3016, %v3126
    %v3128 = vpop.f32.mrb[0].mxu0
    %3129 = vmatprep.mubr.bf16.mxu0 0
    %3130 = vmatmul.mubr.bf16.gmra.mrb[0].mxu0 %v3054
    %v3131 = vpop.f32.mrb[0].mxu0
    %v3132 = vadd.f32 %v3016, %v3131
    %v3133 = vpop.f32.mrb[0].mxu0
    %v3134 = vpop.f32.mrb[0].mxu0
    %v3135 = vadd.f32 %v3016, %v3134
    %v3136 = vpop.f32.mrb[0].mxu0
    %3137 = vmatprep.mubr.bf16.mxu0 0
    %3138 = vmatmul.mubr.bf16.gmra.mrb[0].mxu0 %v3057
    %v3139 = vpop.f32.mrb[0].mxu0
    %v3140 = vadd.f32 %v3016, %v3139
    %v3141 = vpop.f32.mrb[0].mxu0
    %v3142 = vpop.f32.mrb[0].mxu0
    %v3143 = vadd.f32 %v3016, %v3142
    %v3144 = vpop.f32.mrb[0].mxu0
    %3145 = vmatprep.mubr.bf16.mxu0 0
    %3146 = vmatmul.mubr.bf16.gmra.mrb[0].mxu0 %v3060
    %v3147 = vpop.f32.mrb[0].mxu0
    %v3148 = vadd.f32 %v3016, %v3147
    %v3149 = vpop.f32.mrb[0].mxu0
    %v3150 = vpop.f32.mrb[0].mxu0
    %v3151 = vadd.f32 %v3016, %v3150
    %v3152 = vpop.f32.mrb[0].mxu0
    %3153 = vmatprep.mubr.bf16.mxu0 0
    %3154 = vmatmul.mubr.bf16.gmra.mrb[0].mxu0 %v3063
    %v3155 = vpop.f32.mrb[0].mxu0
    %v3156 = vadd.f32 %v3016, %v3155
    %v3157 = vpop.f32.mrb[0].mxu0
    %v3158 = vpop.f32.mrb[0].mxu0
    %v3159 = vadd.f32 %v3016, %v3158
    %v3160 = vpop.f32.mrb[0].mxu0
    %3161 = vdwg.mxu0
    %v3162 = vadd.f32 %v2172, %v3100
    %v3163 = vadd.f32 %v2173, %v3103
    %v3164 = vadd.f32 %v2174, %v3108
    %v3165 = vadd.f32 %v2175, %v3111
    %v3166 = vadd.f32 %v2176, %v3116
    %v3167 = vadd.f32 %v2177, %v3119
    %v3168 = vadd.f32 %v2178, %v3124
    %v3169 = vadd.f32 %v2179, %v3127
    %v3170 = vadd.f32 %v2180, %v3132
    %v3171 = vadd.f32 %v2181, %v3135
    %v3172 = vadd.f32 %v2182, %v3140
    %v3173 = vadd.f32 %v2183, %v3143
    %v3174 = vadd.f32 %v2184, %v3148
    %v3175 = vadd.f32 %v2185, %v3151
    %v3176 = vadd.f32 %v2186, %v3156
    %v3177 = vadd.f32 %v2187, %v3159
    %v3178 = vsel %vm188, %v3162, 0.0
    %3179 = vadd.xlane.f32.xlu0 %v3178
    %v3180 = vpop.xlane.xlu0 %3179
    %v3181 = vsel %vm188, %v3163, 0.0
    %3182 = vadd.xlane.f32.xlu0 %v3181
    %v3183 = vpop.xlane.xlu0 %3182
    %v3184 = vsel %vm188, %v3164, 0.0
    %3185 = vadd.xlane.f32.xlu0 %v3184
    %v3186 = vpop.xlane.xlu0 %3185
    %v3187 = vsel %vm188, %v3165, 0.0
    %3188 = vadd.xlane.f32.xlu0 %v3187
    %v3189 = vpop.xlane.xlu0 %3188
    %v3190 = vsel %vm188, %v3166, 0.0
    %3191 = vadd.xlane.f32.xlu0 %v3190
    %v3192 = vpop.xlane.xlu0 %3191
    %v3193 = vsel %vm188, %v3167, 0.0
    %3194 = vadd.xlane.f32.xlu0 %v3193
    %v3195 = vpop.xlane.xlu0 %3194
    %v3196 = vsel %vm188, %v3168, 0.0
    %3197 = vadd.xlane.f32.xlu0 %v3196
    %v3198 = vpop.xlane.xlu0 %3197
    %v3199 = vsel %vm188, %v3169, 0.0
    %3200 = vadd.xlane.f32.xlu0 %v3199
    %v3201 = vpop.xlane.xlu0 %3200
    %v3202 = vsel %vm188, %v3170, 0.0
    %3203 = vadd.xlane.f32.xlu0 %v3202
    %v3204 = vpop.xlane.xlu0 %3203
    %v3205 = vsel %vm188, %v3171, 0.0
    %3206 = vadd.xlane.f32.xlu0 %v3205
    %v3207 = vpop.xlane.xlu0 %3206
    %v3208 = vsel %vm188, %v3172, 0.0
    %3209 = vadd.xlane.f32.xlu0 %v3208
    %v3210 = vpop.xlane.xlu0 %3209
    %v3211 = vsel %vm188, %v3173, 0.0
    %3212 = vadd.xlane.f32.xlu0 %v3211
    %v3213 = vpop.xlane.xlu0 %3212
    %v3214 = vsel %vm188, %v3174, 0.0
    %3215 = vadd.xlane.f32.xlu0 %v3214
    %v3216 = vpop.xlane.xlu0 %3215
    %v3217 = vsel %vm188, %v3175, 0.0
    %3218 = vadd.xlane.f32.xlu0 %v3217
    %v3219 = vpop.xlane.xlu0 %3218
    %v3220 = vsel %vm188, %v3176, 0.0
    %3221 = vadd.xlane.f32.xlu0 %v3220
    %v3222 = vpop.xlane.xlu0 %3221
    %v3223 = vsel %vm188, %v3177, 0.0
    %3224 = vadd.xlane.f32.xlu0 %v3223
    %v3225 = vpop.xlane.xlu0 %3224
    %v3226 = vmul.f32 %v3180, %v1369
    %v3227 = vmul.f32 %v3183, %v1369
    %v3228 = vmul.f32 %v3186, %v1369
    %v3229 = vmul.f32 %v3189, %v1369
    %v3230 = vmul.f32 %v3192, %v1369
    %v3231 = vmul.f32 %v3195, %v1369
    %v3232 = vmul.f32 %v3198, %v1369
    %v3233 = vmul.f32 %v3201, %v1369
    %v3234 = vmul.f32 %v3204, %v1369
    %v3235 = vmul.f32 %v3207, %v1369
    %v3236 = vmul.f32 %v3210, %v1369
    %v3237 = vmul.f32 %v3213, %v1369
    %v3238 = vmul.f32 %v3216, %v1369
    %v3239 = vmul.f32 %v3219, %v1369
    %v3240 = vmul.f32 %v3222, %v1369
    %v3241 = vmul.f32 %v3225, %v1369
    %v3242 = vsub.f32 %v3162, %v3226
    %v3243 = vsub.f32 %v3163, %v3227
    %v3244 = vsub.f32 %v3164, %v3228
    %v3245 = vsub.f32 %v3165, %v3229
    %v3246 = vsub.f32 %v3166, %v3230
    %v3247 = vsub.f32 %v3167, %v3231
    %v3248 = vsub.f32 %v3168, %v3232
    %v3249 = vsub.f32 %v3169, %v3233
    %v3250 = vsub.f32 %v3170, %v3234
    %v3251 = vsub.f32 %v3171, %v3235
    %v3252 = vsub.f32 %v3172, %v3236
    %v3253 = vsub.f32 %v3173, %v3237
    %v3254 = vsub.f32 %v3174, %v3238
    %v3255 = vsub.f32 %v3175, %v3239
    %v3256 = vsub.f32 %v3176, %v3240
    %v3257 = vsub.f32 %v3177, %v3241
    %v3258 = vmul.f32 %v3242, %v3242
    %v3259 = vmul.f32 %v3243, %v3243
    %v3260 = vmul.f32 %v3244, %v3244
    %v3261 = vmul.f32 %v3245, %v3245
    %v3262 = vmul.f32 %v3246, %v3246
    %v3263 = vmul.f32 %v3247, %v3247
    %v3264 = vmul.f32 %v3248, %v3248
    %v3265 = vmul.f32 %v3249, %v3249
    %v3266 = vmul.f32 %v3250, %v3250
    %v3267 = vmul.f32 %v3251, %v3251
    %v3268 = vmul.f32 %v3252, %v3252
    %v3269 = vmul.f32 %v3253, %v3253
    %v3270 = vmul.f32 %v3254, %v3254
    %v3271 = vmul.f32 %v3255, %v3255
    %v3272 = vmul.f32 %v3256, %v3256
    %v3273 = vmul.f32 %v3257, %v3257
    %v3274 = vsel %vm188, %v3258, 0.0
    %3275 = vadd.xlane.f32.xlu0 %v3274
    %v3276 = vpop.xlane.xlu0 %3275
    %v3277 = vsel %vm188, %v3259, 0.0
    %3278 = vadd.xlane.f32.xlu0 %v3277
    %v3279 = vpop.xlane.xlu0 %3278
    %v3280 = vsel %vm188, %v3260, 0.0
    %3281 = vadd.xlane.f32.xlu0 %v3280
    %v3282 = vpop.xlane.xlu0 %3281
    %v3283 = vsel %vm188, %v3261, 0.0
    %3284 = vadd.xlane.f32.xlu0 %v3283
    %v3285 = vpop.xlane.xlu0 %3284
    %v3286 = vsel %vm188, %v3262, 0.0
    %3287 = vadd.xlane.f32.xlu0 %v3286
    %v3288 = vpop.xlane.xlu0 %3287
    %v3289 = vsel %vm188, %v3263, 0.0
    %3290 = vadd.xlane.f32.xlu0 %v3289
    %v3291 = vpop.xlane.xlu0 %3290
    %v3292 = vsel %vm188, %v3264, 0.0
    %3293 = vadd.xlane.f32.xlu0 %v3292
    %v3294 = vpop.xlane.xlu0 %3293
    %v3295 = vsel %vm188, %v3265, 0.0
    %3296 = vadd.xlane.f32.xlu0 %v3295
    %v3297 = vpop.xlane.xlu0 %3296
    %v3298 = vsel %vm188, %v3266, 0.0
    %3299 = vadd.xlane.f32.xlu0 %v3298
    %v3300 = vpop.xlane.xlu0 %3299
    %v3301 = vsel %vm188, %v3267, 0.0
    %3302 = vadd.xlane.f32.xlu0 %v3301
    %v3303 = vpop.xlane.xlu0 %3302
    %v3304 = vsel %vm188, %v3268, 0.0
    %3305 = vadd.xlane.f32.xlu0 %v3304
    %v3306 = vpop.xlane.xlu0 %3305
    %v3307 = vsel %vm188, %v3269, 0.0
    %3308 = vadd.xlane.f32.xlu0 %v3307
    %v3309 = vpop.xlane.xlu0 %3308
    %v3310 = vsel %vm188, %v3270, 0.0
    %3311 = vadd.xlane.f32.xlu0 %v3310
    %v3312 = vpop.xlane.xlu0 %3311
    %v3313 = vsel %vm188, %v3271, 0.0
    %3314 = vadd.xlane.f32.xlu0 %v3313
    %v3315 = vpop.xlane.xlu0 %3314
    %v3316 = vsel %vm188, %v3272, 0.0
    %3317 = vadd.xlane.f32.xlu0 %v3316
    %v3318 = vpop.xlane.xlu0 %3317
    %v3319 = vsel %vm188, %v3273, 0.0
    %3320 = vadd.xlane.f32.xlu0 %v3319
    %v3321 = vpop.xlane.xlu0 %3320
    %v3322 = vmul.f32 %v3276, %v1369
    %v3323 = vmul.f32 %v3279, %v1369
    %v3324 = vmul.f32 %v3282, %v1369
    %v3325 = vmul.f32 %v3285, %v1369
    %v3326 = vmul.f32 %v3288, %v1369
    %v3327 = vmul.f32 %v3291, %v1369
    %v3328 = vmul.f32 %v3294, %v1369
    %v3329 = vmul.f32 %v3297, %v1369
    %v3330 = vmul.f32 %v3300, %v1369
    %v3331 = vmul.f32 %v3303, %v1369
    %v3332 = vmul.f32 %v3306, %v1369
    %v3333 = vmul.f32 %v3309, %v1369
    %v3334 = vmul.f32 %v3312, %v1369
    %v3335 = vmul.f32 %v3315, %v1369
    %v3336 = vmul.f32 %v3318, %v1369
    %v3337 = vmul.f32 %v3321, %v1369
    %v3338 = vadd.f32 %v3322, 1e-05
    %v3339 = vadd.f32 %v3323, 1e-05
    %v3340 = vadd.f32 %v3324, 1e-05
    %v3341 = vadd.f32 %v3325, 1e-05
    %v3342 = vadd.f32 %v3326, 1e-05
    %v3343 = vadd.f32 %v3327, 1e-05
    %v3344 = vadd.f32 %v3328, 1e-05
    %v3345 = vadd.f32 %v3329, 1e-05
    %v3346 = vadd.f32 %v3330, 1e-05
    %v3347 = vadd.f32 %v3331, 1e-05
    %v3348 = vadd.f32 %v3332, 1e-05
    %v3349 = vadd.f32 %v3333, 1e-05
    %v3350 = vadd.f32 %v3334, 1e-05
    %v3351 = vadd.f32 %v3335, 1e-05
    %v3352 = vadd.f32 %v3336, 1e-05
    %v3353 = vadd.f32 %v3337, 1e-05
    %v3354 = vrsqrt.pop %v3338
    %v3355 = vrsqrt.pop %v3339
    %v3356 = vrsqrt.pop %v3340
    %v3357 = vrsqrt.pop %v3341
    %v3358 = vrsqrt.pop %v3342
    %v3359 = vrsqrt.pop %v3343
    %v3360 = vrsqrt.pop %v3344
    %v3361 = vrsqrt.pop %v3345
    %v3362 = vrsqrt.pop %v3346
    %v3363 = vrsqrt.pop %v3347
    %v3364 = vrsqrt.pop %v3348
    %v3365 = vrsqrt.pop %v3349
    %v3366 = vrsqrt.pop %v3350
    %v3367 = vrsqrt.pop %v3351
    %v3368 = vrsqrt.pop %v3352
    %v3369 = vrsqrt.pop %v3353
    %v3370 = vmul.f32 %v3242, %v3354
    %v3371 = vmul.f32 %v3243, %v3355
    %v3372 = vmul.f32 %v3244, %v3356
    %v3373 = vmul.f32 %v3245, %v3357
    %v3374 = vmul.f32 %v3246, %v3358
    %v3375 = vmul.f32 %v3247, %v3359
    %v3376 = vmul.f32 %v3248, %v3360
    %v3377 = vmul.f32 %v3249, %v3361
    %v3378 = vmul.f32 %v3250, %v3362
    %v3379 = vmul.f32 %v3251, %v3363
    %v3380 = vmul.f32 %v3252, %v3364
    %v3381 = vmul.f32 %v3253, %v3365
    %v3382 = vmul.f32 %v3254, %v3366
    %v3383 = vmul.f32 %v3255, %v3367
    %v3384 = vmul.f32 %v3256, %v3368
    %v3385 = vmul.f32 %v3257, %v3369
    %v3386 = vlaneseq
    %v3387 = vshrl.u32 %v3386, 7
    %v3388 = vsub.s32 4, %v3387
    %v3389 = vrot.slane %v2189, %v3388
    %v3390 = vmul.f32 %v3370, %v3389
    %v3391 = vmul.f32 %v3371, %v3389
    %v3392 = vmul.f32 %v3372, %v3389
    %v3393 = vmul.f32 %v3373, %v3389
    %v3394 = vmul.f32 %v3374, %v3389
    %v3395 = vmul.f32 %v3375, %v3389
    %v3396 = vmul.f32 %v3376, %v3389
    %v3397 = vmul.f32 %v3377, %v3389
    %v3398 = vmul.f32 %v3378, %v3389
    %v3399 = vmul.f32 %v3379, %v3389
    %v3400 = vmul.f32 %v3380, %v3389
    %v3401 = vmul.f32 %v3381, %v3389
    %v3402 = vmul.f32 %v3382, %v3389
    %v3403 = vmul.f32 %v3383, %v3389
    %v3404 = vmul.f32 %v3384, %v3389
    %v3405 = vmul.f32 %v3385, %v3389
    %v3406 = vlaneseq
    %v3407 = vshrl.u32 %v3406, 7
    %v3408 = vsub.s32 5, %v3407
    %v3409 = vrot.slane %v2189, %v3408
    %v3410 = vadd.f32 %v3390, %v3409
    %v3411 = vadd.f32 %v3391, %v3409
    %v3412 = vadd.f32 %v3392, %v3409
    %v3413 = vadd.f32 %v3393, %v3409
    %v3414 = vadd.f32 %v3394, %v3409
    %v3415 = vadd.f32 %v3395, %v3409
    %v3416 = vadd.f32 %v3396, %v3409
    %v3417 = vadd.f32 %v3397, %v3409
    %v3418 = vadd.f32 %v3398, %v3409
    %v3419 = vadd.f32 %v3399, %v3409
    %v3420 = vadd.f32 %v3400, %v3409
    %v3421 = vadd.f32 %v3401, %v3409
    %v3422 = vadd.f32 %v3402, %v3409
    %v3423 = vadd.f32 %v3403, %v3409
    %v3424 = vadd.f32 %v3404, %v3409
    %v3425 = vadd.f32 %v3405, %v3409
    %v3426 = vpack.c.bf16 %v3411, %v3410
    %v3427 = vpack.c.bf16 %v3413, %v3412
    %v3428 = vpack.c.bf16 %v3415, %v3414
    %v3429 = vpack.c.bf16 %v3417, %v3416
    %v3430 = vpack.c.bf16 %v3419, %v3418
    %v3431 = vpack.c.bf16 %v3421, %v3420
    %v3432 = vpack.c.bf16 %v3423, %v3422
    %v3433 = vpack.c.bf16 %v3425, %v3424
    %s3434 = scalar_lea.vmem [#allocation7], 32
    %v3435 = vld [vmem:[%s3434] sm:$0xf]
    %v3436 = vld [vmem:[%s3434 + $0x4] sm:$0xf]
    %v3437 = vld [vmem:[%s3434 + $0x8] sm:$0xf]
    %v3438 = vld [vmem:[%s3434 + $0xc] sm:$0xf]
    %v3439 = vld [vmem:[%s3434 + $0x10] sm:$0xf]
    %v3440 = vld [vmem:[%s3434 + $0x14] sm:$0xf]
    %v3441 = vld [vmem:[%s3434 + $0x18] sm:$0xf]
    %v3442 = vld [vmem:[%s3434 + $0x1c] sm:$0xf]
    %v3443 = vlaneseq
    %v3444 = vshrl.u32 %v3443, 7
    %v3445 = vsub.s32 0, %v3444
    %v3446 = vrot.slane %v2192, %v3445
    %v3455 = vunpack.c.l.b16 %v3435
    %v3456 = vunpack.c.l.b16 %v3436
    %v3457 = vunpack.c.l.b16 %v3437
    %v3458 = vunpack.c.l.b16 %v3438
    %v3459 = vunpack.c.l.b16 %v3439
    %v3460 = vunpack.c.l.b16 %v3440
    %v3461 = vunpack.c.l.b16 %v3441
    %v3462 = vunpack.c.l.b16 %v3442
    %v3463 = vpack.c.b16 %v3456, %v3455
    %v3464 = vpack.c.b16 %v3458, %v3457
    %v3465 = vpack.c.b16 %v3460, %v3459
    %v3466 = vpack.c.b16 %v3462, %v3461
    %v3472 = vsel %vm188, %v3426, 0
    %v3475 = vsel %vm188, %v3427, 0
    %v3478 = vsel %vm188, %v3428, 0
    %v3481 = vsel %vm188, %v3429, 0
    %v3484 = vsel %vm188, %v3430, 0
    %v3487 = vsel %vm188, %v3431, 0
    %v3490 = vsel %vm188, %v3432, 0
    %v3493 = vsel %vm188, %v3433, 0
    %3495 = vmatprep.subr.bf16.mxu0 0
    %3496 = vmatpush1.bf16.msra.mxu0 %v3463
    %3497 = vmatprep.subr.bf16.mxu0 0
    %3498 = vmatpush1.bf16.msra.mxu0 %v3464
    %3499 = vmatprep.subr.bf16.mxu0 0
    %3500 = vmatpush1.bf16.msra.mxu0 %v3465
    %3501 = vmatprep.subr.bf16.mxu0 0
    %3502 = vmatpush1.bf16.msra.mxu0 %v3466
    %3503 = vmatprep.subr.bf16.mxu0 0
    %3504 = vmatpush1.bf16.msra.mxu0 0
    %3505 = vmatprep.subr.bf16.mxu0 0
    %3506 = vmatpush1.bf16.msra.mxu0 0
    %3507 = vmatprep.subr.bf16.mxu0 0
    %3508 = vmatpush1.bf16.msra.mxu0 0
    %3509 = vmatprep.subr.bf16.mxu0 0
    %3510 = vmatpush1.bf16.msra.mxu0 0
    %3511 = vmatprep.subr.bf16.mxu0 0
    %3512 = vmatpush1.bf16.msra.mxu0 0
    %3513 = vmatprep.subr.bf16.mxu0 0
    %3514 = vmatpush1.bf16.msra.mxu0 0
    %3515 = vmatprep.subr.bf16.mxu0 0
    %3516 = vmatpush1.bf16.msra.mxu0 0
    %3517 = vmatprep.subr.bf16.mxu0 0
    %3518 = vmatpush1.bf16.msra.mxu0 0
    %3519 = vmatprep.subr.bf16.mxu0 0
    %3520 = vmatpush1.bf16.msra.mxu0 0
    %3521 = vmatprep.subr.bf16.mxu0 0
    %3522 = vmatpush1.bf16.msra.mxu0 0
    %3523 = vmatprep.subr.bf16.mxu0 0
    %3524 = vmatpush1.bf16.msra.mxu0 0
    %3525 = vmatprep.subr.bf16.mxu0 0
    %3526 = vmatpush1.bf16.msra.mxu0 0
    %3527 = vmatprep.mubr.bf16.mxu0 0
    %3528 = vmatmul.mubr.bf16.gmra.mrb[0].mxu0 %v3472
    %v3529 = vpop.f32.mrb[0].mxu0
    %v3530 = vadd.f32 %v3446, %v3529
    %v3531 = vpop.f32.mrb[0].mxu0
    %v3532 = vpop.f32.mrb[0].mxu0
    %v3533 = vadd.f32 %v3446, %v3532
    %v3534 = vpop.f32.mrb[0].mxu0
    %3535 = vmatprep.mubr.bf16.mxu0 0
    %3536 = vmatmul.mubr.bf16.gmra.mrb[0].mxu0 %v3475
    %v3537 = vpop.f32.mrb[0].mxu0
    %v3538 = vadd.f32 %v3446, %v3537
    %v3539 = vpop.f32.mrb[0].mxu0
    %v3540 = vpop.f32.mrb[0].mxu0
    %v3541 = vadd.f32 %v3446, %v3540
    %v3542 = vpop.f32.mrb[0].mxu0
    %3543 = vmatprep.mubr.bf16.mxu0 0
    %3544 = vmatmul.mubr.bf16.gmra.mrb[0].mxu0 %v3478
    %v3545 = vpop.f32.mrb[0].mxu0
    %v3546 = vadd.f32 %v3446, %v3545
    %v3547 = vpop.f32.mrb[0].mxu0
    %v3548 = vpop.f32.mrb[0].mxu0
    %v3549 = vadd.f32 %v3446, %v3548
    %v3550 = vpop.f32.mrb[0].mxu0
    %3551 = vmatprep.mubr.bf16.mxu0 0
    %3552 = vmatmul.mubr.bf16.gmra.mrb[0].mxu0 %v3481
    %v3553 = vpop.f32.mrb[0].mxu0
    %v3554 = vadd.f32 %v3446, %v3553
    %v3555 = vpop.f32.mrb[0].mxu0
    %v3556 = vpop.f32.mrb[0].mxu0
    %v3557 = vadd.f32 %v3446, %v3556
    %v3558 = vpop.f32.mrb[0].mxu0
    %3559 = vmatprep.mubr.bf16.mxu0 0
    %3560 = vmatmul.mubr.bf16.gmra.mrb[0].mxu0 %v3484
    %v3561 = vpop.f32.mrb[0].mxu0
    %v3562 = vadd.f32 %v3446, %v3561
    %v3563 = vpop.f32.mrb[0].mxu0
    %v3564 = vpop.f32.mrb[0].mxu0
    %v3565 = vadd.f32 %v3446, %v3564
    %v3566 = vpop.f32.mrb[0].mxu0
    %3567 = vmatprep.mubr.bf16.mxu0 0
    %3568 = vmatmul.mubr.bf16.gmra.mrb[0].mxu0 %v3487
    %v3569 = vpop.f32.mrb[0].mxu0
    %v3570 = vadd.f32 %v3446, %v3569
    %v3571 = vpop.f32.mrb[0].mxu0
    %v3572 = vpop.f32.mrb[0].mxu0
    %v3573 = vadd.f32 %v3446, %v3572
    %v3574 = vpop.f32.mrb[0].mxu0
    %3575 = vmatprep.mubr.bf16.mxu0 0
    %3576 = vmatmul.mubr.bf16.gmra.mrb[0].mxu0 %v3490
    %v3577 = vpop.f32.mrb[0].mxu0
    %v3578 = vadd.f32 %v3446, %v3577
    %v3579 = vpop.f32.mrb[0].mxu0
    %v3580 = vpop.f32.mrb[0].mxu0
    %v3581 = vadd.f32 %v3446, %v3580
    %v3582 = vpop.f32.mrb[0].mxu0
    %3583 = vmatprep.mubr.bf16.mxu0 0
    %3584 = vmatmul.mubr.bf16.gmra.mrb[0].mxu0 %v3493
    %v3585 = vpop.f32.mrb[0].mxu0
    %v3586 = vadd.f32 %v3446, %v3585
    %v3587 = vpop.f32.mrb[0].mxu0
    %v3588 = vpop.f32.mrb[0].mxu0
    %v3589 = vadd.f32 %v3446, %v3588
    %v3590 = vpop.f32.mrb[0].mxu0
    %3591 = vdwg.mxu0
    %v3592 = vmax.f32 %v3530, 0.0
    %v3593 = vmax.f32 %v3533, 0.0
    %v3594 = vmax.f32 %v3538, 0.0
    %v3595 = vmax.f32 %v3541, 0.0
    %v3596 = vmax.f32 %v3546, 0.0
    %v3597 = vmax.f32 %v3549, 0.0
    %v3598 = vmax.f32 %v3554, 0.0
    %v3599 = vmax.f32 %v3557, 0.0
    %v3600 = vmax.f32 %v3562, 0.0
    %v3601 = vmax.f32 %v3565, 0.0
    %v3602 = vmax.f32 %v3570, 0.0
    %v3603 = vmax.f32 %v3573, 0.0
    %v3604 = vmax.f32 %v3578, 0.0
    %v3605 = vmax.f32 %v3581, 0.0
    %v3606 = vmax.f32 %v3586, 0.0
    %v3607 = vmax.f32 %v3589, 0.0
    %v3608 = vpack.c.bf16 %v3593, %v3592
    %v3609 = vpack.c.bf16 %v3595, %v3594
    %v3610 = vpack.c.bf16 %v3597, %v3596
    %v3611 = vpack.c.bf16 %v3599, %v3598
    %v3612 = vpack.c.bf16 %v3601, %v3600
    %v3613 = vpack.c.bf16 %v3603, %v3602
    %v3614 = vpack.c.bf16 %v3605, %v3604
    %v3615 = vpack.c.bf16 %v3607, %v3606
    %s3616 = scalar_lea.vmem %s6, 64
    %v3617 = vld [vmem:[%s3616] sm:$0xf]
    %v3618 = vld [vmem:[%s3616 + $0x4] sm:$0xf]
    %v3619 = vld [vmem:[%s3616 + $0x8] sm:$0xf]
    %v3620 = vld [vmem:[%s3616 + $0xc] sm:$0xf]
    %v3621 = vld [vmem:[%s3616 + $0x10] sm:$0xf]
    %v3622 = vld [vmem:[%s3616 + $0x14] sm:$0xf]
    %v3623 = vld [vmem:[%s3616 + $0x18] sm:$0xf]
    %v3624 = vld [vmem:[%s3616 + $0x1c] sm:$0xf]
    %v3625 = vld [vmem:[%s3616 + $0x20] sm:$0xf]
    %v3626 = vld [vmem:[%s3616 + $0x24] sm:$0xf]
    %v3627 = vld [vmem:[%s3616 + $0x28] sm:$0xf]
    %v3628 = vld [vmem:[%s3616 + $0x2c] sm:$0xf]
    %v3629 = vld [vmem:[%s3616 + $0x30] sm:$0xf]
    %v3630 = vld [vmem:[%s3616 + $0x34] sm:$0xf]
    %v3631 = vld [vmem:[%s3616 + $0x38] sm:$0xf]
    %v3632 = vld [vmem:[%s3616 + $0x3c] sm:$0xf]
    %v3633 = vlaneseq
    %v3634 = vshrl.u32 %v3633, 7
    %v3635 = vsub.s32 0, %v3634
    %v3636 = vrot.slane %v2190, %v3635
    %v3653 = vunpack.c.l.b16 %v3617
    %v3654 = vunpack.c.l.b16 %v3618
    %v3655 = vunpack.c.l.b16 %v3619
    %v3656 = vunpack.c.l.b16 %v3620
    %v3657 = vunpack.c.l.b16 %v3621
    %v3658 = vunpack.c.l.b16 %v3622
    %v3659 = vunpack.c.l.b16 %v3623
    %v3660 = vunpack.c.l.b16 %v3624
    %v3661 = vunpack.c.l.b16 %v3625
    %v3662 = vunpack.c.l.b16 %v3626
    %v3663 = vunpack.c.l.b16 %v3627
    %v3664 = vunpack.c.l.b16 %v3628
    %v3665 = vunpack.c.l.b16 %v3629
    %v3666 = vunpack.c.l.b16 %v3630
    %v3667 = vunpack.c.l.b16 %v3631
    %v3668 = vunpack.c.l.b16 %v3632
    %v3669 = vpack.c.b16 %v3654, %v3653
    %v3670 = vpack.c.b16 %v3656, %v3655
    %v3671 = vpack.c.b16 %v3658, %v3657
    %v3672 = vpack.c.b16 %v3660, %v3659
    %v3673 = vpack.c.b16 %v3662, %v3661
    %v3674 = vpack.c.b16 %v3664, %v3663
    %v3675 = vpack.c.b16 %v3666, %v3665
    %v3676 = vpack.c.b16 %v3668, %v3667
    %3685 = vmatprep.subr.bf16.mxu0 0
    %3686 = vmatpush1.bf16.msra.mxu0 %v3669
    %3687 = vmatprep.subr.bf16.mxu0 0
    %3688 = vmatpush1.bf16.msra.mxu0 %v3670
    %3689 = vmatprep.subr.bf16.mxu0 0
    %3690 = vmatpush1.bf16.msra.mxu0 %v3671
    %3691 = vmatprep.subr.bf16.mxu0 0
    %3692 = vmatpush1.bf16.msra.mxu0 %v3672
    %3693 = vmatprep.subr.bf16.mxu0 0
    %3694 = vmatpush1.bf16.msra.mxu0 %v3673
    %3695 = vmatprep.subr.bf16.mxu0 0
    %3696 = vmatpush1.bf16.msra.mxu0 %v3674
    %3697 = vmatprep.subr.bf16.mxu0 0
    %3698 = vmatpush1.bf16.msra.mxu0 %v3675
    %3699 = vmatprep.subr.bf16.mxu0 0
    %3700 = vmatpush1.bf16.msra.mxu0 %v3676
    %3701 = vmatprep.subr.bf16.mxu0 0
    %3702 = vmatpush1.bf16.msra.mxu0 0
    %3703 = vmatprep.subr.bf16.mxu0 0
    %3704 = vmatpush1.bf16.msra.mxu0 0
    %3705 = vmatprep.subr.bf16.mxu0 0
    %3706 = vmatpush1.bf16.msra.mxu0 0
    %3707 = vmatprep.subr.bf16.mxu0 0
    %3708 = vmatpush1.bf16.msra.mxu0 0
    %3709 = vmatprep.subr.bf16.mxu0 0
    %3710 = vmatpush1.bf16.msra.mxu0 0
    %3711 = vmatprep.subr.bf16.mxu0 0
    %3712 = vmatpush1.bf16.msra.mxu0 0
    %3713 = vmatprep.subr.bf16.mxu0 0
    %3714 = vmatpush1.bf16.msra.mxu0 0
    %3715 = vmatprep.subr.bf16.mxu0 0
    %3716 = vmatpush1.bf16.msra.mxu0 0
    %3717 = vmatprep.mubr.bf16.mxu0 0
    %3718 = vmatmul.mubr.bf16.gmra.mrb[0].mxu0 %v3608
    %v3719 = vpop.f32.mrb[0].mxu0
    %v3720 = vadd.f32 %v3636, %v3719
    %v3721 = vpop.f32.mrb[0].mxu0
    %v3722 = vpop.f32.mrb[0].mxu0
    %v3723 = vadd.f32 %v3636, %v3722
    %v3724 = vpop.f32.mrb[0].mxu0
    %3725 = vmatprep.mubr.bf16.mxu0 0
    %3726 = vmatmul.mubr.bf16.gmra.mrb[0].mxu0 %v3609
    %v3727 = vpop.f32.mrb[0].mxu0
    %v3728 = vadd.f32 %v3636, %v3727
    %v3729 = vpop.f32.mrb[0].mxu0
    %v3730 = vpop.f32.mrb[0].mxu0
    %v3731 = vadd.f32 %v3636, %v3730
    %v3732 = vpop.f32.mrb[0].mxu0
    %3733 = vmatprep.mubr.bf16.mxu0 0
    %3734 = vmatmul.mubr.bf16.gmra.mrb[0].mxu0 %v3610
    %v3735 = vpop.f32.mrb[0].mxu0
    %v3736 = vadd.f32 %v3636, %v3735
    %v3737 = vpop.f32.mrb[0].mxu0
    %v3738 = vpop.f32.mrb[0].mxu0
    %v3739 = vadd.f32 %v3636, %v3738
    %v3740 = vpop.f32.mrb[0].mxu0
    %3741 = vmatprep.mubr.bf16.mxu0 0
    %3742 = vmatmul.mubr.bf16.gmra.mrb[0].mxu0 %v3611
    %v3743 = vpop.f32.mrb[0].mxu0
    %v3744 = vadd.f32 %v3636, %v3743
    %v3745 = vpop.f32.mrb[0].mxu0
    %v3746 = vpop.f32.mrb[0].mxu0
    %v3747 = vadd.f32 %v3636, %v3746
    %v3748 = vpop.f32.mrb[0].mxu0
    %3749 = vmatprep.mubr.bf16.mxu0 0
    %3750 = vmatmul.mubr.bf16.gmra.mrb[0].mxu0 %v3612
    %v3751 = vpop.f32.mrb[0].mxu0
    %v3752 = vadd.f32 %v3636, %v3751
    %v3753 = vpop.f32.mrb[0].mxu0
    %v3754 = vpop.f32.mrb[0].mxu0
    %v3755 = vadd.f32 %v3636, %v3754
    %v3756 = vpop.f32.mrb[0].mxu0
    %3757 = vmatprep.mubr.bf16.mxu0 0
    %3758 = vmatmul.mubr.bf16.gmra.mrb[0].mxu0 %v3613
    %v3759 = vpop.f32.mrb[0].mxu0
    %v3760 = vadd.f32 %v3636, %v3759
    %v3761 = vpop.f32.mrb[0].mxu0
    %v3762 = vpop.f32.mrb[0].mxu0
    %v3763 = vadd.f32 %v3636, %v3762
    %v3764 = vpop.f32.mrb[0].mxu0
    %3765 = vmatprep.mubr.bf16.mxu0 0
    %3766 = vmatmul.mubr.bf16.gmra.mrb[0].mxu0 %v3614
    %v3767 = vpop.f32.mrb[0].mxu0
    %v3768 = vadd.f32 %v3636, %v3767
    %v3769 = vpop.f32.mrb[0].mxu0
    %v3770 = vpop.f32.mrb[0].mxu0
    %v3771 = vadd.f32 %v3636, %v3770
    %v3772 = vpop.f32.mrb[0].mxu0
    %3773 = vmatprep.mubr.bf16.mxu0 0
    %3774 = vmatmul.mubr.bf16.gmra.mrb[0].mxu0 %v3615
    %v3775 = vpop.f32.mrb[0].mxu0
    %v3776 = vadd.f32 %v3636, %v3775
    %v3777 = vpop.f32.mrb[0].mxu0
    %v3778 = vpop.f32.mrb[0].mxu0
    %v3779 = vadd.f32 %v3636, %v3778
    %v3780 = vpop.f32.mrb[0].mxu0
    %3781 = vdwg.mxu0
    %v3782 = vadd.f32 %v3410, %v3720
    %v3783 = vadd.f32 %v3411, %v3723
    %v3784 = vadd.f32 %v3412, %v3728
    %v3785 = vadd.f32 %v3413, %v3731
    %v3786 = vadd.f32 %v3414, %v3736
    %v3787 = vadd.f32 %v3415, %v3739
    %v3788 = vadd.f32 %v3416, %v3744
    %v3789 = vadd.f32 %v3417, %v3747
    %v3790 = vadd.f32 %v3418, %v3752
    %v3791 = vadd.f32 %v3419, %v3755
    %v3792 = vadd.f32 %v3420, %v3760
    %v3793 = vadd.f32 %v3421, %v3763
    %v3794 = vadd.f32 %v3422, %v3768
    %v3795 = vadd.f32 %v3423, %v3771
    %v3796 = vadd.f32 %v3424, %v3776
    %v3797 = vadd.f32 %v3425, %v3779
    %v3798 = vsel %vm188, %v3782, 0.0
    %3799 = vadd.xlane.f32.xlu0 %v3798
    %v3800 = vpop.xlane.xlu0 %3799
    %v3801 = vsel %vm188, %v3783, 0.0
    %3802 = vadd.xlane.f32.xlu0 %v3801
    %v3803 = vpop.xlane.xlu0 %3802
    %v3804 = vsel %vm188, %v3784, 0.0
    %3805 = vadd.xlane.f32.xlu0 %v3804
    %v3806 = vpop.xlane.xlu0 %3805
    %v3807 = vsel %vm188, %v3785, 0.0
    %3808 = vadd.xlane.f32.xlu0 %v3807
    %v3809 = vpop.xlane.xlu0 %3808
    %v3810 = vsel %vm188, %v3786, 0.0
    %3811 = vadd.xlane.f32.xlu0 %v3810
    %v3812 = vpop.xlane.xlu0 %3811
    %v3813 = vsel %vm188, %v3787, 0.0
    %3814 = vadd.xlane.f32.xlu0 %v3813
    %v3815 = vpop.xlane.xlu0 %3814
    %v3816 = vsel %vm188, %v3788, 0.0
    %3817 = vadd.xlane.f32.xlu0 %v3816
    %v3818 = vpop.xlane.xlu0 %3817
    %v3819 = vsel %vm188, %v3789, 0.0
    %3820 = vadd.xlane.f32.xlu0 %v3819
    %v3821 = vpop.xlane.xlu0 %3820
    %v3822 = vsel %vm188, %v3790, 0.0
    %3823 = vadd.xlane.f32.xlu0 %v3822
    %v3824 = vpop.xlane.xlu0 %3823
    %v3825 = vsel %vm188, %v3791, 0.0
    %3826 = vadd.xlane.f32.xlu0 %v3825
    %v3827 = vpop.xlane.xlu0 %3826
    %v3828 = vsel %vm188, %v3792, 0.0
    %3829 = vadd.xlane.f32.xlu0 %v3828
    %v3830 = vpop.xlane.xlu0 %3829
    %v3831 = vsel %vm188, %v3793, 0.0
    %3832 = vadd.xlane.f32.xlu0 %v3831
    %v3833 = vpop.xlane.xlu0 %3832
    %v3834 = vsel %vm188, %v3794, 0.0
    %3835 = vadd.xlane.f32.xlu0 %v3834
    %v3836 = vpop.xlane.xlu0 %3835
    %v3837 = vsel %vm188, %v3795, 0.0
    %3838 = vadd.xlane.f32.xlu0 %v3837
    %v3839 = vpop.xlane.xlu0 %3838
    %v3840 = vsel %vm188, %v3796, 0.0
    %3841 = vadd.xlane.f32.xlu0 %v3840
    %v3842 = vpop.xlane.xlu0 %3841
    %v3843 = vsel %vm188, %v3797, 0.0
    %3844 = vadd.xlane.f32.xlu0 %v3843
    %v3845 = vpop.xlane.xlu0 %3844
    %v3846 = vmul.f32 %v3800, %v1369
    %v3847 = vmul.f32 %v3803, %v1369
    %v3848 = vmul.f32 %v3806, %v1369
    %v3849 = vmul.f32 %v3809, %v1369
    %v3850 = vmul.f32 %v3812, %v1369
    %v3851 = vmul.f32 %v3815, %v1369
    %v3852 = vmul.f32 %v3818, %v1369
    %v3853 = vmul.f32 %v3821, %v1369
    %v3854 = vmul.f32 %v3824, %v1369
    %v3855 = vmul.f32 %v3827, %v1369
    %v3856 = vmul.f32 %v3830, %v1369
    %v3857 = vmul.f32 %v3833, %v1369
    %v3858 = vmul.f32 %v3836, %v1369
    %v3859 = vmul.f32 %v3839, %v1369
    %v3860 = vmul.f32 %v3842, %v1369
    %v3861 = vmul.f32 %v3845, %v1369
    %v3862 = vsub.f32 %v3782, %v3846
    %v3863 = vsub.f32 %v3783, %v3847
    %v3864 = vsub.f32 %v3784, %v3848
    %v3865 = vsub.f32 %v3785, %v3849
    %v3866 = vsub.f32 %v3786, %v3850
    %v3867 = vsub.f32 %v3787, %v3851
    %v3868 = vsub.f32 %v3788, %v3852
    %v3869 = vsub.f32 %v3789, %v3853
    %v3870 = vsub.f32 %v3790, %v3854
    %v3871 = vsub.f32 %v3791, %v3855
    %v3872 = vsub.f32 %v3792, %v3856
    %v3873 = vsub.f32 %v3793, %v3857
    %v3874 = vsub.f32 %v3794, %v3858
    %v3875 = vsub.f32 %v3795, %v3859
    %v3876 = vsub.f32 %v3796, %v3860
    %v3877 = vsub.f32 %v3797, %v3861
    %v3878 = vmul.f32 %v3862, %v3862
    %v3879 = vmul.f32 %v3863, %v3863
    %v3880 = vmul.f32 %v3864, %v3864
    %v3881 = vmul.f32 %v3865, %v3865
    %v3882 = vmul.f32 %v3866, %v3866
    %v3883 = vmul.f32 %v3867, %v3867
    %v3884 = vmul.f32 %v3868, %v3868
    %v3885 = vmul.f32 %v3869, %v3869
    %v3886 = vmul.f32 %v3870, %v3870
    %v3887 = vmul.f32 %v3871, %v3871
    %v3888 = vmul.f32 %v3872, %v3872
    %v3889 = vmul.f32 %v3873, %v3873
    %v3890 = vmul.f32 %v3874, %v3874
    %v3891 = vmul.f32 %v3875, %v3875
    %v3892 = vmul.f32 %v3876, %v3876
    %v3893 = vmul.f32 %v3877, %v3877
    %v3894 = vsel %vm188, %v3878, 0.0
    %3895 = vadd.xlane.f32.xlu0 %v3894
    %v3896 = vpop.xlane.xlu0 %3895
    %v3897 = vsel %vm188, %v3879, 0.0
    %3898 = vadd.xlane.f32.xlu0 %v3897
    %v3899 = vpop.xlane.xlu0 %3898
    %v3900 = vsel %vm188, %v3880, 0.0
    %3901 = vadd.xlane.f32.xlu0 %v3900
    %v3902 = vpop.xlane.xlu0 %3901
    %v3903 = vsel %vm188, %v3881, 0.0
    %3904 = vadd.xlane.f32.xlu0 %v3903
    %v3905 = vpop.xlane.xlu0 %3904
    %v3906 = vsel %vm188, %v3882, 0.0
    %3907 = vadd.xlane.f32.xlu0 %v3906
    %v3908 = vpop.xlane.xlu0 %3907
    %v3909 = vsel %vm188, %v3883, 0.0
    %3910 = vadd.xlane.f32.xlu0 %v3909
    %v3911 = vpop.xlane.xlu0 %3910
    %v3912 = vsel %vm188, %v3884, 0.0
    %3913 = vadd.xlane.f32.xlu0 %v3912
    %v3914 = vpop.xlane.xlu0 %3913
    %v3915 = vsel %vm188, %v3885, 0.0
    %3916 = vadd.xlane.f32.xlu0 %v3915
    %v3917 = vpop.xlane.xlu0 %3916
    %v3918 = vsel %vm188, %v3886, 0.0
    %3919 = vadd.xlane.f32.xlu0 %v3918
    %v3920 = vpop.xlane.xlu0 %3919
    %v3921 = vsel %vm188, %v3887, 0.0
    %3922 = vadd.xlane.f32.xlu0 %v3921
    %v3923 = vpop.xlane.xlu0 %3922
    %v3924 = vsel %vm188, %v3888, 0.0
    %3925 = vadd.xlane.f32.xlu0 %v3924
    %v3926 = vpop.xlane.xlu0 %3925
    %v3927 = vsel %vm188, %v3889, 0.0
    %3928 = vadd.xlane.f32.xlu0 %v3927
    %v3929 = vpop.xlane.xlu0 %3928
    %v3930 = vsel %vm188, %v3890, 0.0
    %3931 = vadd.xlane.f32.xlu0 %v3930
    %v3932 = vpop.xlane.xlu0 %3931
    %v3933 = vsel %vm188, %v3891, 0.0
    %3934 = vadd.xlane.f32.xlu0 %v3933
    %v3935 = vpop.xlane.xlu0 %3934
    %v3936 = vsel %vm188, %v3892, 0.0
    %3937 = vadd.xlane.f32.xlu0 %v3936
    %v3938 = vpop.xlane.xlu0 %3937
    %v3939 = vsel %vm188, %v3893, 0.0
    %3940 = vadd.xlane.f32.xlu0 %v3939
    %v3941 = vpop.xlane.xlu0 %3940
    %v3942 = vmul.f32 %v3896, %v1369
    %v3943 = vmul.f32 %v3899, %v1369
    %v3944 = vmul.f32 %v3902, %v1369
    %v3945 = vmul.f32 %v3905, %v1369
    %v3946 = vmul.f32 %v3908, %v1369
    %v3947 = vmul.f32 %v3911, %v1369
    %v3948 = vmul.f32 %v3914, %v1369
    %v3949 = vmul.f32 %v3917, %v1369
    %v3950 = vmul.f32 %v3920, %v1369
    %v3951 = vmul.f32 %v3923, %v1369
    %v3952 = vmul.f32 %v3926, %v1369
    %v3953 = vmul.f32 %v3929, %v1369
    %v3954 = vmul.f32 %v3932, %v1369
    %v3955 = vmul.f32 %v3935, %v1369
    %v3956 = vmul.f32 %v3938, %v1369
    %v3957 = vmul.f32 %v3941, %v1369
    %v3958 = vadd.f32 %v3942, 1e-05
    %v3959 = vadd.f32 %v3943, 1e-05
    %v3960 = vadd.f32 %v3944, 1e-05
    %v3961 = vadd.f32 %v3945, 1e-05
    %v3962 = vadd.f32 %v3946, 1e-05
    %v3963 = vadd.f32 %v3947, 1e-05
    %v3964 = vadd.f32 %v3948, 1e-05
    %v3965 = vadd.f32 %v3949, 1e-05
    %v3966 = vadd.f32 %v3950, 1e-05
    %v3967 = vadd.f32 %v3951, 1e-05
    %v3968 = vadd.f32 %v3952, 1e-05
    %v3969 = vadd.f32 %v3953, 1e-05
    %v3970 = vadd.f32 %v3954, 1e-05
    %v3971 = vadd.f32 %v3955, 1e-05
    %v3972 = vadd.f32 %v3956, 1e-05
    %v3973 = vadd.f32 %v3957, 1e-05
    %v3974 = vrsqrt.pop %v3958
    %v3975 = vrsqrt.pop %v3959
    %v3976 = vrsqrt.pop %v3960
    %v3977 = vrsqrt.pop %v3961
    %v3978 = vrsqrt.pop %v3962
    %v3979 = vrsqrt.pop %v3963
    %v3980 = vrsqrt.pop %v3964
    %v3981 = vrsqrt.pop %v3965
    %v3982 = vrsqrt.pop %v3966
    %v3983 = vrsqrt.pop %v3967
    %v3984 = vrsqrt.pop %v3968
    %v3985 = vrsqrt.pop %v3969
    %v3986 = vrsqrt.pop %v3970
    %v3987 = vrsqrt.pop %v3971
    %v3988 = vrsqrt.pop %v3972
    %v3989 = vrsqrt.pop %v3973
    %v3990 = vmul.f32 %v3862, %v3974
    %v3991 = vmul.f32 %v3863, %v3975
    %v3992 = vmul.f32 %v3864, %v3976
    %v3993 = vmul.f32 %v3865, %v3977
    %v3994 = vmul.f32 %v3866, %v3978
    %v3995 = vmul.f32 %v3867, %v3979
    %v3996 = vmul.f32 %v3868, %v3980
    %v3997 = vmul.f32 %v3869, %v3981
    %v3998 = vmul.f32 %v3870, %v3982
    %v3999 = vmul.f32 %v3871, %v3983
    %v4000 = vmul.f32 %v3872, %v3984
    %v4001 = vmul.f32 %v3873, %v3985
    %v4002 = vmul.f32 %v3874, %v3986
    %v4003 = vmul.f32 %v3875, %v3987
    %v4004 = vmul.f32 %v3876, %v3988
    %v4005 = vmul.f32 %v3877, %v3989
    %v4006 = vlaneseq
    %v4007 = vshrl.u32 %v4006, 7
    %v4008 = vsub.s32 6, %v4007
    %v4009 = vrot.slane %v2189, %v4008
    %v4010 = vmul.f32 %v3990, %v4009
    %v4011 = vmul.f32 %v3991, %v4009
    %v4012 = vmul.f32 %v3992, %v4009
    %v4013 = vmul.f32 %v3993, %v4009
    %v4014 = vmul.f32 %v3994, %v4009
    %v4015 = vmul.f32 %v3995, %v4009
    %v4016 = vmul.f32 %v3996, %v4009
    %v4017 = vmul.f32 %v3997, %v4009
    %v4018 = vmul.f32 %v3998, %v4009
    %v4019 = vmul.f32 %v3999, %v4009
    %v4020 = vmul.f32 %v4000, %v4009
    %v4021 = vmul.f32 %v4001, %v4009
    %v4022 = vmul.f32 %v4002, %v4009
    %v4023 = vmul.f32 %v4003, %v4009
    %v4024 = vmul.f32 %v4004, %v4009
    %v4025 = vmul.f32 %v4005, %v4009
    %v4026 = vlaneseq
    %v4027 = vshrl.u32 %v4026, 7
    %v4028 = vsub.s32 7, %v4027
    %v4029 = vrot.slane %v2189, %v4028
    %v4030 = vadd.f32 %v4010, %v4029
    %v4031 = vadd.f32 %v4011, %v4029
    %v4032 = vadd.f32 %v4012, %v4029
    %v4033 = vadd.f32 %v4013, %v4029
    %v4034 = vadd.f32 %v4014, %v4029
    %v4035 = vadd.f32 %v4015, %v4029
    %v4036 = vadd.f32 %v4016, %v4029
    %v4037 = vadd.f32 %v4017, %v4029
    %v4038 = vadd.f32 %v4018, %v4029
    %v4039 = vadd.f32 %v4019, %v4029
    %v4040 = vadd.f32 %v4020, %v4029
    %v4041 = vadd.f32 %v4021, %v4029
    %v4042 = vadd.f32 %v4022, %v4029
    %v4043 = vadd.f32 %v4023, %v4029
    %v4044 = vadd.f32 %v4024, %v4029
    %v4045 = vadd.f32 %v4025, %v4029
    %s4046 = scalar_lea.vmem %s7, 32
    %v4047 = vld [vmem:[%s4046] sm:$0xff]
    %v4048 = vld [vmem:[%s4046 + $0x8] sm:$0x1]
    %s4049 = scalar_lea.vmem %s8, 4
    %v4050 = vld [vmem:[%s4049] sm:$0x3]
    %v4051 = vpack.c.bf16 %v4031, %v4030
    %v4052 = vpack.c.bf16 %v4033, %v4032
    %v4053 = vpack.c.bf16 %v4035, %v4034
    %v4054 = vpack.c.bf16 %v4037, %v4036
    %v4055 = vpack.c.bf16 %v4039, %v4038
    %v4056 = vpack.c.bf16 %v4041, %v4040
    %v4057 = vpack.c.bf16 %v4043, %v4042
    %v4058 = vpack.c.bf16 %v4045, %v4044
    %s4059 = scalar_lea.vmem [#allocation5], 128
    %v4060 = vld [vmem:[%s4059] sm:$0xff]
    %v4061 = vld [vmem:[%s4059 + $0x8] sm:$0xff]
    %v4062 = vld [vmem:[%s4059 + $0x10] sm:$0xff]
    %v4063 = vld [vmem:[%s4059 + $0x18] sm:$0xff]
    %v4064 = vld [vmem:[%s4059 + $0x20] sm:$0xff]
    %v4065 = vld [vmem:[%s4059 + $0x28] sm:$0xff]
    %v4066 = vld [vmem:[%s4059 + $0x30] sm:$0xff]
    %v4067 = vld [vmem:[%s4059 + $0x38] sm:$0xff]
    %v4076 = vunpack.c.l.b16 %v4060
    %v4077 = vunpack.c.h.b16 %v4060
    %v4078 = vunpack.c.l.b16 %v4061
    %v4079 = vunpack.c.h.b16 %v4061
    %v4080 = vunpack.c.l.b16 %v4062
    %v4081 = vunpack.c.h.b16 %v4062
    %v4082 = vunpack.c.l.b16 %v4063
    %v4083 = vunpack.c.h.b16 %v4063
    %v4084 = vunpack.c.l.b16 %v4064
    %v4085 = vunpack.c.h.b16 %v4064
    %v4086 = vunpack.c.l.b16 %v4065
    %v4087 = vunpack.c.h.b16 %v4065
    %v4088 = vunpack.c.l.b16 %v4066
    %v4089 = vunpack.c.h.b16 %v4066
    %v4090 = vunpack.c.l.b16 %v4067
    %v4091 = vunpack.c.h.b16 %v4067
    %v4092 = vpack.c.b16 %v4078, %v4076
    %v4093 = vpack.c.b16 %v4079, %v4077
    %v4094 = vpack.c.b16 %v4082, %v4080
    %v4095 = vpack.c.b16 %v4083, %v4081
    %v4096 = vpack.c.b16 %v4086, %v4084
    %v4097 = vpack.c.b16 %v4087, %v4085
    %v4098 = vpack.c.b16 %v4090, %v4088
    %v4099 = vpack.c.b16 %v4091, %v4089
    %v4109 = vsel %vm188, %v4051, 0
    %v4112 = vsel %vm188, %v4052, 0
    %v4115 = vsel %vm188, %v4053, 0
    %v4118 = vsel %vm188, %v4054, 0
    %v4121 = vsel %vm188, %v4055, 0
    %v4124 = vsel %vm188, %v4056, 0
    %v4127 = vsel %vm188, %v4057, 0
    %v4130 = vsel %vm188, %v4058, 0
    %4132 = vmatprep.subr.bf16.mxu0 %v4093
    %4133 = vmatpush1.bf16.msra.mxu0 %v4092
    %4134 = vmatprep.subr.bf16.mxu0 %v4095
    %4135 = vmatpush1.bf16.msra.mxu0 %v4094
    %4136 = vmatprep.subr.bf16.mxu0 %v4097
    %4137 = vmatpush1.bf16.msra.mxu0 %v4096
    %4138 = vmatprep.subr.bf16.mxu0 %v4099
    %4139 = vmatpush1.bf16.msra.mxu0 %v4098
    %4140 = vmatprep.subr.bf16.mxu0 0
    %4141 = vmatpush1.bf16.msra.mxu0 0
    %4142 = vmatprep.subr.bf16.mxu0 0
    %4143 = vmatpush1.bf16.msra.mxu0 0
    %4144 = vmatprep.subr.bf16.mxu0 0
    %4145 = vmatpush1.bf16.msra.mxu0 0
    %4146 = vmatprep.subr.bf16.mxu0 0
    %4147 = vmatpush1.bf16.msra.mxu0 0
    %4148 = vmatprep.subr.bf16.mxu0 0
    %4149 = vmatpush1.bf16.msra.mxu0 0
    %4150 = vmatprep.subr.bf16.mxu0 0
    %4151 = vmatpush1.bf16.msra.mxu0 0
    %4152 = vmatprep.subr.bf16.mxu0 0
    %4153 = vmatpush1.bf16.msra.mxu0 0
    %4154 = vmatprep.subr.bf16.mxu0 0
    %4155 = vmatpush1.bf16.msra.mxu0 0
    %4156 = vmatprep.subr.bf16.mxu0 0
    %4157 = vmatpush1.bf16.msra.mxu0 0
    %4158 = vmatprep.subr.bf16.mxu0 0
    %4159 = vmatpush1.bf16.msra.mxu0 0
    %4160 = vmatprep.subr.bf16.mxu0 0
    %4161 = vmatpush1.bf16.msra.mxu0 0
    %4162 = vmatprep.subr.bf16.mxu0 0
    %4163 = vmatpush1.bf16.msra.mxu0 0
    %4164 = vmatprep.mubr.bf16.mxu0 0
    %4165 = vmatmul.mubr.bf16.gmra.mrb[0].mxu0 %v4109
    %v4166 = vpop.f32.mrb[0].mxu0
    %v4167 = vadd.f32 0.0, %v4166
    %v4168 = vpop.f32.mrb[0].mxu0
    %v4169 = vadd.f32 0.0, %v4168
    %v4170 = vpop.f32.mrb[0].mxu0
    %v4171 = vadd.f32 0.0, %v4170
    %v4172 = vpop.f32.mrb[0].mxu0
    %v4173 = vadd.f32 0.0, %v4172
    %4174 = vmatprep.mubr.bf16.mxu0 0
    %4175 = vmatmul.mubr.bf16.gmra.mrb[0].mxu0 %v4112
    %v4176 = vpop.f32.mrb[0].mxu0
    %v4177 = vadd.f32 0.0, %v4176
    %v4178 = vpop.f32.mrb[0].mxu0
    %v4179 = vadd.f32 0.0, %v4178
    %v4180 = vpop.f32.mrb[0].mxu0
    %v4181 = vadd.f32 0.0, %v4180
    %v4182 = vpop.f32.mrb[0].mxu0
    %v4183 = vadd.f32 0.0, %v4182
    %4184 = vmatprep.mubr.bf16.mxu0 0
    %4185 = vmatmul.mubr.bf16.gmra.mrb[0].mxu0 %v4115
    %v4186 = vpop.f32.mrb[0].mxu0
    %v4187 = vadd.f32 0.0, %v4186
    %v4188 = vpop.f32.mrb[0].mxu0
    %v4189 = vadd.f32 0.0, %v4188
    %v4190 = vpop.f32.mrb[0].mxu0
    %v4191 = vadd.f32 0.0, %v4190
    %v4192 = vpop.f32.mrb[0].mxu0
    %v4193 = vadd.f32 0.0, %v4192
    %4194 = vmatprep.mubr.bf16.mxu0 0
    %4195 = vmatmul.mubr.bf16.gmra.mrb[0].mxu0 %v4118
    %v4196 = vpop.f32.mrb[0].mxu0
    %v4197 = vadd.f32 0.0, %v4196
    %v4198 = vpop.f32.mrb[0].mxu0
    %v4199 = vadd.f32 0.0, %v4198
    %v4200 = vpop.f32.mrb[0].mxu0
    %v4201 = vadd.f32 0.0, %v4200
    %v4202 = vpop.f32.mrb[0].mxu0
    %v4203 = vadd.f32 0.0, %v4202
    %4204 = vmatprep.mubr.bf16.mxu0 0
    %4205 = vmatmul.mubr.bf16.gmra.mrb[0].mxu0 %v4121
    %v4206 = vpop.f32.mrb[0].mxu0
    %v4207 = vadd.f32 0.0, %v4206
    %v4208 = vpop.f32.mrb[0].mxu0
    %v4209 = vadd.f32 0.0, %v4208
    %v4210 = vpop.f32.mrb[0].mxu0
    %v4211 = vadd.f32 0.0, %v4210
    %v4212 = vpop.f32.mrb[0].mxu0
    %v4213 = vadd.f32 0.0, %v4212
    %4214 = vmatprep.mubr.bf16.mxu0 0
    %4215 = vmatmul.mubr.bf16.gmra.mrb[0].mxu0 %v4124
    %v4216 = vpop.f32.mrb[0].mxu0
    %v4217 = vadd.f32 0.0, %v4216
    %v4218 = vpop.f32.mrb[0].mxu0
    %v4219 = vadd.f32 0.0, %v4218
    %v4220 = vpop.f32.mrb[0].mxu0
    %v4221 = vadd.f32 0.0, %v4220
    %v4222 = vpop.f32.mrb[0].mxu0
    %v4223 = vadd.f32 0.0, %v4222
    %4224 = vmatprep.mubr.bf16.mxu0 0
    %4225 = vmatmul.mubr.bf16.gmra.mrb[0].mxu0 %v4127
    %v4226 = vpop.f32.mrb[0].mxu0
    %v4227 = vadd.f32 0.0, %v4226
    %v4228 = vpop.f32.mrb[0].mxu0
    %v4229 = vadd.f32 0.0, %v4228
    %v4230 = vpop.f32.mrb[0].mxu0
    %v4231 = vadd.f32 0.0, %v4230
    %v4232 = vpop.f32.mrb[0].mxu0
    %v4233 = vadd.f32 0.0, %v4232
    %4234 = vmatprep.mubr.bf16.mxu0 0
    %4235 = vmatmul.mubr.bf16.gmra.mrb[0].mxu0 %v4130
    %v4236 = vpop.f32.mrb[0].mxu0
    %v4237 = vadd.f32 0.0, %v4236
    %v4238 = vpop.f32.mrb[0].mxu0
    %v4239 = vadd.f32 0.0, %v4238
    %v4240 = vpop.f32.mrb[0].mxu0
    %v4241 = vadd.f32 0.0, %v4240
    %v4242 = vpop.f32.mrb[0].mxu0
    %v4243 = vadd.f32 0.0, %v4242
    %4244 = vdwg.mxu0
    %v4245 = vlaneseq
    %v4246 = vshrl.u32 %v4245, 7
    %v4247 = vsub.s32 0, %v4246
    %v4248 = vrot.slane %v4047, %v4247
    %v4249 = vadd.f32 %v4167, %v4248
    %v4250 = vadd.f32 %v4171, %v4248
    %v4251 = vadd.f32 %v4177, %v4248
    %v4252 = vadd.f32 %v4181, %v4248
    %v4253 = vadd.f32 %v4187, %v4248
    %v4254 = vadd.f32 %v4191, %v4248
    %v4255 = vadd.f32 %v4197, %v4248
    %v4256 = vadd.f32 %v4201, %v4248
    %v4257 = vadd.f32 %v4207, %v4248
    %v4258 = vadd.f32 %v4211, %v4248
    %v4259 = vadd.f32 %v4217, %v4248
    %v4260 = vadd.f32 %v4221, %v4248
    %v4261 = vadd.f32 %v4227, %v4248
    %v4262 = vadd.f32 %v4231, %v4248
    %v4263 = vadd.f32 %v4237, %v4248
    %v4264 = vadd.f32 %v4241, %v4248
    %v4265 = vlaneseq
    %v4266 = vshrl.u32 %v4265, 7
    %v4267 = vsub.s32 1, %v4266
    %v4268 = vrot.slane %v4047, %v4267
    %4270 = vrot.lane.b32.xlu0 %v4268, 64
    %v4271 = vpop.permute.xlu0 %4270
    %v4273 = vadd.f32 %v4167, %v4271
    %v4274 = vadd.f32 %v4171, %v4271
    %v4275 = vadd.f32 %v4177, %v4271
    %v4276 = vadd.f32 %v4181, %v4271
    %v4277 = vadd.f32 %v4187, %v4271
    %v4278 = vadd.f32 %v4191, %v4271
    %v4279 = vadd.f32 %v4197, %v4271
    %v4280 = vadd.f32 %v4201, %v4271
    %v4281 = vadd.f32 %v4207, %v4271
    %v4282 = vadd.f32 %v4211, %v4271
    %v4283 = vadd.f32 %v4217, %v4271
    %v4284 = vadd.f32 %v4221, %v4271
    %v4285 = vadd.f32 %v4227, %v4271
    %v4286 = vadd.f32 %v4231, %v4271
    %v4287 = vadd.f32 %v4237, %v4271
    %v4288 = vadd.f32 %v4241, %v4271
    %v4289 = vlaneseq
    %v4290 = vshrl.u32 %v4289, 7
    %v4291 = vsub.s32 2, %v4290
    %v4292 = vrot.slane %v4047, %v4291
    %v4293 = vadd.f32 %v4169, %v4292
    %v4294 = vadd.f32 %v4173, %v4292
    %v4295 = vadd.f32 %v4179, %v4292
    %v4296 = vadd.f32 %v4183, %v4292
    %v4297 = vadd.f32 %v4189, %v4292
    %v4298 = vadd.f32 %v4193, %v4292
    %v4299 = vadd.f32 %v4199, %v4292
    %v4300 = vadd.f32 %v4203, %v4292
    %v4301 = vadd.f32 %v4209, %v4292
    %v4302 = vadd.f32 %v4213, %v4292
    %v4303 = vadd.f32 %v4219, %v4292
    %v4304 = vadd.f32 %v4223, %v4292
    %v4305 = vadd.f32 %v4229, %v4292
    %v4306 = vadd.f32 %v4233, %v4292
    %v4307 = vadd.f32 %v4239, %v4292
    %v4308 = vadd.f32 %v4243, %v4292
    %4325 = vrot.lane.b32.xlu0 %v4273, 64
    %v4326 = vpop.permute.xlu0 %4325
    %4327 = vrot.lane.b32.xlu0 %v4274, 64
    %v4328 = vpop.permute.xlu0 %4327
    %4329 = vrot.lane.b32.xlu0 %v4275, 64
    %v4330 = vpop.permute.xlu0 %4329
    %4331 = vrot.lane.b32.xlu0 %v4276, 64
    %v4332 = vpop.permute.xlu0 %4331
    %4333 = vrot.lane.b32.xlu0 %v4277, 64
    %v4334 = vpop.permute.xlu0 %4333
    %4335 = vrot.lane.b32.xlu0 %v4278, 64
    %v4336 = vpop.permute.xlu0 %4335
    %4337 = vrot.lane.b32.xlu0 %v4279, 64
    %v4338 = vpop.permute.xlu0 %4337
    %4339 = vrot.lane.b32.xlu0 %v4280, 64
    %v4340 = vpop.permute.xlu0 %4339
    %4341 = vrot.lane.b32.xlu0 %v4281, 64
    %v4342 = vpop.permute.xlu0 %4341
    %4343 = vrot.lane.b32.xlu0 %v4282, 64
    %v4344 = vpop.permute.xlu0 %4343
    %4345 = vrot.lane.b32.xlu0 %v4283, 64
    %v4346 = vpop.permute.xlu0 %4345
    %4347 = vrot.lane.b32.xlu0 %v4284, 64
    %v4348 = vpop.permute.xlu0 %4347
    %4349 = vrot.lane.b32.xlu0 %v4285, 64
    %v4350 = vpop.permute.xlu0 %4349
    %4351 = vrot.lane.b32.xlu0 %v4286, 64
    %v4352 = vpop.permute.xlu0 %4351
    %4353 = vrot.lane.b32.xlu0 %v4287, 64
    %v4354 = vpop.permute.xlu0 %4353
    %4355 = vrot.lane.b32.xlu0 %v4288, 64
    %v4356 = vpop.permute.xlu0 %4355
    %v4373 = vmul.f32 %v4249, %v4326
    %v4374 = vmul.f32 %v4250, %v4328
    %v4375 = vmul.f32 %v4251, %v4330
    %v4376 = vmul.f32 %v4252, %v4332
    %v4377 = vmul.f32 %v4253, %v4334
    %v4378 = vmul.f32 %v4254, %v4336
    %v4379 = vmul.f32 %v4255, %v4338
    %v4380 = vmul.f32 %v4256, %v4340
    %v4381 = vmul.f32 %v4249, %v4342
    %v4382 = vmul.f32 %v4250, %v4344
    %v4383 = vmul.f32 %v4251, %v4346
    %v4384 = vmul.f32 %v4252, %v4348
    %v4385 = vmul.f32 %v4253, %v4350
    %v4386 = vmul.f32 %v4254, %v4352
    %v4387 = vmul.f32 %v4255, %v4354
    %v4388 = vmul.f32 %v4256, %v4356
    %v4389 = vmul.f32 %v4257, %v4326
    %v4390 = vmul.f32 %v4258, %v4328
    %v4391 = vmul.f32 %v4259, %v4330
    %v4392 = vmul.f32 %v4260, %v4332
    %v4393 = vmul.f32 %v4261, %v4334
    %v4394 = vmul.f32 %v4262, %v4336
    %v4395 = vmul.f32 %v4263, %v4338
    %v4396 = vmul.f32 %v4264, %v4340
    %v4397 = vmul.f32 %v4257, %v4342
    %v4398 = vmul.f32 %v4258, %v4344
    %v4399 = vmul.f32 %v4259, %v4346
    %v4400 = vmul.f32 %v4260, %v4348
    %v4401 = vmul.f32 %v4261, %v4350
    %v4402 = vmul.f32 %v4262, %v4352
    %v4403 = vmul.f32 %v4263, %v4354
    %v4404 = vmul.f32 %v4264, %v4356
    %v4405 = vpack.c.bf16 %v4374, %v4373
    %v4406 = vpack.c.bf16 %v4376, %v4375
    %v4407 = vpack.c.bf16 %v4378, %v4377
    %v4408 = vpack.c.bf16 %v4380, %v4379
    %v4409 = vpack.c.bf16 %v4382, %v4381
    %v4410 = vpack.c.bf16 %v4384, %v4383
    %v4411 = vpack.c.bf16 %v4386, %v4385
    %v4412 = vpack.c.bf16 %v4388, %v4387
    %v4413 = vpack.c.bf16 %v4390, %v4389
    %v4414 = vpack.c.bf16 %v4392, %v4391
    %v4415 = vpack.c.bf16 %v4394, %v4393
    %v4416 = vpack.c.bf16 %v4396, %v4395
    %v4417 = vpack.c.bf16 %v4398, %v4397
    %v4418 = vpack.c.bf16 %v4400, %v4399
    %v4419 = vpack.c.bf16 %v4402, %v4401
    %v4420 = vpack.c.bf16 %v4404, %v4403
    %v4422 = vsel %vm188, %v4405, 0
    %v4425 = vsel %vm188, %v4406, 0
    %v4428 = vsel %vm188, %v4407, 0
    %v4431 = vsel %vm188, %v4408, 0
    %v4434 = vsel %vm188, %v4409, 0
    %v4437 = vsel %vm188, %v4410, 0
    %v4440 = vsel %vm188, %v4411, 0
    %v4443 = vsel %vm188, %v4412, 0
    %v4446 = vsel %vm188, %v4413, 0
    %v4449 = vsel %vm188, %v4414, 0
    %v4452 = vsel %vm188, %v4415, 0
    %v4455 = vsel %vm188, %v4416, 0
    %v4458 = vsel %vm188, %v4417, 0
    %v4461 = vsel %vm188, %v4418, 0
    %v4464 = vsel %vm188, %v4419, 0
    %v4467 = vsel %vm188, %v4420, 0
    %4469 = vmatprep.subr.bf16.mxu0 0
    %4470 = vmatpush1.bf16.msra.mxu0 %v698
    %4471 = vmatprep.subr.bf16.mxu0 0
    %4472 = vmatpush1.bf16.msra.mxu0 %v699
    %4473 = vmatprep.subr.bf16.mxu0 0
    %4474 = vmatpush1.bf16.msra.mxu0 %v700
    %4475 = vmatprep.subr.bf16.mxu0 0
    %4476 = vmatpush1.bf16.msra.mxu0 %v701
    %4477 = vmatprep.subr.bf16.mxu0 0
    %4478 = vmatpush1.bf16.msra.mxu0 0
    %4479 = vmatprep.subr.bf16.mxu0 0
    %4480 = vmatpush1.bf16.msra.mxu0 0
    %4481 = vmatprep.subr.bf16.mxu0 0
    %4482 = vmatpush1.bf16.msra.mxu0 0
    %4483 = vmatprep.subr.bf16.mxu0 0
    %4484 = vmatpush1.bf16.msra.mxu0 0
    %4485 = vmatprep.subr.bf16.mxu0 0
    %4486 = vmatpush1.bf16.msra.mxu0 0
    %4487 = vmatprep.subr.bf16.mxu0 0
    %4488 = vmatpush1.bf16.msra.mxu0 0
    %4489 = vmatprep.subr.bf16.mxu0 0
    %4490 = vmatpush1.bf16.msra.mxu0 0
    %4491 = vmatprep.subr.bf16.mxu0 0
    %4492 = vmatpush1.bf16.msra.mxu0 0
    %4493 = vmatprep.subr.bf16.mxu0 0
    %4494 = vmatpush1.bf16.msra.mxu0 0
    %4495 = vmatprep.subr.bf16.mxu0 0
    %4496 = vmatpush1.bf16.msra.mxu0 0
    %4497 = vmatprep.subr.bf16.mxu0 0
    %4498 = vmatpush1.bf16.msra.mxu0 0
    %4499 = vmatprep.subr.bf16.mxu0 0
    %4500 = vmatpush1.bf16.msra.mxu0 0
    %4501 = vmatprep.mubr.bf16.mxu0 0
    %4502 = vmatmul.mubr.bf16.gmra.mrb[0].mxu0 %v4422
    %v4503 = vpop.f32.mrb[0].mxu0
    %v4504 = vadd.f32 0.0, %v4503
    %v4505 = vpop.f32.mrb[0].mxu0
    %v4506 = vpop.f32.mrb[0].mxu0
    %v4507 = vadd.f32 0.0, %v4506
    %v4508 = vpop.f32.mrb[0].mxu0
    %4509 = vmatprep.mubr.bf16.mxu0 0
    %4510 = vmatmul.mubr.bf16.gmra.mrb[0].mxu0 %v4425
    %v4511 = vpop.f32.mrb[0].mxu0
    %v4512 = vadd.f32 0.0, %v4511
    %v4513 = vpop.f32.mrb[0].mxu0
    %v4514 = vpop.f32.mrb[0].mxu0
    %v4515 = vadd.f32 0.0, %v4514
    %v4516 = vpop.f32.mrb[0].mxu0
    %4517 = vmatprep.mubr.bf16.mxu0 0
    %4518 = vmatmul.mubr.bf16.gmra.mrb[0].mxu0 %v4428
    %v4519 = vpop.f32.mrb[0].mxu0
    %v4520 = vadd.f32 0.0, %v4519
    %v4521 = vpop.f32.mrb[0].mxu0
    %v4522 = vpop.f32.mrb[0].mxu0
    %v4523 = vadd.f32 0.0, %v4522
    %v4524 = vpop.f32.mrb[0].mxu0
    %4525 = vmatprep.mubr.bf16.mxu0 0
    %4526 = vmatmul.mubr.bf16.gmra.mrb[0].mxu0 %v4431
    %v4527 = vpop.f32.mrb[0].mxu0
    %v4528 = vadd.f32 0.0, %v4527
    %v4529 = vpop.f32.mrb[0].mxu0
    %v4530 = vpop.f32.mrb[0].mxu0
    %v4531 = vadd.f32 0.0, %v4530
    %v4532 = vpop.f32.mrb[0].mxu0
    %4533 = vmatprep.mubr.bf16.mxu0 0
    %4534 = vmatmul.mubr.bf16.gmra.mrb[0].mxu0 %v4434
    %v4535 = vpop.f32.mrb[0].mxu0
    %v4536 = vadd.f32 0.0, %v4535
    %v4537 = vpop.f32.mrb[0].mxu0
    %v4538 = vpop.f32.mrb[0].mxu0
    %v4539 = vadd.f32 0.0, %v4538
    %v4540 = vpop.f32.mrb[0].mxu0
    %4541 = vmatprep.mubr.bf16.mxu0 0
    %4542 = vmatmul.mubr.bf16.gmra.mrb[0].mxu0 %v4437
    %v4543 = vpop.f32.mrb[0].mxu0
    %v4544 = vadd.f32 0.0, %v4543
    %v4545 = vpop.f32.mrb[0].mxu0
    %v4546 = vpop.f32.mrb[0].mxu0
    %v4547 = vadd.f32 0.0, %v4546
    %v4548 = vpop.f32.mrb[0].mxu0
    %4549 = vmatprep.mubr.bf16.mxu0 0
    %4550 = vmatmul.mubr.bf16.gmra.mrb[0].mxu0 %v4440
    %v4551 = vpop.f32.mrb[0].mxu0
    %v4552 = vadd.f32 0.0, %v4551
    %v4553 = vpop.f32.mrb[0].mxu0
    %v4554 = vpop.f32.mrb[0].mxu0
    %v4555 = vadd.f32 0.0, %v4554
    %v4556 = vpop.f32.mrb[0].mxu0
    %4557 = vmatprep.mubr.bf16.mxu0 0
    %4558 = vmatmul.mubr.bf16.gmra.mrb[0].mxu0 %v4443
    %v4559 = vpop.f32.mrb[0].mxu0
    %v4560 = vadd.f32 0.0, %v4559
    %v4561 = vpop.f32.mrb[0].mxu0
    %v4562 = vpop.f32.mrb[0].mxu0
    %v4563 = vadd.f32 0.0, %v4562
    %v4564 = vpop.f32.mrb[0].mxu0
    %4565 = vmatprep.mubr.bf16.mxu0 0
    %4566 = vmatmul.mubr.bf16.gmra.mrb[0].mxu0 %v4446
    %v4567 = vpop.f32.mrb[0].mxu0
    %v4568 = vadd.f32 0.0, %v4567
    %v4569 = vpop.f32.mrb[0].mxu0
    %v4570 = vpop.f32.mrb[0].mxu0
    %v4571 = vadd.f32 0.0, %v4570
    %v4572 = vpop.f32.mrb[0].mxu0
    %4573 = vmatprep.mubr.bf16.mxu0 0
    %4574 = vmatmul.mubr.bf16.gmra.mrb[0].mxu0 %v4449
    %v4575 = vpop.f32.mrb[0].mxu0
    %v4576 = vadd.f32 0.0, %v4575
    %v4577 = vpop.f32.mrb[0].mxu0
    %v4578 = vpop.f32.mrb[0].mxu0
    %v4579 = vadd.f32 0.0, %v4578
    %v4580 = vpop.f32.mrb[0].mxu0
    %4581 = vmatprep.mubr.bf16.mxu0 0
    %4582 = vmatmul.mubr.bf16.gmra.mrb[0].mxu0 %v4452
    %v4583 = vpop.f32.mrb[0].mxu0
    %v4584 = vadd.f32 0.0, %v4583
    %v4585 = vpop.f32.mrb[0].mxu0
    %v4586 = vpop.f32.mrb[0].mxu0
    %v4587 = vadd.f32 0.0, %v4586
    %v4588 = vpop.f32.mrb[0].mxu0
    %4589 = vmatprep.mubr.bf16.mxu0 0
    %4590 = vmatmul.mubr.bf16.gmra.mrb[0].mxu0 %v4455
    %v4591 = vpop.f32.mrb[0].mxu0
    %v4592 = vadd.f32 0.0, %v4591
    %v4593 = vpop.f32.mrb[0].mxu0
    %v4594 = vpop.f32.mrb[0].mxu0
    %v4595 = vadd.f32 0.0, %v4594
    %v4596 = vpop.f32.mrb[0].mxu0
    %4597 = vmatprep.mubr.bf16.mxu0 0
    %4598 = vmatmul.mubr.bf16.gmra.mrb[0].mxu0 %v4458
    %v4599 = vpop.f32.mrb[0].mxu0
    %v4600 = vadd.f32 0.0, %v4599
    %v4601 = vpop.f32.mrb[0].mxu0
    %v4602 = vpop.f32.mrb[0].mxu0
    %v4603 = vadd.f32 0.0, %v4602
    %v4604 = vpop.f32.mrb[0].mxu0
    %4605 = vmatprep.mubr.bf16.mxu0 0
    %4606 = vmatmul.mubr.bf16.gmra.mrb[0].mxu0 %v4461
    %v4607 = vpop.f32.mrb[0].mxu0
    %v4608 = vadd.f32 0.0, %v4607
    %v4609 = vpop.f32.mrb[0].mxu0
    %v4610 = vpop.f32.mrb[0].mxu0
    %v4611 = vadd.f32 0.0, %v4610
    %v4612 = vpop.f32.mrb[0].mxu0
    %4613 = vmatprep.mubr.bf16.mxu0 0
    %4614 = vmatmul.mubr.bf16.gmra.mrb[0].mxu0 %v4464
    %v4615 = vpop.f32.mrb[0].mxu0
    %v4616 = vadd.f32 0.0, %v4615
    %v4617 = vpop.f32.mrb[0].mxu0
    %v4618 = vpop.f32.mrb[0].mxu0
    %v4619 = vadd.f32 0.0, %v4618
    %v4620 = vpop.f32.mrb[0].mxu0
    %4621 = vmatprep.mubr.bf16.mxu0 0
    %4622 = vmatmul.mubr.bf16.gmra.mrb[0].mxu0 %v4467
    %v4623 = vpop.f32.mrb[0].mxu0
    %v4624 = vadd.f32 0.0, %v4623
    %v4625 = vpop.f32.mrb[0].mxu0
    %v4626 = vpop.f32.mrb[0].mxu0
    %v4627 = vadd.f32 0.0, %v4626
    %v4628 = vpop.f32.mrb[0].mxu0
    %4629 = vdwg.mxu0
    %v4630 = vmax.f32 %v4504, %v4536
    %v4631 = vmax.f32 %v4507, %v4539
    %v4632 = vmax.f32 %v4512, %v4544
    %v4633 = vmax.f32 %v4515, %v4547
    %v4634 = vmax.f32 %v4520, %v4552
    %v4635 = vmax.f32 %v4523, %v4555
    %v4636 = vmax.f32 %v4528, %v4560
    %v4637 = vmax.f32 %v4531, %v4563
    %v4638 = vsub.f32 %v4504, %v4630
    %v4639 = vsub.f32 %v4507, %v4631
    %v4640 = vsub.f32 %v4512, %v4632
    %v4641 = vsub.f32 %v4515, %v4633
    %v4642 = vsub.f32 %v4520, %v4634
    %v4643 = vsub.f32 %v4523, %v4635
    %v4644 = vsub.f32 %v4528, %v4636
    %v4645 = vsub.f32 %v4531, %v4637
    %v4646 = vmul.f32 %v4638, 1.442695
    %v4647 = vpow.pop %v4646
    %v4648 = vmul.f32 %v4639, 1.442695
    %v4649 = vpow.pop %v4648
    %v4650 = vmul.f32 %v4640, 1.442695
    %v4651 = vpow.pop %v4650
    %v4652 = vmul.f32 %v4641, 1.442695
    %v4653 = vpow.pop %v4652
    %v4654 = vmul.f32 %v4642, 1.442695
    %v4655 = vpow.pop %v4654
    %v4656 = vmul.f32 %v4643, 1.442695
    %v4657 = vpow.pop %v4656
    %v4658 = vmul.f32 %v4644, 1.442695
    %v4659 = vpow.pop %v4658
    %v4660 = vmul.f32 %v4645, 1.442695
    %v4661 = vpow.pop %v4660
    %v4662 = vsub.f32 %v4536, %v4630
    %v4663 = vsub.f32 %v4539, %v4631
    %v4664 = vsub.f32 %v4544, %v4632
    %v4665 = vsub.f32 %v4547, %v4633
    %v4666 = vsub.f32 %v4552, %v4634
    %v4667 = vsub.f32 %v4555, %v4635
    %v4668 = vsub.f32 %v4560, %v4636
    %v4669 = vsub.f32 %v4563, %v4637
    %v4670 = vmul.f32 %v4662, 1.442695
    %v4671 = vpow.pop %v4670
    %v4672 = vmul.f32 %v4663, 1.442695
    %v4673 = vpow.pop %v4672
    %v4674 = vmul.f32 %v4664, 1.442695
    %v4675 = vpow.pop %v4674
    %v4676 = vmul.f32 %v4665, 1.442695
    %v4677 = vpow.pop %v4676
    %v4678 = vmul.f32 %v4666, 1.442695
    %v4679 = vpow.pop %v4678
    %v4680 = vmul.f32 %v4667, 1.442695
    %v4681 = vpow.pop %v4680
    %v4682 = vmul.f32 %v4668, 1.442695
    %v4683 = vpow.pop %v4682
    %v4684 = vmul.f32 %v4669, 1.442695
    %v4685 = vpow.pop %v4684
    %v4686 = vadd.f32 %v4647, %v4671
    %v4687 = vadd.f32 %v4649, %v4673
    %v4688 = vadd.f32 %v4651, %v4675
    %v4689 = vadd.f32 %v4653, %v4677
    %v4690 = vadd.f32 %v4655, %v4679
    %v4691 = vadd.f32 %v4657, %v4681
    %v4692 = vadd.f32 %v4659, %v4683
    %v4693 = vadd.f32 %v4661, %v4685
    %v4694 = vrcp.pop %v4686
    %v4695 = vrcp.pop %v4687
    %v4696 = vrcp.pop %v4688
    %v4697 = vrcp.pop %v4689
    %v4698 = vrcp.pop %v4690
    %v4699 = vrcp.pop %v4691
    %v4700 = vrcp.pop %v4692
    %v4701 = vrcp.pop %v4693
    %v4702 = vmul.f32 %v4647, %v4694
    %v4703 = vmul.f32 %v4649, %v4695
    %v4704 = vmul.f32 %v4651, %v4696
    %v4705 = vmul.f32 %v4653, %v4697
    %v4706 = vmul.f32 %v4655, %v4698
    %v4707 = vmul.f32 %v4657, %v4699
    %v4708 = vmul.f32 %v4659, %v4700
    %v4709 = vmul.f32 %v4661, %v4701
    %v4710 = vmul.f32 %v4702, %v4293
    %v4711 = vmul.f32 %v4703, %v4294
    %v4712 = vmul.f32 %v4704, %v4295
    %v4713 = vmul.f32 %v4705, %v4296
    %v4714 = vmul.f32 %v4706, %v4297
    %v4715 = vmul.f32 %v4707, %v4298
    %v4716 = vmul.f32 %v4708, %v4299
    %v4717 = vmul.f32 %v4709, %v4300
    %v4718 = vmul.f32 %v4671, %v4694
    %v4719 = vmul.f32 %v4673, %v4695
    %v4720 = vmul.f32 %v4675, %v4696
    %v4721 = vmul.f32 %v4677, %v4697
    %v4722 = vmul.f32 %v4679, %v4698
    %v4723 = vmul.f32 %v4681, %v4699
    %v4724 = vmul.f32 %v4683, %v4700
    %v4725 = vmul.f32 %v4685, %v4701
    %v4726 = vmul.f32 %v4718, %v4301
    %v4727 = vmul.f32 %v4719, %v4302
    %v4728 = vmul.f32 %v4720, %v4303
    %v4729 = vmul.f32 %v4721, %v4304
    %v4730 = vmul.f32 %v4722, %v4305
    %v4731 = vmul.f32 %v4723, %v4306
    %v4732 = vmul.f32 %v4724, %v4307
    %v4733 = vmul.f32 %v4725, %v4308
    %v4734 = vadd.f32 %v4710, %v4726
    %v4735 = vadd.f32 %v4711, %v4727
    %v4736 = vadd.f32 %v4712, %v4728
    %v4737 = vadd.f32 %v4713, %v4729
    %v4738 = vadd.f32 %v4714, %v4730
    %v4739 = vadd.f32 %v4715, %v4731
    %v4740 = vadd.f32 %v4716, %v4732
    %v4741 = vadd.f32 %v4717, %v4733
    %v4742 = vmax.f32 %v4568, %v4600
    %v4743 = vmax.f32 %v4571, %v4603
    %v4744 = vmax.f32 %v4576, %v4608
    %v4745 = vmax.f32 %v4579, %v4611
    %v4746 = vmax.f32 %v4584, %v4616
    %v4747 = vmax.f32 %v4587, %v4619
    %v4748 = vmax.f32 %v4592, %v4624
    %v4749 = vmax.f32 %v4595, %v4627
    %v4750 = vsub.f32 %v4568, %v4742
    %v4751 = vsub.f32 %v4571, %v4743
    %v4752 = vsub.f32 %v4576, %v4744
    %v4753 = vsub.f32 %v4579, %v4745
    %v4754 = vsub.f32 %v4584, %v4746
    %v4755 = vsub.f32 %v4587, %v4747
    %v4756 = vsub.f32 %v4592, %v4748
    %v4757 = vsub.f32 %v4595, %v4749
    %v4758 = vmul.f32 %v4750, 1.442695
    %v4759 = vpow.pop %v4758
    %v4760 = vmul.f32 %v4751, 1.442695
    %v4761 = vpow.pop %v4760
    %v4762 = vmul.f32 %v4752, 1.442695
    %v4763 = vpow.pop %v4762
    %v4764 = vmul.f32 %v4753, 1.442695
    %v4765 = vpow.pop %v4764
    %v4766 = vmul.f32 %v4754, 1.442695
    %v4767 = vpow.pop %v4766
    %v4768 = vmul.f32 %v4755, 1.442695
    %v4769 = vpow.pop %v4768
    %v4770 = vmul.f32 %v4756, 1.442695
    %v4771 = vpow.pop %v4770
    %v4772 = vmul.f32 %v4757, 1.442695
    %v4773 = vpow.pop %v4772
    %v4774 = vsub.f32 %v4600, %v4742
    %v4775 = vsub.f32 %v4603, %v4743
    %v4776 = vsub.f32 %v4608, %v4744
    %v4777 = vsub.f32 %v4611, %v4745
    %v4778 = vsub.f32 %v4616, %v4746
    %v4779 = vsub.f32 %v4619, %v4747
    %v4780 = vsub.f32 %v4624, %v4748
    %v4781 = vsub.f32 %v4627, %v4749
    %v4782 = vmul.f32 %v4774, 1.442695
    %v4783 = vpow.pop %v4782
    %v4784 = vmul.f32 %v4775, 1.442695
    %v4785 = vpow.pop %v4784
    %v4786 = vmul.f32 %v4776, 1.442695
    %v4787 = vpow.pop %v4786
    %v4788 = vmul.f32 %v4777, 1.442695
    %v4789 = vpow.pop %v4788
    %v4790 = vmul.f32 %v4778, 1.442695
    %v4791 = vpow.pop %v4790
    %v4792 = vmul.f32 %v4779, 1.442695
    %v4793 = vpow.pop %v4792
    %v4794 = vmul.f32 %v4780, 1.442695
    %v4795 = vpow.pop %v4794
    %v4796 = vmul.f32 %v4781, 1.442695
    %v4797 = vpow.pop %v4796
    %v4798 = vadd.f32 %v4759, %v4783
    %v4799 = vadd.f32 %v4761, %v4785
    %v4800 = vadd.f32 %v4763, %v4787
    %v4801 = vadd.f32 %v4765, %v4789
    %v4802 = vadd.f32 %v4767, %v4791
    %v4803 = vadd.f32 %v4769, %v4793
    %v4804 = vadd.f32 %v4771, %v4795
    %v4805 = vadd.f32 %v4773, %v4797
    %v4806 = vrcp.pop %v4798
    %v4807 = vrcp.pop %v4799
    %v4808 = vrcp.pop %v4800
    %v4809 = vrcp.pop %v4801
    %v4810 = vrcp.pop %v4802
    %v4811 = vrcp.pop %v4803
    %v4812 = vrcp.pop %v4804
    %v4813 = vrcp.pop %v4805
    %v4814 = vmul.f32 %v4759, %v4806
    %v4815 = vmul.f32 %v4761, %v4807
    %v4816 = vmul.f32 %v4763, %v4808
    %v4817 = vmul.f32 %v4765, %v4809
    %v4818 = vmul.f32 %v4767, %v4810
    %v4819 = vmul.f32 %v4769, %v4811
    %v4820 = vmul.f32 %v4771, %v4812
    %v4821 = vmul.f32 %v4773, %v4813
    %v4822 = vmul.f32 %v4814, %v4293
    %v4823 = vmul.f32 %v4815, %v4294
    %v4824 = vmul.f32 %v4816, %v4295
    %v4825 = vmul.f32 %v4817, %v4296
    %v4826 = vmul.f32 %v4818, %v4297
    %v4827 = vmul.f32 %v4819, %v4298
    %v4828 = vmul.f32 %v4820, %v4299
    %v4829 = vmul.f32 %v4821, %v4300
    %v4830 = vmul.f32 %v4783, %v4806
    %v4831 = vmul.f32 %v4785, %v4807
    %v4832 = vmul.f32 %v4787, %v4808
    %v4833 = vmul.f32 %v4789, %v4809
    %v4834 = vmul.f32 %v4791, %v4810
    %v4835 = vmul.f32 %v4793, %v4811
    %v4836 = vmul.f32 %v4795, %v4812
    %v4837 = vmul.f32 %v4797, %v4813
    %v4838 = vmul.f32 %v4830, %v4301
    %v4839 = vmul.f32 %v4831, %v4302
    %v4840 = vmul.f32 %v4832, %v4303
    %v4841 = vmul.f32 %v4833, %v4304
    %v4842 = vmul.f32 %v4834, %v4305
    %v4843 = vmul.f32 %v4835, %v4306
    %v4844 = vmul.f32 %v4836, %v4307
    %v4845 = vmul.f32 %v4837, %v4308
    %v4846 = vadd.f32 %v4822, %v4838
    %v4847 = vadd.f32 %v4823, %v4839
    %v4848 = vadd.f32 %v4824, %v4840
    %v4849 = vadd.f32 %v4825, %v4841
    %v4850 = vadd.f32 %v4826, %v4842
    %v4851 = vadd.f32 %v4827, %v4843
    %v4852 = vadd.f32 %v4828, %v4844
    %v4853 = vadd.f32 %v4829, %v4845
    %v4854 = vpack.c.bf16 %v4735, %v4734
    %v4855 = vpack.c.bf16 %v4737, %v4736
    %v4856 = vpack.c.bf16 %v4739, %v4738
    %v4857 = vpack.c.bf16 %v4741, %v4740
    %v4858 = vpack.c.bf16 %v4847, %v4846
    %v4859 = vpack.c.bf16 %v4849, %v4848
    %v4860 = vpack.c.bf16 %v4851, %v4850
    %v4861 = vpack.c.bf16 %v4853, %v4852
    %s4862 = scalar_lea.vmem [#allocation2], 128
    %v4863 = vld [vmem:[%s4862] sm:$0xf]
    %v4864 = vld [vmem:[%s4862 + $0x4] sm:$0xf]
    %v4865 = vld [vmem:[%s4862 + $0x8] sm:$0xf]
    %v4866 = vld [vmem:[%s4862 + $0xc] sm:$0xf]
    %v4867 = vld [vmem:[%s4862 + $0x10] sm:$0xf]
    %v4868 = vld [vmem:[%s4862 + $0x14] sm:$0xf]
    %v4869 = vld [vmem:[%s4862 + $0x18] sm:$0xf]
    %v4870 = vld [vmem:[%s4862 + $0x1c] sm:$0xf]
    %v4871 = vlaneseq
    %v4872 = vshrl.u32 %v4871, 7
    %v4873 = vsub.s32 3, %v4872
    %v4874 = vrot.slane %v4047, %v4873
    %v4883 = vunpack.c.l.b16 %v4863
    %v4884 = vunpack.c.l.b16 %v4864
    %v4885 = vunpack.c.l.b16 %v4865
    %v4886 = vunpack.c.l.b16 %v4866
    %v4887 = vunpack.c.l.b16 %v4867
    %v4888 = vunpack.c.l.b16 %v4868
    %v4889 = vunpack.c.l.b16 %v4869
    %v4890 = vunpack.c.l.b16 %v4870
    %v4891 = vpack.c.b16 %v4884, %v4883
    %v4892 = vpack.c.b16 %v4886, %v4885
    %v4893 = vpack.c.b16 %v4888, %v4887
    %v4894 = vpack.c.b16 %v4890, %v4889
    %v4900 = vsel %vm188, %v4854, 0
    %v4903 = vsel %vm188, %v4855, 0
    %v4906 = vsel %vm188, %v4856, 0
    %v4909 = vsel %vm188, %v4857, 0
    %v4912 = vsel %vm188, %v4858, 0
    %v4915 = vsel %vm188, %v4859, 0
    %v4918 = vsel %vm188, %v4860, 0
    %v4921 = vsel %vm188, %v4861, 0
    %4923 = vmatprep.subr.bf16.mxu0 0
    %4924 = vmatpush1.bf16.msra.mxu0 %v4891
    %4925 = vmatprep.subr.bf16.mxu0 0
    %4926 = vmatpush1.bf16.msra.mxu0 %v4892
    %4927 = vmatprep.subr.bf16.mxu0 0
    %4928 = vmatpush1.bf16.msra.mxu0 %v4893
    %4929 = vmatprep.subr.bf16.mxu0 0
    %4930 = vmatpush1.bf16.msra.mxu0 %v4894
    %4931 = vmatprep.subr.bf16.mxu0 0
    %4932 = vmatpush1.bf16.msra.mxu0 0
    %4933 = vmatprep.subr.bf16.mxu0 0
    %4934 = vmatpush1.bf16.msra.mxu0 0
    %4935 = vmatprep.subr.bf16.mxu0 0
    %4936 = vmatpush1.bf16.msra.mxu0 0
    %4937 = vmatprep.subr.bf16.mxu0 0
    %4938 = vmatpush1.bf16.msra.mxu0 0
    %4939 = vmatprep.subr.bf16.mxu0 0
    %4940 = vmatpush1.bf16.msra.mxu0 0
    %4941 = vmatprep.subr.bf16.mxu0 0
    %4942 = vmatpush1.bf16.msra.mxu0 0
    %4943 = vmatprep.subr.bf16.mxu0 0
    %4944 = vmatpush1.bf16.msra.mxu0 0
    %4945 = vmatprep.subr.bf16.mxu0 0
    %4946 = vmatpush1.bf16.msra.mxu0 0
    %4947 = vmatprep.subr.bf16.mxu0 0
    %4948 = vmatpush1.bf16.msra.mxu0 0
    %4949 = vmatprep.subr.bf16.mxu0 0
    %4950 = vmatpush1.bf16.msra.mxu0 0
    %4951 = vmatprep.subr.bf16.mxu0 0
    %4952 = vmatpush1.bf16.msra.mxu0 0
    %4953 = vmatprep.subr.bf16.mxu0 0
    %4954 = vmatpush1.bf16.msra.mxu0 0
    %4955 = vmatprep.mubr.bf16.mxu0 0
    %4956 = vmatmul.mubr.bf16.gmra.mrb[0].mxu0 %v4900
    %v4957 = vpop.f32.mrb[0].mxu0
    %v4958 = vadd.f32 %v4874, %v4957
    %v4959 = vpop.f32.mrb[0].mxu0
    %v4960 = vpop.f32.mrb[0].mxu0
    %v4961 = vadd.f32 %v4874, %v4960
    %v4962 = vpop.f32.mrb[0].mxu0
    %4963 = vmatprep.mubr.bf16.mxu0 0
    %4964 = vmatmul.mubr.bf16.gmra.mrb[0].mxu0 %v4903
    %v4965 = vpop.f32.mrb[0].mxu0
    %v4966 = vadd.f32 %v4874, %v4965
    %v4967 = vpop.f32.mrb[0].mxu0
    %v4968 = vpop.f32.mrb[0].mxu0
    %v4969 = vadd.f32 %v4874, %v4968
    %v4970 = vpop.f32.mrb[0].mxu0
    %4971 = vmatprep.mubr.bf16.mxu0 0
    %4972 = vmatmul.mubr.bf16.gmra.mrb[0].mxu0 %v4906
    %v4973 = vpop.f32.mrb[0].mxu0
    %v4974 = vadd.f32 %v4874, %v4973
    %v4975 = vpop.f32.mrb[0].mxu0
    %v4976 = vpop.f32.mrb[0].mxu0
    %v4977 = vadd.f32 %v4874, %v4976
    %v4978 = vpop.f32.mrb[0].mxu0
    %4979 = vmatprep.mubr.bf16.mxu0 0
    %4980 = vmatmul.mubr.bf16.gmra.mrb[0].mxu0 %v4909
    %v4981 = vpop.f32.mrb[0].mxu0
    %v4982 = vadd.f32 %v4874, %v4981
    %v4983 = vpop.f32.mrb[0].mxu0
    %v4984 = vpop.f32.mrb[0].mxu0
    %v4985 = vadd.f32 %v4874, %v4984
    %v4986 = vpop.f32.mrb[0].mxu0
    %4987 = vmatprep.mubr.bf16.mxu0 0
    %4988 = vmatmul.mubr.bf16.gmra.mrb[0].mxu0 %v4912
    %v4989 = vpop.f32.mrb[0].mxu0
    %v4990 = vadd.f32 %v4874, %v4989
    %v4991 = vpop.f32.mrb[0].mxu0
    %v4992 = vpop.f32.mrb[0].mxu0
    %v4993 = vadd.f32 %v4874, %v4992
    %v4994 = vpop.f32.mrb[0].mxu0
    %4995 = vmatprep.mubr.bf16.mxu0 0
    %4996 = vmatmul.mubr.bf16.gmra.mrb[0].mxu0 %v4915
    %v4997 = vpop.f32.mrb[0].mxu0
    %v4998 = vadd.f32 %v4874, %v4997
    %v4999 = vpop.f32.mrb[0].mxu0
    %v5000 = vpop.f32.mrb[0].mxu0
    %v5001 = vadd.f32 %v4874, %v5000
    %v5002 = vpop.f32.mrb[0].mxu0
    %5003 = vmatprep.mubr.bf16.mxu0 0
    %5004 = vmatmul.mubr.bf16.gmra.mrb[0].mxu0 %v4918
    %v5005 = vpop.f32.mrb[0].mxu0
    %v5006 = vadd.f32 %v4874, %v5005
    %v5007 = vpop.f32.mrb[0].mxu0
    %v5008 = vpop.f32.mrb[0].mxu0
    %v5009 = vadd.f32 %v4874, %v5008
    %v5010 = vpop.f32.mrb[0].mxu0
    %5011 = vmatprep.mubr.bf16.mxu0 0
    %5012 = vmatmul.mubr.bf16.gmra.mrb[0].mxu0 %v4921
    %v5013 = vpop.f32.mrb[0].mxu0
    %v5014 = vadd.f32 %v4874, %v5013
    %v5015 = vpop.f32.mrb[0].mxu0
    %v5016 = vpop.f32.mrb[0].mxu0
    %v5017 = vadd.f32 %v4874, %v5016
    %v5018 = vpop.f32.mrb[0].mxu0
    %5019 = vdwg.mxu0
    %v5020 = vadd.f32 %v4030, %v4958
    %v5021 = vadd.f32 %v4031, %v4961
    %v5022 = vadd.f32 %v4032, %v4966
    %v5023 = vadd.f32 %v4033, %v4969
    %v5024 = vadd.f32 %v4034, %v4974
    %v5025 = vadd.f32 %v4035, %v4977
    %v5026 = vadd.f32 %v4036, %v4982
    %v5027 = vadd.f32 %v4037, %v4985
    %v5028 = vadd.f32 %v4038, %v4990
    %v5029 = vadd.f32 %v4039, %v4993
    %v5030 = vadd.f32 %v4040, %v4998
    %v5031 = vadd.f32 %v4041, %v5001
    %v5032 = vadd.f32 %v4042, %v5006
    %v5033 = vadd.f32 %v4043, %v5009
    %v5034 = vadd.f32 %v4044, %v5014
    %v5035 = vadd.f32 %v4045, %v5017
    %v5036 = vsel %vm188, %v5020, 0.0
    %5037 = vadd.xlane.f32.xlu0 %v5036
    %v5038 = vpop.xlane.xlu0 %5037
    %v5039 = vsel %vm188, %v5021, 0.0
    %5040 = vadd.xlane.f32.xlu0 %v5039
    %v5041 = vpop.xlane.xlu0 %5040
    %v5042 = vsel %vm188, %v5022, 0.0
    %5043 = vadd.xlane.f32.xlu0 %v5042
    %v5044 = vpop.xlane.xlu0 %5043
    %v5045 = vsel %vm188, %v5023, 0.0
    %5046 = vadd.xlane.f32.xlu0 %v5045
    %v5047 = vpop.xlane.xlu0 %5046
    %v5048 = vsel %vm188, %v5024, 0.0
    %5049 = vadd.xlane.f32.xlu0 %v5048
    %v5050 = vpop.xlane.xlu0 %5049
    %v5051 = vsel %vm188, %v5025, 0.0
    %5052 = vadd.xlane.f32.xlu0 %v5051
    %v5053 = vpop.xlane.xlu0 %5052
    %v5054 = vsel %vm188, %v5026, 0.0
    %5055 = vadd.xlane.f32.xlu0 %v5054
    %v5056 = vpop.xlane.xlu0 %5055
    %v5057 = vsel %vm188, %v5027, 0.0
    %5058 = vadd.xlane.f32.xlu0 %v5057
    %v5059 = vpop.xlane.xlu0 %5058
    %v5060 = vsel %vm188, %v5028, 0.0
    %5061 = vadd.xlane.f32.xlu0 %v5060
    %v5062 = vpop.xlane.xlu0 %5061
    %v5063 = vsel %vm188, %v5029, 0.0
    %5064 = vadd.xlane.f32.xlu0 %v5063
    %v5065 = vpop.xlane.xlu0 %5064
    %v5066 = vsel %vm188, %v5030, 0.0
    %5067 = vadd.xlane.f32.xlu0 %v5066
    %v5068 = vpop.xlane.xlu0 %5067
    %v5069 = vsel %vm188, %v5031, 0.0
    %5070 = vadd.xlane.f32.xlu0 %v5069
    %v5071 = vpop.xlane.xlu0 %5070
    %v5072 = vsel %vm188, %v5032, 0.0
    %5073 = vadd.xlane.f32.xlu0 %v5072
    %v5074 = vpop.xlane.xlu0 %5073
    %v5075 = vsel %vm188, %v5033, 0.0
    %5076 = vadd.xlane.f32.xlu0 %v5075
    %v5077 = vpop.xlane.xlu0 %5076
    %v5078 = vsel %vm188, %v5034, 0.0
    %5079 = vadd.xlane.f32.xlu0 %v5078
    %v5080 = vpop.xlane.xlu0 %5079
    %v5081 = vsel %vm188, %v5035, 0.0
    %5082 = vadd.xlane.f32.xlu0 %v5081
    %v5083 = vpop.xlane.xlu0 %5082
    %v5084 = vmul.f32 %v5038, %v1369
    %v5085 = vmul.f32 %v5041, %v1369
    %v5086 = vmul.f32 %v5044, %v1369
    %v5087 = vmul.f32 %v5047, %v1369
    %v5088 = vmul.f32 %v5050, %v1369
    %v5089 = vmul.f32 %v5053, %v1369
    %v5090 = vmul.f32 %v5056, %v1369
    %v5091 = vmul.f32 %v5059, %v1369
    %v5092 = vmul.f32 %v5062, %v1369
    %v5093 = vmul.f32 %v5065, %v1369
    %v5094 = vmul.f32 %v5068, %v1369
    %v5095 = vmul.f32 %v5071, %v1369
    %v5096 = vmul.f32 %v5074, %v1369
    %v5097 = vmul.f32 %v5077, %v1369
    %v5098 = vmul.f32 %v5080, %v1369
    %v5099 = vmul.f32 %v5083, %v1369
    %v5100 = vsub.f32 %v5020, %v5084
    %v5101 = vsub.f32 %v5021, %v5085
    %v5102 = vsub.f32 %v5022, %v5086
    %v5103 = vsub.f32 %v5023, %v5087
    %v5104 = vsub.f32 %v5024, %v5088
    %v5105 = vsub.f32 %v5025, %v5089
    %v5106 = vsub.f32 %v5026, %v5090
    %v5107 = vsub.f32 %v5027, %v5091
    %v5108 = vsub.f32 %v5028, %v5092
    %v5109 = vsub.f32 %v5029, %v5093
    %v5110 = vsub.f32 %v5030, %v5094
    %v5111 = vsub.f32 %v5031, %v5095
    %v5112 = vsub.f32 %v5032, %v5096
    %v5113 = vsub.f32 %v5033, %v5097
    %v5114 = vsub.f32 %v5034, %v5098
    %v5115 = vsub.f32 %v5035, %v5099
    %v5116 = vmul.f32 %v5100, %v5100
    %v5117 = vmul.f32 %v5101, %v5101
    %v5118 = vmul.f32 %v5102, %v5102
    %v5119 = vmul.f32 %v5103, %v5103
    %v5120 = vmul.f32 %v5104, %v5104
    %v5121 = vmul.f32 %v5105, %v5105
    %v5122 = vmul.f32 %v5106, %v5106
    %v5123 = vmul.f32 %v5107, %v5107
    %v5124 = vmul.f32 %v5108, %v5108
    %v5125 = vmul.f32 %v5109, %v5109
    %v5126 = vmul.f32 %v5110, %v5110
    %v5127 = vmul.f32 %v5111, %v5111
    %v5128 = vmul.f32 %v5112, %v5112
    %v5129 = vmul.f32 %v5113, %v5113
    %v5130 = vmul.f32 %v5114, %v5114
    %v5131 = vmul.f32 %v5115, %v5115
    %v5132 = vsel %vm188, %v5116, 0.0
    %5133 = vadd.xlane.f32.xlu0 %v5132
    %v5134 = vpop.xlane.xlu0 %5133
    %v5135 = vsel %vm188, %v5117, 0.0
    %5136 = vadd.xlane.f32.xlu0 %v5135
    %v5137 = vpop.xlane.xlu0 %5136
    %v5138 = vsel %vm188, %v5118, 0.0
    %5139 = vadd.xlane.f32.xlu0 %v5138
    %v5140 = vpop.xlane.xlu0 %5139
    %v5141 = vsel %vm188, %v5119, 0.0
    %5142 = vadd.xlane.f32.xlu0 %v5141
    %v5143 = vpop.xlane.xlu0 %5142
    %v5144 = vsel %vm188, %v5120, 0.0
    %5145 = vadd.xlane.f32.xlu0 %v5144
    %v5146 = vpop.xlane.xlu0 %5145
    %v5147 = vsel %vm188, %v5121, 0.0
    %5148 = vadd.xlane.f32.xlu0 %v5147
    %v5149 = vpop.xlane.xlu0 %5148
    %v5150 = vsel %vm188, %v5122, 0.0
    %5151 = vadd.xlane.f32.xlu0 %v5150
    %v5152 = vpop.xlane.xlu0 %5151
    %v5153 = vsel %vm188, %v5123, 0.0
    %5154 = vadd.xlane.f32.xlu0 %v5153
    %v5155 = vpop.xlane.xlu0 %5154
    %v5156 = vsel %vm188, %v5124, 0.0
    %5157 = vadd.xlane.f32.xlu0 %v5156
    %v5158 = vpop.xlane.xlu0 %5157
    %v5159 = vsel %vm188, %v5125, 0.0
    %5160 = vadd.xlane.f32.xlu0 %v5159
    %v5161 = vpop.xlane.xlu0 %5160
    %v5162 = vsel %vm188, %v5126, 0.0
    %5163 = vadd.xlane.f32.xlu0 %v5162
    %v5164 = vpop.xlane.xlu0 %5163
    %v5165 = vsel %vm188, %v5127, 0.0
    %5166 = vadd.xlane.f32.xlu0 %v5165
    %v5167 = vpop.xlane.xlu0 %5166
    %v5168 = vsel %vm188, %v5128, 0.0
    %5169 = vadd.xlane.f32.xlu0 %v5168
    %v5170 = vpop.xlane.xlu0 %5169
    %v5171 = vsel %vm188, %v5129, 0.0
    %5172 = vadd.xlane.f32.xlu0 %v5171
    %v5173 = vpop.xlane.xlu0 %5172
    %v5174 = vsel %vm188, %v5130, 0.0
    %5175 = vadd.xlane.f32.xlu0 %v5174
    %v5176 = vpop.xlane.xlu0 %5175
    %v5177 = vsel %vm188, %v5131, 0.0
    %5178 = vadd.xlane.f32.xlu0 %v5177
    %v5179 = vpop.xlane.xlu0 %5178
    %v5180 = vmul.f32 %v5134, %v1369
    %v5181 = vmul.f32 %v5137, %v1369
    %v5182 = vmul.f32 %v5140, %v1369
    %v5183 = vmul.f32 %v5143, %v1369
    %v5184 = vmul.f32 %v5146, %v1369
    %v5185 = vmul.f32 %v5149, %v1369
    %v5186 = vmul.f32 %v5152, %v1369
    %v5187 = vmul.f32 %v5155, %v1369
    %v5188 = vmul.f32 %v5158, %v1369
    %v5189 = vmul.f32 %v5161, %v1369
    %v5190 = vmul.f32 %v5164, %v1369
    %v5191 = vmul.f32 %v5167, %v1369
    %v5192 = vmul.f32 %v5170, %v1369
    %v5193 = vmul.f32 %v5173, %v1369
    %v5194 = vmul.f32 %v5176, %v1369
    %v5195 = vmul.f32 %v5179, %v1369
    %v5196 = vadd.f32 %v5180, 1e-05
    %v5197 = vadd.f32 %v5181, 1e-05
    %v5198 = vadd.f32 %v5182, 1e-05
    %v5199 = vadd.f32 %v5183, 1e-05
    %v5200 = vadd.f32 %v5184, 1e-05
    %v5201 = vadd.f32 %v5185, 1e-05
    %v5202 = vadd.f32 %v5186, 1e-05
    %v5203 = vadd.f32 %v5187, 1e-05
    %v5204 = vadd.f32 %v5188, 1e-05
    %v5205 = vadd.f32 %v5189, 1e-05
    %v5206 = vadd.f32 %v5190, 1e-05
    %v5207 = vadd.f32 %v5191, 1e-05
    %v5208 = vadd.f32 %v5192, 1e-05
    %v5209 = vadd.f32 %v5193, 1e-05
    %v5210 = vadd.f32 %v5194, 1e-05
    %v5211 = vadd.f32 %v5195, 1e-05
    %v5212 = vrsqrt.pop %v5196
    %v5213 = vrsqrt.pop %v5197
    %v5214 = vrsqrt.pop %v5198
    %v5215 = vrsqrt.pop %v5199
    %v5216 = vrsqrt.pop %v5200
    %v5217 = vrsqrt.pop %v5201
    %v5218 = vrsqrt.pop %v5202
    %v5219 = vrsqrt.pop %v5203
    %v5220 = vrsqrt.pop %v5204
    %v5221 = vrsqrt.pop %v5205
    %v5222 = vrsqrt.pop %v5206
    %v5223 = vrsqrt.pop %v5207
    %v5224 = vrsqrt.pop %v5208
    %v5225 = vrsqrt.pop %v5209
    %v5226 = vrsqrt.pop %v5210
    %v5227 = vrsqrt.pop %v5211
    %v5228 = vmul.f32 %v5100, %v5212
    %v5229 = vmul.f32 %v5101, %v5213
    %v5230 = vmul.f32 %v5102, %v5214
    %v5231 = vmul.f32 %v5103, %v5215
    %v5232 = vmul.f32 %v5104, %v5216
    %v5233 = vmul.f32 %v5105, %v5217
    %v5234 = vmul.f32 %v5106, %v5218
    %v5235 = vmul.f32 %v5107, %v5219
    %v5236 = vmul.f32 %v5108, %v5220
    %v5237 = vmul.f32 %v5109, %v5221
    %v5238 = vmul.f32 %v5110, %v5222
    %v5239 = vmul.f32 %v5111, %v5223
    %v5240 = vmul.f32 %v5112, %v5224
    %v5241 = vmul.f32 %v5113, %v5225
    %v5242 = vmul.f32 %v5114, %v5226
    %v5243 = vmul.f32 %v5115, %v5227
    %v5244 = vlaneseq
    %v5245 = vshrl.u32 %v5244, 7
    %v5246 = vsub.s32 4, %v5245
    %v5247 = vrot.slane %v4047, %v5246
    %v5248 = vmul.f32 %v5228, %v5247
    %v5249 = vmul.f32 %v5229, %v5247
    %v5250 = vmul.f32 %v5230, %v5247
    %v5251 = vmul.f32 %v5231, %v5247
    %v5252 = vmul.f32 %v5232, %v5247
    %v5253 = vmul.f32 %v5233, %v5247
    %v5254 = vmul.f32 %v5234, %v5247
    %v5255 = vmul.f32 %v5235, %v5247
    %v5256 = vmul.f32 %v5236, %v5247
    %v5257 = vmul.f32 %v5237, %v5247
    %v5258 = vmul.f32 %v5238, %v5247
    %v5259 = vmul.f32 %v5239, %v5247
    %v5260 = vmul.f32 %v5240, %v5247
    %v5261 = vmul.f32 %v5241, %v5247
    %v5262 = vmul.f32 %v5242, %v5247
    %v5263 = vmul.f32 %v5243, %v5247
    %v5264 = vlaneseq
    %v5265 = vshrl.u32 %v5264, 7
    %v5266 = vsub.s32 5, %v5265
    %v5267 = vrot.slane %v4047, %v5266
    %v5268 = vadd.f32 %v5248, %v5267
    %v5269 = vadd.f32 %v5249, %v5267
    %v5270 = vadd.f32 %v5250, %v5267
    %v5271 = vadd.f32 %v5251, %v5267
    %v5272 = vadd.f32 %v5252, %v5267
    %v5273 = vadd.f32 %v5253, %v5267
    %v5274 = vadd.f32 %v5254, %v5267
    %v5275 = vadd.f32 %v5255, %v5267
    %v5276 = vadd.f32 %v5256, %v5267
    %v5277 = vadd.f32 %v5257, %v5267
    %v5278 = vadd.f32 %v5258, %v5267
    %v5279 = vadd.f32 %v5259, %v5267
    %v5280 = vadd.f32 %v5260, %v5267
    %v5281 = vadd.f32 %v5261, %v5267
    %v5282 = vadd.f32 %v5262, %v5267
    %v5283 = vadd.f32 %v5263, %v5267
    %v5284 = vpack.c.bf16 %v5269, %v5268
    %v5285 = vpack.c.bf16 %v5271, %v5270
    %v5286 = vpack.c.bf16 %v5273, %v5272
    %v5287 = vpack.c.bf16 %v5275, %v5274
    %v5288 = vpack.c.bf16 %v5277, %v5276
    %v5289 = vpack.c.bf16 %v5279, %v5278
    %v5290 = vpack.c.bf16 %v5281, %v5280
    %v5291 = vpack.c.bf16 %v5283, %v5282
    %s5292 = scalar_lea.vmem [#allocation7], 64
    %v5293 = vld [vmem:[%s5292] sm:$0xf]
    %v5294 = vld [vmem:[%s5292 + $0x4] sm:$0xf]
    %v5295 = vld [vmem:[%s5292 + $0x8] sm:$0xf]
    %v5296 = vld [vmem:[%s5292 + $0xc] sm:$0xf]
    %v5297 = vld [vmem:[%s5292 + $0x10] sm:$0xf]
    %v5298 = vld [vmem:[%s5292 + $0x14] sm:$0xf]
    %v5299 = vld [vmem:[%s5292 + $0x18] sm:$0xf]
    %v5300 = vld [vmem:[%s5292 + $0x1c] sm:$0xf]
    %v5301 = vlaneseq
    %v5302 = vshrl.u32 %v5301, 7
    %v5303 = vsub.s32 0, %v5302
    %v5304 = vrot.slane %v4050, %v5303
    %v5313 = vunpack.c.l.b16 %v5293
    %v5314 = vunpack.c.l.b16 %v5294
    %v5315 = vunpack.c.l.b16 %v5295
    %v5316 = vunpack.c.l.b16 %v5296
    %v5317 = vunpack.c.l.b16 %v5297
    %v5318 = vunpack.c.l.b16 %v5298
    %v5319 = vunpack.c.l.b16 %v5299
    %v5320 = vunpack.c.l.b16 %v5300
    %v5321 = vpack.c.b16 %v5314, %v5313
    %v5322 = vpack.c.b16 %v5316, %v5315
    %v5323 = vpack.c.b16 %v5318, %v5317
    %v5324 = vpack.c.b16 %v5320, %v5319
    %v5330 = vsel %vm188, %v5284, 0
    %v5333 = vsel %vm188, %v5285, 0
    %v5336 = vsel %vm188, %v5286, 0
    %v5339 = vsel %vm188, %v5287, 0
    %v5342 = vsel %vm188, %v5288, 0
    %v5345 = vsel %vm188, %v5289, 0
    %v5348 = vsel %vm188, %v5290, 0
    %v5351 = vsel %vm188, %v5291, 0
    %5353 = vmatprep.subr.bf16.mxu0 0
    %5354 = vmatpush1.bf16.msra.mxu0 %v5321
    %5355 = vmatprep.subr.bf16.mxu0 0
    %5356 = vmatpush1.bf16.msra.mxu0 %v5322
    %5357 = vmatprep.subr.bf16.mxu0 0
    %5358 = vmatpush1.bf16.msra.mxu0 %v5323
    %5359 = vmatprep.subr.bf16.mxu0 0
    %5360 = vmatpush1.bf16.msra.mxu0 %v5324
    %5361 = vmatprep.subr.bf16.mxu0 0
    %5362 = vmatpush1.bf16.msra.mxu0 0
    %5363 = vmatprep.subr.bf16.mxu0 0
    %5364 = vmatpush1.bf16.msra.mxu0 0
    %5365 = vmatprep.subr.bf16.mxu0 0
    %5366 = vmatpush1.bf16.msra.mxu0 0
    %5367 = vmatprep.subr.bf16.mxu0 0
    %5368 = vmatpush1.bf16.msra.mxu0 0
    %5369 = vmatprep.subr.bf16.mxu0 0
    %5370 = vmatpush1.bf16.msra.mxu0 0
    %5371 = vmatprep.subr.bf16.mxu0 0
    %5372 = vmatpush1.bf16.msra.mxu0 0
    %5373 = vmatprep.subr.bf16.mxu0 0
    %5374 = vmatpush1.bf16.msra.mxu0 0
    %5375 = vmatprep.subr.bf16.mxu0 0
    %5376 = vmatpush1.bf16.msra.mxu0 0
    %5377 = vmatprep.subr.bf16.mxu0 0
    %5378 = vmatpush1.bf16.msra.mxu0 0
    %5379 = vmatprep.subr.bf16.mxu0 0
    %5380 = vmatpush1.bf16.msra.mxu0 0
    %5381 = vmatprep.subr.bf16.mxu0 0
    %5382 = vmatpush1.bf16.msra.mxu0 0
    %5383 = vmatprep.subr.bf16.mxu0 0
    %5384 = vmatpush1.bf16.msra.mxu0 0
    %5385 = vmatprep.mubr.bf16.mxu0 0
    %5386 = vmatmul.mubr.bf16.gmra.mrb[0].mxu0 %v5330
    %v5387 = vpop.f32.mrb[0].mxu0
    %v5388 = vadd.f32 %v5304, %v5387
    %v5389 = vpop.f32.mrb[0].mxu0
    %v5390 = vpop.f32.mrb[0].mxu0
    %v5391 = vadd.f32 %v5304, %v5390
    %v5392 = vpop.f32.mrb[0].mxu0
    %5393 = vmatprep.mubr.bf16.mxu0 0
    %5394 = vmatmul.mubr.bf16.gmra.mrb[0].mxu0 %v5333
    %v5395 = vpop.f32.mrb[0].mxu0
    %v5396 = vadd.f32 %v5304, %v5395
    %v5397 = vpop.f32.mrb[0].mxu0
    %v5398 = vpop.f32.mrb[0].mxu0
    %v5399 = vadd.f32 %v5304, %v5398
    %v5400 = vpop.f32.mrb[0].mxu0
    %5401 = vmatprep.mubr.bf16.mxu0 0
    %5402 = vmatmul.mubr.bf16.gmra.mrb[0].mxu0 %v5336
    %v5403 = vpop.f32.mrb[0].mxu0
    %v5404 = vadd.f32 %v5304, %v5403
    %v5405 = vpop.f32.mrb[0].mxu0
    %v5406 = vpop.f32.mrb[0].mxu0
    %v5407 = vadd.f32 %v5304, %v5406
    %v5408 = vpop.f32.mrb[0].mxu0
    %5409 = vmatprep.mubr.bf16.mxu0 0
    %5410 = vmatmul.mubr.bf16.gmra.mrb[0].mxu0 %v5339
    %v5411 = vpop.f32.mrb[0].mxu0
    %v5412 = vadd.f32 %v5304, %v5411
    %v5413 = vpop.f32.mrb[0].mxu0
    %v5414 = vpop.f32.mrb[0].mxu0
    %v5415 = vadd.f32 %v5304, %v5414
    %v5416 = vpop.f32.mrb[0].mxu0
    %5417 = vmatprep.mubr.bf16.mxu0 0
    %5418 = vmatmul.mubr.bf16.gmra.mrb[0].mxu0 %v5342
    %v5419 = vpop.f32.mrb[0].mxu0
    %v5420 = vadd.f32 %v5304, %v5419
    %v5421 = vpop.f32.mrb[0].mxu0
    %v5422 = vpop.f32.mrb[0].mxu0
    %v5423 = vadd.f32 %v5304, %v5422
    %v5424 = vpop.f32.mrb[0].mxu0
    %5425 = vmatprep.mubr.bf16.mxu0 0
    %5426 = vmatmul.mubr.bf16.gmra.mrb[0].mxu0 %v5345
    %v5427 = vpop.f32.mrb[0].mxu0
    %v5428 = vadd.f32 %v5304, %v5427
    %v5429 = vpop.f32.mrb[0].mxu0
    %v5430 = vpop.f32.mrb[0].mxu0
    %v5431 = vadd.f32 %v5304, %v5430
    %v5432 = vpop.f32.mrb[0].mxu0
    %5433 = vmatprep.mubr.bf16.mxu0 0
    %5434 = vmatmul.mubr.bf16.gmra.mrb[0].mxu0 %v5348
    %v5435 = vpop.f32.mrb[0].mxu0
    %v5436 = vadd.f32 %v5304, %v5435
    %v5437 = vpop.f32.mrb[0].mxu0
    %v5438 = vpop.f32.mrb[0].mxu0
    %v5439 = vadd.f32 %v5304, %v5438
    %v5440 = vpop.f32.mrb[0].mxu0
    %5441 = vmatprep.mubr.bf16.mxu0 0
    %5442 = vmatmul.mubr.bf16.gmra.mrb[0].mxu0 %v5351
    %v5443 = vpop.f32.mrb[0].mxu0
    %v5444 = vadd.f32 %v5304, %v5443
    %v5445 = vpop.f32.mrb[0].mxu0
    %v5446 = vpop.f32.mrb[0].mxu0
    %v5447 = vadd.f32 %v5304, %v5446
    %v5448 = vpop.f32.mrb[0].mxu0
    %5449 = vdwg.mxu0
    %v5450 = vmax.f32 %v5388, 0.0
    %v5451 = vmax.f32 %v5391, 0.0
    %v5452 = vmax.f32 %v5396, 0.0
    %v5453 = vmax.f32 %v5399, 0.0
    %v5454 = vmax.f32 %v5404, 0.0
    %v5455 = vmax.f32 %v5407, 0.0
    %v5456 = vmax.f32 %v5412, 0.0
    %v5457 = vmax.f32 %v5415, 0.0
    %v5458 = vmax.f32 %v5420, 0.0
    %v5459 = vmax.f32 %v5423, 0.0
    %v5460 = vmax.f32 %v5428, 0.0
    %v5461 = vmax.f32 %v5431, 0.0
    %v5462 = vmax.f32 %v5436, 0.0
    %v5463 = vmax.f32 %v5439, 0.0
    %v5464 = vmax.f32 %v5444, 0.0
    %v5465 = vmax.f32 %v5447, 0.0
    %v5466 = vpack.c.bf16 %v5451, %v5450
    %v5467 = vpack.c.bf16 %v5453, %v5452
    %v5468 = vpack.c.bf16 %v5455, %v5454
    %v5469 = vpack.c.bf16 %v5457, %v5456
    %v5470 = vpack.c.bf16 %v5459, %v5458
    %v5471 = vpack.c.bf16 %v5461, %v5460
    %v5472 = vpack.c.bf16 %v5463, %v5462
    %v5473 = vpack.c.bf16 %v5465, %v5464
    %s5474 = scalar_lea.vmem %s6, 128
    %v5475 = vld [vmem:[%s5474] sm:$0xf]
    %v5476 = vld [vmem:[%s5474 + $0x4] sm:$0xf]
    %v5477 = vld [vmem:[%s5474 + $0x8] sm:$0xf]
    %v5478 = vld [vmem:[%s5474 + $0xc] sm:$0xf]
    %v5479 = vld [vmem:[%s5474 + $0x10] sm:$0xf]
    %v5480 = vld [vmem:[%s5474 + $0x14] sm:$0xf]
    %v5481 = vld [vmem:[%s5474 + $0x18] sm:$0xf]
    %v5482 = vld [vmem:[%s5474 + $0x1c] sm:$0xf]
    %v5483 = vld [vmem:[%s5474 + $0x20] sm:$0xf]
    %v5484 = vld [vmem:[%s5474 + $0x24] sm:$0xf]
    %v5485 = vld [vmem:[%s5474 + $0x28] sm:$0xf]
    %v5486 = vld [vmem:[%s5474 + $0x2c] sm:$0xf]
    %v5487 = vld [vmem:[%s5474 + $0x30] sm:$0xf]
    %v5488 = vld [vmem:[%s5474 + $0x34] sm:$0xf]
    %v5489 = vld [vmem:[%s5474 + $0x38] sm:$0xf]
    %v5490 = vld [vmem:[%s5474 + $0x3c] sm:$0xf]
    %v5491 = vlaneseq
    %v5492 = vshrl.u32 %v5491, 7
    %v5493 = vsub.s32 0, %v5492
    %v5494 = vrot.slane %v4048, %v5493
    %v5511 = vunpack.c.l.b16 %v5475
    %v5512 = vunpack.c.l.b16 %v5476
    %v5513 = vunpack.c.l.b16 %v5477
    %v5514 = vunpack.c.l.b16 %v5478
    %v5515 = vunpack.c.l.b16 %v5479
    %v5516 = vunpack.c.l.b16 %v5480
    %v5517 = vunpack.c.l.b16 %v5481
    %v5518 = vunpack.c.l.b16 %v5482
    %v5519 = vunpack.c.l.b16 %v5483
    %v5520 = vunpack.c.l.b16 %v5484
    %v5521 = vunpack.c.l.b16 %v5485
    %v5522 = vunpack.c.l.b16 %v5486
    %v5523 = vunpack.c.l.b16 %v5487
    %v5524 = vunpack.c.l.b16 %v5488
    %v5525 = vunpack.c.l.b16 %v5489
    %v5526 = vunpack.c.l.b16 %v5490
    %v5527 = vpack.c.b16 %v5512, %v5511
    %v5528 = vpack.c.b16 %v5514, %v5513
    %v5529 = vpack.c.b16 %v5516, %v5515
    %v5530 = vpack.c.b16 %v5518, %v5517
    %v5531 = vpack.c.b16 %v5520, %v5519
    %v5532 = vpack.c.b16 %v5522, %v5521
    %v5533 = vpack.c.b16 %v5524, %v5523
    %v5534 = vpack.c.b16 %v5526, %v5525
    %5543 = vmatprep.subr.bf16.mxu0 0
    %5544 = vmatpush1.bf16.msra.mxu0 %v5527
    %5545 = vmatprep.subr.bf16.mxu0 0
    %5546 = vmatpush1.bf16.msra.mxu0 %v5528
    %5547 = vmatprep.subr.bf16.mxu0 0
    %5548 = vmatpush1.bf16.msra.mxu0 %v5529
    %5549 = vmatprep.subr.bf16.mxu0 0
    %5550 = vmatpush1.bf16.msra.mxu0 %v5530
    %5551 = vmatprep.subr.bf16.mxu0 0
    %5552 = vmatpush1.bf16.msra.mxu0 %v5531
    %5553 = vmatprep.subr.bf16.mxu0 0
    %5554 = vmatpush1.bf16.msra.mxu0 %v5532
    %5555 = vmatprep.subr.bf16.mxu0 0
    %5556 = vmatpush1.bf16.msra.mxu0 %v5533
    %5557 = vmatprep.subr.bf16.mxu0 0
    %5558 = vmatpush1.bf16.msra.mxu0 %v5534
    %5559 = vmatprep.subr.bf16.mxu0 0
    %5560 = vmatpush1.bf16.msra.mxu0 0
    %5561 = vmatprep.subr.bf16.mxu0 0
    %5562 = vmatpush1.bf16.msra.mxu0 0
    %5563 = vmatprep.subr.bf16.mxu0 0
    %5564 = vmatpush1.bf16.msra.mxu0 0
    %5565 = vmatprep.subr.bf16.mxu0 0
    %5566 = vmatpush1.bf16.msra.mxu0 0
    %5567 = vmatprep.subr.bf16.mxu0 0
    %5568 = vmatpush1.bf16.msra.mxu0 0
    %5569 = vmatprep.subr.bf16.mxu0 0
    %5570 = vmatpush1.bf16.msra.mxu0 0
    %5571 = vmatprep.subr.bf16.mxu0 0
    %5572 = vmatpush1.bf16.msra.mxu0 0
    %5573 = vmatprep.subr.bf16.mxu0 0
    %5574 = vmatpush1.bf16.msra.mxu0 0
    %5575 = vmatprep.mubr.bf16.mxu0 0
    %5576 = vmatmul.mubr.bf16.gmra.mrb[0].mxu0 %v5466
    %v5577 = vpop.f32.mrb[0].mxu0
    %v5578 = vadd.f32 %v5494, %v5577
    %v5579 = vpop.f32.mrb[0].mxu0
    %v5580 = vpop.f32.mrb[0].mxu0
    %v5581 = vadd.f32 %v5494, %v5580
    %v5582 = vpop.f32.mrb[0].mxu0
    %5583 = vmatprep.mubr.bf16.mxu0 0
    %5584 = vmatmul.mubr.bf16.gmra.mrb[0].mxu0 %v5467
    %v5585 = vpop.f32.mrb[0].mxu0
    %v5586 = vadd.f32 %v5494, %v5585
    %v5587 = vpop.f32.mrb[0].mxu0
    %v5588 = vpop.f32.mrb[0].mxu0
    %v5589 = vadd.f32 %v5494, %v5588
    %v5590 = vpop.f32.mrb[0].mxu0
    %5591 = vmatprep.mubr.bf16.mxu0 0
    %5592 = vmatmul.mubr.bf16.gmra.mrb[0].mxu0 %v5468
    %v5593 = vpop.f32.mrb[0].mxu0
    %v5594 = vadd.f32 %v5494, %v5593
    %v5595 = vpop.f32.mrb[0].mxu0
    %v5596 = vpop.f32.mrb[0].mxu0
    %v5597 = vadd.f32 %v5494, %v5596
    %v5598 = vpop.f32.mrb[0].mxu0
    %5599 = vmatprep.mubr.bf16.mxu0 0
    %5600 = vmatmul.mubr.bf16.gmra.mrb[0].mxu0 %v5469
    %v5601 = vpop.f32.mrb[0].mxu0
    %v5602 = vadd.f32 %v5494, %v5601
    %v5603 = vpop.f32.mrb[0].mxu0
    %v5604 = vpop.f32.mrb[0].mxu0
    %v5605 = vadd.f32 %v5494, %v5604
    %v5606 = vpop.f32.mrb[0].mxu0
    %5607 = vmatprep.mubr.bf16.mxu0 0
    %5608 = vmatmul.mubr.bf16.gmra.mrb[0].mxu0 %v5470
    %v5609 = vpop.f32.mrb[0].mxu0
    %v5610 = vadd.f32 %v5494, %v5609
    %v5611 = vpop.f32.mrb[0].mxu0
    %v5612 = vpop.f32.mrb[0].mxu0
    %v5613 = vadd.f32 %v5494, %v5612
    %v5614 = vpop.f32.mrb[0].mxu0
    %5615 = vmatprep.mubr.bf16.mxu0 0
    %5616 = vmatmul.mubr.bf16.gmra.mrb[0].mxu0 %v5471
    %v5617 = vpop.f32.mrb[0].mxu0
    %v5618 = vadd.f32 %v5494, %v5617
    %v5619 = vpop.f32.mrb[0].mxu0
    %v5620 = vpop.f32.mrb[0].mxu0
    %v5621 = vadd.f32 %v5494, %v5620
    %v5622 = vpop.f32.mrb[0].mxu0
    %5623 = vmatprep.mubr.bf16.mxu0 0
    %5624 = vmatmul.mubr.bf16.gmra.mrb[0].mxu0 %v5472
    %v5625 = vpop.f32.mrb[0].mxu0
    %v5626 = vadd.f32 %v5494, %v5625
    %v5627 = vpop.f32.mrb[0].mxu0
    %v5628 = vpop.f32.mrb[0].mxu0
    %v5629 = vadd.f32 %v5494, %v5628
    %v5630 = vpop.f32.mrb[0].mxu0
    %5631 = vmatprep.mubr.bf16.mxu0 0
    %5632 = vmatmul.mubr.bf16.gmra.mrb[0].mxu0 %v5473
    %v5633 = vpop.f32.mrb[0].mxu0
    %v5634 = vadd.f32 %v5494, %v5633
    %v5635 = vpop.f32.mrb[0].mxu0
    %v5636 = vpop.f32.mrb[0].mxu0
    %v5637 = vadd.f32 %v5494, %v5636
    %v5638 = vpop.f32.mrb[0].mxu0
    %5639 = vdwg.mxu0
    %v5640 = vadd.f32 %v5268, %v5578
    %v5641 = vadd.f32 %v5269, %v5581
    %v5642 = vadd.f32 %v5270, %v5586
    %v5643 = vadd.f32 %v5271, %v5589
    %v5644 = vadd.f32 %v5272, %v5594
    %v5645 = vadd.f32 %v5273, %v5597
    %v5646 = vadd.f32 %v5274, %v5602
    %v5647 = vadd.f32 %v5275, %v5605
    %v5648 = vadd.f32 %v5276, %v5610
    %v5649 = vadd.f32 %v5277, %v5613
    %v5650 = vadd.f32 %v5278, %v5618
    %v5651 = vadd.f32 %v5279, %v5621
    %v5652 = vadd.f32 %v5280, %v5626
    %v5653 = vadd.f32 %v5281, %v5629
    %v5654 = vadd.f32 %v5282, %v5634
    %v5655 = vadd.f32 %v5283, %v5637
    %v5656 = vsel %vm188, %v5640, 0.0
    %5657 = vadd.xlane.f32.xlu0 %v5656
    %v5658 = vpop.xlane.xlu0 %5657
    %v5659 = vsel %vm188, %v5641, 0.0
    %5660 = vadd.xlane.f32.xlu0 %v5659
    %v5661 = vpop.xlane.xlu0 %5660
    %v5662 = vsel %vm188, %v5642, 0.0
    %5663 = vadd.xlane.f32.xlu0 %v5662
    %v5664 = vpop.xlane.xlu0 %5663
    %v5665 = vsel %vm188, %v5643, 0.0
    %5666 = vadd.xlane.f32.xlu0 %v5665
    %v5667 = vpop.xlane.xlu0 %5666
    %v5668 = vsel %vm188, %v5644, 0.0
    %5669 = vadd.xlane.f32.xlu0 %v5668
    %v5670 = vpop.xlane.xlu0 %5669
    %v5671 = vsel %vm188, %v5645, 0.0
    %5672 = vadd.xlane.f32.xlu0 %v5671
    %v5673 = vpop.xlane.xlu0 %5672
    %v5674 = vsel %vm188, %v5646, 0.0
    %5675 = vadd.xlane.f32.xlu0 %v5674
    %v5676 = vpop.xlane.xlu0 %5675
    %v5677 = vsel %vm188, %v5647, 0.0
    %5678 = vadd.xlane.f32.xlu0 %v5677
    %v5679 = vpop.xlane.xlu0 %5678
    %v5680 = vsel %vm188, %v5648, 0.0
    %5681 = vadd.xlane.f32.xlu0 %v5680
    %v5682 = vpop.xlane.xlu0 %5681
    %v5683 = vsel %vm188, %v5649, 0.0
    %5684 = vadd.xlane.f32.xlu0 %v5683
    %v5685 = vpop.xlane.xlu0 %5684
    %v5686 = vsel %vm188, %v5650, 0.0
    %5687 = vadd.xlane.f32.xlu0 %v5686
    %v5688 = vpop.xlane.xlu0 %5687
    %v5689 = vsel %vm188, %v5651, 0.0
    %5690 = vadd.xlane.f32.xlu0 %v5689
    %v5691 = vpop.xlane.xlu0 %5690
    %v5692 = vsel %vm188, %v5652, 0.0
    %5693 = vadd.xlane.f32.xlu0 %v5692
    %v5694 = vpop.xlane.xlu0 %5693
    %v5695 = vsel %vm188, %v5653, 0.0
    %5696 = vadd.xlane.f32.xlu0 %v5695
    %v5697 = vpop.xlane.xlu0 %5696
    %v5698 = vsel %vm188, %v5654, 0.0
    %5699 = vadd.xlane.f32.xlu0 %v5698
    %v5700 = vpop.xlane.xlu0 %5699
    %v5701 = vsel %vm188, %v5655, 0.0
    %5702 = vadd.xlane.f32.xlu0 %v5701
    %v5703 = vpop.xlane.xlu0 %5702
    %v5704 = vmul.f32 %v5658, %v1369
    %v5705 = vmul.f32 %v5661, %v1369
    %v5706 = vmul.f32 %v5664, %v1369
    %v5707 = vmul.f32 %v5667, %v1369
    %v5708 = vmul.f32 %v5670, %v1369
    %v5709 = vmul.f32 %v5673, %v1369
    %v5710 = vmul.f32 %v5676, %v1369
    %v5711 = vmul.f32 %v5679, %v1369
    %v5712 = vmul.f32 %v5682, %v1369
    %v5713 = vmul.f32 %v5685, %v1369
    %v5714 = vmul.f32 %v5688, %v1369
    %v5715 = vmul.f32 %v5691, %v1369
    %v5716 = vmul.f32 %v5694, %v1369
    %v5717 = vmul.f32 %v5697, %v1369
    %v5718 = vmul.f32 %v5700, %v1369
    %v5719 = vmul.f32 %v5703, %v1369
    %v5720 = vsub.f32 %v5640, %v5704
    %v5721 = vsub.f32 %v5641, %v5705
    %v5722 = vsub.f32 %v5642, %v5706
    %v5723 = vsub.f32 %v5643, %v5707
    %v5724 = vsub.f32 %v5644, %v5708
    %v5725 = vsub.f32 %v5645, %v5709
    %v5726 = vsub.f32 %v5646, %v5710
    %v5727 = vsub.f32 %v5647, %v5711
    %v5728 = vsub.f32 %v5648, %v5712
    %v5729 = vsub.f32 %v5649, %v5713
    %v5730 = vsub.f32 %v5650, %v5714
    %v5731 = vsub.f32 %v5651, %v5715
    %v5732 = vsub.f32 %v5652, %v5716
    %v5733 = vsub.f32 %v5653, %v5717
    %v5734 = vsub.f32 %v5654, %v5718
    %v5735 = vsub.f32 %v5655, %v5719
    %v5736 = vmul.f32 %v5720, %v5720
    %v5737 = vmul.f32 %v5721, %v5721
    %v5738 = vmul.f32 %v5722, %v5722
    %v5739 = vmul.f32 %v5723, %v5723
    %v5740 = vmul.f32 %v5724, %v5724
    %v5741 = vmul.f32 %v5725, %v5725
    %v5742 = vmul.f32 %v5726, %v5726
    %v5743 = vmul.f32 %v5727, %v5727
    %v5744 = vmul.f32 %v5728, %v5728
    %v5745 = vmul.f32 %v5729, %v5729
    %v5746 = vmul.f32 %v5730, %v5730
    %v5747 = vmul.f32 %v5731, %v5731
    %v5748 = vmul.f32 %v5732, %v5732
    %v5749 = vmul.f32 %v5733, %v5733
    %v5750 = vmul.f32 %v5734, %v5734
    %v5751 = vmul.f32 %v5735, %v5735
    %v5752 = vsel %vm188, %v5736, 0.0
    %5753 = vadd.xlane.f32.xlu0 %v5752
    %v5754 = vpop.xlane.xlu0 %5753
    %v5755 = vsel %vm188, %v5737, 0.0
    %5756 = vadd.xlane.f32.xlu0 %v5755
    %v5757 = vpop.xlane.xlu0 %5756
    %v5758 = vsel %vm188, %v5738, 0.0
    %5759 = vadd.xlane.f32.xlu0 %v5758
    %v5760 = vpop.xlane.xlu0 %5759
    %v5761 = vsel %vm188, %v5739, 0.0
    %5762 = vadd.xlane.f32.xlu0 %v5761
    %v5763 = vpop.xlane.xlu0 %5762
    %v5764 = vsel %vm188, %v5740, 0.0
    %5765 = vadd.xlane.f32.xlu0 %v5764
    %v5766 = vpop.xlane.xlu0 %5765
    %v5767 = vsel %vm188, %v5741, 0.0
    %5768 = vadd.xlane.f32.xlu0 %v5767
    %v5769 = vpop.xlane.xlu0 %5768
    %v5770 = vsel %vm188, %v5742, 0.0
    %5771 = vadd.xlane.f32.xlu0 %v5770
    %v5772 = vpop.xlane.xlu0 %5771
    %v5773 = vsel %vm188, %v5743, 0.0
    %5774 = vadd.xlane.f32.xlu0 %v5773
    %v5775 = vpop.xlane.xlu0 %5774
    %v5776 = vsel %vm188, %v5744, 0.0
    %5777 = vadd.xlane.f32.xlu0 %v5776
    %v5778 = vpop.xlane.xlu0 %5777
    %v5779 = vsel %vm188, %v5745, 0.0
    %5780 = vadd.xlane.f32.xlu0 %v5779
    %v5781 = vpop.xlane.xlu0 %5780
    %v5782 = vsel %vm188, %v5746, 0.0
    %5783 = vadd.xlane.f32.xlu0 %v5782
    %v5784 = vpop.xlane.xlu0 %5783
    %v5785 = vsel %vm188, %v5747, 0.0
    %5786 = vadd.xlane.f32.xlu0 %v5785
    %v5787 = vpop.xlane.xlu0 %5786
    %v5788 = vsel %vm188, %v5748, 0.0
    %5789 = vadd.xlane.f32.xlu0 %v5788
    %v5790 = vpop.xlane.xlu0 %5789
    %v5791 = vsel %vm188, %v5749, 0.0
    %5792 = vadd.xlane.f32.xlu0 %v5791
    %v5793 = vpop.xlane.xlu0 %5792
    %v5794 = vsel %vm188, %v5750, 0.0
    %5795 = vadd.xlane.f32.xlu0 %v5794
    %v5796 = vpop.xlane.xlu0 %5795
    %v5797 = vsel %vm188, %v5751, 0.0
    %5798 = vadd.xlane.f32.xlu0 %v5797
    %v5799 = vpop.xlane.xlu0 %5798
    %v5800 = vmul.f32 %v5754, %v1369
    %v5801 = vmul.f32 %v5757, %v1369
    %v5802 = vmul.f32 %v5760, %v1369
    %v5803 = vmul.f32 %v5763, %v1369
    %v5804 = vmul.f32 %v5766, %v1369
    %v5805 = vmul.f32 %v5769, %v1369
    %v5806 = vmul.f32 %v5772, %v1369
    %v5807 = vmul.f32 %v5775, %v1369
    %v5808 = vmul.f32 %v5778, %v1369
    %v5809 = vmul.f32 %v5781, %v1369
    %v5810 = vmul.f32 %v5784, %v1369
    %v5811 = vmul.f32 %v5787, %v1369
    %v5812 = vmul.f32 %v5790, %v1369
    %v5813 = vmul.f32 %v5793, %v1369
    %v5814 = vmul.f32 %v5796, %v1369
    %v5815 = vmul.f32 %v5799, %v1369
    %v5816 = vadd.f32 %v5800, 1e-05
    %v5817 = vadd.f32 %v5801, 1e-05
    %v5818 = vadd.f32 %v5802, 1e-05
    %v5819 = vadd.f32 %v5803, 1e-05
    %v5820 = vadd.f32 %v5804, 1e-05
    %v5821 = vadd.f32 %v5805, 1e-05
    %v5822 = vadd.f32 %v5806, 1e-05
    %v5823 = vadd.f32 %v5807, 1e-05
    %v5824 = vadd.f32 %v5808, 1e-05
    %v5825 = vadd.f32 %v5809, 1e-05
    %v5826 = vadd.f32 %v5810, 1e-05
    %v5827 = vadd.f32 %v5811, 1e-05
    %v5828 = vadd.f32 %v5812, 1e-05
    %v5829 = vadd.f32 %v5813, 1e-05
    %v5830 = vadd.f32 %v5814, 1e-05
    %v5831 = vadd.f32 %v5815, 1e-05
    %v5832 = vrsqrt.pop %v5816
    %v5833 = vrsqrt.pop %v5817
    %v5834 = vrsqrt.pop %v5818
    %v5835 = vrsqrt.pop %v5819
    %v5836 = vrsqrt.pop %v5820
    %v5837 = vrsqrt.pop %v5821
    %v5838 = vrsqrt.pop %v5822
    %v5839 = vrsqrt.pop %v5823
    %v5840 = vrsqrt.pop %v5824
    %v5841 = vrsqrt.pop %v5825
    %v5842 = vrsqrt.pop %v5826
    %v5843 = vrsqrt.pop %v5827
    %v5844 = vrsqrt.pop %v5828
    %v5845 = vrsqrt.pop %v5829
    %v5846 = vrsqrt.pop %v5830
    %v5847 = vrsqrt.pop %v5831
    %v5848 = vmul.f32 %v5720, %v5832
    %v5849 = vmul.f32 %v5721, %v5833
    %v5850 = vmul.f32 %v5722, %v5834
    %v5851 = vmul.f32 %v5723, %v5835
    %v5852 = vmul.f32 %v5724, %v5836
    %v5853 = vmul.f32 %v5725, %v5837
    %v5854 = vmul.f32 %v5726, %v5838
    %v5855 = vmul.f32 %v5727, %v5839
    %v5856 = vmul.f32 %v5728, %v5840
    %v5857 = vmul.f32 %v5729, %v5841
    %v5858 = vmul.f32 %v5730, %v5842
    %v5859 = vmul.f32 %v5731, %v5843
    %v5860 = vmul.f32 %v5732, %v5844
    %v5861 = vmul.f32 %v5733, %v5845
    %v5862 = vmul.f32 %v5734, %v5846
    %v5863 = vmul.f32 %v5735, %v5847
    %v5864 = vlaneseq
    %v5865 = vshrl.u32 %v5864, 7
    %v5866 = vsub.s32 6, %v5865
    %v5867 = vrot.slane %v4047, %v5866
    %v5868 = vmul.f32 %v5848, %v5867
    %v5869 = vmul.f32 %v5849, %v5867
    %v5870 = vmul.f32 %v5850, %v5867
    %v5871 = vmul.f32 %v5851, %v5867
    %v5872 = vmul.f32 %v5852, %v5867
    %v5873 = vmul.f32 %v5853, %v5867
    %v5874 = vmul.f32 %v5854, %v5867
    %v5875 = vmul.f32 %v5855, %v5867
    %v5876 = vmul.f32 %v5856, %v5867
    %v5877 = vmul.f32 %v5857, %v5867
    %v5878 = vmul.f32 %v5858, %v5867
    %v5879 = vmul.f32 %v5859, %v5867
    %v5880 = vmul.f32 %v5860, %v5867
    %v5881 = vmul.f32 %v5861, %v5867
    %v5882 = vmul.f32 %v5862, %v5867
    %v5883 = vmul.f32 %v5863, %v5867
    %v5884 = vlaneseq
    %v5885 = vshrl.u32 %v5884, 7
    %v5886 = vsub.s32 7, %v5885
    %v5887 = vrot.slane %v4047, %v5886
    %v5888 = vadd.f32 %v5868, %v5887
    %v5889 = vadd.f32 %v5869, %v5887
    %v5890 = vadd.f32 %v5870, %v5887
    %v5891 = vadd.f32 %v5871, %v5887
    %v5892 = vadd.f32 %v5872, %v5887
    %v5893 = vadd.f32 %v5873, %v5887
    %v5894 = vadd.f32 %v5874, %v5887
    %v5895 = vadd.f32 %v5875, %v5887
    %v5896 = vadd.f32 %v5876, %v5887
    %v5897 = vadd.f32 %v5877, %v5887
    %v5898 = vadd.f32 %v5878, %v5887
    %v5899 = vadd.f32 %v5879, %v5887
    %v5900 = vadd.f32 %v5880, %v5887
    %v5901 = vadd.f32 %v5881, %v5887
    %v5902 = vadd.f32 %v5882, %v5887
    %v5903 = vadd.f32 %v5883, %v5887
    %s5904 = scalar_lea.vmem %s7, 48
    %v5905 = vld [vmem:[%s5904] sm:$0xff]
    %v5906 = vld [vmem:[%s5904 + $0x8] sm:$0x1]
    %s5907 = scalar_lea.vmem %s8, 6
    %v5908 = vld [vmem:[%s5907] sm:$0x3]
    %v5909 = vpack.c.bf16 %v5889, %v5888
    %v5910 = vpack.c.bf16 %v5891, %v5890
    %v5911 = vpack.c.bf16 %v5893, %v5892
    %v5912 = vpack.c.bf16 %v5895, %v5894
    %v5913 = vpack.c.bf16 %v5897, %v5896
    %v5914 = vpack.c.bf16 %v5899, %v5898
    %v5915 = vpack.c.bf16 %v5901, %v5900
    %v5916 = vpack.c.bf16 %v5903, %v5902
    %s5917 = scalar_lea.vmem [#allocation5], 192
    %v5918 = vld [vmem:[%s5917] sm:$0xff]
    %v5919 = vld [vmem:[%s5917 + $0x8] sm:$0xff]
    %v5920 = vld [vmem:[%s5917 + $0x10] sm:$0xff]
    %v5921 = vld [vmem:[%s5917 + $0x18] sm:$0xff]
    %v5922 = vld [vmem:[%s5917 + $0x20] sm:$0xff]
    %v5923 = vld [vmem:[%s5917 + $0x28] sm:$0xff]
    %v5924 = vld [vmem:[%s5917 + $0x30] sm:$0xff]
    %v5925 = vld [vmem:[%s5917 + $0x38] sm:$0xff]
    %v5934 = vunpack.c.l.b16 %v5918
    %v5935 = vunpack.c.h.b16 %v5918
    %v5936 = vunpack.c.l.b16 %v5919
    %v5937 = vunpack.c.h.b16 %v5919
    %v5938 = vunpack.c.l.b16 %v5920
    %v5939 = vunpack.c.h.b16 %v5920
    %v5940 = vunpack.c.l.b16 %v5921
    %v5941 = vunpack.c.h.b16 %v5921
    %v5942 = vunpack.c.l.b16 %v5922
    %v5943 = vunpack.c.h.b16 %v5922
    %v5944 = vunpack.c.l.b16 %v5923
    %v5945 = vunpack.c.h.b16 %v5923
    %v5946 = vunpack.c.l.b16 %v5924
    %v5947 = vunpack.c.h.b16 %v5924
    %v5948 = vunpack.c.l.b16 %v5925
    %v5949 = vunpack.c.h.b16 %v5925
    %v5950 = vpack.c.b16 %v5936, %v5934
    %v5951 = vpack.c.b16 %v5937, %v5935
    %v5952 = vpack.c.b16 %v5940, %v5938
    %v5953 = vpack.c.b16 %v5941, %v5939
    %v5954 = vpack.c.b16 %v5944, %v5942
    %v5955 = vpack.c.b16 %v5945, %v5943
    %v5956 = vpack.c.b16 %v5948, %v5946
    %v5957 = vpack.c.b16 %v5949, %v5947
    %v5967 = vsel %vm188, %v5909, 0
    %v5970 = vsel %vm188, %v5910, 0
    %v5973 = vsel %vm188, %v5911, 0
    %v5976 = vsel %vm188, %v5912, 0
    %v5979 = vsel %vm188, %v5913, 0
    %v5982 = vsel %vm188, %v5914, 0
    %v5985 = vsel %vm188, %v5915, 0
    %v5988 = vsel %vm188, %v5916, 0
    %5990 = vmatprep.subr.bf16.mxu0 %v5951
    %5991 = vmatpush1.bf16.msra.mxu0 %v5950
    %5992 = vmatprep.subr.bf16.mxu0 %v5953
    %5993 = vmatpush1.bf16.msra.mxu0 %v5952
    %5994 = vmatprep.subr.bf16.mxu0 %v5955
    %5995 = vmatpush1.bf16.msra.mxu0 %v5954
    %5996 = vmatprep.subr.bf16.mxu0 %v5957
    %5997 = vmatpush1.bf16.msra.mxu0 %v5956
    %5998 = vmatprep.subr.bf16.mxu0 0
    %5999 = vmatpush1.bf16.msra.mxu0 0
    %6000 = vmatprep.subr.bf16.mxu0 0
    %6001 = vmatpush1.bf16.msra.mxu0 0
    %6002 = vmatprep.subr.bf16.mxu0 0
    %6003 = vmatpush1.bf16.msra.mxu0 0
    %6004 = vmatprep.subr.bf16.mxu0 0
    %6005 = vmatpush1.bf16.msra.mxu0 0
    %6006 = vmatprep.subr.bf16.mxu0 0
    %6007 = vmatpush1.bf16.msra.mxu0 0
    %6008 = vmatprep.subr.bf16.mxu0 0
    %6009 = vmatpush1.bf16.msra.mxu0 0
    %6010 = vmatprep.subr.bf16.mxu0 0
    %6011 = vmatpush1.bf16.msra.mxu0 0
    %6012 = vmatprep.subr.bf16.mxu0 0
    %6013 = vmatpush1.bf16.msra.mxu0 0
    %6014 = vmatprep.subr.bf16.mxu0 0
    %6015 = vmatpush1.bf16.msra.mxu0 0
    %6016 = vmatprep.subr.bf16.mxu0 0
    %6017 = vmatpush1.bf16.msra.mxu0 0
    %6018 = vmatprep.subr.bf16.mxu0 0
    %6019 = vmatpush1.bf16.msra.mxu0 0
    %6020 = vmatprep.subr.bf16.mxu0 0
    %6021 = vmatpush1.bf16.msra.mxu0 0
    %6022 = vmatprep.mubr.bf16.mxu0 0
    %6023 = vmatmul.mubr.bf16.gmra.mrb[0].mxu0 %v5967
    %v6024 = vpop.f32.mrb[0].mxu0
    %v6025 = vadd.f32 0.0, %v6024
    %v6026 = vpop.f32.mrb[0].mxu0
    %v6027 = vadd.f32 0.0, %v6026
    %v6028 = vpop.f32.mrb[0].mxu0
    %v6029 = vadd.f32 0.0, %v6028
    %v6030 = vpop.f32.mrb[0].mxu0
    %v6031 = vadd.f32 0.0, %v6030
    %6032 = vmatprep.mubr.bf16.mxu0 0
    %6033 = vmatmul.mubr.bf16.gmra.mrb[0].mxu0 %v5970
    %v6034 = vpop.f32.mrb[0].mxu0
    %v6035 = vadd.f32 0.0, %v6034
    %v6036 = vpop.f32.mrb[0].mxu0
    %v6037 = vadd.f32 0.0, %v6036
    %v6038 = vpop.f32.mrb[0].mxu0
    %v6039 = vadd.f32 0.0, %v6038
    %v6040 = vpop.f32.mrb[0].mxu0
    %v6041 = vadd.f32 0.0, %v6040
    %6042 = vmatprep.mubr.bf16.mxu0 0
    %6043 = vmatmul.mubr.bf16.gmra.mrb[0].mxu0 %v5973
    %v6044 = vpop.f32.mrb[0].mxu0
    %v6045 = vadd.f32 0.0, %v6044
    %v6046 = vpop.f32.mrb[0].mxu0
    %v6047 = vadd.f32 0.0, %v6046
    %v6048 = vpop.f32.mrb[0].mxu0
    %v6049 = vadd.f32 0.0, %v6048
    %v6050 = vpop.f32.mrb[0].mxu0
    %v6051 = vadd.f32 0.0, %v6050
    %6052 = vmatprep.mubr.bf16.mxu0 0
    %6053 = vmatmul.mubr.bf16.gmra.mrb[0].mxu0 %v5976
    %v6054 = vpop.f32.mrb[0].mxu0
    %v6055 = vadd.f32 0.0, %v6054
    %v6056 = vpop.f32.mrb[0].mxu0
    %v6057 = vadd.f32 0.0, %v6056
    %v6058 = vpop.f32.mrb[0].mxu0
    %v6059 = vadd.f32 0.0, %v6058
    %v6060 = vpop.f32.mrb[0].mxu0
    %v6061 = vadd.f32 0.0, %v6060
    %6062 = vmatprep.mubr.bf16.mxu0 0
    %6063 = vmatmul.mubr.bf16.gmra.mrb[0].mxu0 %v5979
    %v6064 = vpop.f32.mrb[0].mxu0
    %v6065 = vadd.f32 0.0, %v6064
    %v6066 = vpop.f32.mrb[0].mxu0
    %v6067 = vadd.f32 0.0, %v6066
    %v6068 = vpop.f32.mrb[0].mxu0
    %v6069 = vadd.f32 0.0, %v6068
    %v6070 = vpop.f32.mrb[0].mxu0
    %v6071 = vadd.f32 0.0, %v6070
    %6072 = vmatprep.mubr.bf16.mxu0 0
    %6073 = vmatmul.mubr.bf16.gmra.mrb[0].mxu0 %v5982
    %v6074 = vpop.f32.mrb[0].mxu0
    %v6075 = vadd.f32 0.0, %v6074
    %v6076 = vpop.f32.mrb[0].mxu0
    %v6077 = vadd.f32 0.0, %v6076
    %v6078 = vpop.f32.mrb[0].mxu0
    %v6079 = vadd.f32 0.0, %v6078
    %v6080 = vpop.f32.mrb[0].mxu0
    %v6081 = vadd.f32 0.0, %v6080
    %6082 = vmatprep.mubr.bf16.mxu0 0
    %6083 = vmatmul.mubr.bf16.gmra.mrb[0].mxu0 %v5985
    %v6084 = vpop.f32.mrb[0].mxu0
    %v6085 = vadd.f32 0.0, %v6084
    %v6086 = vpop.f32.mrb[0].mxu0
    %v6087 = vadd.f32 0.0, %v6086
    %v6088 = vpop.f32.mrb[0].mxu0
    %v6089 = vadd.f32 0.0, %v6088
    %v6090 = vpop.f32.mrb[0].mxu0
    %v6091 = vadd.f32 0.0, %v6090
    %6092 = vmatprep.mubr.bf16.mxu0 0
    %6093 = vmatmul.mubr.bf16.gmra.mrb[0].mxu0 %v5988
    %v6094 = vpop.f32.mrb[0].mxu0
    %v6095 = vadd.f32 0.0, %v6094
    %v6096 = vpop.f32.mrb[0].mxu0
    %v6097 = vadd.f32 0.0, %v6096
    %v6098 = vpop.f32.mrb[0].mxu0
    %v6099 = vadd.f32 0.0, %v6098
    %v6100 = vpop.f32.mrb[0].mxu0
    %v6101 = vadd.f32 0.0, %v6100
    %6102 = vdwg.mxu0
    %v6103 = vlaneseq
    %v6104 = vshrl.u32 %v6103, 7
    %v6105 = vsub.s32 0, %v6104
    %v6106 = vrot.slane %v5905, %v6105
    %v6107 = vadd.f32 %v6025, %v6106
    %v6108 = vadd.f32 %v6029, %v6106
    %v6109 = vadd.f32 %v6035, %v6106
    %v6110 = vadd.f32 %v6039, %v6106
    %v6111 = vadd.f32 %v6045, %v6106
    %v6112 = vadd.f32 %v6049, %v6106
    %v6113 = vadd.f32 %v6055, %v6106
    %v6114 = vadd.f32 %v6059, %v6106
    %v6115 = vadd.f32 %v6065, %v6106
    %v6116 = vadd.f32 %v6069, %v6106
    %v6117 = vadd.f32 %v6075, %v6106
    %v6118 = vadd.f32 %v6079, %v6106
    %v6119 = vadd.f32 %v6085, %v6106
    %v6120 = vadd.f32 %v6089, %v6106
    %v6121 = vadd.f32 %v6095, %v6106
    %v6122 = vadd.f32 %v6099, %v6106
    %v6123 = vlaneseq
    %v6124 = vshrl.u32 %v6123, 7
    %v6125 = vsub.s32 1, %v6124
    %v6126 = vrot.slane %v5905, %v6125
    %6128 = vrot.lane.b32.xlu0 %v6126, 64
    %v6129 = vpop.permute.xlu0 %6128
    %v6131 = vadd.f32 %v6025, %v6129
    %v6132 = vadd.f32 %v6029, %v6129
    %v6133 = vadd.f32 %v6035, %v6129
    %v6134 = vadd.f32 %v6039, %v6129
    %v6135 = vadd.f32 %v6045, %v6129
    %v6136 = vadd.f32 %v6049, %v6129
    %v6137 = vadd.f32 %v6055, %v6129
    %v6138 = vadd.f32 %v6059, %v6129
    %v6139 = vadd.f32 %v6065, %v6129
    %v6140 = vadd.f32 %v6069, %v6129
    %v6141 = vadd.f32 %v6075, %v6129
    %v6142 = vadd.f32 %v6079, %v6129
    %v6143 = vadd.f32 %v6085, %v6129
    %v6144 = vadd.f32 %v6089, %v6129
    %v6145 = vadd.f32 %v6095, %v6129
    %v6146 = vadd.f32 %v6099, %v6129
    %v6147 = vlaneseq
    %v6148 = vshrl.u32 %v6147, 7
    %v6149 = vsub.s32 2, %v6148
    %v6150 = vrot.slane %v5905, %v6149
    %v6151 = vadd.f32 %v6027, %v6150
    %v6152 = vadd.f32 %v6031, %v6150
    %v6153 = vadd.f32 %v6037, %v6150
    %v6154 = vadd.f32 %v6041, %v6150
    %v6155 = vadd.f32 %v6047, %v6150
    %v6156 = vadd.f32 %v6051, %v6150
    %v6157 = vadd.f32 %v6057, %v6150
    %v6158 = vadd.f32 %v6061, %v6150
    %v6159 = vadd.f32 %v6067, %v6150
    %v6160 = vadd.f32 %v6071, %v6150
    %v6161 = vadd.f32 %v6077, %v6150
    %v6162 = vadd.f32 %v6081, %v6150
    %v6163 = vadd.f32 %v6087, %v6150
    %v6164 = vadd.f32 %v6091, %v6150
    %v6165 = vadd.f32 %v6097, %v6150
    %v6166 = vadd.f32 %v6101, %v6150
    %6183 = vrot.lane.b32.xlu0 %v6131, 64
    %v6184 = vpop.permute.xlu0 %6183
    %6185 = vrot.lane.b32.xlu0 %v6132, 64
    %v6186 = vpop.permute.xlu0 %6185
    %6187 = vrot.lane.b32.xlu0 %v6133, 64
    %v6188 = vpop.permute.xlu0 %6187
    %6189 = vrot.lane.b32.xlu0 %v6134, 64
    %v6190 = vpop.permute.xlu0 %6189
    %6191 = vrot.lane.b32.xlu0 %v6135, 64
    %v6192 = vpop.permute.xlu0 %6191
    %6193 = vrot.lane.b32.xlu0 %v6136, 64
    %v6194 = vpop.permute.xlu0 %6193
    %6195 = vrot.lane.b32.xlu0 %v6137, 64
    %v6196 = vpop.permute.xlu0 %6195
    %6197 = vrot.lane.b32.xlu0 %v6138, 64
    %v6198 = vpop.permute.xlu0 %6197
    %6199 = vrot.lane.b32.xlu0 %v6139, 64
    %v6200 = vpop.permute.xlu0 %6199
    %6201 = vrot.lane.b32.xlu0 %v6140, 64
    %v6202 = vpop.permute.xlu0 %6201
    %6203 = vrot.lane.b32.xlu0 %v6141, 64
    %v6204 = vpop.permute.xlu0 %6203
    %6205 = vrot.lane.b32.xlu0 %v6142, 64
    %v6206 = vpop.permute.xlu0 %6205
    %6207 = vrot.lane.b32.xlu0 %v6143, 64
    %v6208 = vpop.permute.xlu0 %6207
    %6209 = vrot.lane.b32.xlu0 %v6144, 64
    %v6210 = vpop.permute.xlu0 %6209
    %6211 = vrot.lane.b32.xlu0 %v6145, 64
    %v6212 = vpop.permute.xlu0 %6211
    %6213 = vrot.lane.b32.xlu0 %v6146, 64
    %v6214 = vpop.permute.xlu0 %6213
    %v6231 = vmul.f32 %v6107, %v6184
    %v6232 = vmul.f32 %v6108, %v6186
    %v6233 = vmul.f32 %v6109, %v6188
    %v6234 = vmul.f32 %v6110, %v6190
    %v6235 = vmul.f32 %v6111, %v6192
    %v6236 = vmul.f32 %v6112, %v6194
    %v6237 = vmul.f32 %v6113, %v6196
    %v6238 = vmul.f32 %v6114, %v6198
    %v6239 = vmul.f32 %v6107, %v6200
    %v6240 = vmul.f32 %v6108, %v6202
    %v6241 = vmul.f32 %v6109, %v6204
    %v6242 = vmul.f32 %v6110, %v6206
    %v6243 = vmul.f32 %v6111, %v6208
    %v6244 = vmul.f32 %v6112, %v6210
    %v6245 = vmul.f32 %v6113, %v6212
    %v6246 = vmul.f32 %v6114, %v6214
    %v6247 = vmul.f32 %v6115, %v6184
    %v6248 = vmul.f32 %v6116, %v6186
    %v6249 = vmul.f32 %v6117, %v6188
    %v6250 = vmul.f32 %v6118, %v6190
    %v6251 = vmul.f32 %v6119, %v6192
    %v6252 = vmul.f32 %v6120, %v6194
    %v6253 = vmul.f32 %v6121, %v6196
    %v6254 = vmul.f32 %v6122, %v6198
    %v6255 = vmul.f32 %v6115, %v6200
    %v6256 = vmul.f32 %v6116, %v6202
    %v6257 = vmul.f32 %v6117, %v6204
    %v6258 = vmul.f32 %v6118, %v6206
    %v6259 = vmul.f32 %v6119, %v6208
    %v6260 = vmul.f32 %v6120, %v6210
    %v6261 = vmul.f32 %v6121, %v6212
    %v6262 = vmul.f32 %v6122, %v6214
    %v6263 = vpack.c.bf16 %v6232, %v6231
    %v6264 = vpack.c.bf16 %v6234, %v6233
    %v6265 = vpack.c.bf16 %v6236, %v6235
    %v6266 = vpack.c.bf16 %v6238, %v6237
    %v6267 = vpack.c.bf16 %v6240, %v6239
    %v6268 = vpack.c.bf16 %v6242, %v6241
    %v6269 = vpack.c.bf16 %v6244, %v6243
    %v6270 = vpack.c.bf16 %v6246, %v6245
    %v6271 = vpack.c.bf16 %v6248, %v6247
    %v6272 = vpack.c.bf16 %v6250, %v6249
    %v6273 = vpack.c.bf16 %v6252, %v6251
    %v6274 = vpack.c.bf16 %v6254, %v6253
    %v6275 = vpack.c.bf16 %v6256, %v6255
    %v6276 = vpack.c.bf16 %v6258, %v6257
    %v6277 = vpack.c.bf16 %v6260, %v6259
    %v6278 = vpack.c.bf16 %v6262, %v6261
    %v6280 = vsel %vm188, %v6263, 0
    %v6283 = vsel %vm188, %v6264, 0
    %v6286 = vsel %vm188, %v6265, 0
    %v6289 = vsel %vm188, %v6266, 0
    %v6292 = vsel %vm188, %v6267, 0
    %v6295 = vsel %vm188, %v6268, 0
    %v6298 = vsel %vm188, %v6269, 0
    %v6301 = vsel %vm188, %v6270, 0
    %v6304 = vsel %vm188, %v6271, 0
    %v6307 = vsel %vm188, %v6272, 0
    %v6310 = vsel %vm188, %v6273, 0
    %v6313 = vsel %vm188, %v6274, 0
    %v6316 = vsel %vm188, %v6275, 0
    %v6319 = vsel %vm188, %v6276, 0
    %v6322 = vsel %vm188, %v6277, 0
    %v6325 = vsel %vm188, %v6278, 0
    %6327 = vmatprep.subr.bf16.mxu0 0
    %6328 = vmatpush1.bf16.msra.mxu0 %v698
    %6329 = vmatprep.subr.bf16.mxu0 0
    %6330 = vmatpush1.bf16.msra.mxu0 %v699
    %6331 = vmatprep.subr.bf16.mxu0 0
    %6332 = vmatpush1.bf16.msra.mxu0 %v700
    %6333 = vmatprep.subr.bf16.mxu0 0
    %6334 = vmatpush1.bf16.msra.mxu0 %v701
    %6335 = vmatprep.subr.bf16.mxu0 0
    %6336 = vmatpush1.bf16.msra.mxu0 0
    %6337 = vmatprep.subr.bf16.mxu0 0
    %6338 = vmatpush1.bf16.msra.mxu0 0
    %6339 = vmatprep.subr.bf16.mxu0 0
    %6340 = vmatpush1.bf16.msra.mxu0 0
    %6341 = vmatprep.subr.bf16.mxu0 0
    %6342 = vmatpush1.bf16.msra.mxu0 0
    %6343 = vmatprep.subr.bf16.mxu0 0
    %6344 = vmatpush1.bf16.msra.mxu0 0
    %6345 = vmatprep.subr.bf16.mxu0 0
    %6346 = vmatpush1.bf16.msra.mxu0 0
    %6347 = vmatprep.subr.bf16.mxu0 0
    %6348 = vmatpush1.bf16.msra.mxu0 0
    %6349 = vmatprep.subr.bf16.mxu0 0
    %6350 = vmatpush1.bf16.msra.mxu0 0
    %6351 = vmatprep.subr.bf16.mxu0 0
    %6352 = vmatpush1.bf16.msra.mxu0 0
    %6353 = vmatprep.subr.bf16.mxu0 0
    %6354 = vmatpush1.bf16.msra.mxu0 0
    %6355 = vmatprep.subr.bf16.mxu0 0
    %6356 = vmatpush1.bf16.msra.mxu0 0
    %6357 = vmatprep.subr.bf16.mxu0 0
    %6358 = vmatpush1.bf16.msra.mxu0 0
    %6359 = vmatprep.mubr.bf16.mxu0 0
    %6360 = vmatmul.mubr.bf16.gmra.mrb[0].mxu0 %v6280
    %v6361 = vpop.f32.mrb[0].mxu0
    %v6362 = vadd.f32 0.0, %v6361
    %v6363 = vpop.f32.mrb[0].mxu0
    %v6364 = vpop.f32.mrb[0].mxu0
    %v6365 = vadd.f32 0.0, %v6364
    %v6366 = vpop.f32.mrb[0].mxu0
    %6367 = vmatprep.mubr.bf16.mxu0 0
    %6368 = vmatmul.mubr.bf16.gmra.mrb[0].mxu0 %v6283
    %v6369 = vpop.f32.mrb[0].mxu0
    %v6370 = vadd.f32 0.0, %v6369
    %v6371 = vpop.f32.mrb[0].mxu0
    %v6372 = vpop.f32.mrb[0].mxu0
    %v6373 = vadd.f32 0.0, %v6372
    %v6374 = vpop.f32.mrb[0].mxu0
    %6375 = vmatprep.mubr.bf16.mxu0 0
    %6376 = vmatmul.mubr.bf16.gmra.mrb[0].mxu0 %v6286
    %v6377 = vpop.f32.mrb[0].mxu0
    %v6378 = vadd.f32 0.0, %v6377
    %v6379 = vpop.f32.mrb[0].mxu0
    %v6380 = vpop.f32.mrb[0].mxu0
    %v6381 = vadd.f32 0.0, %v6380
    %v6382 = vpop.f32.mrb[0].mxu0
    %6383 = vmatprep.mubr.bf16.mxu0 0
    %6384 = vmatmul.mubr.bf16.gmra.mrb[0].mxu0 %v6289
    %v6385 = vpop.f32.mrb[0].mxu0
    %v6386 = vadd.f32 0.0, %v6385
    %v6387 = vpop.f32.mrb[0].mxu0
    %v6388 = vpop.f32.mrb[0].mxu0
    %v6389 = vadd.f32 0.0, %v6388
    %v6390 = vpop.f32.mrb[0].mxu0
    %6391 = vmatprep.mubr.bf16.mxu0 0
    %6392 = vmatmul.mubr.bf16.gmra.mrb[0].mxu0 %v6292
    %v6393 = vpop.f32.mrb[0].mxu0
    %v6394 = vadd.f32 0.0, %v6393
    %v6395 = vpop.f32.mrb[0].mxu0
    %v6396 = vpop.f32.mrb[0].mxu0
    %v6397 = vadd.f32 0.0, %v6396
    %v6398 = vpop.f32.mrb[0].mxu0
    %6399 = vmatprep.mubr.bf16.mxu0 0
    %6400 = vmatmul.mubr.bf16.gmra.mrb[0].mxu0 %v6295
    %v6401 = vpop.f32.mrb[0].mxu0
    %v6402 = vadd.f32 0.0, %v6401
    %v6403 = vpop.f32.mrb[0].mxu0
    %v6404 = vpop.f32.mrb[0].mxu0
    %v6405 = vadd.f32 0.0, %v6404
    %v6406 = vpop.f32.mrb[0].mxu0
    %6407 = vmatprep.mubr.bf16.mxu0 0
    %6408 = vmatmul.mubr.bf16.gmra.mrb[0].mxu0 %v6298
    %v6409 = vpop.f32.mrb[0].mxu0
    %v6410 = vadd.f32 0.0, %v6409
    %v6411 = vpop.f32.mrb[0].mxu0
    %v6412 = vpop.f32.mrb[0].mxu0
    %v6413 = vadd.f32 0.0, %v6412
    %v6414 = vpop.f32.mrb[0].mxu0
    %6415 = vmatprep.mubr.bf16.mxu0 0
    %6416 = vmatmul.mubr.bf16.gmra.mrb[0].mxu0 %v6301
    %v6417 = vpop.f32.mrb[0].mxu0
    %v6418 = vadd.f32 0.0, %v6417
    %v6419 = vpop.f32.mrb[0].mxu0
    %v6420 = vpop.f32.mrb[0].mxu0
    %v6421 = vadd.f32 0.0, %v6420
    %v6422 = vpop.f32.mrb[0].mxu0
    %6423 = vmatprep.mubr.bf16.mxu0 0
    %6424 = vmatmul.mubr.bf16.gmra.mrb[0].mxu0 %v6304
    %v6425 = vpop.f32.mrb[0].mxu0
    %v6426 = vadd.f32 0.0, %v6425
    %v6427 = vpop.f32.mrb[0].mxu0
    %v6428 = vpop.f32.mrb[0].mxu0
    %v6429 = vadd.f32 0.0, %v6428
    %v6430 = vpop.f32.mrb[0].mxu0
    %6431 = vmatprep.mubr.bf16.mxu0 0
    %6432 = vmatmul.mubr.bf16.gmra.mrb[0].mxu0 %v6307
    %v6433 = vpop.f32.mrb[0].mxu0
    %v6434 = vadd.f32 0.0, %v6433
    %v6435 = vpop.f32.mrb[0].mxu0
    %v6436 = vpop.f32.mrb[0].mxu0
    %v6437 = vadd.f32 0.0, %v6436
    %v6438 = vpop.f32.mrb[0].mxu0
    %6439 = vmatprep.mubr.bf16.mxu0 0
    %6440 = vmatmul.mubr.bf16.gmra.mrb[0].mxu0 %v6310
    %v6441 = vpop.f32.mrb[0].mxu0
    %v6442 = vadd.f32 0.0, %v6441
    %v6443 = vpop.f32.mrb[0].mxu0
    %v6444 = vpop.f32.mrb[0].mxu0
    %v6445 = vadd.f32 0.0, %v6444
    %v6446 = vpop.f32.mrb[0].mxu0
    %6447 = vmatprep.mubr.bf16.mxu0 0
    %6448 = vmatmul.mubr.bf16.gmra.mrb[0].mxu0 %v6313
    %v6449 = vpop.f32.mrb[0].mxu0
    %v6450 = vadd.f32 0.0, %v6449
    %v6451 = vpop.f32.mrb[0].mxu0
    %v6452 = vpop.f32.mrb[0].mxu0
    %v6453 = vadd.f32 0.0, %v6452
    %v6454 = vpop.f32.mrb[0].mxu0
    %6455 = vmatprep.mubr.bf16.mxu0 0
    %6456 = vmatmul.mubr.bf16.gmra.mrb[0].mxu0 %v6316
    %v6457 = vpop.f32.mrb[0].mxu0
    %v6458 = vadd.f32 0.0, %v6457
    %v6459 = vpop.f32.mrb[0].mxu0
    %v6460 = vpop.f32.mrb[0].mxu0
    %v6461 = vadd.f32 0.0, %v6460
    %v6462 = vpop.f32.mrb[0].mxu0
    %6463 = vmatprep.mubr.bf16.mxu0 0
    %6464 = vmatmul.mubr.bf16.gmra.mrb[0].mxu0 %v6319
    %v6465 = vpop.f32.mrb[0].mxu0
    %v6466 = vadd.f32 0.0, %v6465
    %v6467 = vpop.f32.mrb[0].mxu0
    %v6468 = vpop.f32.mrb[0].mxu0
    %v6469 = vadd.f32 0.0, %v6468
    %v6470 = vpop.f32.mrb[0].mxu0
    %6471 = vmatprep.mubr.bf16.mxu0 0
    %6472 = vmatmul.mubr.bf16.gmra.mrb[0].mxu0 %v6322
    %v6473 = vpop.f32.mrb[0].mxu0
    %v6474 = vadd.f32 0.0, %v6473
    %v6475 = vpop.f32.mrb[0].mxu0
    %v6476 = vpop.f32.mrb[0].mxu0
    %v6477 = vadd.f32 0.0, %v6476
    %v6478 = vpop.f32.mrb[0].mxu0
    %6479 = vmatprep.mubr.bf16.mxu0 0
    %6480 = vmatmul.mubr.bf16.gmra.mrb[0].mxu0 %v6325
    %v6481 = vpop.f32.mrb[0].mxu0
    %v6482 = vadd.f32 0.0, %v6481
    %v6483 = vpop.f32.mrb[0].mxu0
    %v6484 = vpop.f32.mrb[0].mxu0
    %v6485 = vadd.f32 0.0, %v6484
    %v6486 = vpop.f32.mrb[0].mxu0
    %6487 = vdwg.mxu0
    %v6488 = vmax.f32 %v6362, %v6394
    %v6489 = vmax.f32 %v6365, %v6397
    %v6490 = vmax.f32 %v6370, %v6402
    %v6491 = vmax.f32 %v6373, %v6405
    %v6492 = vmax.f32 %v6378, %v6410
    %v6493 = vmax.f32 %v6381, %v6413
    %v6494 = vmax.f32 %v6386, %v6418
    %v6495 = vmax.f32 %v6389, %v6421
    %v6496 = vsub.f32 %v6362, %v6488
    %v6497 = vsub.f32 %v6365, %v6489
    %v6498 = vsub.f32 %v6370, %v6490
    %v6499 = vsub.f32 %v6373, %v6491
    %v6500 = vsub.f32 %v6378, %v6492
    %v6501 = vsub.f32 %v6381, %v6493
    %v6502 = vsub.f32 %v6386, %v6494
    %v6503 = vsub.f32 %v6389, %v6495
    %v6504 = vmul.f32 %v6496, 1.442695
    %v6505 = vpow.pop %v6504
    %v6506 = vmul.f32 %v6497, 1.442695
    %v6507 = vpow.pop %v6506
    %v6508 = vmul.f32 %v6498, 1.442695
    %v6509 = vpow.pop %v6508
    %v6510 = vmul.f32 %v6499, 1.442695
    %v6511 = vpow.pop %v6510
    %v6512 = vmul.f32 %v6500, 1.442695
    %v6513 = vpow.pop %v6512
    %v6514 = vmul.f32 %v6501, 1.442695
    %v6515 = vpow.pop %v6514
    %v6516 = vmul.f32 %v6502, 1.442695
    %v6517 = vpow.pop %v6516
    %v6518 = vmul.f32 %v6503, 1.442695
    %v6519 = vpow.pop %v6518
    %v6520 = vsub.f32 %v6394, %v6488
    %v6521 = vsub.f32 %v6397, %v6489
    %v6522 = vsub.f32 %v6402, %v6490
    %v6523 = vsub.f32 %v6405, %v6491
    %v6524 = vsub.f32 %v6410, %v6492
    %v6525 = vsub.f32 %v6413, %v6493
    %v6526 = vsub.f32 %v6418, %v6494
    %v6527 = vsub.f32 %v6421, %v6495
    %v6528 = vmul.f32 %v6520, 1.442695
    %v6529 = vpow.pop %v6528
    %v6530 = vmul.f32 %v6521, 1.442695
    %v6531 = vpow.pop %v6530
    %v6532 = vmul.f32 %v6522, 1.442695
    %v6533 = vpow.pop %v6532
    %v6534 = vmul.f32 %v6523, 1.442695
    %v6535 = vpow.pop %v6534
    %v6536 = vmul.f32 %v6524, 1.442695
    %v6537 = vpow.pop %v6536
    %v6538 = vmul.f32 %v6525, 1.442695
    %v6539 = vpow.pop %v6538
    %v6540 = vmul.f32 %v6526, 1.442695
    %v6541 = vpow.pop %v6540
    %v6542 = vmul.f32 %v6527, 1.442695
    %v6543 = vpow.pop %v6542
    %v6544 = vadd.f32 %v6505, %v6529
    %v6545 = vadd.f32 %v6507, %v6531
    %v6546 = vadd.f32 %v6509, %v6533
    %v6547 = vadd.f32 %v6511, %v6535
    %v6548 = vadd.f32 %v6513, %v6537
    %v6549 = vadd.f32 %v6515, %v6539
    %v6550 = vadd.f32 %v6517, %v6541
    %v6551 = vadd.f32 %v6519, %v6543
    %v6552 = vrcp.pop %v6544
    %v6553 = vrcp.pop %v6545
    %v6554 = vrcp.pop %v6546
    %v6555 = vrcp.pop %v6547
    %v6556 = vrcp.pop %v6548
    %v6557 = vrcp.pop %v6549
    %v6558 = vrcp.pop %v6550
    %v6559 = vrcp.pop %v6551
    %v6560 = vmul.f32 %v6505, %v6552
    %v6561 = vmul.f32 %v6507, %v6553
    %v6562 = vmul.f32 %v6509, %v6554
    %v6563 = vmul.f32 %v6511, %v6555
    %v6564 = vmul.f32 %v6513, %v6556
    %v6565 = vmul.f32 %v6515, %v6557
    %v6566 = vmul.f32 %v6517, %v6558
    %v6567 = vmul.f32 %v6519, %v6559
    %v6568 = vmul.f32 %v6560, %v6151
    %v6569 = vmul.f32 %v6561, %v6152
    %v6570 = vmul.f32 %v6562, %v6153
    %v6571 = vmul.f32 %v6563, %v6154
    %v6572 = vmul.f32 %v6564, %v6155
    %v6573 = vmul.f32 %v6565, %v6156
    %v6574 = vmul.f32 %v6566, %v6157
    %v6575 = vmul.f32 %v6567, %v6158
    %v6576 = vmul.f32 %v6529, %v6552
    %v6577 = vmul.f32 %v6531, %v6553
    %v6578 = vmul.f32 %v6533, %v6554
    %v6579 = vmul.f32 %v6535, %v6555
    %v6580 = vmul.f32 %v6537, %v6556
    %v6581 = vmul.f32 %v6539, %v6557
    %v6582 = vmul.f32 %v6541, %v6558
    %v6583 = vmul.f32 %v6543, %v6559
    %v6584 = vmul.f32 %v6576, %v6159
    %v6585 = vmul.f32 %v6577, %v6160
    %v6586 = vmul.f32 %v6578, %v6161
    %v6587 = vmul.f32 %v6579, %v6162
    %v6588 = vmul.f32 %v6580, %v6163
    %v6589 = vmul.f32 %v6581, %v6164
    %v6590 = vmul.f32 %v6582, %v6165
    %v6591 = vmul.f32 %v6583, %v6166
    %v6592 = vadd.f32 %v6568, %v6584
    %v6593 = vadd.f32 %v6569, %v6585
    %v6594 = vadd.f32 %v6570, %v6586
    %v6595 = vadd.f32 %v6571, %v6587
    %v6596 = vadd.f32 %v6572, %v6588
    %v6597 = vadd.f32 %v6573, %v6589
    %v6598 = vadd.f32 %v6574, %v6590
    %v6599 = vadd.f32 %v6575, %v6591
    %v6600 = vmax.f32 %v6426, %v6458
    %v6601 = vmax.f32 %v6429, %v6461
    %v6602 = vmax.f32 %v6434, %v6466
    %v6603 = vmax.f32 %v6437, %v6469
    %v6604 = vmax.f32 %v6442, %v6474
    %v6605 = vmax.f32 %v6445, %v6477
    %v6606 = vmax.f32 %v6450, %v6482
    %v6607 = vmax.f32 %v6453, %v6485
    %v6608 = vsub.f32 %v6426, %v6600
    %v6609 = vsub.f32 %v6429, %v6601
    %v6610 = vsub.f32 %v6434, %v6602
    %v6611 = vsub.f32 %v6437, %v6603
    %v6612 = vsub.f32 %v6442, %v6604
    %v6613 = vsub.f32 %v6445, %v6605
    %v6614 = vsub.f32 %v6450, %v6606
    %v6615 = vsub.f32 %v6453, %v6607
    %v6616 = vmul.f32 %v6608, 1.442695
    %v6617 = vpow.pop %v6616
    %v6618 = vmul.f32 %v6609, 1.442695
    %v6619 = vpow.pop %v6618
    %v6620 = vmul.f32 %v6610, 1.442695
    %v6621 = vpow.pop %v6620
    %v6622 = vmul.f32 %v6611, 1.442695
    %v6623 = vpow.pop %v6622
    %v6624 = vmul.f32 %v6612, 1.442695
    %v6625 = vpow.pop %v6624
    %v6626 = vmul.f32 %v6613, 1.442695
    %v6627 = vpow.pop %v6626
    %v6628 = vmul.f32 %v6614, 1.442695
    %v6629 = vpow.pop %v6628
    %v6630 = vmul.f32 %v6615, 1.442695
    %v6631 = vpow.pop %v6630
    %v6632 = vsub.f32 %v6458, %v6600
    %v6633 = vsub.f32 %v6461, %v6601
    %v6634 = vsub.f32 %v6466, %v6602
    %v6635 = vsub.f32 %v6469, %v6603
    %v6636 = vsub.f32 %v6474, %v6604
    %v6637 = vsub.f32 %v6477, %v6605
    %v6638 = vsub.f32 %v6482, %v6606
    %v6639 = vsub.f32 %v6485, %v6607
    %v6640 = vmul.f32 %v6632, 1.442695
    %v6641 = vpow.pop %v6640
    %v6642 = vmul.f32 %v6633, 1.442695
    %v6643 = vpow.pop %v6642
    %v6644 = vmul.f32 %v6634, 1.442695
    %v6645 = vpow.pop %v6644
    %v6646 = vmul.f32 %v6635, 1.442695
    %v6647 = vpow.pop %v6646
    %v6648 = vmul.f32 %v6636, 1.442695
    %v6649 = vpow.pop %v6648
    %v6650 = vmul.f32 %v6637, 1.442695
    %v6651 = vpow.pop %v6650
    %v6652 = vmul.f32 %v6638, 1.442695
    %v6653 = vpow.pop %v6652
    %v6654 = vmul.f32 %v6639, 1.442695
    %v6655 = vpow.pop %v6654
    %v6656 = vadd.f32 %v6617, %v6641
    %v6657 = vadd.f32 %v6619, %v6643
    %v6658 = vadd.f32 %v6621, %v6645
    %v6659 = vadd.f32 %v6623, %v6647
    %v6660 = vadd.f32 %v6625, %v6649
    %v6661 = vadd.f32 %v6627, %v6651
    %v6662 = vadd.f32 %v6629, %v6653
    %v6663 = vadd.f32 %v6631, %v6655
    %v6664 = vrcp.pop %v6656
    %v6665 = vrcp.pop %v6657
    %v6666 = vrcp.pop %v6658
    %v6667 = vrcp.pop %v6659
    %v6668 = vrcp.pop %v6660
    %v6669 = vrcp.pop %v6661
    %v6670 = vrcp.pop %v6662
    %v6671 = vrcp.pop %v6663
    %v6672 = vmul.f32 %v6617, %v6664
    %v6673 = vmul.f32 %v6619, %v6665
    %v6674 = vmul.f32 %v6621, %v6666
    %v6675 = vmul.f32 %v6623, %v6667
    %v6676 = vmul.f32 %v6625, %v6668
    %v6677 = vmul.f32 %v6627, %v6669
    %v6678 = vmul.f32 %v6629, %v6670
    %v6679 = vmul.f32 %v6631, %v6671
    %v6680 = vmul.f32 %v6672, %v6151
    %v6681 = vmul.f32 %v6673, %v6152
    %v6682 = vmul.f32 %v6674, %v6153
    %v6683 = vmul.f32 %v6675, %v6154
    %v6684 = vmul.f32 %v6676, %v6155
    %v6685 = vmul.f32 %v6677, %v6156
    %v6686 = vmul.f32 %v6678, %v6157
    %v6687 = vmul.f32 %v6679, %v6158
    %v6688 = vmul.f32 %v6641, %v6664
    %v6689 = vmul.f32 %v6643, %v6665
    %v6690 = vmul.f32 %v6645, %v6666
    %v6691 = vmul.f32 %v6647, %v6667
    %v6692 = vmul.f32 %v6649, %v6668
    %v6693 = vmul.f32 %v6651, %v6669
    %v6694 = vmul.f32 %v6653, %v6670
    %v6695 = vmul.f32 %v6655, %v6671
    %v6696 = vmul.f32 %v6688, %v6159
    %v6697 = vmul.f32 %v6689, %v6160
    %v6698 = vmul.f32 %v6690, %v6161
    %v6699 = vmul.f32 %v6691, %v6162
    %v6700 = vmul.f32 %v6692, %v6163
    %v6701 = vmul.f32 %v6693, %v6164
    %v6702 = vmul.f32 %v6694, %v6165
    %v6703 = vmul.f32 %v6695, %v6166
    %v6704 = vadd.f32 %v6680, %v6696
    %v6705 = vadd.f32 %v6681, %v6697
    %v6706 = vadd.f32 %v6682, %v6698
    %v6707 = vadd.f32 %v6683, %v6699
    %v6708 = vadd.f32 %v6684, %v6700
    %v6709 = vadd.f32 %v6685, %v6701
    %v6710 = vadd.f32 %v6686, %v6702
    %v6711 = vadd.f32 %v6687, %v6703
    %v6712 = vpack.c.bf16 %v6593, %v6592
    %v6713 = vpack.c.bf16 %v6595, %v6594
    %v6714 = vpack.c.bf16 %v6597, %v6596
    %v6715 = vpack.c.bf16 %v6599, %v6598
    %v6716 = vpack.c.bf16 %v6705, %v6704
    %v6717 = vpack.c.bf16 %v6707, %v6706
    %v6718 = vpack.c.bf16 %v6709, %v6708
    %v6719 = vpack.c.bf16 %v6711, %v6710
    %s6720 = scalar_lea.vmem [#allocation2], 160
    %v6721 = vld [vmem:[%s6720] sm:$0xf]
    %v6722 = vld [vmem:[%s6720 + $0x4] sm:$0xf]
    %v6723 = vld [vmem:[%s6720 + $0x8] sm:$0xf]
    %v6724 = vld [vmem:[%s6720 + $0xc] sm:$0xf]
    %v6725 = vld [vmem:[%s6720 + $0x10] sm:$0xf]
    %v6726 = vld [vmem:[%s6720 + $0x14] sm:$0xf]
    %v6727 = vld [vmem:[%s6720 + $0x18] sm:$0xf]
    %v6728 = vld [vmem:[%s6720 + $0x1c] sm:$0xf]
    %v6729 = vlaneseq
    %v6730 = vshrl.u32 %v6729, 7
    %v6731 = vsub.s32 3, %v6730
    %v6732 = vrot.slane %v5905, %v6731
    %v6741 = vunpack.c.l.b16 %v6721
    %v6742 = vunpack.c.l.b16 %v6722
    %v6743 = vunpack.c.l.b16 %v6723
    %v6744 = vunpack.c.l.b16 %v6724
    %v6745 = vunpack.c.l.b16 %v6725
    %v6746 = vunpack.c.l.b16 %v6726
    %v6747 = vunpack.c.l.b16 %v6727
    %v6748 = vunpack.c.l.b16 %v6728
    %v6749 = vpack.c.b16 %v6742, %v6741
    %v6750 = vpack.c.b16 %v6744, %v6743
    %v6751 = vpack.c.b16 %v6746, %v6745
    %v6752 = vpack.c.b16 %v6748, %v6747
    %v6758 = vsel %vm188, %v6712, 0
    %v6761 = vsel %vm188, %v6713, 0
    %v6764 = vsel %vm188, %v6714, 0
    %v6767 = vsel %vm188, %v6715, 0
    %v6770 = vsel %vm188, %v6716, 0
    %v6773 = vsel %vm188, %v6717, 0
    %v6776 = vsel %vm188, %v6718, 0
    %v6779 = vsel %vm188, %v6719, 0
    %6781 = vmatprep.subr.bf16.mxu0 0
    %6782 = vmatpush1.bf16.msra.mxu0 %v6749
    %6783 = vmatprep.subr.bf16.mxu0 0
    %6784 = vmatpush1.bf16.msra.mxu0 %v6750
    %6785 = vmatprep.subr.bf16.mxu0 0
    %6786 = vmatpush1.bf16.msra.mxu0 %v6751
    %6787 = vmatprep.subr.bf16.mxu0 0
    %6788 = vmatpush1.bf16.msra.mxu0 %v6752
    %6789 = vmatprep.subr.bf16.mxu0 0
    %6790 = vmatpush1.bf16.msra.mxu0 0
    %6791 = vmatprep.subr.bf16.mxu0 0
    %6792 = vmatpush1.bf16.msra.mxu0 0
    %6793 = vmatprep.subr.bf16.mxu0 0
    %6794 = vmatpush1.bf16.msra.mxu0 0
    %6795 = vmatprep.subr.bf16.mxu0 0
    %6796 = vmatpush1.bf16.msra.mxu0 0
    %6797 = vmatprep.subr.bf16.mxu0 0
    %6798 = vmatpush1.bf16.msra.mxu0 0
    %6799 = vmatprep.subr.bf16.mxu0 0
    %6800 = vmatpush1.bf16.msra.mxu0 0
    %6801 = vmatprep.subr.bf16.mxu0 0
    %6802 = vmatpush1.bf16.msra.mxu0 0
    %6803 = vmatprep.subr.bf16.mxu0 0
    %6804 = vmatpush1.bf16.msra.mxu0 0
    %6805 = vmatprep.subr.bf16.mxu0 0
    %6806 = vmatpush1.bf16.msra.mxu0 0
    %6807 = vmatprep.subr.bf16.mxu0 0
    %6808 = vmatpush1.bf16.msra.mxu0 0
    %6809 = vmatprep.subr.bf16.mxu0 0
    %6810 = vmatpush1.bf16.msra.mxu0 0
    %6811 = vmatprep.subr.bf16.mxu0 0
    %6812 = vmatpush1.bf16.msra.mxu0 0
    %6813 = vmatprep.mubr.bf16.mxu0 0
    %6814 = vmatmul.mubr.bf16.gmra.mrb[0].mxu0 %v6758
    %v6815 = vpop.f32.mrb[0].mxu0
    %v6816 = vadd.f32 %v6732, %v6815
    %v6817 = vpop.f32.mrb[0].mxu0
    %v6818 = vpop.f32.mrb[0].mxu0
    %v6819 = vadd.f32 %v6732, %v6818
    %v6820 = vpop.f32.mrb[0].mxu0
    %6821 = vmatprep.mubr.bf16.mxu0 0
    %6822 = vmatmul.mubr.bf16.gmra.mrb[0].mxu0 %v6761
    %v6823 = vpop.f32.mrb[0].mxu0
    %v6824 = vadd.f32 %v6732, %v6823
    %v6825 = vpop.f32.mrb[0].mxu0
    %v6826 = vpop.f32.mrb[0].mxu0
    %v6827 = vadd.f32 %v6732, %v6826
    %v6828 = vpop.f32.mrb[0].mxu0
    %6829 = vmatprep.mubr.bf16.mxu0 0
    %6830 = vmatmul.mubr.bf16.gmra.mrb[0].mxu0 %v6764
    %v6831 = vpop.f32.mrb[0].mxu0
    %v6832 = vadd.f32 %v6732, %v6831
    %v6833 = vpop.f32.mrb[0].mxu0
    %v6834 = vpop.f32.mrb[0].mxu0
    %v6835 = vadd.f32 %v6732, %v6834
    %v6836 = vpop.f32.mrb[0].mxu0
    %6837 = vmatprep.mubr.bf16.mxu0 0
    %6838 = vmatmul.mubr.bf16.gmra.mrb[0].mxu0 %v6767
    %v6839 = vpop.f32.mrb[0].mxu0
    %v6840 = vadd.f32 %v6732, %v6839
    %v6841 = vpop.f32.mrb[0].mxu0
    %v6842 = vpop.f32.mrb[0].mxu0
    %v6843 = vadd.f32 %v6732, %v6842
    %v6844 = vpop.f32.mrb[0].mxu0
    %6845 = vmatprep.mubr.bf16.mxu0 0
    %6846 = vmatmul.mubr.bf16.gmra.mrb[0].mxu0 %v6770
    %v6847 = vpop.f32.mrb[0].mxu0
    %v6848 = vadd.f32 %v6732, %v6847
    %v6849 = vpop.f32.mrb[0].mxu0
    %v6850 = vpop.f32.mrb[0].mxu0
    %v6851 = vadd.f32 %v6732, %v6850
    %v6852 = vpop.f32.mrb[0].mxu0
    %6853 = vmatprep.mubr.bf16.mxu0 0
    %6854 = vmatmul.mubr.bf16.gmra.mrb[0].mxu0 %v6773
    %v6855 = vpop.f32.mrb[0].mxu0
    %v6856 = vadd.f32 %v6732, %v6855
    %v6857 = vpop.f32.mrb[0].mxu0
    %v6858 = vpop.f32.mrb[0].mxu0
    %v6859 = vadd.f32 %v6732, %v6858
    %v6860 = vpop.f32.mrb[0].mxu0
    %6861 = vmatprep.mubr.bf16.mxu0 0
    %6862 = vmatmul.mubr.bf16.gmra.mrb[0].mxu0 %v6776
    %v6863 = vpop.f32.mrb[0].mxu0
    %v6864 = vadd.f32 %v6732, %v6863
    %v6865 = vpop.f32.mrb[0].mxu0
    %v6866 = vpop.f32.mrb[0].mxu0
    %v6867 = vadd.f32 %v6732, %v6866
    %v6868 = vpop.f32.mrb[0].mxu0
    %6869 = vmatprep.mubr.bf16.mxu0 0
    %6870 = vmatmul.mubr.bf16.gmra.mrb[0].mxu0 %v6779
    %v6871 = vpop.f32.mrb[0].mxu0
    %v6872 = vadd.f32 %v6732, %v6871
    %v6873 = vpop.f32.mrb[0].mxu0
    %v6874 = vpop.f32.mrb[0].mxu0
    %v6875 = vadd.f32 %v6732, %v6874
    %v6876 = vpop.f32.mrb[0].mxu0
    %6877 = vdwg.mxu0
    %v6878 = vadd.f32 %v5888, %v6816
    %v6879 = vadd.f32 %v5889, %v6819
    %v6880 = vadd.f32 %v5890, %v6824
    %v6881 = vadd.f32 %v5891, %v6827
    %v6882 = vadd.f32 %v5892, %v6832
    %v6883 = vadd.f32 %v5893, %v6835
    %v6884 = vadd.f32 %v5894, %v6840
    %v6885 = vadd.f32 %v5895, %v6843
    %v6886 = vadd.f32 %v5896, %v6848
    %v6887 = vadd.f32 %v5897, %v6851
    %v6888 = vadd.f32 %v5898, %v6856
    %v6889 = vadd.f32 %v5899, %v6859
    %v6890 = vadd.f32 %v5900, %v6864
    %v6891 = vadd.f32 %v5901, %v6867
    %v6892 = vadd.f32 %v5902, %v6872
    %v6893 = vadd.f32 %v5903, %v6875
    %v6894 = vsel %vm188, %v6878, 0.0
    %6895 = vadd.xlane.f32.xlu0 %v6894
    %v6896 = vpop.xlane.xlu0 %6895
    %v6897 = vsel %vm188, %v6879, 0.0
    %6898 = vadd.xlane.f32.xlu0 %v6897
    %v6899 = vpop.xlane.xlu0 %6898
    %v6900 = vsel %vm188, %v6880, 0.0
    %6901 = vadd.xlane.f32.xlu0 %v6900
    %v6902 = vpop.xlane.xlu0 %6901
    %v6903 = vsel %vm188, %v6881, 0.0
    %6904 = vadd.xlane.f32.xlu0 %v6903
    %v6905 = vpop.xlane.xlu0 %6904
    %v6906 = vsel %vm188, %v6882, 0.0
    %6907 = vadd.xlane.f32.xlu0 %v6906
    %v6908 = vpop.xlane.xlu0 %6907
    %v6909 = vsel %vm188, %v6883, 0.0
    %6910 = vadd.xlane.f32.xlu0 %v6909
    %v6911 = vpop.xlane.xlu0 %6910
    %v6912 = vsel %vm188, %v6884, 0.0
    %6913 = vadd.xlane.f32.xlu0 %v6912
    %v6914 = vpop.xlane.xlu0 %6913
    %v6915 = vsel %vm188, %v6885, 0.0
    %6916 = vadd.xlane.f32.xlu0 %v6915
    %v6917 = vpop.xlane.xlu0 %6916
    %v6918 = vsel %vm188, %v6886, 0.0
    %6919 = vadd.xlane.f32.xlu0 %v6918
    %v6920 = vpop.xlane.xlu0 %6919
    %v6921 = vsel %vm188, %v6887, 0.0
    %6922 = vadd.xlane.f32.xlu0 %v6921
    %v6923 = vpop.xlane.xlu0 %6922
    %v6924 = vsel %vm188, %v6888, 0.0
    %6925 = vadd.xlane.f32.xlu0 %v6924
    %v6926 = vpop.xlane.xlu0 %6925
    %v6927 = vsel %vm188, %v6889, 0.0
    %6928 = vadd.xlane.f32.xlu0 %v6927
    %v6929 = vpop.xlane.xlu0 %6928
    %v6930 = vsel %vm188, %v6890, 0.0
    %6931 = vadd.xlane.f32.xlu0 %v6930
    %v6932 = vpop.xlane.xlu0 %6931
    %v6933 = vsel %vm188, %v6891, 0.0
    %6934 = vadd.xlane.f32.xlu0 %v6933
    %v6935 = vpop.xlane.xlu0 %6934
    %v6936 = vsel %vm188, %v6892, 0.0
    %6937 = vadd.xlane.f32.xlu0 %v6936
    %v6938 = vpop.xlane.xlu0 %6937
    %v6939 = vsel %vm188, %v6893, 0.0
    %6940 = vadd.xlane.f32.xlu0 %v6939
    %v6941 = vpop.xlane.xlu0 %6940
    %v6942 = vmul.f32 %v6896, %v1369
    %v6943 = vmul.f32 %v6899, %v1369
    %v6944 = vmul.f32 %v6902, %v1369
    %v6945 = vmul.f32 %v6905, %v1369
    %v6946 = vmul.f32 %v6908, %v1369
    %v6947 = vmul.f32 %v6911, %v1369
    %v6948 = vmul.f32 %v6914, %v1369
    %v6949 = vmul.f32 %v6917, %v1369
    %v6950 = vmul.f32 %v6920, %v1369
    %v6951 = vmul.f32 %v6923, %v1369
    %v6952 = vmul.f32 %v6926, %v1369
    %v6953 = vmul.f32 %v6929, %v1369
    %v6954 = vmul.f32 %v6932, %v1369
    %v6955 = vmul.f32 %v6935, %v1369
    %v6956 = vmul.f32 %v6938, %v1369
    %v6957 = vmul.f32 %v6941, %v1369
    %v6958 = vsub.f32 %v6878, %v6942
    %v6959 = vsub.f32 %v6879, %v6943
    %v6960 = vsub.f32 %v6880, %v6944
    %v6961 = vsub.f32 %v6881, %v6945
    %v6962 = vsub.f32 %v6882, %v6946
    %v6963 = vsub.f32 %v6883, %v6947
    %v6964 = vsub.f32 %v6884, %v6948
    %v6965 = vsub.f32 %v6885, %v6949
    %v6966 = vsub.f32 %v6886, %v6950
    %v6967 = vsub.f32 %v6887, %v6951
    %v6968 = vsub.f32 %v6888, %v6952
    %v6969 = vsub.f32 %v6889, %v6953
    %v6970 = vsub.f32 %v6890, %v6954
    %v6971 = vsub.f32 %v6891, %v6955
    %v6972 = vsub.f32 %v6892, %v6956
    %v6973 = vsub.f32 %v6893, %v6957
    %v6974 = vmul.f32 %v6958, %v6958
    %v6975 = vmul.f32 %v6959, %v6959
    %v6976 = vmul.f32 %v6960, %v6960
    %v6977 = vmul.f32 %v6961, %v6961
    %v6978 = vmul.f32 %v6962, %v6962
    %v6979 = vmul.f32 %v6963, %v6963
    %v6980 = vmul.f32 %v6964, %v6964
    %v6981 = vmul.f32 %v6965, %v6965
    %v6982 = vmul.f32 %v6966, %v6966
    %v6983 = vmul.f32 %v6967, %v6967
    %v6984 = vmul.f32 %v6968, %v6968
    %v6985 = vmul.f32 %v6969, %v6969
    %v6986 = vmul.f32 %v6970, %v6970
    %v6987 = vmul.f32 %v6971, %v6971
    %v6988 = vmul.f32 %v6972, %v6972
    %v6989 = vmul.f32 %v6973, %v6973
    %v6990 = vsel %vm188, %v6974, 0.0
    %6991 = vadd.xlane.f32.xlu0 %v6990
    %v6992 = vpop.xlane.xlu0 %6991
    %v6993 = vsel %vm188, %v6975, 0.0
    %6994 = vadd.xlane.f32.xlu0 %v6993
    %v6995 = vpop.xlane.xlu0 %6994
    %v6996 = vsel %vm188, %v6976, 0.0
    %6997 = vadd.xlane.f32.xlu0 %v6996
    %v6998 = vpop.xlane.xlu0 %6997
    %v6999 = vsel %vm188, %v6977, 0.0
    %7000 = vadd.xlane.f32.xlu0 %v6999
    %v7001 = vpop.xlane.xlu0 %7000
    %v7002 = vsel %vm188, %v6978, 0.0
    %7003 = vadd.xlane.f32.xlu0 %v7002
    %v7004 = vpop.xlane.xlu0 %7003
    %v7005 = vsel %vm188, %v6979, 0.0
    %7006 = vadd.xlane.f32.xlu0 %v7005
    %v7007 = vpop.xlane.xlu0 %7006
    %v7008 = vsel %vm188, %v6980, 0.0
    %7009 = vadd.xlane.f32.xlu0 %v7008
    %v7010 = vpop.xlane.xlu0 %7009
    %v7011 = vsel %vm188, %v6981, 0.0
    %7012 = vadd.xlane.f32.xlu0 %v7011
    %v7013 = vpop.xlane.xlu0 %7012
    %v7014 = vsel %vm188, %v6982, 0.0
    %7015 = vadd.xlane.f32.xlu0 %v7014
    %v7016 = vpop.xlane.xlu0 %7015
    %v7017 = vsel %vm188, %v6983, 0.0
    %7018 = vadd.xlane.f32.xlu0 %v7017
    %v7019 = vpop.xlane.xlu0 %7018
    %v7020 = vsel %vm188, %v6984, 0.0
    %7021 = vadd.xlane.f32.xlu0 %v7020
    %v7022 = vpop.xlane.xlu0 %7021
    %v7023 = vsel %vm188, %v6985, 0.0
    %7024 = vadd.xlane.f32.xlu0 %v7023
    %v7025 = vpop.xlane.xlu0 %7024
    %v7026 = vsel %vm188, %v6986, 0.0
    %7027 = vadd.xlane.f32.xlu0 %v7026
    %v7028 = vpop.xlane.xlu0 %7027
    %v7029 = vsel %vm188, %v6987, 0.0
    %7030 = vadd.xlane.f32.xlu0 %v7029
    %v7031 = vpop.xlane.xlu0 %7030
    %v7032 = vsel %vm188, %v6988, 0.0
    %7033 = vadd.xlane.f32.xlu0 %v7032
    %v7034 = vpop.xlane.xlu0 %7033
    %v7035 = vsel %vm188, %v6989, 0.0
    %7036 = vadd.xlane.f32.xlu0 %v7035
    %v7037 = vpop.xlane.xlu0 %7036
    %v7038 = vmul.f32 %v6992, %v1369
    %v7039 = vmul.f32 %v6995, %v1369
    %v7040 = vmul.f32 %v6998, %v1369
    %v7041 = vmul.f32 %v7001, %v1369
    %v7042 = vmul.f32 %v7004, %v1369
    %v7043 = vmul.f32 %v7007, %v1369
    %v7044 = vmul.f32 %v7010, %v1369
    %v7045 = vmul.f32 %v7013, %v1369
    %v7046 = vmul.f32 %v7016, %v1369
    %v7047 = vmul.f32 %v7019, %v1369
    %v7048 = vmul.f32 %v7022, %v1369
    %v7049 = vmul.f32 %v7025, %v1369
    %v7050 = vmul.f32 %v7028, %v1369
    %v7051 = vmul.f32 %v7031, %v1369
    %v7052 = vmul.f32 %v7034, %v1369
    %v7053 = vmul.f32 %v7037, %v1369
    %v7054 = vadd.f32 %v7038, 1e-05
    %v7055 = vadd.f32 %v7039, 1e-05
    %v7056 = vadd.f32 %v7040, 1e-05
    %v7057 = vadd.f32 %v7041, 1e-05
    %v7058 = vadd.f32 %v7042, 1e-05
    %v7059 = vadd.f32 %v7043, 1e-05
    %v7060 = vadd.f32 %v7044, 1e-05
    %v7061 = vadd.f32 %v7045, 1e-05
    %v7062 = vadd.f32 %v7046, 1e-05
    %v7063 = vadd.f32 %v7047, 1e-05
    %v7064 = vadd.f32 %v7048, 1e-05
    %v7065 = vadd.f32 %v7049, 1e-05
    %v7066 = vadd.f32 %v7050, 1e-05
    %v7067 = vadd.f32 %v7051, 1e-05
    %v7068 = vadd.f32 %v7052, 1e-05
    %v7069 = vadd.f32 %v7053, 1e-05
    %v7070 = vrsqrt.pop %v7054
    %v7071 = vrsqrt.pop %v7055
    %v7072 = vrsqrt.pop %v7056
    %v7073 = vrsqrt.pop %v7057
    %v7074 = vrsqrt.pop %v7058
    %v7075 = vrsqrt.pop %v7059
    %v7076 = vrsqrt.pop %v7060
    %v7077 = vrsqrt.pop %v7061
    %v7078 = vrsqrt.pop %v7062
    %v7079 = vrsqrt.pop %v7063
    %v7080 = vrsqrt.pop %v7064
    %v7081 = vrsqrt.pop %v7065
    %v7082 = vrsqrt.pop %v7066
    %v7083 = vrsqrt.pop %v7067
    %v7084 = vrsqrt.pop %v7068
    %v7085 = vrsqrt.pop %v7069
    %v7086 = vmul.f32 %v6958, %v7070
    %v7087 = vmul.f32 %v6959, %v7071
    %v7088 = vmul.f32 %v6960, %v7072
    %v7089 = vmul.f32 %v6961, %v7073
    %v7090 = vmul.f32 %v6962, %v7074
    %v7091 = vmul.f32 %v6963, %v7075
    %v7092 = vmul.f32 %v6964, %v7076
    %v7093 = vmul.f32 %v6965, %v7077
    %v7094 = vmul.f32 %v6966, %v7078
    %v7095 = vmul.f32 %v6967, %v7079
    %v7096 = vmul.f32 %v6968, %v7080
    %v7097 = vmul.f32 %v6969, %v7081
    %v7098 = vmul.f32 %v6970, %v7082
    %v7099 = vmul.f32 %v6971, %v7083
    %v7100 = vmul.f32 %v6972, %v7084
    %v7101 = vmul.f32 %v6973, %v7085
    %v7102 = vlaneseq
    %v7103 = vshrl.u32 %v7102, 7
    %v7104 = vsub.s32 4, %v7103
    %v7105 = vrot.slane %v5905, %v7104
    %v7106 = vmul.f32 %v7086, %v7105
    %v7107 = vmul.f32 %v7087, %v7105
    %v7108 = vmul.f32 %v7088, %v7105
    %v7109 = vmul.f32 %v7089, %v7105
    %v7110 = vmul.f32 %v7090, %v7105
    %v7111 = vmul.f32 %v7091, %v7105
    %v7112 = vmul.f32 %v7092, %v7105
    %v7113 = vmul.f32 %v7093, %v7105
    %v7114 = vmul.f32 %v7094, %v7105
    %v7115 = vmul.f32 %v7095, %v7105
    %v7116 = vmul.f32 %v7096, %v7105
    %v7117 = vmul.f32 %v7097, %v7105
    %v7118 = vmul.f32 %v7098, %v7105
    %v7119 = vmul.f32 %v7099, %v7105
    %v7120 = vmul.f32 %v7100, %v7105
    %v7121 = vmul.f32 %v7101, %v7105
    %v7122 = vlaneseq
    %v7123 = vshrl.u32 %v7122, 7
    %v7124 = vsub.s32 5, %v7123
    %v7125 = vrot.slane %v5905, %v7124
    %v7126 = vadd.f32 %v7106, %v7125
    %v7127 = vadd.f32 %v7107, %v7125
    %v7128 = vadd.f32 %v7108, %v7125
    %v7129 = vadd.f32 %v7109, %v7125
    %v7130 = vadd.f32 %v7110, %v7125
    %v7131 = vadd.f32 %v7111, %v7125
    %v7132 = vadd.f32 %v7112, %v7125
    %v7133 = vadd.f32 %v7113, %v7125
    %v7134 = vadd.f32 %v7114, %v7125
    %v7135 = vadd.f32 %v7115, %v7125
    %v7136 = vadd.f32 %v7116, %v7125
    %v7137 = vadd.f32 %v7117, %v7125
    %v7138 = vadd.f32 %v7118, %v7125
    %v7139 = vadd.f32 %v7119, %v7125
    %v7140 = vadd.f32 %v7120, %v7125
    %v7141 = vadd.f32 %v7121, %v7125
    %v7142 = vpack.c.bf16 %v7127, %v7126
    %v7143 = vpack.c.bf16 %v7129, %v7128
    %v7144 = vpack.c.bf16 %v7131, %v7130
    %v7145 = vpack.c.bf16 %v7133, %v7132
    %v7146 = vpack.c.bf16 %v7135, %v7134
    %v7147 = vpack.c.bf16 %v7137, %v7136
    %v7148 = vpack.c.bf16 %v7139, %v7138
    %v7149 = vpack.c.bf16 %v7141, %v7140
    %s7150 = scalar_lea.vmem [#allocation7], 96
    %v7151 = vld [vmem:[%s7150] sm:$0xf]
    %v7152 = vld [vmem:[%s7150 + $0x4] sm:$0xf]
    %v7153 = vld [vmem:[%s7150 + $0x8] sm:$0xf]
    %v7154 = vld [vmem:[%s7150 + $0xc] sm:$0xf]
    %v7155 = vld [vmem:[%s7150 + $0x10] sm:$0xf]
    %v7156 = vld [vmem:[%s7150 + $0x14] sm:$0xf]
    %v7157 = vld [vmem:[%s7150 + $0x18] sm:$0xf]
    %v7158 = vld [vmem:[%s7150 + $0x1c] sm:$0xf]
    %v7159 = vlaneseq
    %v7160 = vshrl.u32 %v7159, 7
    %v7161 = vsub.s32 0, %v7160
    %v7162 = vrot.slane %v5908, %v7161
    %v7171 = vunpack.c.l.b16 %v7151
    %v7172 = vunpack.c.l.b16 %v7152
    %v7173 = vunpack.c.l.b16 %v7153
    %v7174 = vunpack.c.l.b16 %v7154
    %v7175 = vunpack.c.l.b16 %v7155
    %v7176 = vunpack.c.l.b16 %v7156
    %v7177 = vunpack.c.l.b16 %v7157
    %v7178 = vunpack.c.l.b16 %v7158
    %v7179 = vpack.c.b16 %v7172, %v7171
    %v7180 = vpack.c.b16 %v7174, %v7173
    %v7181 = vpack.c.b16 %v7176, %v7175
    %v7182 = vpack.c.b16 %v7178, %v7177
    %v7188 = vsel %vm188, %v7142, 0
    %v7191 = vsel %vm188, %v7143, 0
    %v7194 = vsel %vm188, %v7144, 0
    %v7197 = vsel %vm188, %v7145, 0
    %v7200 = vsel %vm188, %v7146, 0
    %v7203 = vsel %vm188, %v7147, 0
    %v7206 = vsel %vm188, %v7148, 0
    %v7209 = vsel %vm188, %v7149, 0
    %7211 = vmatprep.subr.bf16.mxu0 0
    %7212 = vmatpush1.bf16.msra.mxu0 %v7179
    %7213 = vmatprep.subr.bf16.mxu0 0
    %7214 = vmatpush1.bf16.msra.mxu0 %v7180
    %7215 = vmatprep.subr.bf16.mxu0 0
    %7216 = vmatpush1.bf16.msra.mxu0 %v7181
    %7217 = vmatprep.subr.bf16.mxu0 0
    %7218 = vmatpush1.bf16.msra.mxu0 %v7182
    %7219 = vmatprep.subr.bf16.mxu0 0
    %7220 = vmatpush1.bf16.msra.mxu0 0
    %7221 = vmatprep.subr.bf16.mxu0 0
    %7222 = vmatpush1.bf16.msra.mxu0 0
    %7223 = vmatprep.subr.bf16.mxu0 0
    %7224 = vmatpush1.bf16.msra.mxu0 0
    %7225 = vmatprep.subr.bf16.mxu0 0
    %7226 = vmatpush1.bf16.msra.mxu0 0
    %7227 = vmatprep.subr.bf16.mxu0 0
    %7228 = vmatpush1.bf16.msra.mxu0 0
    %7229 = vmatprep.subr.bf16.mxu0 0
    %7230 = vmatpush1.bf16.msra.mxu0 0
    %7231 = vmatprep.subr.bf16.mxu0 0
    %7232 = vmatpush1.bf16.msra.mxu0 0
    %7233 = vmatprep.subr.bf16.mxu0 0
    %7234 = vmatpush1.bf16.msra.mxu0 0
    %7235 = vmatprep.subr.bf16.mxu0 0
    %7236 = vmatpush1.bf16.msra.mxu0 0
    %7237 = vmatprep.subr.bf16.mxu0 0
    %7238 = vmatpush1.bf16.msra.mxu0 0
    %7239 = vmatprep.subr.bf16.mxu0 0
    %7240 = vmatpush1.bf16.msra.mxu0 0
    %7241 = vmatprep.subr.bf16.mxu0 0
    %7242 = vmatpush1.bf16.msra.mxu0 0
    %7243 = vmatprep.mubr.bf16.mxu0 0
    %7244 = vmatmul.mubr.bf16.gmra.mrb[0].mxu0 %v7188
    %v7245 = vpop.f32.mrb[0].mxu0
    %v7246 = vadd.f32 %v7162, %v7245
    %v7247 = vpop.f32.mrb[0].mxu0
    %v7248 = vpop.f32.mrb[0].mxu0
    %v7249 = vadd.f32 %v7162, %v7248
    %v7250 = vpop.f32.mrb[0].mxu0
    %7251 = vmatprep.mubr.bf16.mxu0 0
    %7252 = vmatmul.mubr.bf16.gmra.mrb[0].mxu0 %v7191
    %v7253 = vpop.f32.mrb[0].mxu0
    %v7254 = vadd.f32 %v7162, %v7253
    %v7255 = vpop.f32.mrb[0].mxu0
    %v7256 = vpop.f32.mrb[0].mxu0
    %v7257 = vadd.f32 %v7162, %v7256
    %v7258 = vpop.f32.mrb[0].mxu0
    %7259 = vmatprep.mubr.bf16.mxu0 0
    %7260 = vmatmul.mubr.bf16.gmra.mrb[0].mxu0 %v7194
    %v7261 = vpop.f32.mrb[0].mxu0
    %v7262 = vadd.f32 %v7162, %v7261
    %v7263 = vpop.f32.mrb[0].mxu0
    %v7264 = vpop.f32.mrb[0].mxu0
    %v7265 = vadd.f32 %v7162, %v7264
    %v7266 = vpop.f32.mrb[0].mxu0
    %7267 = vmatprep.mubr.bf16.mxu0 0
    %7268 = vmatmul.mubr.bf16.gmra.mrb[0].mxu0 %v7197
    %v7269 = vpop.f32.mrb[0].mxu0
    %v7270 = vadd.f32 %v7162, %v7269
    %v7271 = vpop.f32.mrb[0].mxu0
    %v7272 = vpop.f32.mrb[0].mxu0
    %v7273 = vadd.f32 %v7162, %v7272
    %v7274 = vpop.f32.mrb[0].mxu0
    %7275 = vmatprep.mubr.bf16.mxu0 0
    %7276 = vmatmul.mubr.bf16.gmra.mrb[0].mxu0 %v7200
    %v7277 = vpop.f32.mrb[0].mxu0
    %v7278 = vadd.f32 %v7162, %v7277
    %v7279 = vpop.f32.mrb[0].mxu0
    %v7280 = vpop.f32.mrb[0].mxu0
    %v7281 = vadd.f32 %v7162, %v7280
    %v7282 = vpop.f32.mrb[0].mxu0
    %7283 = vmatprep.mubr.bf16.mxu0 0
    %7284 = vmatmul.mubr.bf16.gmra.mrb[0].mxu0 %v7203
    %v7285 = vpop.f32.mrb[0].mxu0
    %v7286 = vadd.f32 %v7162, %v7285
    %v7287 = vpop.f32.mrb[0].mxu0
    %v7288 = vpop.f32.mrb[0].mxu0
    %v7289 = vadd.f32 %v7162, %v7288
    %v7290 = vpop.f32.mrb[0].mxu0
    %7291 = vmatprep.mubr.bf16.mxu0 0
    %7292 = vmatmul.mubr.bf16.gmra.mrb[0].mxu0 %v7206
    %v7293 = vpop.f32.mrb[0].mxu0
    %v7294 = vadd.f32 %v7162, %v7293
    %v7295 = vpop.f32.mrb[0].mxu0
    %v7296 = vpop.f32.mrb[0].mxu0
    %v7297 = vadd.f32 %v7162, %v7296
    %v7298 = vpop.f32.mrb[0].mxu0
    %7299 = vmatprep.mubr.bf16.mxu0 0
    %7300 = vmatmul.mubr.bf16.gmra.mrb[0].mxu0 %v7209
    %v7301 = vpop.f32.mrb[0].mxu0
    %v7302 = vadd.f32 %v7162, %v7301
    %v7303 = vpop.f32.mrb[0].mxu0
    %v7304 = vpop.f32.mrb[0].mxu0
    %v7305 = vadd.f32 %v7162, %v7304
    %v7306 = vpop.f32.mrb[0].mxu0
    %7307 = vdwg.mxu0
    %v7308 = vmax.f32 %v7246, 0.0
    %v7309 = vmax.f32 %v7249, 0.0
    %v7310 = vmax.f32 %v7254, 0.0
    %v7311 = vmax.f32 %v7257, 0.0
    %v7312 = vmax.f32 %v7262, 0.0
    %v7313 = vmax.f32 %v7265, 0.0
    %v7314 = vmax.f32 %v7270, 0.0
    %v7315 = vmax.f32 %v7273, 0.0
    %v7316 = vmax.f32 %v7278, 0.0
    %v7317 = vmax.f32 %v7281, 0.0
    %v7318 = vmax.f32 %v7286, 0.0
    %v7319 = vmax.f32 %v7289, 0.0
    %v7320 = vmax.f32 %v7294, 0.0
    %v7321 = vmax.f32 %v7297, 0.0
    %v7322 = vmax.f32 %v7302, 0.0
    %v7323 = vmax.f32 %v7305, 0.0
    %v7324 = vpack.c.bf16 %v7309, %v7308
    %v7325 = vpack.c.bf16 %v7311, %v7310
    %v7326 = vpack.c.bf16 %v7313, %v7312
    %v7327 = vpack.c.bf16 %v7315, %v7314
    %v7328 = vpack.c.bf16 %v7317, %v7316
    %v7329 = vpack.c.bf16 %v7319, %v7318
    %v7330 = vpack.c.bf16 %v7321, %v7320
    %v7331 = vpack.c.bf16 %v7323, %v7322
    %s7332 = scalar_lea.vmem %s6, 192
    %v7333 = vld [vmem:[%s7332] sm:$0xf]
    %v7334 = vld [vmem:[%s7332 + $0x4] sm:$0xf]
    %v7335 = vld [vmem:[%s7332 + $0x8] sm:$0xf]
    %v7336 = vld [vmem:[%s7332 + $0xc] sm:$0xf]
    %v7337 = vld [vmem:[%s7332 + $0x10] sm:$0xf]
    %v7338 = vld [vmem:[%s7332 + $0x14] sm:$0xf]
    %v7339 = vld [vmem:[%s7332 + $0x18] sm:$0xf]
    %v7340 = vld [vmem:[%s7332 + $0x1c] sm:$0xf]
    %v7341 = vld [vmem:[%s7332 + $0x20] sm:$0xf]
    %v7342 = vld [vmem:[%s7332 + $0x24] sm:$0xf]
    %v7343 = vld [vmem:[%s7332 + $0x28] sm:$0xf]
    %v7344 = vld [vmem:[%s7332 + $0x2c] sm:$0xf]
    %v7345 = vld [vmem:[%s7332 + $0x30] sm:$0xf]
    %v7346 = vld [vmem:[%s7332 + $0x34] sm:$0xf]
    %v7347 = vld [vmem:[%s7332 + $0x38] sm:$0xf]
    %v7348 = vld [vmem:[%s7332 + $0x3c] sm:$0xf]
    %v7349 = vlaneseq
    %v7350 = vshrl.u32 %v7349, 7
    %v7351 = vsub.s32 0, %v7350
    %v7352 = vrot.slane %v5906, %v7351
    %v7369 = vunpack.c.l.b16 %v7333
    %v7370 = vunpack.c.l.b16 %v7334
    %v7371 = vunpack.c.l.b16 %v7335
    %v7372 = vunpack.c.l.b16 %v7336
    %v7373 = vunpack.c.l.b16 %v7337
    %v7374 = vunpack.c.l.b16 %v7338
    %v7375 = vunpack.c.l.b16 %v7339
    %v7376 = vunpack.c.l.b16 %v7340
    %v7377 = vunpack.c.l.b16 %v7341
    %v7378 = vunpack.c.l.b16 %v7342
    %v7379 = vunpack.c.l.b16 %v7343
    %v7380 = vunpack.c.l.b16 %v7344
    %v7381 = vunpack.c.l.b16 %v7345
    %v7382 = vunpack.c.l.b16 %v7346
    %v7383 = vunpack.c.l.b16 %v7347
    %v7384 = vunpack.c.l.b16 %v7348
    %v7385 = vpack.c.b16 %v7370, %v7369
    %v7386 = vpack.c.b16 %v7372, %v7371
    %v7387 = vpack.c.b16 %v7374, %v7373
    %v7388 = vpack.c.b16 %v7376, %v7375
    %v7389 = vpack.c.b16 %v7378, %v7377
    %v7390 = vpack.c.b16 %v7380, %v7379
    %v7391 = vpack.c.b16 %v7382, %v7381
    %v7392 = vpack.c.b16 %v7384, %v7383
    %7401 = vmatprep.subr.bf16.mxu0 0
    %7402 = vmatpush1.bf16.msra.mxu0 %v7385
    %7403 = vmatprep.subr.bf16.mxu0 0
    %7404 = vmatpush1.bf16.msra.mxu0 %v7386
    %7405 = vmatprep.subr.bf16.mxu0 0
    %7406 = vmatpush1.bf16.msra.mxu0 %v7387
    %7407 = vmatprep.subr.bf16.mxu0 0
    %7408 = vmatpush1.bf16.msra.mxu0 %v7388
    %7409 = vmatprep.subr.bf16.mxu0 0
    %7410 = vmatpush1.bf16.msra.mxu0 %v7389
    %7411 = vmatprep.subr.bf16.mxu0 0
    %7412 = vmatpush1.bf16.msra.mxu0 %v7390
    %7413 = vmatprep.subr.bf16.mxu0 0
    %7414 = vmatpush1.bf16.msra.mxu0 %v7391
    %7415 = vmatprep.subr.bf16.mxu0 0
    %7416 = vmatpush1.bf16.msra.mxu0 %v7392
    %7417 = vmatprep.subr.bf16.mxu0 0
    %7418 = vmatpush1.bf16.msra.mxu0 0
    %7419 = vmatprep.subr.bf16.mxu0 0
    %7420 = vmatpush1.bf16.msra.mxu0 0
    %7421 = vmatprep.subr.bf16.mxu0 0
    %7422 = vmatpush1.bf16.msra.mxu0 0
    %7423 = vmatprep.subr.bf16.mxu0 0
    %7424 = vmatpush1.bf16.msra.mxu0 0
    %7425 = vmatprep.subr.bf16.mxu0 0
    %7426 = vmatpush1.bf16.msra.mxu0 0
    %7427 = vmatprep.subr.bf16.mxu0 0
    %7428 = vmatpush1.bf16.msra.mxu0 0
    %7429 = vmatprep.subr.bf16.mxu0 0
    %7430 = vmatpush1.bf16.msra.mxu0 0
    %7431 = vmatprep.subr.bf16.mxu0 0
    %7432 = vmatpush1.bf16.msra.mxu0 0
    %7433 = vmatprep.mubr.bf16.mxu0 0
    %7434 = vmatmul.mubr.bf16.gmra.mrb[0].mxu0 %v7324
    %v7435 = vpop.f32.mrb[0].mxu0
    %v7436 = vadd.f32 %v7352, %v7435
    %v7437 = vpop.f32.mrb[0].mxu0
    %v7438 = vpop.f32.mrb[0].mxu0
    %v7439 = vadd.f32 %v7352, %v7438
    %v7440 = vpop.f32.mrb[0].mxu0
    %7441 = vmatprep.mubr.bf16.mxu0 0
    %7442 = vmatmul.mubr.bf16.gmra.mrb[0].mxu0 %v7325
    %v7443 = vpop.f32.mrb[0].mxu0
    %v7444 = vadd.f32 %v7352, %v7443
    %v7445 = vpop.f32.mrb[0].mxu0
    %v7446 = vpop.f32.mrb[0].mxu0
    %v7447 = vadd.f32 %v7352, %v7446
    %v7448 = vpop.f32.mrb[0].mxu0
    %7449 = vmatprep.mubr.bf16.mxu0 0
    %7450 = vmatmul.mubr.bf16.gmra.mrb[0].mxu0 %v7326
    %v7451 = vpop.f32.mrb[0].mxu0
    %v7452 = vadd.f32 %v7352, %v7451
    %v7453 = vpop.f32.mrb[0].mxu0
    %v7454 = vpop.f32.mrb[0].mxu0
    %v7455 = vadd.f32 %v7352, %v7454
    %v7456 = vpop.f32.mrb[0].mxu0
    %7457 = vmatprep.mubr.bf16.mxu0 0
    %7458 = vmatmul.mubr.bf16.gmra.mrb[0].mxu0 %v7327
    %v7459 = vpop.f32.mrb[0].mxu0
    %v7460 = vadd.f32 %v7352, %v7459
    %v7461 = vpop.f32.mrb[0].mxu0
    %v7462 = vpop.f32.mrb[0].mxu0
    %v7463 = vadd.f32 %v7352, %v7462
    %v7464 = vpop.f32.mrb[0].mxu0
    %7465 = vmatprep.mubr.bf16.mxu0 0
    %7466 = vmatmul.mubr.bf16.gmra.mrb[0].mxu0 %v7328
    %v7467 = vpop.f32.mrb[0].mxu0
    %v7468 = vadd.f32 %v7352, %v7467
    %v7469 = vpop.f32.mrb[0].mxu0
    %v7470 = vpop.f32.mrb[0].mxu0
    %v7471 = vadd.f32 %v7352, %v7470
    %v7472 = vpop.f32.mrb[0].mxu0
    %7473 = vmatprep.mubr.bf16.mxu0 0
    %7474 = vmatmul.mubr.bf16.gmra.mrb[0].mxu0 %v7329
    %v7475 = vpop.f32.mrb[0].mxu0
    %v7476 = vadd.f32 %v7352, %v7475
    %v7477 = vpop.f32.mrb[0].mxu0
    %v7478 = vpop.f32.mrb[0].mxu0
    %v7479 = vadd.f32 %v7352, %v7478
    %v7480 = vpop.f32.mrb[0].mxu0
    %7481 = vmatprep.mubr.bf16.mxu0 0
    %7482 = vmatmul.mubr.bf16.gmra.mrb[0].mxu0 %v7330
    %v7483 = vpop.f32.mrb[0].mxu0
    %v7484 = vadd.f32 %v7352, %v7483
    %v7485 = vpop.f32.mrb[0].mxu0
    %v7486 = vpop.f32.mrb[0].mxu0
    %v7487 = vadd.f32 %v7352, %v7486
    %v7488 = vpop.f32.mrb[0].mxu0
    %7489 = vmatprep.mubr.bf16.mxu0 0
    %7490 = vmatmul.mubr.bf16.gmra.mrb[0].mxu0 %v7331
    %v7491 = vpop.f32.mrb[0].mxu0
    %v7492 = vadd.f32 %v7352, %v7491
    %v7493 = vpop.f32.mrb[0].mxu0
    %v7494 = vpop.f32.mrb[0].mxu0
    %v7495 = vadd.f32 %v7352, %v7494
    %v7496 = vpop.f32.mrb[0].mxu0
    %7497 = vdwg.mxu0
    %v7498 = vadd.f32 %v7126, %v7436
    %v7499 = vadd.f32 %v7127, %v7439
    %v7500 = vadd.f32 %v7128, %v7444
    %v7501 = vadd.f32 %v7129, %v7447
    %v7502 = vadd.f32 %v7130, %v7452
    %v7503 = vadd.f32 %v7131, %v7455
    %v7504 = vadd.f32 %v7132, %v7460
    %v7505 = vadd.f32 %v7133, %v7463
    %v7506 = vadd.f32 %v7134, %v7468
    %v7507 = vadd.f32 %v7135, %v7471
    %v7508 = vadd.f32 %v7136, %v7476
    %v7509 = vadd.f32 %v7137, %v7479
    %v7510 = vadd.f32 %v7138, %v7484
    %v7511 = vadd.f32 %v7139, %v7487
    %v7512 = vadd.f32 %v7140, %v7492
    %v7513 = vadd.f32 %v7141, %v7495
    %v7514 = vsel %vm188, %v7498, 0.0
    %7515 = vadd.xlane.f32.xlu0 %v7514
    %v7516 = vpop.xlane.xlu0 %7515
    %v7517 = vsel %vm188, %v7499, 0.0
    %7518 = vadd.xlane.f32.xlu0 %v7517
    %v7519 = vpop.xlane.xlu0 %7518
    %v7520 = vsel %vm188, %v7500, 0.0
    %7521 = vadd.xlane.f32.xlu0 %v7520
    %v7522 = vpop.xlane.xlu0 %7521
    %v7523 = vsel %vm188, %v7501, 0.0
    %7524 = vadd.xlane.f32.xlu0 %v7523
    %v7525 = vpop.xlane.xlu0 %7524
    %v7526 = vsel %vm188, %v7502, 0.0
    %7527 = vadd.xlane.f32.xlu0 %v7526
    %v7528 = vpop.xlane.xlu0 %7527
    %v7529 = vsel %vm188, %v7503, 0.0
    %7530 = vadd.xlane.f32.xlu0 %v7529
    %v7531 = vpop.xlane.xlu0 %7530
    %v7532 = vsel %vm188, %v7504, 0.0
    %7533 = vadd.xlane.f32.xlu0 %v7532
    %v7534 = vpop.xlane.xlu0 %7533
    %v7535 = vsel %vm188, %v7505, 0.0
    %7536 = vadd.xlane.f32.xlu0 %v7535
    %v7537 = vpop.xlane.xlu0 %7536
    %v7538 = vsel %vm188, %v7506, 0.0
    %7539 = vadd.xlane.f32.xlu0 %v7538
    %v7540 = vpop.xlane.xlu0 %7539
    %v7541 = vsel %vm188, %v7507, 0.0
    %7542 = vadd.xlane.f32.xlu0 %v7541
    %v7543 = vpop.xlane.xlu0 %7542
    %v7544 = vsel %vm188, %v7508, 0.0
    %7545 = vadd.xlane.f32.xlu0 %v7544
    %v7546 = vpop.xlane.xlu0 %7545
    %v7547 = vsel %vm188, %v7509, 0.0
    %7548 = vadd.xlane.f32.xlu0 %v7547
    %v7549 = vpop.xlane.xlu0 %7548
    %v7550 = vsel %vm188, %v7510, 0.0
    %7551 = vadd.xlane.f32.xlu0 %v7550
    %v7552 = vpop.xlane.xlu0 %7551
    %v7553 = vsel %vm188, %v7511, 0.0
    %7554 = vadd.xlane.f32.xlu0 %v7553
    %v7555 = vpop.xlane.xlu0 %7554
    %v7556 = vsel %vm188, %v7512, 0.0
    %7557 = vadd.xlane.f32.xlu0 %v7556
    %v7558 = vpop.xlane.xlu0 %7557
    %v7559 = vsel %vm188, %v7513, 0.0
    %7560 = vadd.xlane.f32.xlu0 %v7559
    %v7561 = vpop.xlane.xlu0 %7560
    %v7562 = vmul.f32 %v7516, %v1369
    %v7563 = vmul.f32 %v7519, %v1369
    %v7564 = vmul.f32 %v7522, %v1369
    %v7565 = vmul.f32 %v7525, %v1369
    %v7566 = vmul.f32 %v7528, %v1369
    %v7567 = vmul.f32 %v7531, %v1369
    %v7568 = vmul.f32 %v7534, %v1369
    %v7569 = vmul.f32 %v7537, %v1369
    %v7570 = vmul.f32 %v7540, %v1369
    %v7571 = vmul.f32 %v7543, %v1369
    %v7572 = vmul.f32 %v7546, %v1369
    %v7573 = vmul.f32 %v7549, %v1369
    %v7574 = vmul.f32 %v7552, %v1369
    %v7575 = vmul.f32 %v7555, %v1369
    %v7576 = vmul.f32 %v7558, %v1369
    %v7577 = vmul.f32 %v7561, %v1369
    %v7578 = vsub.f32 %v7498, %v7562
    %v7579 = vsub.f32 %v7499, %v7563
    %v7580 = vsub.f32 %v7500, %v7564
    %v7581 = vsub.f32 %v7501, %v7565
    %v7582 = vsub.f32 %v7502, %v7566
    %v7583 = vsub.f32 %v7503, %v7567
    %v7584 = vsub.f32 %v7504, %v7568
    %v7585 = vsub.f32 %v7505, %v7569
    %v7586 = vsub.f32 %v7506, %v7570
    %v7587 = vsub.f32 %v7507, %v7571
    %v7588 = vsub.f32 %v7508, %v7572
    %v7589 = vsub.f32 %v7509, %v7573
    %v7590 = vsub.f32 %v7510, %v7574
    %v7591 = vsub.f32 %v7511, %v7575
    %v7592 = vsub.f32 %v7512, %v7576
    %v7593 = vsub.f32 %v7513, %v7577
    %v7594 = vmul.f32 %v7578, %v7578
    %v7595 = vmul.f32 %v7579, %v7579
    %v7596 = vmul.f32 %v7580, %v7580
    %v7597 = vmul.f32 %v7581, %v7581
    %v7598 = vmul.f32 %v7582, %v7582
    %v7599 = vmul.f32 %v7583, %v7583
    %v7600 = vmul.f32 %v7584, %v7584
    %v7601 = vmul.f32 %v7585, %v7585
    %v7602 = vmul.f32 %v7586, %v7586
    %v7603 = vmul.f32 %v7587, %v7587
    %v7604 = vmul.f32 %v7588, %v7588
    %v7605 = vmul.f32 %v7589, %v7589
    %v7606 = vmul.f32 %v7590, %v7590
    %v7607 = vmul.f32 %v7591, %v7591
    %v7608 = vmul.f32 %v7592, %v7592
    %v7609 = vmul.f32 %v7593, %v7593
    %v7610 = vsel %vm188, %v7594, 0.0
    %7611 = vadd.xlane.f32.xlu0 %v7610
    %v7612 = vpop.xlane.xlu0 %7611
    %v7613 = vsel %vm188, %v7595, 0.0
    %7614 = vadd.xlane.f32.xlu0 %v7613
    %v7615 = vpop.xlane.xlu0 %7614
    %v7616 = vsel %vm188, %v7596, 0.0
    %7617 = vadd.xlane.f32.xlu0 %v7616
    %v7618 = vpop.xlane.xlu0 %7617
    %v7619 = vsel %vm188, %v7597, 0.0
    %7620 = vadd.xlane.f32.xlu0 %v7619
    %v7621 = vpop.xlane.xlu0 %7620
    %v7622 = vsel %vm188, %v7598, 0.0
    %7623 = vadd.xlane.f32.xlu0 %v7622
    %v7624 = vpop.xlane.xlu0 %7623
    %v7625 = vsel %vm188, %v7599, 0.0
    %7626 = vadd.xlane.f32.xlu0 %v7625
    %v7627 = vpop.xlane.xlu0 %7626
    %v7628 = vsel %vm188, %v7600, 0.0
    %7629 = vadd.xlane.f32.xlu0 %v7628
    %v7630 = vpop.xlane.xlu0 %7629
    %v7631 = vsel %vm188, %v7601, 0.0
    %7632 = vadd.xlane.f32.xlu0 %v7631
    %v7633 = vpop.xlane.xlu0 %7632
    %v7634 = vsel %vm188, %v7602, 0.0
    %7635 = vadd.xlane.f32.xlu0 %v7634
    %v7636 = vpop.xlane.xlu0 %7635
    %v7637 = vsel %vm188, %v7603, 0.0
    %7638 = vadd.xlane.f32.xlu0 %v7637
    %v7639 = vpop.xlane.xlu0 %7638
    %v7640 = vsel %vm188, %v7604, 0.0
    %7641 = vadd.xlane.f32.xlu0 %v7640
    %v7642 = vpop.xlane.xlu0 %7641
    %v7643 = vsel %vm188, %v7605, 0.0
    %7644 = vadd.xlane.f32.xlu0 %v7643
    %v7645 = vpop.xlane.xlu0 %7644
    %v7646 = vsel %vm188, %v7606, 0.0
    %7647 = vadd.xlane.f32.xlu0 %v7646
    %v7648 = vpop.xlane.xlu0 %7647
    %v7649 = vsel %vm188, %v7607, 0.0
    %7650 = vadd.xlane.f32.xlu0 %v7649
    %v7651 = vpop.xlane.xlu0 %7650
    %v7652 = vsel %vm188, %v7608, 0.0
    %7653 = vadd.xlane.f32.xlu0 %v7652
    %v7654 = vpop.xlane.xlu0 %7653
    %v7655 = vsel %vm188, %v7609, 0.0
    %7656 = vadd.xlane.f32.xlu0 %v7655
    %v7657 = vpop.xlane.xlu0 %7656
    %v7658 = vmul.f32 %v7612, %v1369
    %v7659 = vmul.f32 %v7615, %v1369
    %v7660 = vmul.f32 %v7618, %v1369
    %v7661 = vmul.f32 %v7621, %v1369
    %v7662 = vmul.f32 %v7624, %v1369
    %v7663 = vmul.f32 %v7627, %v1369
    %v7664 = vmul.f32 %v7630, %v1369
    %v7665 = vmul.f32 %v7633, %v1369
    %v7666 = vmul.f32 %v7636, %v1369
    %v7667 = vmul.f32 %v7639, %v1369
    %v7668 = vmul.f32 %v7642, %v1369
    %v7669 = vmul.f32 %v7645, %v1369
    %v7670 = vmul.f32 %v7648, %v1369
    %v7671 = vmul.f32 %v7651, %v1369
    %v7672 = vmul.f32 %v7654, %v1369
    %v7673 = vmul.f32 %v7657, %v1369
    %v7674 = vadd.f32 %v7658, 1e-05
    %v7675 = vadd.f32 %v7659, 1e-05
    %v7676 = vadd.f32 %v7660, 1e-05
    %v7677 = vadd.f32 %v7661, 1e-05
    %v7678 = vadd.f32 %v7662, 1e-05
    %v7679 = vadd.f32 %v7663, 1e-05
    %v7680 = vadd.f32 %v7664, 1e-05
    %v7681 = vadd.f32 %v7665, 1e-05
    %v7682 = vadd.f32 %v7666, 1e-05
    %v7683 = vadd.f32 %v7667, 1e-05
    %v7684 = vadd.f32 %v7668, 1e-05
    %v7685 = vadd.f32 %v7669, 1e-05
    %v7686 = vadd.f32 %v7670, 1e-05
    %v7687 = vadd.f32 %v7671, 1e-05
    %v7688 = vadd.f32 %v7672, 1e-05
    %v7689 = vadd.f32 %v7673, 1e-05
    %v7690 = vrsqrt.pop %v7674
    %v7691 = vrsqrt.pop %v7675
    %v7692 = vrsqrt.pop %v7676
    %v7693 = vrsqrt.pop %v7677
    %v7694 = vrsqrt.pop %v7678
    %v7695 = vrsqrt.pop %v7679
    %v7696 = vrsqrt.pop %v7680
    %v7697 = vrsqrt.pop %v7681
    %v7698 = vrsqrt.pop %v7682
    %v7699 = vrsqrt.pop %v7683
    %v7700 = vrsqrt.pop %v7684
    %v7701 = vrsqrt.pop %v7685
    %v7702 = vrsqrt.pop %v7686
    %v7703 = vrsqrt.pop %v7687
    %v7704 = vrsqrt.pop %v7688
    %v7705 = vrsqrt.pop %v7689
    %v7706 = vmul.f32 %v7578, %v7690
    %v7707 = vmul.f32 %v7579, %v7691
    %v7708 = vmul.f32 %v7580, %v7692
    %v7709 = vmul.f32 %v7581, %v7693
    %v7710 = vmul.f32 %v7582, %v7694
    %v7711 = vmul.f32 %v7583, %v7695
    %v7712 = vmul.f32 %v7584, %v7696
    %v7713 = vmul.f32 %v7585, %v7697
    %v7714 = vmul.f32 %v7586, %v7698
    %v7715 = vmul.f32 %v7587, %v7699
    %v7716 = vmul.f32 %v7588, %v7700
    %v7717 = vmul.f32 %v7589, %v7701
    %v7718 = vmul.f32 %v7590, %v7702
    %v7719 = vmul.f32 %v7591, %v7703
    %v7720 = vmul.f32 %v7592, %v7704
    %v7721 = vmul.f32 %v7593, %v7705
    %v7722 = vlaneseq
    %v7723 = vshrl.u32 %v7722, 7
    %v7724 = vsub.s32 6, %v7723
    %v7725 = vrot.slane %v5905, %v7724
    %v7726 = vmul.f32 %v7706, %v7725
    %v7727 = vmul.f32 %v7707, %v7725
    %v7728 = vmul.f32 %v7708, %v7725
    %v7729 = vmul.f32 %v7709, %v7725
    %v7730 = vmul.f32 %v7710, %v7725
    %v7731 = vmul.f32 %v7711, %v7725
    %v7732 = vmul.f32 %v7712, %v7725
    %v7733 = vmul.f32 %v7713, %v7725
    %v7734 = vmul.f32 %v7714, %v7725
    %v7735 = vmul.f32 %v7715, %v7725
    %v7736 = vmul.f32 %v7716, %v7725
    %v7737 = vmul.f32 %v7717, %v7725
    %v7738 = vmul.f32 %v7718, %v7725
    %v7739 = vmul.f32 %v7719, %v7725
    %v7740 = vmul.f32 %v7720, %v7725
    %v7741 = vmul.f32 %v7721, %v7725
    %v7742 = vlaneseq
    %v7743 = vshrl.u32 %v7742, 7
    %v7744 = vsub.s32 7, %v7743
    %v7745 = vrot.slane %v5905, %v7744
    %v7746 = vadd.f32 %v7726, %v7745
    %v7747 = vadd.f32 %v7727, %v7745
    %v7748 = vadd.f32 %v7728, %v7745
    %v7749 = vadd.f32 %v7729, %v7745
    %v7750 = vadd.f32 %v7730, %v7745
    %v7751 = vadd.f32 %v7731, %v7745
    %v7752 = vadd.f32 %v7732, %v7745
    %v7753 = vadd.f32 %v7733, %v7745
    %v7754 = vadd.f32 %v7734, %v7745
    %v7755 = vadd.f32 %v7735, %v7745
    %v7756 = vadd.f32 %v7736, %v7745
    %v7757 = vadd.f32 %v7737, %v7745
    %v7758 = vadd.f32 %v7738, %v7745
    %v7759 = vadd.f32 %v7739, %v7745
    %v7760 = vadd.f32 %v7740, %v7745
    %v7761 = vadd.f32 %v7741, %v7745
    %v7762 = vld [vmem:[%s2] sm:$0x1]
    %v7763 = vpack.c.bf16 %v7747, %v7746
    %v7764 = vpack.c.bf16 %v7749, %v7748
    %v7765 = vpack.c.bf16 %v7751, %v7750
    %v7766 = vpack.c.bf16 %v7753, %v7752
    %v7767 = vpack.c.bf16 %v7755, %v7754
    %v7768 = vpack.c.bf16 %v7757, %v7756
    %v7769 = vpack.c.bf16 %v7759, %v7758
    %v7770 = vpack.c.bf16 %v7761, %v7760
    %7771 = vmatprep.subr.bf16.mxu0 0
    %7772 = vmatpush1.bf16.msra.mxu0 %v7763
    %7773 = vmatprep.subr.bf16.mxu0 0
    %7774 = vmatpush1.bf16.msra.mxu0 %v7764
    %7775 = vmatprep.subr.bf16.mxu0 0
    %7776 = vmatpush1.bf16.msra.mxu0 %v7765
    %7777 = vmatprep.subr.bf16.mxu0 0
    %7778 = vmatpush1.bf16.msra.mxu0 %v7766
    %7779 = vmatprep.subr.bf16.mxu0 0
    %7780 = vmatpush1.bf16.msra.mxu0 %v7767
    %7781 = vmatprep.subr.bf16.mxu0 0
    %7782 = vmatpush1.bf16.msra.mxu0 %v7768
    %7783 = vmatprep.subr.bf16.mxu0 0
    %7784 = vmatpush1.bf16.msra.mxu0 %v7769
    %7785 = vmatprep.subr.bf16.mxu0 0
    %7786 = vmatpush1.bf16.msra.mxu0 %v7770
    %7787 = vmatprep.subr.bf16.mxu0 0
    %7788 = vmatpush1.bf16.msra.mxu0 0
    %7789 = vmatprep.subr.bf16.mxu0 0
    %7790 = vmatpush1.bf16.msra.mxu0 0
    %7791 = vmatprep.subr.bf16.mxu0 0
    %7792 = vmatpush1.bf16.msra.mxu0 0
    %7793 = vmatprep.subr.bf16.mxu0 0
    %7794 = vmatpush1.bf16.msra.mxu0 0
    %7795 = vmatprep.subr.bf16.mxu0 0
    %7796 = vmatpush1.bf16.msra.mxu0 0
    %7797 = vmatprep.subr.bf16.mxu0 0
    %7798 = vmatpush1.bf16.msra.mxu0 0
    %7799 = vmatprep.subr.bf16.mxu0 0
    %7800 = vmatpush1.bf16.msra.mxu0 0
    %7801 = vmatprep.subr.bf16.mxu0 0
    %7802 = vmatpush1.bf16.msra.mxu0 0
    %7803 = vmatprep.mubr.bf16.mxu0 0
    %7804 = vmatmul.mubr.bf16.gmra.mrb[0].mxu0 %v7762
    %v7805 = vpop.f32.mrb[0].mxu0
    %v7806 = vadd.f32 0.0, %v7805
    %v7807 = vpop.f32.mrb[0].mxu0
    %v7808 = vpop.f32.mrb[0].mxu0
    %v7809 = vpop.f32.mrb[0].mxu0
    %7810 = vdwg.mxu0
    %s7811 = scalar_lea.vmem %s7, 64
    %v7812 = vld [vmem:[%s7811] sm:$0xff]
    %s7813 = scalar_lea.vmem %s8, 8
    %v7814 = vld [vmem:[%s7813] sm:$0x3]
    %vm7815 = vcmask 517120
    %v7816 = vsel %vm7815, %v7806, 0.0
    %7817 = vadd.xlane.f32.xlu0 %v7816
    %v7818 = vpop.xlane.xlu0 %7817
    %v7819 = vmul.f32 %v7818, %v1369
    %v7820 = vsub.f32 %v7806, %v7819
    %v7821 = vmul.f32 %v7820, %v7820
    %v7822 = vsel %vm7815, %v7821, 0.0
    %7823 = vadd.xlane.f32.xlu0 %v7822
    %v7824 = vpop.xlane.xlu0 %7823
    %v7825 = vmul.f32 %v7824, %v1369
    %v7826 = vadd.f32 %v7825, 1e-05
    %v7827 = vrsqrt.pop %v7826
    %v7828 = vmul.f32 %v7820, %v7827
    %v7829 = vlaneseq
    %v7830 = vshrl.u32 %v7829, 7
    %v7831 = vsub.s32 0, %v7830
    %v7832 = vrot.slane %v7812, %v7831
    %v7833 = vmul.f32 %v7828, %v7832
    %v7834 = vlaneseq
    %v7835 = vshrl.u32 %v7834, 7
    %v7836 = vsub.s32 1, %v7835
    %v7837 = vrot.slane %v7812, %v7836
    %v7838 = vadd.f32 %v7833, %v7837
    %v7839 = vpack.c.bf16 %v7838, %v7838
    %s7840 = scalar_lea.vmem [#allocation7], 128
    %v7841 = vld [vmem:[%s7840] sm:$0xf]
    %v7842 = vld [vmem:[%s7840 + $0x4] sm:$0xf]
    %v7843 = vld [vmem:[%s7840 + $0x8] sm:$0xf]
    %v7844 = vld [vmem:[%s7840 + $0xc] sm:$0xf]
    %v7845 = vld [vmem:[%s7840 + $0x10] sm:$0xf]
    %v7846 = vld [vmem:[%s7840 + $0x14] sm:$0xf]
    %v7847 = vld [vmem:[%s7840 + $0x18] sm:$0xf]
    %v7848 = vld [vmem:[%s7840 + $0x1c] sm:$0xf]
    %v7849 = vlaneseq
    %v7850 = vshrl.u32 %v7849, 7
    %v7851 = vsub.s32 0, %v7850
    %v7852 = vrot.slane %v7814, %v7851
    %v7861 = vunpack.c.l.b16 %v7841
    %v7862 = vunpack.c.l.b16 %v7842
    %v7863 = vunpack.c.l.b16 %v7843
    %v7864 = vunpack.c.l.b16 %v7844
    %v7865 = vunpack.c.l.b16 %v7845
    %v7866 = vunpack.c.l.b16 %v7846
    %v7867 = vunpack.c.l.b16 %v7847
    %v7868 = vunpack.c.l.b16 %v7848
    %v7869 = vpack.c.b16 %v7862, %v7861
    %v7870 = vpack.c.b16 %v7864, %v7863
    %v7871 = vpack.c.b16 %v7866, %v7865
    %v7872 = vpack.c.b16 %v7868, %v7867
    %v7878 = vsel %vm188, %v7839, 0
    %7880 = vmatprep.subr.bf16.mxu0 0
    %7881 = vmatpush1.bf16.msra.mxu0 %v7869
    %7882 = vmatprep.subr.bf16.mxu0 0
    %7883 = vmatpush1.bf16.msra.mxu0 %v7870
    %7884 = vmatprep.subr.bf16.mxu0 0
    %7885 = vmatpush1.bf16.msra.mxu0 %v7871
    %7886 = vmatprep.subr.bf16.mxu0 0
    %7887 = vmatpush1.bf16.msra.mxu0 %v7872
    %7888 = vmatprep.subr.bf16.mxu0 0
    %7889 = vmatpush1.bf16.msra.mxu0 0
    %7890 = vmatprep.subr.bf16.mxu0 0
    %7891 = vmatpush1.bf16.msra.mxu0 0
    %7892 = vmatprep.subr.bf16.mxu0 0
    %7893 = vmatpush1.bf16.msra.mxu0 0
    %7894 = vmatprep.subr.bf16.mxu0 0
    %7895 = vmatpush1.bf16.msra.mxu0 0
    %7896 = vmatprep.subr.bf16.mxu0 0
    %7897 = vmatpush1.bf16.msra.mxu0 0
    %7898 = vmatprep.subr.bf16.mxu0 0
    %7899 = vmatpush1.bf16.msra.mxu0 0
    %7900 = vmatprep.subr.bf16.mxu0 0
    %7901 = vmatpush1.bf16.msra.mxu0 0
    %7902 = vmatprep.subr.bf16.mxu0 0
    %7903 = vmatpush1.bf16.msra.mxu0 0
    %7904 = vmatprep.subr.bf16.mxu0 0
    %7905 = vmatpush1.bf16.msra.mxu0 0
    %7906 = vmatprep.subr.bf16.mxu0 0
    %7907 = vmatpush1.bf16.msra.mxu0 0
    %7908 = vmatprep.subr.bf16.mxu0 0
    %7909 = vmatpush1.bf16.msra.mxu0 0
    %7910 = vmatprep.subr.bf16.mxu0 0
    %7911 = vmatpush1.bf16.msra.mxu0 0
    %7912 = vmatprep.mubr.bf16.mxu0 0
    %7913 = vmatmul.mubr.bf16.gmra.mrb[0].mxu0 %v7878
    %v7914 = vpop.f32.mrb[0].mxu0
    %v7915 = vadd.f32 %v7852, %v7914
    %v7916 = vpop.f32.mrb[0].mxu0
    %v7917 = vpop.f32.mrb[0].mxu0
    %v7918 = vpop.f32.mrb[0].mxu0
    %7919 = vdwg.mxu0
    %v7920 = vmax.f32 %v7915, 0.0
    %v7921 = vpack.c.bf16 %v7920, %v7920
    %s7922 = scalar_lea.vmem %s6, 256
    %v7923 = vld [vmem:[%s7922] sm:$0xf]
    %v7924 = vld [vmem:[%s7922 + $0x4] sm:$0xf]
    %v7925 = vld [vmem:[%s7922 + $0x8] sm:$0xf]
    %v7926 = vld [vmem:[%s7922 + $0xc] sm:$0xf]
    %v7927 = vld [vmem:[%s7922 + $0x10] sm:$0xf]
    %v7928 = vld [vmem:[%s7922 + $0x14] sm:$0xf]
    %v7929 = vld [vmem:[%s7922 + $0x18] sm:$0xf]
    %v7930 = vld [vmem:[%s7922 + $0x1c] sm:$0xf]
    %v7931 = vld [vmem:[%s7922 + $0x20] sm:$0xf]
    %v7932 = vld [vmem:[%s7922 + $0x24] sm:$0xf]
    %v7933 = vld [vmem:[%s7922 + $0x28] sm:$0xf]
    %v7934 = vld [vmem:[%s7922 + $0x2c] sm:$0xf]
    %v7935 = vld [vmem:[%s7922 + $0x30] sm:$0xf]
    %v7936 = vld [vmem:[%s7922 + $0x34] sm:$0xf]
    %v7937 = vld [vmem:[%s7922 + $0x38] sm:$0xf]
    %v7938 = vld [vmem:[%s7922 + $0x3c] sm:$0xf]
    %v7939 = vlaneseq
    %v7940 = vshrl.u32 %v7939, 7
    %v7941 = vsub.s32 1, %v7940
    %v7942 = vrot.slane %v7814, %v7941
    %v7959 = vunpack.c.l.b16 %v7923
    %v7960 = vunpack.c.l.b16 %v7924
    %v7961 = vunpack.c.l.b16 %v7925
    %v7962 = vunpack.c.l.b16 %v7926
    %v7963 = vunpack.c.l.b16 %v7927
    %v7964 = vunpack.c.l.b16 %v7928
    %v7965 = vunpack.c.l.b16 %v7929
    %v7966 = vunpack.c.l.b16 %v7930
    %v7967 = vunpack.c.l.b16 %v7931
    %v7968 = vunpack.c.l.b16 %v7932
    %v7969 = vunpack.c.l.b16 %v7933
    %v7970 = vunpack.c.l.b16 %v7934
    %v7971 = vunpack.c.l.b16 %v7935
    %v7972 = vunpack.c.l.b16 %v7936
    %v7973 = vunpack.c.l.b16 %v7937
    %v7974 = vunpack.c.l.b16 %v7938
    %v7975 = vpack.c.b16 %v7960, %v7959
    %v7976 = vpack.c.b16 %v7962, %v7961
    %v7977 = vpack.c.b16 %v7964, %v7963
    %v7978 = vpack.c.b16 %v7966, %v7965
    %v7979 = vpack.c.b16 %v7968, %v7967
    %v7980 = vpack.c.b16 %v7970, %v7969
    %v7981 = vpack.c.b16 %v7972, %v7971
    %v7982 = vpack.c.b16 %v7974, %v7973
    %7991 = vmatprep.subr.bf16.mxu0 0
    %7992 = vmatpush1.bf16.msra.mxu0 %v7975
    %7993 = vmatprep.subr.bf16.mxu0 0
    %7994 = vmatpush1.bf16.msra.mxu0 %v7976
    %7995 = vmatprep.subr.bf16.mxu0 0
    %7996 = vmatpush1.bf16.msra.mxu0 %v7977
    %7997 = vmatprep.subr.bf16.mxu0 0
    %7998 = vmatpush1.bf16.msra.mxu0 %v7978
    %7999 = vmatprep.subr.bf16.mxu0 0
    %8000 = vmatpush1.bf16.msra.mxu0 %v7979
    %8001 = vmatprep.subr.bf16.mxu0 0
    %8002 = vmatpush1.bf16.msra.mxu0 %v7980
    %8003 = vmatprep.subr.bf16.mxu0 0
    %8004 = vmatpush1.bf16.msra.mxu0 %v7981
    %8005 = vmatprep.subr.bf16.mxu0 0
    %8006 = vmatpush1.bf16.msra.mxu0 %v7982
    %8007 = vmatprep.subr.bf16.mxu0 0
    %8008 = vmatpush1.bf16.msra.mxu0 0
    %8009 = vmatprep.subr.bf16.mxu0 0
    %8010 = vmatpush1.bf16.msra.mxu0 0
    %8011 = vmatprep.subr.bf16.mxu0 0
    %8012 = vmatpush1.bf16.msra.mxu0 0
    %8013 = vmatprep.subr.bf16.mxu0 0
    %8014 = vmatpush1.bf16.msra.mxu0 0
    %8015 = vmatprep.subr.bf16.mxu0 0
    %8016 = vmatpush1.bf16.msra.mxu0 0
    %8017 = vmatprep.subr.bf16.mxu0 0
    %8018 = vmatpush1.bf16.msra.mxu0 0
    %8019 = vmatprep.subr.bf16.mxu0 0
    %8020 = vmatpush1.bf16.msra.mxu0 0
    %8021 = vmatprep.subr.bf16.mxu0 0
    %8022 = vmatpush1.bf16.msra.mxu0 0
    %8023 = vmatprep.mubr.bf16.mxu0 0
    %8024 = vmatmul.mubr.bf16.gmra.mrb[0].mxu0 %v7921
    %v8025 = vpop.f32.mrb[0].mxu0
    %v8026 = vadd.f32 %v7942, %v8025
    %v8027 = vpop.f32.mrb[0].mxu0
    %v8028 = vpop.f32.mrb[0].mxu0
    %v8029 = vpop.f32.mrb[0].mxu0
    %8030 = vdwg.mxu0
    %8031 = vst [vmem:[#allocation8] sm:$0x3] %v8026
    // Predicated region
    $region50: #{tpu_custom_call.1} parent=1 // pred_check
      _
    $region51: #{tpu_custom_call.1} parent=1 // pred_check_branch
      %8033 = sbr.rel (0) target = $region53
    $region52: #{tpu_custom_call.1} parent=1 // pred_region
      %s8035 = ssub.s32 32, 32
      %8036 = vsyncadd [#allocation4], %s8035
      %s8038 = sshll.u32 [#allocation8], 4
      %s8039 = int_to_ptr.vmem [resolvable:$true] %s8038
      %8041 = dma.vmem_to_hbm [thread:$0]  %s8039, 32, %s9, [#allocation4]
    $region53: #{tpu_custom_call.1} parent=1 // pred_fallthru
      _
    // Predicated region
    $region54: #{tpu_custom_call.1} parent=1 // pred_check
      _
    $region55: #{tpu_custom_call.1} parent=1 // pred_check_branch
      %8043 = sbr.rel (0) target = $region57
    $region56: #{tpu_custom_call.1} parent=1 // pred_region
      %8044 = dma.done [#allocation4], 32
    $region57: #{tpu_custom_call.1} parent=1 // pred_fallthru
      _
    %8045 = vsyncpa [#allocation3], 1
    %8046 = vsyncpa [#allocation6], 1
    %8047 = vsyncpa [#allocation4], 1

</llo_original>
